<compile_context>
chip_gen: v7x
topology: tpu7x:2x2x1
jax: 0.10.0
libtpu: 0.0.40
codegen_flags: <defaults>
</compile_context>

<pallas_src>
import math
import jax
import jax.numpy as jnp
from jax.experimental import pallas as pl
from jax.experimental.pallas import tpu as pltpu

# ---------------- model hyper-parameters (small, deterministic) ----------------
VOCAB = 64
D = 32           # d_model
H = 4            # num_heads
DH = D // H      # head dim
DFF = 64         # d_ff
LAYERS = 2       # num_layers
SEQ = 16         # seq_len
BATCH = 2
NUM_TRACKS = 4
MAX_POS = 128
LN_EPS = 1e-5    # nn.LayerNorm default
SLAB = 128       # packed lane-dense output width: [0:VOCAB)=logits, [VOCAB:VOCAB+D)=hidden


# ---------------------------- kernel helpers ----------------------------------
def _layernorm(x, w, b):
    # torch.nn.LayerNorm: biased variance, eps inside the sqrt
    mu = jnp.mean(x, axis=-1, keepdims=True)
    d = x - mu
    var = jnp.mean(d * d, axis=-1, keepdims=True)
    return d * jax.lax.rsqrt(var + LN_EPS) * w + b


def _gelu_tanh(x):
    # tanh approximation (runs on the EUP slot). torch.nn.GELU() default is the
    # exact erf form; deviation is ~1e-3 absolute at these magnitudes.
    c = math.sqrt(2.0 / math.pi)
    return 0.5 * x * (1.0 + jnp.tanh(c * (x + 0.044715 * x * x * x)))


# ------------------------- fused full-model kernel -----------------------------
def fused_kernel(ids_ref, trk_ref,                       # scalar-prefetch (SMEM)
                 tok_ref, trkemb_ref, pos_ref,           # embedding tables (VMEM)
                 ln1w, ln1b, wq, bq, wk, bk, wv, bv, wo, bo,
                 ln2w, ln2b, w1, b1, w2, b2,
                 flnw, flnb, wslab,
                 out_ref,                                 # [SEQ, 128] packed output
                 emb_scratch):                            # [SEQ, D] VMEM scratch
    b = pl.program_id(0)

    # ---- fused embeddings: token gather + track gather, vectorized position add ----
    # Tables are stored [n, 1, D] so the gather indexes a leading (untiled) axis.
    for s in range(SEQ):                                  # static unroll, SEQ=16
        tid = ids_ref[b, s]
        trk = jnp.clip(trk_ref[b, s], 0, NUM_TRACKS - 1)  # torch.clamp semantics
        emb_scratch[pl.ds(s, 1), :] = tok_ref[tid] + trkemb_ref[trk]
    x = emb_scratch[...] + pos_ref[...]                   # [SEQ, D]
    # self.dropout: identity in eval mode

    # ---- transformer layers (statically unrolled; weights read once each) ----
    for l in range(LAYERS):
        # --- self-attention sub-layer (pre-norm residual) ---
        xn = _layernorm(x, ln1w[l], ln1b[l])              # [SEQ, D]
        head_sum = None
        for h in range(H):                                # head-major weights: plain 2-D dots
            q = jnp.dot(xn, wq[l, h], preferred_element_type=jnp.float32) + bq[l, h]  # [S, DH]
            k = jnp.dot(xn, wk[l, h], preferred_element_type=jnp.float32) + bk[l, h]
            v = jnp.dot(xn, wv[l, h], preferred_element_type=jnp.float32) + bv[l, h]
            s_ = jnp.dot(q, k.T, preferred_element_type=jnp.float32)      # [S, S]; 1/sqrt(DH) folded into wq/bq
            s_ = s_ - jnp.max(s_, axis=-1, keepdims=True)
            p = jnp.exp(s_)
            p = p / jnp.sum(p, axis=-1, keepdims=True)                    # exact softmax (torch parity)
            o = jnp.dot(p, v, preferred_element_type=jnp.float32)         # [S, DH]
            hp = jnp.dot(o, wo[l, h], preferred_element_type=jnp.float32) # [S, D]
            head_sum = hp if head_sum is None else head_sum + hp
        x = x + head_sum + bo[l]

        # --- feed-forward sub-layer (pre-norm residual) ---
        xn2 = _layernorm(x, ln2w[l], ln2b[l])
        hff = _gelu_tanh(jnp.dot(xn2, w1[l], preferred_element_type=jnp.float32) + b1[l])  # [S, DFF]
        x = x + jnp.dot(hff, w2[l], preferred_element_type=jnp.float32) + b2[l]

    # ---- final norm + packed (logits | hidden) lane-dense output ----
    # wslab = [lm_head_w | I_D | 0] so one matmul produces logits (cols 0:64) and
    # an exact copy of the final-norm hidden state (cols 64:96) in one 128-lane slab.
    xf = _layernorm(x, flnw[...], flnb[...])
    out_ref[...] = jnp.dot(xf, wslab[...], preferred_element_type=jnp.float32)   # [SEQ, 128]


# ------------------------------ pallas wrapper ----------------------------------
FUSED_WEIGHT_KEYS = ("token_emb3", "track_emb3", "pos_emb",
                     "ln1_w", "ln1_b", "w_q", "b_q", "w_k", "b_k", "w_v", "b_v",
                     "w_o", "b_o", "ln2_w", "ln2_b",
                     "w_ff1", "b_ff1", "w_ff2", "b_ff2",
                     "final_ln_w", "final_ln_b", "w_slab")


def _bcast_spec(shape):
    nd = len(shape)
    # broadcast across the batch grid axis; index_maps receive (b, ids_ref, trk_ref)
    return pl.BlockSpec(shape, lambda b, ids, trk, _nd=nd: (0,) * _nd)


def museformer_fused(params, input_ids, track_ids):
    B, S = input_ids.shape
    weights = [params[k] for k in FUSED_WEIGHT_KEYS]

    in_specs = []
    for k, w in zip(FUSED_WEIGHT_KEYS, weights):
        if k == "pos_emb":
            # only rows [0, SEQ) are needed (clamp is a no-op for SEQ <= MAX_POS)
            in_specs.append(pl.BlockSpec((SEQ, D), lambda b, ids, trk: (0, 0)))
        else:
            in_specs.append(_bcast_spec(w.shape))

    out_spec = pl.BlockSpec((None, SEQ, SLAB), lambda b, ids, trk: (b, 0, 0))

    return pl.pallas_call(
        fused_kernel,
        out_shape=jax.ShapeDtypeStruct((B, S, SLAB), jnp.float32),
        grid_spec=pltpu.PrefetchScalarGridSpec(
            num_scalar_prefetch=2,          # input_ids, track_ids -> SMEM
            grid=(B,),                      # one batch element per step; parallel on v7x
            in_specs=in_specs,
            out_specs=out_spec,
            scratch_shapes=[pltpu.VMEM((SEQ, D), jnp.float32)],
        ),
        compiler_params=pltpu.CompilerParams(
            dimension_semantics=("parallel",)),
    )(input_ids, track_ids, *weights)


# ------------------------------- parameters -------------------------------------
def init_params(key):
    """Deterministic init mirroring _init_weights: normal(0, 0.02) weights,
    zero biases, LayerNorm weight=1 / bias=0.  Per-layer weights are stacked
    along a leading layer axis; Q/K/V/out-proj are stored head-major so the
    kernel never slices the lane dimension.  1/sqrt(DH) is folded into w_q/b_q."""
    keys = iter(jax.random.split(key, 16))

    def nrm(shape):
        return 0.02 * jax.random.normal(next(keys), shape, jnp.float32)

    ones = lambda s: jnp.ones(s, jnp.float32)
    zeros = lambda s: jnp.zeros(s, jnp.float32)
    scale = 1.0 / math.sqrt(DH)

    lm_head_w = nrm((D, VOCAB))
    # extended LM-head: [lm_head | identity | zeros] -> lane-dense 128-wide output slab
    w_slab = jnp.zeros((D, SLAB), jnp.float32)
    w_slab = w_slab.at[:, :VOCAB].set(lm_head_w)
    w_slab = w_slab.at[:, VOCAB:VOCAB + D].set(jnp.eye(D, dtype=jnp.float32))

    return {
        # embedding tables stored [n, 1, D] so the in-kernel gather indexes a leading axis
        "token_emb3": nrm((VOCAB, 1, D)),
        "track_emb3": nrm((NUM_TRACKS, 1, D)),   # track_embedding_dim == d_model (no projection)
        "pos_emb": nrm((MAX_POS, D)),
        # stacked transformer-layer weights  [LAYERS, ...]
        "ln1_w": ones((LAYERS, 1, D)), "ln1_b": zeros((LAYERS, 1, D)),
        "w_q": nrm((LAYERS, H, D, DH)) * scale,  # attention scale folded in
        "b_q": zeros((LAYERS, H, 1, DH)),        # (scale fold applies to bias too; zero anyway)
        "w_k": nrm((LAYERS, H, D, DH)), "b_k": zeros((LAYERS, H, 1, DH)),
        "w_v": nrm((LAYERS, H, D, DH)), "b_v": zeros((LAYERS, H, 1, DH)),
        "w_o": nrm((LAYERS, H, DH, D)), "b_o": zeros((LAYERS, 1, D)),
        "ln2_w": ones((LAYERS, 1, D)), "ln2_b": zeros((LAYERS, 1, D)),
        "w_ff1": nrm((LAYERS, D, DFF)), "b_ff1": zeros((LAYERS, 1, DFF)),
        "w_ff2": nrm((LAYERS, DFF, D)), "b_ff2": zeros((LAYERS, 1, D)),
        # final norm + LM head (no bias)
        "final_ln_w": ones((1, D)), "final_ln_b": zeros((1, D)),
        "lm_head_w": lm_head_w,
        "w_slab": w_slab,
    }


# ------------------------------- forward pass -----------------------------------
def museformer_forward(params, input_ids, track_ids=None, attention_mask=None):
    # TODO(synk): attention_mask / key_padding_mask path not implemented (None here)
    if track_ids is None:
        track_ids = jnp.zeros_like(input_ids)
        params = dict(params, track_emb3=jnp.zeros_like(params["track_emb3"]))

    slab = museformer_fused(params,
                            input_ids.astype(jnp.int32),
                            track_ids.astype(jnp.int32))   # [B, S, 128]
    logits = slab[..., :VOCAB]                              # [B, S, VOCAB]
    last_hidden = slab[..., VOCAB:VOCAB + D]                # [B, S, D]
    # TODO(synk): labels/CrossEntropyLoss path and generate() sampling loop not implemented
    return last_hidden, logits


# ----------------------------------- main ----------------------------------------
if __name__ == "__main__":
    key = jax.random.PRNGKey(0)
    kp, ki, kt = jax.random.split(key, 3)
    params = init_params(kp)

    input_ids = jax.random.randint(ki, (BATCH, SEQ), 0, VOCAB, dtype=jnp.int32)
    track_ids = jax.random.randint(kt, (BATCH, SEQ), 0, NUM_TRACKS, dtype=jnp.int32)

    last_hidden, logits = museformer_forward(params, input_ids, track_ids)
    jax.block_until_ready((last_hidden, logits))

    assert last_hidden.shape == (BATCH, SEQ, D)
    assert logits.shape == (BATCH, SEQ, VOCAB)
    print("KERNEL_OK")
</pallas_src>

<mosaic_0001>
module attributes {stable_mosaic.version = 11 : i64} {
  func.func @fused_kernel(%arg0: i32, %arg1: memref<2x16xi32, #tpu.memory_space<smem>>, %arg2: memref<2x16xi32, #tpu.memory_space<smem>>, %arg3: memref<64x1x32xf32, #tpu.memory_space<vmem>>, %arg4: memref<4x1x32xf32, #tpu.memory_space<vmem>>, %arg5: memref<16x32xf32, #tpu.memory_space<vmem>>, %arg6: memref<2x1x32xf32, #tpu.memory_space<vmem>>, %arg7: memref<2x1x32xf32, #tpu.memory_space<vmem>>, %arg8: memref<2x4x32x8xf32, #tpu.memory_space<vmem>>, %arg9: memref<2x4x1x8xf32, #tpu.memory_space<vmem>>, %arg10: memref<2x4x32x8xf32, #tpu.memory_space<vmem>>, %arg11: memref<2x4x1x8xf32, #tpu.memory_space<vmem>>, %arg12: memref<2x4x32x8xf32, #tpu.memory_space<vmem>>, %arg13: memref<2x4x1x8xf32, #tpu.memory_space<vmem>>, %arg14: memref<2x4x8x32xf32, #tpu.memory_space<vmem>>, %arg15: memref<2x1x32xf32, #tpu.memory_space<vmem>>, %arg16: memref<2x1x32xf32, #tpu.memory_space<vmem>>, %arg17: memref<2x1x32xf32, #tpu.memory_space<vmem>>, %arg18: memref<2x32x64xf32, #tpu.memory_space<vmem>>, %arg19: memref<2x1x64xf32, #tpu.memory_space<vmem>>, %arg20: memref<2x64x32xf32, #tpu.memory_space<vmem>>, %arg21: memref<2x1x32xf32, #tpu.memory_space<vmem>>, %arg22: memref<1x32xf32, #tpu.memory_space<vmem>>, %arg23: memref<1x32xf32, #tpu.memory_space<vmem>>, %arg24: memref<32x128xf32, #tpu.memory_space<vmem>>, %arg25: memref<1x16x128xf32, #tpu.memory_space<vmem>>, %arg26: memref<16x32xf32, #tpu.memory_space<vmem>>) attributes {dimension_semantics = [#tpu.dimension_semantics<parallel>], iteration_bounds = array<i64: 2>, scalar_prefetch = 2 : i64, scratch_operands = 1 : i64, tpu.core_type = #tpu.core_type<tc>, window_params = [{pipeline_mode = #tpu.pipeline_mode<synchronous>, transform_indices = @transform_0, window_bounds = array<i64: 64, 1, 32>}, {pipeline_mode = #tpu.pipeline_mode<synchronous>, transform_indices = @transform_1, window_bounds = array<i64: 4, 1, 32>}, {transform_indices = @transform_2, window_bounds = array<i64: 16, 32>}, {pipeline_mode = #tpu.pipeline_mode<synchronous>, transform_indices = @transform_3, window_bounds = array<i64: 2, 1, 32>}, {pipeline_mode = #tpu.pipeline_mode<synchronous>, transform_indices = @transform_4, window_bounds = array<i64: 2, 1, 32>}, {pipeline_mode = #tpu.pipeline_mode<synchronous>, transform_indices = @transform_5, window_bounds = array<i64: 2, 4, 32, 8>}, {pipeline_mode = #tpu.pipeline_mode<synchronous>, transform_indices = @transform_6, window_bounds = array<i64: 2, 4, 1, 8>}, {pipeline_mode = #tpu.pipeline_mode<synchronous>, transform_indices = @transform_7, window_bounds = array<i64: 2, 4, 32, 8>}, {pipeline_mode = #tpu.pipeline_mode<synchronous>, transform_indices = @transform_8, window_bounds = array<i64: 2, 4, 1, 8>}, {pipeline_mode = #tpu.pipeline_mode<synchronous>, transform_indices = @transform_9, window_bounds = array<i64: 2, 4, 32, 8>}, {pipeline_mode = #tpu.pipeline_mode<synchronous>, transform_indices = @transform_10, window_bounds = array<i64: 2, 4, 1, 8>}, {pipeline_mode = #tpu.pipeline_mode<synchronous>, transform_indices = @transform_11, window_bounds = array<i64: 2, 4, 8, 32>}, {pipeline_mode = #tpu.pipeline_mode<synchronous>, transform_indices = @transform_12, window_bounds = array<i64: 2, 1, 32>}, {pipeline_mode = #tpu.pipeline_mode<synchronous>, transform_indices = @transform_13, window_bounds = array<i64: 2, 1, 32>}, {pipeline_mode = #tpu.pipeline_mode<synchronous>, transform_indices = @transform_14, window_bounds = array<i64: 2, 1, 32>}, {pipeline_mode = #tpu.pipeline_mode<synchronous>, transform_indices = @transform_15, window_bounds = array<i64: 2, 32, 64>}, {pipeline_mode = #tpu.pipeline_mode<synchronous>, transform_indices = @transform_16, window_bounds = array<i64: 2, 1, 64>}, {pipeline_mode = #tpu.pipeline_mode<synchronous>, transform_indices = @transform_17, window_bounds = array<i64: 2, 64, 32>}, {pipeline_mode = #tpu.pipeline_mode<synchronous>, transform_indices = @transform_18, window_bounds = array<i64: 2, 1, 32>}, {pipeline_mode = #tpu.pipeline_mode<synchronous>, transform_indices = @transform_19, window_bounds = array<i64: 1, 32>}, {pipeline_mode = #tpu.pipeline_mode<synchronous>, transform_indices = @transform_20, window_bounds = array<i64: 1, 32>}, {pipeline_mode = #tpu.pipeline_mode<synchronous>, transform_indices = @transform_21, window_bounds = array<i64: 32, 128>}, {transform_indices = @transform_22, window_bounds = array<i64: 1, 16, 128>}]} {
    %0 = arith.index_cast %arg0 : i32 to index
    %c0 = arith.constant 0 : index
    %1 = memref.load %arg1[%0, %c0] : memref<2x16xi32, #tpu.memory_space<smem>>
    %2 = arith.index_cast %arg0 : i32 to index
    %c0_0 = arith.constant 0 : index
    %3 = memref.load %arg2[%2, %c0_0] : memref<2x16xi32, #tpu.memory_space<smem>>
    %c0_i32 = arith.constant 0 : i32
    %c3_i32 = arith.constant 3 : i32
    %4 = arith.maxsi %c0_i32, %3 : i32
    %5 = arith.minsi %c3_i32, %4 : i32
    %6 = arith.index_cast %1 : i32 to index
    %c0_1 = arith.constant 0 : index
    %c0_2 = arith.constant 0 : index
    %7 = vector.load %arg3[%6, %c0_1, %c0_2] : memref<64x1x32xf32, #tpu.memory_space<vmem>>, vector<1x1x32xf32>
    %8 = vector.shape_cast %7 : vector<1x1x32xf32> to vector<1x32xf32>
    %9 = arith.index_cast %5 : i32 to index
    %c0_3 = arith.constant 0 : index
    %c0_4 = arith.constant 0 : index
    %10 = vector.load %arg4[%9, %c0_3, %c0_4] : memref<4x1x32xf32, #tpu.memory_space<vmem>>, vector<1x1x32xf32>
    %11 = vector.shape_cast %10 : vector<1x1x32xf32> to vector<1x32xf32>
    %12 = arith.addf %8, %11 : vector<1x32xf32>
    %c0_5 = arith.constant 0 : index
    %c0_6 = arith.constant 0 : index
    %13 = vector.load %arg26[%c0_5, %c0_6] : memref<16x32xf32, #tpu.memory_space<vmem>>, vector<1x32xf32>
    tpu.vector_store %arg26[%c0_5, %c0_6], %12 {strides = array<i32>} : memref<16x32xf32, #tpu.memory_space<vmem>>, vector<1x32xf32>,
    %14 = arith.index_cast %arg0 : i32 to index
    %c1 = arith.constant 1 : index
    %15 = memref.load %arg1[%14, %c1] : memref<2x16xi32, #tpu.memory_space<smem>>
    %16 = arith.index_cast %arg0 : i32 to index
    %c1_7 = arith.constant 1 : index
    %17 = memref.load %arg2[%16, %c1_7] : memref<2x16xi32, #tpu.memory_space<smem>>
    %c0_i32_8 = arith.constant 0 : i32
    %c3_i32_9 = arith.constant 3 : i32
    %18 = arith.maxsi %c0_i32_8, %17 : i32
    %19 = arith.minsi %c3_i32_9, %18 : i32
    %20 = arith.index_cast %15 : i32 to index
    %c0_10 = arith.constant 0 : index
    %c0_11 = arith.constant 0 : index
    %21 = vector.load %arg3[%20, %c0_10, %c0_11] : memref<64x1x32xf32, #tpu.memory_space<vmem>>, vector<1x1x32xf32>
    %22 = vector.shape_cast %21 : vector<1x1x32xf32> to vector<1x32xf32>
    %23 = arith.index_cast %19 : i32 to index
    %c0_12 = arith.constant 0 : index
    %c0_13 = arith.constant 0 : index
    %24 = vector.load %arg4[%23, %c0_12, %c0_13] : memref<4x1x32xf32, #tpu.memory_space<vmem>>, vector<1x1x32xf32>
    %25 = vector.shape_cast %24 : vector<1x1x32xf32> to vector<1x32xf32>
    %26 = arith.addf %22, %25 : vector<1x32xf32>
    %c1_14 = arith.constant 1 : index
    %c0_15 = arith.constant 0 : index
    %27 = vector.load %arg26[%c1_14, %c0_15] : memref<16x32xf32, #tpu.memory_space<vmem>>, vector<1x32xf32>
    tpu.vector_store %arg26[%c1_14, %c0_15], %26 {strides = array<i32>} : memref<16x32xf32, #tpu.memory_space<vmem>>, vector<1x32xf32>,
    %28 = arith.index_cast %arg0 : i32 to index
    %c2 = arith.constant 2 : index
    %29 = memref.load %arg1[%28, %c2] : memref<2x16xi32, #tpu.memory_space<smem>>
    %30 = arith.index_cast %arg0 : i32 to index
    %c2_16 = arith.constant 2 : index
    %31 = memref.load %arg2[%30, %c2_16] : memref<2x16xi32, #tpu.memory_space<smem>>
    %c0_i32_17 = arith.constant 0 : i32
    %c3_i32_18 = arith.constant 3 : i32
    %32 = arith.maxsi %c0_i32_17, %31 : i32
    %33 = arith.minsi %c3_i32_18, %32 : i32
    %34 = arith.index_cast %29 : i32 to index
    %c0_19 = arith.constant 0 : index
    %c0_20 = arith.constant 0 : index
    %35 = vector.load %arg3[%34, %c0_19, %c0_20] : memref<64x1x32xf32, #tpu.memory_space<vmem>>, vector<1x1x32xf32>
    %36 = vector.shape_cast %35 : vector<1x1x32xf32> to vector<1x32xf32>
    %37 = arith.index_cast %33 : i32 to index
    %c0_21 = arith.constant 0 : index
    %c0_22 = arith.constant 0 : index
    %38 = vector.load %arg4[%37, %c0_21, %c0_22] : memref<4x1x32xf32, #tpu.memory_space<vmem>>, vector<1x1x32xf32>
    %39 = vector.shape_cast %38 : vector<1x1x32xf32> to vector<1x32xf32>
    %40 = arith.addf %36, %39 : vector<1x32xf32>
    %c2_23 = arith.constant 2 : index
    %c0_24 = arith.constant 0 : index
    %41 = vector.load %arg26[%c2_23, %c0_24] : memref<16x32xf32, #tpu.memory_space<vmem>>, vector<1x32xf32>
    tpu.vector_store %arg26[%c2_23, %c0_24], %40 {strides = array<i32>} : memref<16x32xf32, #tpu.memory_space<vmem>>, vector<1x32xf32>,
    %42 = arith.index_cast %arg0 : i32 to index
    %c3 = arith.constant 3 : index
    %43 = memref.load %arg1[%42, %c3] : memref<2x16xi32, #tpu.memory_space<smem>>
    %44 = arith.index_cast %arg0 : i32 to index
    %c3_25 = arith.constant 3 : index
    %45 = memref.load %arg2[%44, %c3_25] : memref<2x16xi32, #tpu.memory_space<smem>>
    %c0_i32_26 = arith.constant 0 : i32
    %c3_i32_27 = arith.constant 3 : i32
    %46 = arith.maxsi %c0_i32_26, %45 : i32
    %47 = arith.minsi %c3_i32_27, %46 : i32
    %48 = arith.index_cast %43 : i32 to index
    %c0_28 = arith.constant 0 : index
    %c0_29 = arith.constant 0 : index
    %49 = vector.load %arg3[%48, %c0_28, %c0_29] : memref<64x1x32xf32, #tpu.memory_space<vmem>>, vector<1x1x32xf32>
    %50 = vector.shape_cast %49 : vector<1x1x32xf32> to vector<1x32xf32>
    %51 = arith.index_cast %47 : i32 to index
    %c0_30 = arith.constant 0 : index
    %c0_31 = arith.constant 0 : index
    %52 = vector.load %arg4[%51, %c0_30, %c0_31] : memref<4x1x32xf32, #tpu.memory_space<vmem>>, vector<1x1x32xf32>
    %53 = vector.shape_cast %52 : vector<1x1x32xf32> to vector<1x32xf32>
    %54 = arith.addf %50, %53 : vector<1x32xf32>
    %c3_32 = arith.constant 3 : index
    %c0_33 = arith.constant 0 : index
    %55 = vector.load %arg26[%c3_32, %c0_33] : memref<16x32xf32, #tpu.memory_space<vmem>>, vector<1x32xf32>
    tpu.vector_store %arg26[%c3_32, %c0_33], %54 {strides = array<i32>} : memref<16x32xf32, #tpu.memory_space<vmem>>, vector<1x32xf32>,
    %56 = arith.index_cast %arg0 : i32 to index
    %c4 = arith.constant 4 : index
    %57 = memref.load %arg1[%56, %c4] : memref<2x16xi32, #tpu.memory_space<smem>>
    %58 = arith.index_cast %arg0 : i32 to index
    %c4_34 = arith.constant 4 : index
    %59 = memref.load %arg2[%58, %c4_34] : memref<2x16xi32, #tpu.memory_space<smem>>
    %c0_i32_35 = arith.constant 0 : i32
    %c3_i32_36 = arith.constant 3 : i32
    %60 = arith.maxsi %c0_i32_35, %59 : i32
    %61 = arith.minsi %c3_i32_36, %60 : i32
    %62 = arith.index_cast %57 : i32 to index
    %c0_37 = arith.constant 0 : index
    %c0_38 = arith.constant 0 : index
    %63 = vector.load %arg3[%62, %c0_37, %c0_38] : memref<64x1x32xf32, #tpu.memory_space<vmem>>, vector<1x1x32xf32>
    %64 = vector.shape_cast %63 : vector<1x1x32xf32> to vector<1x32xf32>
    %65 = arith.index_cast %61 : i32 to index
    %c0_39 = arith.constant 0 : index
    %c0_40 = arith.constant 0 : index
    %66 = vector.load %arg4[%65, %c0_39, %c0_40] : memref<4x1x32xf32, #tpu.memory_space<vmem>>, vector<1x1x32xf32>
    %67 = vector.shape_cast %66 : vector<1x1x32xf32> to vector<1x32xf32>
    %68 = arith.addf %64, %67 : vector<1x32xf32>
    %c4_41 = arith.constant 4 : index
    %c0_42 = arith.constant 0 : index
    %69 = vector.load %arg26[%c4_41, %c0_42] : memref<16x32xf32, #tpu.memory_space<vmem>>, vector<1x32xf32>
    tpu.vector_store %arg26[%c4_41, %c0_42], %68 {strides = array<i32>} : memref<16x32xf32, #tpu.memory_space<vmem>>, vector<1x32xf32>,
    %70 = arith.index_cast %arg0 : i32 to index
    %c5 = arith.constant 5 : index
    %71 = memref.load %arg1[%70, %c5] : memref<2x16xi32, #tpu.memory_space<smem>>
    %72 = arith.index_cast %arg0 : i32 to index
    %c5_43 = arith.constant 5 : index
    %73 = memref.load %arg2[%72, %c5_43] : memref<2x16xi32, #tpu.memory_space<smem>>
    %c0_i32_44 = arith.constant 0 : i32
    %c3_i32_45 = arith.constant 3 : i32
    %74 = arith.maxsi %c0_i32_44, %73 : i32
    %75 = arith.minsi %c3_i32_45, %74 : i32
    %76 = arith.index_cast %71 : i32 to index
    %c0_46 = arith.constant 0 : index
    %c0_47 = arith.constant 0 : index
    %77 = vector.load %arg3[%76, %c0_46, %c0_47] : memref<64x1x32xf32, #tpu.memory_space<vmem>>, vector<1x1x32xf32>
    %78 = vector.shape_cast %77 : vector<1x1x32xf32> to vector<1x32xf32>
    %79 = arith.index_cast %75 : i32 to index
    %c0_48 = arith.constant 0 : index
    %c0_49 = arith.constant 0 : index
    %80 = vector.load %arg4[%79, %c0_48, %c0_49] : memref<4x1x32xf32, #tpu.memory_space<vmem>>, vector<1x1x32xf32>
    %81 = vector.shape_cast %80 : vector<1x1x32xf32> to vector<1x32xf32>
    %82 = arith.addf %78, %81 : vector<1x32xf32>
    %c5_50 = arith.constant 5 : index
    %c0_51 = arith.constant 0 : index
    %83 = vector.load %arg26[%c5_50, %c0_51] : memref<16x32xf32, #tpu.memory_space<vmem>>, vector<1x32xf32>
    tpu.vector_store %arg26[%c5_50, %c0_51], %82 {strides = array<i32>} : memref<16x32xf32, #tpu.memory_space<vmem>>, vector<1x32xf32>,
    %84 = arith.index_cast %arg0 : i32 to index
    %c6 = arith.constant 6 : index
    %85 = memref.load %arg1[%84, %c6] : memref<2x16xi32, #tpu.memory_space<smem>>
    %86 = arith.index_cast %arg0 : i32 to index
    %c6_52 = arith.constant 6 : index
    %87 = memref.load %arg2[%86, %c6_52] : memref<2x16xi32, #tpu.memory_space<smem>>
    %c0_i32_53 = arith.constant 0 : i32
    %c3_i32_54 = arith.constant 3 : i32
    %88 = arith.maxsi %c0_i32_53, %87 : i32
    %89 = arith.minsi %c3_i32_54, %88 : i32
    %90 = arith.index_cast %85 : i32 to index
    %c0_55 = arith.constant 0 : index
    %c0_56 = arith.constant 0 : index
    %91 = vector.load %arg3[%90, %c0_55, %c0_56] : memref<64x1x32xf32, #tpu.memory_space<vmem>>, vector<1x1x32xf32>
    %92 = vector.shape_cast %91 : vector<1x1x32xf32> to vector<1x32xf32>
    %93 = arith.index_cast %89 : i32 to index
    %c0_57 = arith.constant 0 : index
    %c0_58 = arith.constant 0 : index
    %94 = vector.load %arg4[%93, %c0_57, %c0_58] : memref<4x1x32xf32, #tpu.memory_space<vmem>>, vector<1x1x32xf32>
    %95 = vector.shape_cast %94 : vector<1x1x32xf32> to vector<1x32xf32>
    %96 = arith.addf %92, %95 : vector<1x32xf32>
    %c6_59 = arith.constant 6 : index
    %c0_60 = arith.constant 0 : index
    %97 = vector.load %arg26[%c6_59, %c0_60] : memref<16x32xf32, #tpu.memory_space<vmem>>, vector<1x32xf32>
    tpu.vector_store %arg26[%c6_59, %c0_60], %96 {strides = array<i32>} : memref<16x32xf32, #tpu.memory_space<vmem>>, vector<1x32xf32>,
    %98 = arith.index_cast %arg0 : i32 to index
    %c7 = arith.constant 7 : index
    %99 = memref.load %arg1[%98, %c7] : memref<2x16xi32, #tpu.memory_space<smem>>
    %100 = arith.index_cast %arg0 : i32 to index
    %c7_61 = arith.constant 7 : index
    %101 = memref.load %arg2[%100, %c7_61] : memref<2x16xi32, #tpu.memory_space<smem>>
    %c0_i32_62 = arith.constant 0 : i32
    %c3_i32_63 = arith.constant 3 : i32
    %102 = arith.maxsi %c0_i32_62, %101 : i32
    %103 = arith.minsi %c3_i32_63, %102 : i32
    %104 = arith.index_cast %99 : i32 to index
    %c0_64 = arith.constant 0 : index
    %c0_65 = arith.constant 0 : index
    %105 = vector.load %arg3[%104, %c0_64, %c0_65] : memref<64x1x32xf32, #tpu.memory_space<vmem>>, vector<1x1x32xf32>
    %106 = vector.shape_cast %105 : vector<1x1x32xf32> to vector<1x32xf32>
    %107 = arith.index_cast %103 : i32 to index
    %c0_66 = arith.constant 0 : index
    %c0_67 = arith.constant 0 : index
    %108 = vector.load %arg4[%107, %c0_66, %c0_67] : memref<4x1x32xf32, #tpu.memory_space<vmem>>, vector<1x1x32xf32>
    %109 = vector.shape_cast %108 : vector<1x1x32xf32> to vector<1x32xf32>
    %110 = arith.addf %106, %109 : vector<1x32xf32>
    %c7_68 = arith.constant 7 : index
    %c0_69 = arith.constant 0 : index
    %111 = vector.load %arg26[%c7_68, %c0_69] : memref<16x32xf32, #tpu.memory_space<vmem>>, vector<1x32xf32>
    tpu.vector_store %arg26[%c7_68, %c0_69], %110 {strides = array<i32>} : memref<16x32xf32, #tpu.memory_space<vmem>>, vector<1x32xf32>,
    %112 = arith.index_cast %arg0 : i32 to index
    %c8 = arith.constant 8 : index
    %113 = memref.load %arg1[%112, %c8] : memref<2x16xi32, #tpu.memory_space<smem>>
    %114 = arith.index_cast %arg0 : i32 to index
    %c8_70 = arith.constant 8 : index
    %115 = memref.load %arg2[%114, %c8_70] : memref<2x16xi32, #tpu.memory_space<smem>>
    %c0_i32_71 = arith.constant 0 : i32
    %c3_i32_72 = arith.constant 3 : i32
    %116 = arith.maxsi %c0_i32_71, %115 : i32
    %117 = arith.minsi %c3_i32_72, %116 : i32
    %118 = arith.index_cast %113 : i32 to index
    %c0_73 = arith.constant 0 : index
    %c0_74 = arith.constant 0 : index
    %119 = vector.load %arg3[%118, %c0_73, %c0_74] : memref<64x1x32xf32, #tpu.memory_space<vmem>>, vector<1x1x32xf32>
    %120 = vector.shape_cast %119 : vector<1x1x32xf32> to vector<1x32xf32>
    %121 = arith.index_cast %117 : i32 to index
    %c0_75 = arith.constant 0 : index
    %c0_76 = arith.constant 0 : index
    %122 = vector.load %arg4[%121, %c0_75, %c0_76] : memref<4x1x32xf32, #tpu.memory_space<vmem>>, vector<1x1x32xf32>
    %123 = vector.shape_cast %122 : vector<1x1x32xf32> to vector<1x32xf32>
    %124 = arith.addf %120, %123 : vector<1x32xf32>
    %c8_77 = arith.constant 8 : index
    %c0_78 = arith.constant 0 : index
    %125 = vector.load %arg26[%c8_77, %c0_78] : memref<16x32xf32, #tpu.memory_space<vmem>>, vector<1x32xf32>
    tpu.vector_store %arg26[%c8_77, %c0_78], %124 {strides = array<i32>} : memref<16x32xf32, #tpu.memory_space<vmem>>, vector<1x32xf32>,
    %126 = arith.index_cast %arg0 : i32 to index
    %c9 = arith.constant 9 : index
    %127 = memref.load %arg1[%126, %c9] : memref<2x16xi32, #tpu.memory_space<smem>>
    %128 = arith.index_cast %arg0 : i32 to index
    %c9_79 = arith.constant 9 : index
    %129 = memref.load %arg2[%128, %c9_79] : memref<2x16xi32, #tpu.memory_space<smem>>
    %c0_i32_80 = arith.constant 0 : i32
    %c3_i32_81 = arith.constant 3 : i32
    %130 = arith.maxsi %c0_i32_80, %129 : i32
    %131 = arith.minsi %c3_i32_81, %130 : i32
    %132 = arith.index_cast %127 : i32 to index
    %c0_82 = arith.constant 0 : index
    %c0_83 = arith.constant 0 : index
    %133 = vector.load %arg3[%132, %c0_82, %c0_83] : memref<64x1x32xf32, #tpu.memory_space<vmem>>, vector<1x1x32xf32>
    %134 = vector.shape_cast %133 : vector<1x1x32xf32> to vector<1x32xf32>
    %135 = arith.index_cast %131 : i32 to index
    %c0_84 = arith.constant 0 : index
    %c0_85 = arith.constant 0 : index
    %136 = vector.load %arg4[%135, %c0_84, %c0_85] : memref<4x1x32xf32, #tpu.memory_space<vmem>>, vector<1x1x32xf32>
    %137 = vector.shape_cast %136 : vector<1x1x32xf32> to vector<1x32xf32>
    %138 = arith.addf %134, %137 : vector<1x32xf32>
    %c9_86 = arith.constant 9 : index
    %c0_87 = arith.constant 0 : index
    %139 = vector.load %arg26[%c9_86, %c0_87] : memref<16x32xf32, #tpu.memory_space<vmem>>, vector<1x32xf32>
    tpu.vector_store %arg26[%c9_86, %c0_87], %138 {strides = array<i32>} : memref<16x32xf32, #tpu.memory_space<vmem>>, vector<1x32xf32>,
    %140 = arith.index_cast %arg0 : i32 to index
    %c10 = arith.constant 10 : index
    %141 = memref.load %arg1[%140, %c10] : memref<2x16xi32, #tpu.memory_space<smem>>
    %142 = arith.index_cast %arg0 : i32 to index
    %c10_88 = arith.constant 10 : index
    %143 = memref.load %arg2[%142, %c10_88] : memref<2x16xi32, #tpu.memory_space<smem>>
    %c0_i32_89 = arith.constant 0 : i32
    %c3_i32_90 = arith.constant 3 : i32
    %144 = arith.maxsi %c0_i32_89, %143 : i32
    %145 = arith.minsi %c3_i32_90, %144 : i32
    %146 = arith.index_cast %141 : i32 to index
    %c0_91 = arith.constant 0 : index
    %c0_92 = arith.constant 0 : index
    %147 = vector.load %arg3[%146, %c0_91, %c0_92] : memref<64x1x32xf32, #tpu.memory_space<vmem>>, vector<1x1x32xf32>
    %148 = vector.shape_cast %147 : vector<1x1x32xf32> to vector<1x32xf32>
    %149 = arith.index_cast %145 : i32 to index
    %c0_93 = arith.constant 0 : index
    %c0_94 = arith.constant 0 : index
    %150 = vector.load %arg4[%149, %c0_93, %c0_94] : memref<4x1x32xf32, #tpu.memory_space<vmem>>, vector<1x1x32xf32>
    %151 = vector.shape_cast %150 : vector<1x1x32xf32> to vector<1x32xf32>
    %152 = arith.addf %148, %151 : vector<1x32xf32>
    %c10_95 = arith.constant 10 : index
    %c0_96 = arith.constant 0 : index
    %153 = vector.load %arg26[%c10_95, %c0_96] : memref<16x32xf32, #tpu.memory_space<vmem>>, vector<1x32xf32>
    tpu.vector_store %arg26[%c10_95, %c0_96], %152 {strides = array<i32>} : memref<16x32xf32, #tpu.memory_space<vmem>>, vector<1x32xf32>,
    %154 = arith.index_cast %arg0 : i32 to index
    %c11 = arith.constant 11 : index
    %155 = memref.load %arg1[%154, %c11] : memref<2x16xi32, #tpu.memory_space<smem>>
    %156 = arith.index_cast %arg0 : i32 to index
    %c11_97 = arith.constant 11 : index
    %157 = memref.load %arg2[%156, %c11_97] : memref<2x16xi32, #tpu.memory_space<smem>>
    %c0_i32_98 = arith.constant 0 : i32
    %c3_i32_99 = arith.constant 3 : i32
    %158 = arith.maxsi %c0_i32_98, %157 : i32
    %159 = arith.minsi %c3_i32_99, %158 : i32
    %160 = arith.index_cast %155 : i32 to index
    %c0_100 = arith.constant 0 : index
    %c0_101 = arith.constant 0 : index
    %161 = vector.load %arg3[%160, %c0_100, %c0_101] : memref<64x1x32xf32, #tpu.memory_space<vmem>>, vector<1x1x32xf32>
    %162 = vector.shape_cast %161 : vector<1x1x32xf32> to vector<1x32xf32>
    %163 = arith.index_cast %159 : i32 to index
    %c0_102 = arith.constant 0 : index
    %c0_103 = arith.constant 0 : index
    %164 = vector.load %arg4[%163, %c0_102, %c0_103] : memref<4x1x32xf32, #tpu.memory_space<vmem>>, vector<1x1x32xf32>
    %165 = vector.shape_cast %164 : vector<1x1x32xf32> to vector<1x32xf32>
    %166 = arith.addf %162, %165 : vector<1x32xf32>
    %c11_104 = arith.constant 11 : index
    %c0_105 = arith.constant 0 : index
    %167 = vector.load %arg26[%c11_104, %c0_105] : memref<16x32xf32, #tpu.memory_space<vmem>>, vector<1x32xf32>
    tpu.vector_store %arg26[%c11_104, %c0_105], %166 {strides = array<i32>} : memref<16x32xf32, #tpu.memory_space<vmem>>, vector<1x32xf32>,
    %168 = arith.index_cast %arg0 : i32 to index
    %c12 = arith.constant 12 : index
    %169 = memref.load %arg1[%168, %c12] : memref<2x16xi32, #tpu.memory_space<smem>>
    %170 = arith.index_cast %arg0 : i32 to index
    %c12_106 = arith.constant 12 : index
    %171 = memref.load %arg2[%170, %c12_106] : memref<2x16xi32, #tpu.memory_space<smem>>
    %c0_i32_107 = arith.constant 0 : i32
    %c3_i32_108 = arith.constant 3 : i32
    %172 = arith.maxsi %c0_i32_107, %171 : i32
    %173 = arith.minsi %c3_i32_108, %172 : i32
    %174 = arith.index_cast %169 : i32 to index
    %c0_109 = arith.constant 0 : index
    %c0_110 = arith.constant 0 : index
    %175 = vector.load %arg3[%174, %c0_109, %c0_110] : memref<64x1x32xf32, #tpu.memory_space<vmem>>, vector<1x1x32xf32>
    %176 = vector.shape_cast %175 : vector<1x1x32xf32> to vector<1x32xf32>
    %177 = arith.index_cast %173 : i32 to index
    %c0_111 = arith.constant 0 : index
    %c0_112 = arith.constant 0 : index
    %178 = vector.load %arg4[%177, %c0_111, %c0_112] : memref<4x1x32xf32, #tpu.memory_space<vmem>>, vector<1x1x32xf32>
    %179 = vector.shape_cast %178 : vector<1x1x32xf32> to vector<1x32xf32>
    %180 = arith.addf %176, %179 : vector<1x32xf32>
    %c12_113 = arith.constant 12 : index
    %c0_114 = arith.constant 0 : index
    %181 = vector.load %arg26[%c12_113, %c0_114] : memref<16x32xf32, #tpu.memory_space<vmem>>, vector<1x32xf32>
    tpu.vector_store %arg26[%c12_113, %c0_114], %180 {strides = array<i32>} : memref<16x32xf32, #tpu.memory_space<vmem>>, vector<1x32xf32>,
    %182 = arith.index_cast %arg0 : i32 to index
    %c13 = arith.constant 13 : index
    %183 = memref.load %arg1[%182, %c13] : memref<2x16xi32, #tpu.memory_space<smem>>
    %184 = arith.index_cast %arg0 : i32 to index
    %c13_115 = arith.constant 13 : index
    %185 = memref.load %arg2[%184, %c13_115] : memref<2x16xi32, #tpu.memory_space<smem>>
    %c0_i32_116 = arith.constant 0 : i32
    %c3_i32_117 = arith.constant 3 : i32
    %186 = arith.maxsi %c0_i32_116, %185 : i32
    %187 = arith.minsi %c3_i32_117, %186 : i32
    %188 = arith.index_cast %183 : i32 to index
    %c0_118 = arith.constant 0 : index
    %c0_119 = arith.constant 0 : index
    %189 = vector.load %arg3[%188, %c0_118, %c0_119] : memref<64x1x32xf32, #tpu.memory_space<vmem>>, vector<1x1x32xf32>
    %190 = vector.shape_cast %189 : vector<1x1x32xf32> to vector<1x32xf32>
    %191 = arith.index_cast %187 : i32 to index
    %c0_120 = arith.constant 0 : index
    %c0_121 = arith.constant 0 : index
    %192 = vector.load %arg4[%191, %c0_120, %c0_121] : memref<4x1x32xf32, #tpu.memory_space<vmem>>, vector<1x1x32xf32>
    %193 = vector.shape_cast %192 : vector<1x1x32xf32> to vector<1x32xf32>
    %194 = arith.addf %190, %193 : vector<1x32xf32>
    %c13_122 = arith.constant 13 : index
    %c0_123 = arith.constant 0 : index
    %195 = vector.load %arg26[%c13_122, %c0_123] : memref<16x32xf32, #tpu.memory_space<vmem>>, vector<1x32xf32>
    tpu.vector_store %arg26[%c13_122, %c0_123], %194 {strides = array<i32>} : memref<16x32xf32, #tpu.memory_space<vmem>>, vector<1x32xf32>,
    %196 = arith.index_cast %arg0 : i32 to index
    %c14 = arith.constant 14 : index
    %197 = memref.load %arg1[%196, %c14] : memref<2x16xi32, #tpu.memory_space<smem>>
    %198 = arith.index_cast %arg0 : i32 to index
    %c14_124 = arith.constant 14 : index
    %199 = memref.load %arg2[%198, %c14_124] : memref<2x16xi32, #tpu.memory_space<smem>>
    %c0_i32_125 = arith.constant 0 : i32
    %c3_i32_126 = arith.constant 3 : i32
    %200 = arith.maxsi %c0_i32_125, %199 : i32
    %201 = arith.minsi %c3_i32_126, %200 : i32
    %202 = arith.index_cast %197 : i32 to index
    %c0_127 = arith.constant 0 : index
    %c0_128 = arith.constant 0 : index
    %203 = vector.load %arg3[%202, %c0_127, %c0_128] : memref<64x1x32xf32, #tpu.memory_space<vmem>>, vector<1x1x32xf32>
    %204 = vector.shape_cast %203 : vector<1x1x32xf32> to vector<1x32xf32>
    %205 = arith.index_cast %201 : i32 to index
    %c0_129 = arith.constant 0 : index
    %c0_130 = arith.constant 0 : index
    %206 = vector.load %arg4[%205, %c0_129, %c0_130] : memref<4x1x32xf32, #tpu.memory_space<vmem>>, vector<1x1x32xf32>
    %207 = vector.shape_cast %206 : vector<1x1x32xf32> to vector<1x32xf32>
    %208 = arith.addf %204, %207 : vector<1x32xf32>
    %c14_131 = arith.constant 14 : index
    %c0_132 = arith.constant 0 : index
    %209 = vector.load %arg26[%c14_131, %c0_132] : memref<16x32xf32, #tpu.memory_space<vmem>>, vector<1x32xf32>
    tpu.vector_store %arg26[%c14_131, %c0_132], %208 {strides = array<i32>} : memref<16x32xf32, #tpu.memory_space<vmem>>, vector<1x32xf32>,
    %210 = arith.index_cast %arg0 : i32 to index
    %c15 = arith.constant 15 : index
    %211 = memref.load %arg1[%210, %c15] : memref<2x16xi32, #tpu.memory_space<smem>>
    %212 = arith.index_cast %arg0 : i32 to index
    %c15_133 = arith.constant 15 : index
    %213 = memref.load %arg2[%212, %c15_133] : memref<2x16xi32, #tpu.memory_space<smem>>
    %c0_i32_134 = arith.constant 0 : i32
    %c3_i32_135 = arith.constant 3 : i32
    %214 = arith.maxsi %c0_i32_134, %213 : i32
    %215 = arith.minsi %c3_i32_135, %214 : i32
    %216 = arith.index_cast %211 : i32 to index
    %c0_136 = arith.constant 0 : index
    %c0_137 = arith.constant 0 : index
    %217 = vector.load %arg3[%216, %c0_136, %c0_137] : memref<64x1x32xf32, #tpu.memory_space<vmem>>, vector<1x1x32xf32>
    %218 = vector.shape_cast %217 : vector<1x1x32xf32> to vector<1x32xf32>
    %219 = arith.index_cast %215 : i32 to index
    %c0_138 = arith.constant 0 : index
    %c0_139 = arith.constant 0 : index
    %220 = vector.load %arg4[%219, %c0_138, %c0_139] : memref<4x1x32xf32, #tpu.memory_space<vmem>>, vector<1x1x32xf32>
    %221 = vector.shape_cast %220 : vector<1x1x32xf32> to vector<1x32xf32>
    %222 = arith.addf %218, %221 : vector<1x32xf32>
    %c15_140 = arith.constant 15 : index
    %c0_141 = arith.constant 0 : index
    %223 = vector.load %arg26[%c15_140, %c0_141] : memref<16x32xf32, #tpu.memory_space<vmem>>, vector<1x32xf32>
    tpu.vector_store %arg26[%c15_140, %c0_141], %222 {strides = array<i32>} : memref<16x32xf32, #tpu.memory_space<vmem>>, vector<1x32xf32>,
    %c0_142 = arith.constant 0 : index
    %c0_143 = arith.constant 0 : index
    %224 = vector.load %arg26[%c0_142, %c0_143] : memref<16x32xf32, #tpu.memory_space<vmem>>, vector<16x32xf32>
    %c0_144 = arith.constant 0 : index
    %c0_145 = arith.constant 0 : index
    %225 = vector.load %arg5[%c0_144, %c0_145] : memref<16x32xf32, #tpu.memory_space<vmem>>, vector<16x32xf32>
    %226 = arith.addf %224, %225 : vector<16x32xf32>
    %c0_146 = arith.constant 0 : index
    %c0_147 = arith.constant 0 : index
    %c0_148 = arith.constant 0 : index
    %227 = vector.load %arg6[%c0_146, %c0_147, %c0_148] : memref<2x1x32xf32, #tpu.memory_space<vmem>>, vector<1x1x32xf32>
    %228 = vector.shape_cast %227 : vector<1x1x32xf32> to vector<1x32xf32>
    %c0_149 = arith.constant 0 : index
    %c0_150 = arith.constant 0 : index
    %c0_151 = arith.constant 0 : index
    %229 = vector.load %arg7[%c0_149, %c0_150, %c0_151] : memref<2x1x32xf32, #tpu.memory_space<vmem>>, vector<1x1x32xf32>
    %230 = vector.shape_cast %229 : vector<1x1x32xf32> to vector<1x32xf32>
    %cst = arith.constant dense<0.000000e+00> : vector<16xf32>
    %231 = vector.multi_reduction <add>, %226, %cst [1] : vector<16x32xf32> to vector<16xf32>
    %232 = vector.shape_cast %231 : vector<16xf32> to vector<16x1xf32>
    %cst_152 = arith.constant 3.200000e+01 : f32
    %233 = vector.broadcast %cst_152 : f32 to vector<16x1xf32>
    %234 = arith.divf %232, %233 : vector<16x1xf32>
    %235 = vector.broadcast %234 : vector<16x1xf32> to vector<16x32xf32>
    %236 = arith.subf %226, %235 : vector<16x32xf32>
    %237 = arith.mulf %236, %236 : vector<16x32xf32>
    %cst_153 = arith.constant dense<0.000000e+00> : vector<16xf32>
    %238 = vector.multi_reduction <add>, %237, %cst_153 [1] : vector<16x32xf32> to vector<16xf32>
    %239 = vector.shape_cast %238 : vector<16xf32> to vector<16x1xf32>
    %cst_154 = arith.constant 3.200000e+01 : f32
    %240 = vector.broadcast %cst_154 : f32 to vector<16x1xf32>
    %241 = arith.divf %239, %240 : vector<16x1xf32>
    %cst_155 = arith.constant 9.99999974E-6 : f32
    %242 = vector.broadcast %cst_155 : f32 to vector<16x1xf32>
    %243 = arith.addf %241, %242 : vector<16x1xf32>
    %244 = math.rsqrt %243 : vector<16x1xf32>
    %245 = vector.broadcast %244 : vector<16x1xf32> to vector<16x32xf32>
    %246 = arith.mulf %236, %245 : vector<16x32xf32>
    %247 = vector.broadcast %228 : vector<1x32xf32> to vector<16x32xf32>
    %248 = arith.mulf %246, %247 : vector<16x32xf32>
    %249 = vector.broadcast %230 : vector<1x32xf32> to vector<16x32xf32>
    %250 = arith.addf %248, %249 : vector<16x32xf32>
    %c0_156 = arith.constant 0 : index
    %c0_157 = arith.constant 0 : index
    %c0_158 = arith.constant 0 : index
    %c0_159 = arith.constant 0 : index
    %251 = vector.load %arg8[%c0_156, %c0_157, %c0_158, %c0_159] : memref<2x4x32x8xf32, #tpu.memory_space<vmem>>, vector<1x1x32x8xf32>
    %252 = vector.shape_cast %251 : vector<1x1x32x8xf32> to vector<32x8xf32>
    %cst_160 = arith.constant dense<0.000000e+00> : vector<16x8xf32>
    %253 = tpu.matmul %250, %252, %cst_160 {dimension_numbers = #tpu.dot_dimension_numbers<[1], [0], [0], [1], [0, 0, 1, 1], [], []>} : vector<16x32xf32>, vector<32x8xf32>, vector<16x8xf32> -> vector<16x8xf32>
    %c0_161 = arith.constant 0 : index
    %c0_162 = arith.constant 0 : index
    %c0_163 = arith.constant 0 : index
    %c0_164 = arith.constant 0 : index
    %254 = vector.load %arg9[%c0_161, %c0_162, %c0_163, %c0_164] : memref<2x4x1x8xf32, #tpu.memory_space<vmem>>, vector<1x1x1x8xf32>
    %255 = vector.shape_cast %254 : vector<1x1x1x8xf32> to vector<1x8xf32>
    %256 = vector.broadcast %255 : vector<1x8xf32> to vector<16x8xf32>
    %257 = arith.addf %253, %256 : vector<16x8xf32>
    %c0_165 = arith.constant 0 : index
    %c0_166 = arith.constant 0 : index
    %c0_167 = arith.constant 0 : index
    %c0_168 = arith.constant 0 : index
    %258 = vector.load %arg10[%c0_165, %c0_166, %c0_167, %c0_168] : memref<2x4x32x8xf32, #tpu.memory_space<vmem>>, vector<1x1x32x8xf32>
    %259 = vector.shape_cast %258 : vector<1x1x32x8xf32> to vector<32x8xf32>
    %cst_169 = arith.constant dense<0.000000e+00> : vector<16x8xf32>
    %260 = tpu.matmul %250, %259, %cst_169 {dimension_numbers = #tpu.dot_dimension_numbers<[1], [0], [0], [1], [0, 0, 1, 1], [], []>} : vector<16x32xf32>, vector<32x8xf32>, vector<16x8xf32> -> vector<16x8xf32>
    %c0_170 = arith.constant 0 : index
    %c0_171 = arith.constant 0 : index
    %c0_172 = arith.constant 0 : index
    %c0_173 = arith.constant 0 : index
    %261 = vector.load %arg11[%c0_170, %c0_171, %c0_172, %c0_173] : memref<2x4x1x8xf32, #tpu.memory_space<vmem>>, vector<1x1x1x8xf32>
    %262 = vector.shape_cast %261 : vector<1x1x1x8xf32> to vector<1x8xf32>
    %263 = vector.broadcast %262 : vector<1x8xf32> to vector<16x8xf32>
    %264 = arith.addf %260, %263 : vector<16x8xf32>
    %c0_174 = arith.constant 0 : index
    %c0_175 = arith.constant 0 : index
    %c0_176 = arith.constant 0 : index
    %c0_177 = arith.constant 0 : index
    %265 = vector.load %arg12[%c0_174, %c0_175, %c0_176, %c0_177] : memref<2x4x32x8xf32, #tpu.memory_space<vmem>>, vector<1x1x32x8xf32>
    %266 = vector.shape_cast %265 : vector<1x1x32x8xf32> to vector<32x8xf32>
    %cst_178 = arith.constant dense<0.000000e+00> : vector<16x8xf32>
    %267 = tpu.matmul %250, %266, %cst_178 {dimension_numbers = #tpu.dot_dimension_numbers<[1], [0], [0], [1], [0, 0, 1, 1], [], []>} : vector<16x32xf32>, vector<32x8xf32>, vector<16x8xf32> -> vector<16x8xf32>
    %c0_179 = arith.constant 0 : index
    %c0_180 = arith.constant 0 : index
    %c0_181 = arith.constant 0 : index
    %c0_182 = arith.constant 0 : index
    %268 = vector.load %arg13[%c0_179, %c0_180, %c0_181, %c0_182] : memref<2x4x1x8xf32, #tpu.memory_space<vmem>>, vector<1x1x1x8xf32>
    %269 = vector.shape_cast %268 : vector<1x1x1x8xf32> to vector<1x8xf32>
    %270 = vector.broadcast %269 : vector<1x8xf32> to vector<16x8xf32>
    %271 = arith.addf %267, %270 : vector<16x8xf32>
    %272 = tpu.transpose %264, [1, 0] : vector<16x8xf32> -> vector<8x16xf32>
    %cst_183 = arith.constant dense<0.000000e+00> : vector<16x16xf32>
    %273 = tpu.matmul %257, %272, %cst_183 {dimension_numbers = #tpu.dot_dimension_numbers<[1], [0], [0], [1], [0, 0, 1, 1], [], []>} : vector<16x8xf32>, vector<8x16xf32>, vector<16x16xf32> -> vector<16x16xf32>
    %cst_184 = arith.constant dense<0xFF800000> : vector<16xf32>
    %274 = vector.multi_reduction <maximumf>, %273, %cst_184 [1] : vector<16x16xf32> to vector<16xf32>
    %275 = vector.shape_cast %274 : vector<16xf32> to vector<16x1xf32>
    %276 = vector.broadcast %275 : vector<16x1xf32> to vector<16x16xf32>
    %277 = arith.subf %273, %276 : vector<16x16xf32>
    %278 = math.exp %277 : vector<16x16xf32>
    %cst_185 = arith.constant dense<0.000000e+00> : vector<16xf32>
    %279 = vector.multi_reduction <add>, %278, %cst_185 [1] : vector<16x16xf32> to vector<16xf32>
    %280 = vector.shape_cast %279 : vector<16xf32> to vector<16x1xf32>
    %281 = vector.broadcast %280 : vector<16x1xf32> to vector<16x16xf32>
    %282 = arith.divf %278, %281 : vector<16x16xf32>
    %cst_186 = arith.constant dense<0.000000e+00> : vector<16x8xf32>
    %283 = tpu.matmul %282, %271, %cst_186 {dimension_numbers = #tpu.dot_dimension_numbers<[1], [0], [0], [1], [0, 0, 1, 1], [], []>} : vector<16x16xf32>, vector<16x8xf32>, vector<16x8xf32> -> vector<16x8xf32>
    %c0_187 = arith.constant 0 : index
    %c0_188 = arith.constant 0 : index
    %c0_189 = arith.constant 0 : index
    %c0_190 = arith.constant 0 : index
    %284 = vector.load %arg14[%c0_187, %c0_188, %c0_189, %c0_190] : memref<2x4x8x32xf32, #tpu.memory_space<vmem>>, vector<1x1x8x32xf32>
    %285 = vector.shape_cast %284 : vector<1x1x8x32xf32> to vector<8x32xf32>
    %cst_191 = arith.constant dense<0.000000e+00> : vector<16x32xf32>
    %286 = tpu.matmul %283, %285, %cst_191 {dimension_numbers = #tpu.dot_dimension_numbers<[1], [0], [0], [1], [0, 0, 1, 1], [], []>} : vector<16x8xf32>, vector<8x32xf32>, vector<16x32xf32> -> vector<16x32xf32>
    %c0_192 = arith.constant 0 : index
    %c1_193 = arith.constant 1 : index
    %c0_194 = arith.constant 0 : index
    %c0_195 = arith.constant 0 : index
    %287 = vector.load %arg8[%c0_192, %c1_193, %c0_194, %c0_195] : memref<2x4x32x8xf32, #tpu.memory_space<vmem>>, vector<1x1x32x8xf32>
    %288 = vector.shape_cast %287 : vector<1x1x32x8xf32> to vector<32x8xf32>
    %cst_196 = arith.constant dense<0.000000e+00> : vector<16x8xf32>
    %289 = tpu.matmul %250, %288, %cst_196 {dimension_numbers = #tpu.dot_dimension_numbers<[1], [0], [0], [1], [0, 0, 1, 1], [], []>} : vector<16x32xf32>, vector<32x8xf32>, vector<16x8xf32> -> vector<16x8xf32>
    %c0_197 = arith.constant 0 : index
    %c1_198 = arith.constant 1 : index
    %c0_199 = arith.constant 0 : index
    %c0_200 = arith.constant 0 : index
    %290 = vector.load %arg9[%c0_197, %c1_198, %c0_199, %c0_200] : memref<2x4x1x8xf32, #tpu.memory_space<vmem>>, vector<1x1x1x8xf32>
    %291 = vector.shape_cast %290 : vector<1x1x1x8xf32> to vector<1x8xf32>
    %292 = vector.broadcast %291 : vector<1x8xf32> to vector<16x8xf32>
    %293 = arith.addf %289, %292 : vector<16x8xf32>
    %c0_201 = arith.constant 0 : index
    %c1_202 = arith.constant 1 : index
    %c0_203 = arith.constant 0 : index
    %c0_204 = arith.constant 0 : index
    %294 = vector.load %arg10[%c0_201, %c1_202, %c0_203, %c0_204] : memref<2x4x32x8xf32, #tpu.memory_space<vmem>>, vector<1x1x32x8xf32>
    %295 = vector.shape_cast %294 : vector<1x1x32x8xf32> to vector<32x8xf32>
    %cst_205 = arith.constant dense<0.000000e+00> : vector<16x8xf32>
    %296 = tpu.matmul %250, %295, %cst_205 {dimension_numbers = #tpu.dot_dimension_numbers<[1], [0], [0], [1], [0, 0, 1, 1], [], []>} : vector<16x32xf32>, vector<32x8xf32>, vector<16x8xf32> -> vector<16x8xf32>
    %c0_206 = arith.constant 0 : index
    %c1_207 = arith.constant 1 : index
    %c0_208 = arith.constant 0 : index
    %c0_209 = arith.constant 0 : index
    %297 = vector.load %arg11[%c0_206, %c1_207, %c0_208, %c0_209] : memref<2x4x1x8xf32, #tpu.memory_space<vmem>>, vector<1x1x1x8xf32>
    %298 = vector.shape_cast %297 : vector<1x1x1x8xf32> to vector<1x8xf32>
    %299 = vector.broadcast %298 : vector<1x8xf32> to vector<16x8xf32>
    %300 = arith.addf %296, %299 : vector<16x8xf32>
    %c0_210 = arith.constant 0 : index
    %c1_211 = arith.constant 1 : index
    %c0_212 = arith.constant 0 : index
    %c0_213 = arith.constant 0 : index
    %301 = vector.load %arg12[%c0_210, %c1_211, %c0_212, %c0_213] : memref<2x4x32x8xf32, #tpu.memory_space<vmem>>, vector<1x1x32x8xf32>
    %302 = vector.shape_cast %301 : vector<1x1x32x8xf32> to vector<32x8xf32>
    %cst_214 = arith.constant dense<0.000000e+00> : vector<16x8xf32>
    %303 = tpu.matmul %250, %302, %cst_214 {dimension_numbers = #tpu.dot_dimension_numbers<[1], [0], [0], [1], [0, 0, 1, 1], [], []>} : vector<16x32xf32>, vector<32x8xf32>, vector<16x8xf32> -> vector<16x8xf32>
    %c0_215 = arith.constant 0 : index
    %c1_216 = arith.constant 1 : index
    %c0_217 = arith.constant 0 : index
    %c0_218 = arith.constant 0 : index
    %304 = vector.load %arg13[%c0_215, %c1_216, %c0_217, %c0_218] : memref<2x4x1x8xf32, #tpu.memory_space<vmem>>, vector<1x1x1x8xf32>
    %305 = vector.shape_cast %304 : vector<1x1x1x8xf32> to vector<1x8xf32>
    %306 = vector.broadcast %305 : vector<1x8xf32> to vector<16x8xf32>
    %307 = arith.addf %303, %306 : vector<16x8xf32>
    %308 = tpu.transpose %300, [1, 0] : vector<16x8xf32> -> vector<8x16xf32>
    %cst_219 = arith.constant dense<0.000000e+00> : vector<16x16xf32>
    %309 = tpu.matmul %293, %308, %cst_219 {dimension_numbers = #tpu.dot_dimension_numbers<[1], [0], [0], [1], [0, 0, 1, 1], [], []>} : vector<16x8xf32>, vector<8x16xf32>, vector<16x16xf32> -> vector<16x16xf32>
    %cst_220 = arith.constant dense<0xFF800000> : vector<16xf32>
    %310 = vector.multi_reduction <maximumf>, %309, %cst_220 [1] : vector<16x16xf32> to vector<16xf32>
    %311 = vector.shape_cast %310 : vector<16xf32> to vector<16x1xf32>
    %312 = vector.broadcast %311 : vector<16x1xf32> to vector<16x16xf32>
    %313 = arith.subf %309, %312 : vector<16x16xf32>
    %314 = math.exp %313 : vector<16x16xf32>
    %cst_221 = arith.constant dense<0.000000e+00> : vector<16xf32>
    %315 = vector.multi_reduction <add>, %314, %cst_221 [1] : vector<16x16xf32> to vector<16xf32>
    %316 = vector.shape_cast %315 : vector<16xf32> to vector<16x1xf32>
    %317 = vector.broadcast %316 : vector<16x1xf32> to vector<16x16xf32>
    %318 = arith.divf %314, %317 : vector<16x16xf32>
    %cst_222 = arith.constant dense<0.000000e+00> : vector<16x8xf32>
    %319 = tpu.matmul %318, %307, %cst_222 {dimension_numbers = #tpu.dot_dimension_numbers<[1], [0], [0], [1], [0, 0, 1, 1], [], []>} : vector<16x16xf32>, vector<16x8xf32>, vector<16x8xf32> -> vector<16x8xf32>
    %c0_223 = arith.constant 0 : index
    %c1_224 = arith.constant 1 : index
    %c0_225 = arith.constant 0 : index
    %c0_226 = arith.constant 0 : index
    %320 = vector.load %arg14[%c0_223, %c1_224, %c0_225, %c0_226] : memref<2x4x8x32xf32, #tpu.memory_space<vmem>>, vector<1x1x8x32xf32>
    %321 = vector.shape_cast %320 : vector<1x1x8x32xf32> to vector<8x32xf32>
    %cst_227 = arith.constant dense<0.000000e+00> : vector<16x32xf32>
    %322 = tpu.matmul %319, %321, %cst_227 {dimension_numbers = #tpu.dot_dimension_numbers<[1], [0], [0], [1], [0, 0, 1, 1], [], []>} : vector<16x8xf32>, vector<8x32xf32>, vector<16x32xf32> -> vector<16x32xf32>
    %323 = arith.addf %286, %322 : vector<16x32xf32>
    %c0_228 = arith.constant 0 : index
    %c2_229 = arith.constant 2 : index
    %c0_230 = arith.constant 0 : index
    %c0_231 = arith.constant 0 : index
    %324 = vector.load %arg8[%c0_228, %c2_229, %c0_230, %c0_231] : memref<2x4x32x8xf32, #tpu.memory_space<vmem>>, vector<1x1x32x8xf32>
    %325 = vector.shape_cast %324 : vector<1x1x32x8xf32> to vector<32x8xf32>
    %cst_232 = arith.constant dense<0.000000e+00> : vector<16x8xf32>
    %326 = tpu.matmul %250, %325, %cst_232 {dimension_numbers = #tpu.dot_dimension_numbers<[1], [0], [0], [1], [0, 0, 1, 1], [], []>} : vector<16x32xf32>, vector<32x8xf32>, vector<16x8xf32> -> vector<16x8xf32>
    %c0_233 = arith.constant 0 : index
    %c2_234 = arith.constant 2 : index
    %c0_235 = arith.constant 0 : index
    %c0_236 = arith.constant 0 : index
    %327 = vector.load %arg9[%c0_233, %c2_234, %c0_235, %c0_236] : memref<2x4x1x8xf32, #tpu.memory_space<vmem>>, vector<1x1x1x8xf32>
    %328 = vector.shape_cast %327 : vector<1x1x1x8xf32> to vector<1x8xf32>
    %329 = vector.broadcast %328 : vector<1x8xf32> to vector<16x8xf32>
    %330 = arith.addf %326, %329 : vector<16x8xf32>
    %c0_237 = arith.constant 0 : index
    %c2_238 = arith.constant 2 : index
    %c0_239 = arith.constant 0 : index
    %c0_240 = arith.constant 0 : index
    %331 = vector.load %arg10[%c0_237, %c2_238, %c0_239, %c0_240] : memref<2x4x32x8xf32, #tpu.memory_space<vmem>>, vector<1x1x32x8xf32>
    %332 = vector.shape_cast %331 : vector<1x1x32x8xf32> to vector<32x8xf32>
    %cst_241 = arith.constant dense<0.000000e+00> : vector<16x8xf32>
    %333 = tpu.matmul %250, %332, %cst_241 {dimension_numbers = #tpu.dot_dimension_numbers<[1], [0], [0], [1], [0, 0, 1, 1], [], []>} : vector<16x32xf32>, vector<32x8xf32>, vector<16x8xf32> -> vector<16x8xf32>
    %c0_242 = arith.constant 0 : index
    %c2_243 = arith.constant 2 : index
    %c0_244 = arith.constant 0 : index
    %c0_245 = arith.constant 0 : index
    %334 = vector.load %arg11[%c0_242, %c2_243, %c0_244, %c0_245] : memref<2x4x1x8xf32, #tpu.memory_space<vmem>>, vector<1x1x1x8xf32>
    %335 = vector.shape_cast %334 : vector<1x1x1x8xf32> to vector<1x8xf32>
    %336 = vector.broadcast %335 : vector<1x8xf32> to vector<16x8xf32>
    %337 = arith.addf %333, %336 : vector<16x8xf32>
    %c0_246 = arith.constant 0 : index
    %c2_247 = arith.constant 2 : index
    %c0_248 = arith.constant 0 : index
    %c0_249 = arith.constant 0 : index
    %338 = vector.load %arg12[%c0_246, %c2_247, %c0_248, %c0_249] : memref<2x4x32x8xf32, #tpu.memory_space<vmem>>, vector<1x1x32x8xf32>
    %339 = vector.shape_cast %338 : vector<1x1x32x8xf32> to vector<32x8xf32>
    %cst_250 = arith.constant dense<0.000000e+00> : vector<16x8xf32>
    %340 = tpu.matmul %250, %339, %cst_250 {dimension_numbers = #tpu.dot_dimension_numbers<[1], [0], [0], [1], [0, 0, 1, 1], [], []>} : vector<16x32xf32>, vector<32x8xf32>, vector<16x8xf32> -> vector<16x8xf32>
    %c0_251 = arith.constant 0 : index
    %c2_252 = arith.constant 2 : index
    %c0_253 = arith.constant 0 : index
    %c0_254 = arith.constant 0 : index
    %341 = vector.load %arg13[%c0_251, %c2_252, %c0_253, %c0_254] : memref<2x4x1x8xf32, #tpu.memory_space<vmem>>, vector<1x1x1x8xf32>
    %342 = vector.shape_cast %341 : vector<1x1x1x8xf32> to vector<1x8xf32>
    %343 = vector.broadcast %342 : vector<1x8xf32> to vector<16x8xf32>
    %344 = arith.addf %340, %343 : vector<16x8xf32>
    %345 = tpu.transpose %337, [1, 0] : vector<16x8xf32> -> vector<8x16xf32>
    %cst_255 = arith.constant dense<0.000000e+00> : vector<16x16xf32>
    %346 = tpu.matmul %330, %345, %cst_255 {dimension_numbers = #tpu.dot_dimension_numbers<[1], [0], [0], [1], [0, 0, 1, 1], [], []>} : vector<16x8xf32>, vector<8x16xf32>, vector<16x16xf32> -> vector<16x16xf32>
    %cst_256 = arith.constant dense<0xFF800000> : vector<16xf32>
    %347 = vector.multi_reduction <maximumf>, %346, %cst_256 [1] : vector<16x16xf32> to vector<16xf32>
    %348 = vector.shape_cast %347 : vector<16xf32> to vector<16x1xf32>
    %349 = vector.broadcast %348 : vector<16x1xf32> to vector<16x16xf32>
    %350 = arith.subf %346, %349 : vector<16x16xf32>
    %351 = math.exp %350 : vector<16x16xf32>
    %cst_257 = arith.constant dense<0.000000e+00> : vector<16xf32>
    %352 = vector.multi_reduction <add>, %351, %cst_257 [1] : vector<16x16xf32> to vector<16xf32>
    %353 = vector.shape_cast %352 : vector<16xf32> to vector<16x1xf32>
    %354 = vector.broadcast %353 : vector<16x1xf32> to vector<16x16xf32>
    %355 = arith.divf %351, %354 : vector<16x16xf32>
    %cst_258 = arith.constant dense<0.000000e+00> : vector<16x8xf32>
    %356 = tpu.matmul %355, %344, %cst_258 {dimension_numbers = #tpu.dot_dimension_numbers<[1], [0], [0], [1], [0, 0, 1, 1], [], []>} : vector<16x16xf32>, vector<16x8xf32>, vector<16x8xf32> -> vector<16x8xf32>
    %c0_259 = arith.constant 0 : index
    %c2_260 = arith.constant 2 : index
    %c0_261 = arith.constant 0 : index
    %c0_262 = arith.constant 0 : index
    %357 = vector.load %arg14[%c0_259, %c2_260, %c0_261, %c0_262] : memref<2x4x8x32xf32, #tpu.memory_space<vmem>>, vector<1x1x8x32xf32>
    %358 = vector.shape_cast %357 : vector<1x1x8x32xf32> to vector<8x32xf32>
    %cst_263 = arith.constant dense<0.000000e+00> : vector<16x32xf32>
    %359 = tpu.matmul %356, %358, %cst_263 {dimension_numbers = #tpu.dot_dimension_numbers<[1], [0], [0], [1], [0, 0, 1, 1], [], []>} : vector<16x8xf32>, vector<8x32xf32>, vector<16x32xf32> -> vector<16x32xf32>
    %360 = arith.addf %323, %359 : vector<16x32xf32>
    %c0_264 = arith.constant 0 : index
    %c3_265 = arith.constant 3 : index
    %c0_266 = arith.constant 0 : index
    %c0_267 = arith.constant 0 : index
    %361 = vector.load %arg8[%c0_264, %c3_265, %c0_266, %c0_267] : memref<2x4x32x8xf32, #tpu.memory_space<vmem>>, vector<1x1x32x8xf32>
    %362 = vector.shape_cast %361 : vector<1x1x32x8xf32> to vector<32x8xf32>
    %cst_268 = arith.constant dense<0.000000e+00> : vector<16x8xf32>
    %363 = tpu.matmul %250, %362, %cst_268 {dimension_numbers = #tpu.dot_dimension_numbers<[1], [0], [0], [1], [0, 0, 1, 1], [], []>} : vector<16x32xf32>, vector<32x8xf32>, vector<16x8xf32> -> vector<16x8xf32>
    %c0_269 = arith.constant 0 : index
    %c3_270 = arith.constant 3 : index
    %c0_271 = arith.constant 0 : index
    %c0_272 = arith.constant 0 : index
    %364 = vector.load %arg9[%c0_269, %c3_270, %c0_271, %c0_272] : memref<2x4x1x8xf32, #tpu.memory_space<vmem>>, vector<1x1x1x8xf32>
    %365 = vector.shape_cast %364 : vector<1x1x1x8xf32> to vector<1x8xf32>
    %366 = vector.broadcast %365 : vector<1x8xf32> to vector<16x8xf32>
    %367 = arith.addf %363, %366 : vector<16x8xf32>
    %c0_273 = arith.constant 0 : index
    %c3_274 = arith.constant 3 : index
    %c0_275 = arith.constant 0 : index
    %c0_276 = arith.constant 0 : index
    %368 = vector.load %arg10[%c0_273, %c3_274, %c0_275, %c0_276] : memref<2x4x32x8xf32, #tpu.memory_space<vmem>>, vector<1x1x32x8xf32>
    %369 = vector.shape_cast %368 : vector<1x1x32x8xf32> to vector<32x8xf32>
    %cst_277 = arith.constant dense<0.000000e+00> : vector<16x8xf32>
    %370 = tpu.matmul %250, %369, %cst_277 {dimension_numbers = #tpu.dot_dimension_numbers<[1], [0], [0], [1], [0, 0, 1, 1], [], []>} : vector<16x32xf32>, vector<32x8xf32>, vector<16x8xf32> -> vector<16x8xf32>
    %c0_278 = arith.constant 0 : index
    %c3_279 = arith.constant 3 : index
    %c0_280 = arith.constant 0 : index
    %c0_281 = arith.constant 0 : index
    %371 = vector.load %arg11[%c0_278, %c3_279, %c0_280, %c0_281] : memref<2x4x1x8xf32, #tpu.memory_space<vmem>>, vector<1x1x1x8xf32>
    %372 = vector.shape_cast %371 : vector<1x1x1x8xf32> to vector<1x8xf32>
    %373 = vector.broadcast %372 : vector<1x8xf32> to vector<16x8xf32>
    %374 = arith.addf %370, %373 : vector<16x8xf32>
    %c0_282 = arith.constant 0 : index
    %c3_283 = arith.constant 3 : index
    %c0_284 = arith.constant 0 : index
    %c0_285 = arith.constant 0 : index
    %375 = vector.load %arg12[%c0_282, %c3_283, %c0_284, %c0_285] : memref<2x4x32x8xf32, #tpu.memory_space<vmem>>, vector<1x1x32x8xf32>
    %376 = vector.shape_cast %375 : vector<1x1x32x8xf32> to vector<32x8xf32>
    %cst_286 = arith.constant dense<0.000000e+00> : vector<16x8xf32>
    %377 = tpu.matmul %250, %376, %cst_286 {dimension_numbers = #tpu.dot_dimension_numbers<[1], [0], [0], [1], [0, 0, 1, 1], [], []>} : vector<16x32xf32>, vector<32x8xf32>, vector<16x8xf32> -> vector<16x8xf32>
    %c0_287 = arith.constant 0 : index
    %c3_288 = arith.constant 3 : index
    %c0_289 = arith.constant 0 : index
    %c0_290 = arith.constant 0 : index
    %378 = vector.load %arg13[%c0_287, %c3_288, %c0_289, %c0_290] : memref<2x4x1x8xf32, #tpu.memory_space<vmem>>, vector<1x1x1x8xf32>
    %379 = vector.shape_cast %378 : vector<1x1x1x8xf32> to vector<1x8xf32>
    %380 = vector.broadcast %379 : vector<1x8xf32> to vector<16x8xf32>
    %381 = arith.addf %377, %380 : vector<16x8xf32>
    %382 = tpu.transpose %374, [1, 0] : vector<16x8xf32> -> vector<8x16xf32>
    %cst_291 = arith.constant dense<0.000000e+00> : vector<16x16xf32>
    %383 = tpu.matmul %367, %382, %cst_291 {dimension_numbers = #tpu.dot_dimension_numbers<[1], [0], [0], [1], [0, 0, 1, 1], [], []>} : vector<16x8xf32>, vector<8x16xf32>, vector<16x16xf32> -> vector<16x16xf32>
    %cst_292 = arith.constant dense<0xFF800000> : vector<16xf32>
    %384 = vector.multi_reduction <maximumf>, %383, %cst_292 [1] : vector<16x16xf32> to vector<16xf32>
    %385 = vector.shape_cast %384 : vector<16xf32> to vector<16x1xf32>
    %386 = vector.broadcast %385 : vector<16x1xf32> to vector<16x16xf32>
    %387 = arith.subf %383, %386 : vector<16x16xf32>
    %388 = math.exp %387 : vector<16x16xf32>
    %cst_293 = arith.constant dense<0.000000e+00> : vector<16xf32>
    %389 = vector.multi_reduction <add>, %388, %cst_293 [1] : vector<16x16xf32> to vector<16xf32>
    %390 = vector.shape_cast %389 : vector<16xf32> to vector<16x1xf32>
    %391 = vector.broadcast %390 : vector<16x1xf32> to vector<16x16xf32>
    %392 = arith.divf %388, %391 : vector<16x16xf32>
    %cst_294 = arith.constant dense<0.000000e+00> : vector<16x8xf32>
    %393 = tpu.matmul %392, %381, %cst_294 {dimension_numbers = #tpu.dot_dimension_numbers<[1], [0], [0], [1], [0, 0, 1, 1], [], []>} : vector<16x16xf32>, vector<16x8xf32>, vector<16x8xf32> -> vector<16x8xf32>
    %c0_295 = arith.constant 0 : index
    %c3_296 = arith.constant 3 : index
    %c0_297 = arith.constant 0 : index
    %c0_298 = arith.constant 0 : index
    %394 = vector.load %arg14[%c0_295, %c3_296, %c0_297, %c0_298] : memref<2x4x8x32xf32, #tpu.memory_space<vmem>>, vector<1x1x8x32xf32>
    %395 = vector.shape_cast %394 : vector<1x1x8x32xf32> to vector<8x32xf32>
    %cst_299 = arith.constant dense<0.000000e+00> : vector<16x32xf32>
    %396 = tpu.matmul %393, %395, %cst_299 {dimension_numbers = #tpu.dot_dimension_numbers<[1], [0], [0], [1], [0, 0, 1, 1], [], []>} : vector<16x8xf32>, vector<8x32xf32>, vector<16x32xf32> -> vector<16x32xf32>
    %397 = arith.addf %360, %396 : vector<16x32xf32>
    %398 = arith.addf %226, %397 : vector<16x32xf32>
    %c0_300 = arith.constant 0 : index
    %c0_301 = arith.constant 0 : index
    %c0_302 = arith.constant 0 : index
    %399 = vector.load %arg15[%c0_300, %c0_301, %c0_302] : memref<2x1x32xf32, #tpu.memory_space<vmem>>, vector<1x1x32xf32>
    %400 = vector.shape_cast %399 : vector<1x1x32xf32> to vector<1x32xf32>
    %401 = vector.broadcast %400 : vector<1x32xf32> to vector<16x32xf32>
    %402 = arith.addf %398, %401 : vector<16x32xf32>
    %c0_303 = arith.constant 0 : index
    %c0_304 = arith.constant 0 : index
    %c0_305 = arith.constant 0 : index
    %403 = vector.load %arg16[%c0_303, %c0_304, %c0_305] : memref<2x1x32xf32, #tpu.memory_space<vmem>>, vector<1x1x32xf32>
    %404 = vector.shape_cast %403 : vector<1x1x32xf32> to vector<1x32xf32>
    %c0_306 = arith.constant 0 : index
    %c0_307 = arith.constant 0 : index
    %c0_308 = arith.constant 0 : index
    %405 = vector.load %arg17[%c0_306, %c0_307, %c0_308] : memref<2x1x32xf32, #tpu.memory_space<vmem>>, vector<1x1x32xf32>
    %406 = vector.shape_cast %405 : vector<1x1x32xf32> to vector<1x32xf32>
    %cst_309 = arith.constant dense<0.000000e+00> : vector<16xf32>
    %407 = vector.multi_reduction <add>, %402, %cst_309 [1] : vector<16x32xf32> to vector<16xf32>
    %408 = vector.shape_cast %407 : vector<16xf32> to vector<16x1xf32>
    %cst_310 = arith.constant 3.200000e+01 : f32
    %409 = vector.broadcast %cst_310 : f32 to vector<16x1xf32>
    %410 = arith.divf %408, %409 : vector<16x1xf32>
    %411 = vector.broadcast %410 : vector<16x1xf32> to vector<16x32xf32>
    %412 = arith.subf %402, %411 : vector<16x32xf32>
    %413 = arith.mulf %412, %412 : vector<16x32xf32>
    %cst_311 = arith.constant dense<0.000000e+00> : vector<16xf32>
    %414 = vector.multi_reduction <add>, %413, %cst_311 [1] : vector<16x32xf32> to vector<16xf32>
    %415 = vector.shape_cast %414 : vector<16xf32> to vector<16x1xf32>
    %cst_312 = arith.constant 3.200000e+01 : f32
    %416 = vector.broadcast %cst_312 : f32 to vector<16x1xf32>
    %417 = arith.divf %415, %416 : vector<16x1xf32>
    %cst_313 = arith.constant 9.99999974E-6 : f32
    %418 = vector.broadcast %cst_313 : f32 to vector<16x1xf32>
    %419 = arith.addf %417, %418 : vector<16x1xf32>
    %420 = math.rsqrt %419 : vector<16x1xf32>
    %421 = vector.broadcast %420 : vector<16x1xf32> to vector<16x32xf32>
    %422 = arith.mulf %412, %421 : vector<16x32xf32>
    %423 = vector.broadcast %404 : vector<1x32xf32> to vector<16x32xf32>
    %424 = arith.mulf %422, %423 : vector<16x32xf32>
    %425 = vector.broadcast %406 : vector<1x32xf32> to vector<16x32xf32>
    %426 = arith.addf %424, %425 : vector<16x32xf32>
    %c0_314 = arith.constant 0 : index
    %c0_315 = arith.constant 0 : index
    %c0_316 = arith.constant 0 : index
    %427 = vector.load %arg18[%c0_314, %c0_315, %c0_316] : memref<2x32x64xf32, #tpu.memory_space<vmem>>, vector<1x32x64xf32>
    %428 = vector.shape_cast %427 : vector<1x32x64xf32> to vector<32x64xf32>
    %cst_317 = arith.constant dense<0.000000e+00> : vector<16x64xf32>
    %429 = tpu.matmul %426, %428, %cst_317 {dimension_numbers = #tpu.dot_dimension_numbers<[1], [0], [0], [1], [0, 0, 1, 1], [], []>} : vector<16x32xf32>, vector<32x64xf32>, vector<16x64xf32> -> vector<16x64xf32>
    %c0_318 = arith.constant 0 : index
    %c0_319 = arith.constant 0 : index
    %c0_320 = arith.constant 0 : index
    %430 = vector.load %arg19[%c0_318, %c0_319, %c0_320] : memref<2x1x64xf32, #tpu.memory_space<vmem>>, vector<1x1x64xf32>
    %431 = vector.shape_cast %430 : vector<1x1x64xf32> to vector<1x64xf32>
    %432 = vector.broadcast %431 : vector<1x64xf32> to vector<16x64xf32>
    %433 = arith.addf %429, %432 : vector<16x64xf32>
    %cst_321 = arith.constant 5.000000e-01 : f32
    %434 = vector.broadcast %cst_321 : f32 to vector<16x64xf32>
    %435 = arith.mulf %434, %433 : vector<16x64xf32>
    %cst_322 = arith.constant 4.471500e-02 : f32
    %436 = vector.broadcast %cst_322 : f32 to vector<16x64xf32>
    %437 = arith.mulf %436, %433 : vector<16x64xf32>
    %438 = arith.mulf %437, %433 : vector<16x64xf32>
    %439 = arith.mulf %438, %433 : vector<16x64xf32>
    %440 = arith.addf %433, %439 : vector<16x64xf32>
    %cst_323 = arith.constant 0.797884583 : f32
    %441 = vector.broadcast %cst_323 : f32 to vector<16x64xf32>
    %442 = arith.mulf %441, %440 : vector<16x64xf32>
    %443 = math.tanh %442 : vector<16x64xf32>
    %cst_324 = arith.constant 1.000000e+00 : f32
    %444 = vector.broadcast %cst_324 : f32 to vector<16x64xf32>
    %445 = arith.addf %444, %443 : vector<16x64xf32>
    %446 = arith.mulf %435, %445 : vector<16x64xf32>
    %c0_325 = arith.constant 0 : index
    %c0_326 = arith.constant 0 : index
    %c0_327 = arith.constant 0 : index
    %447 = vector.load %arg20[%c0_325, %c0_326, %c0_327] : memref<2x64x32xf32, #tpu.memory_space<vmem>>, vector<1x64x32xf32>
    %448 = vector.shape_cast %447 : vector<1x64x32xf32> to vector<64x32xf32>
    %cst_328 = arith.constant dense<0.000000e+00> : vector<16x32xf32>
    %449 = tpu.matmul %446, %448, %cst_328 {dimension_numbers = #tpu.dot_dimension_numbers<[1], [0], [0], [1], [0, 0, 1, 1], [], []>} : vector<16x64xf32>, vector<64x32xf32>, vector<16x32xf32> -> vector<16x32xf32>
    %450 = arith.addf %402, %449 : vector<16x32xf32>
    %c0_329 = arith.constant 0 : index
    %c0_330 = arith.constant 0 : index
    %c0_331 = arith.constant 0 : index
    %451 = vector.load %arg21[%c0_329, %c0_330, %c0_331] : memref<2x1x32xf32, #tpu.memory_space<vmem>>, vector<1x1x32xf32>
    %452 = vector.shape_cast %451 : vector<1x1x32xf32> to vector<1x32xf32>
    %453 = vector.broadcast %452 : vector<1x32xf32> to vector<16x32xf32>
    %454 = arith.addf %450, %453 : vector<16x32xf32>
    %c1_332 = arith.constant 1 : index
    %c0_333 = arith.constant 0 : index
    %c0_334 = arith.constant 0 : index
    %455 = vector.load %arg6[%c1_332, %c0_333, %c0_334] : memref<2x1x32xf32, #tpu.memory_space<vmem>>, vector<1x1x32xf32>
    %456 = vector.shape_cast %455 : vector<1x1x32xf32> to vector<1x32xf32>
    %c1_335 = arith.constant 1 : index
    %c0_336 = arith.constant 0 : index
    %c0_337 = arith.constant 0 : index
    %457 = vector.load %arg7[%c1_335, %c0_336, %c0_337] : memref<2x1x32xf32, #tpu.memory_space<vmem>>, vector<1x1x32xf32>
    %458 = vector.shape_cast %457 : vector<1x1x32xf32> to vector<1x32xf32>
    %cst_338 = arith.constant dense<0.000000e+00> : vector<16xf32>
    %459 = vector.multi_reduction <add>, %454, %cst_338 [1] : vector<16x32xf32> to vector<16xf32>
    %460 = vector.shape_cast %459 : vector<16xf32> to vector<16x1xf32>
    %cst_339 = arith.constant 3.200000e+01 : f32
    %461 = vector.broadcast %cst_339 : f32 to vector<16x1xf32>
    %462 = arith.divf %460, %461 : vector<16x1xf32>
    %463 = vector.broadcast %462 : vector<16x1xf32> to vector<16x32xf32>
    %464 = arith.subf %454, %463 : vector<16x32xf32>
    %465 = arith.mulf %464, %464 : vector<16x32xf32>
    %cst_340 = arith.constant dense<0.000000e+00> : vector<16xf32>
    %466 = vector.multi_reduction <add>, %465, %cst_340 [1] : vector<16x32xf32> to vector<16xf32>
    %467 = vector.shape_cast %466 : vector<16xf32> to vector<16x1xf32>
    %cst_341 = arith.constant 3.200000e+01 : f32
    %468 = vector.broadcast %cst_341 : f32 to vector<16x1xf32>
    %469 = arith.divf %467, %468 : vector<16x1xf32>
    %cst_342 = arith.constant 9.99999974E-6 : f32
    %470 = vector.broadcast %cst_342 : f32 to vector<16x1xf32>
    %471 = arith.addf %469, %470 : vector<16x1xf32>
    %472 = math.rsqrt %471 : vector<16x1xf32>
    %473 = vector.broadcast %472 : vector<16x1xf32> to vector<16x32xf32>
    %474 = arith.mulf %464, %473 : vector<16x32xf32>
    %475 = vector.broadcast %456 : vector<1x32xf32> to vector<16x32xf32>
    %476 = arith.mulf %474, %475 : vector<16x32xf32>
    %477 = vector.broadcast %458 : vector<1x32xf32> to vector<16x32xf32>
    %478 = arith.addf %476, %477 : vector<16x32xf32>
    %c1_343 = arith.constant 1 : index
    %c0_344 = arith.constant 0 : index
    %c0_345 = arith.constant 0 : index
    %c0_346 = arith.constant 0 : index
    %479 = vector.load %arg8[%c1_343, %c0_344, %c0_345, %c0_346] : memref<2x4x32x8xf32, #tpu.memory_space<vmem>>, vector<1x1x32x8xf32>
    %480 = vector.shape_cast %479 : vector<1x1x32x8xf32> to vector<32x8xf32>
    %cst_347 = arith.constant dense<0.000000e+00> : vector<16x8xf32>
    %481 = tpu.matmul %478, %480, %cst_347 {dimension_numbers = #tpu.dot_dimension_numbers<[1], [0], [0], [1], [0, 0, 1, 1], [], []>} : vector<16x32xf32>, vector<32x8xf32>, vector<16x8xf32> -> vector<16x8xf32>
    %c1_348 = arith.constant 1 : index
    %c0_349 = arith.constant 0 : index
    %c0_350 = arith.constant 0 : index
    %c0_351 = arith.constant 0 : index
    %482 = vector.load %arg9[%c1_348, %c0_349, %c0_350, %c0_351] : memref<2x4x1x8xf32, #tpu.memory_space<vmem>>, vector<1x1x1x8xf32>
    %483 = vector.shape_cast %482 : vector<1x1x1x8xf32> to vector<1x8xf32>
    %484 = vector.broadcast %483 : vector<1x8xf32> to vector<16x8xf32>
    %485 = arith.addf %481, %484 : vector<16x8xf32>
    %c1_352 = arith.constant 1 : index
    %c0_353 = arith.constant 0 : index
    %c0_354 = arith.constant 0 : index
    %c0_355 = arith.constant 0 : index
    %486 = vector.load %arg10[%c1_352, %c0_353, %c0_354, %c0_355] : memref<2x4x32x8xf32, #tpu.memory_space<vmem>>, vector<1x1x32x8xf32>
    %487 = vector.shape_cast %486 : vector<1x1x32x8xf32> to vector<32x8xf32>
    %cst_356 = arith.constant dense<0.000000e+00> : vector<16x8xf32>
    %488 = tpu.matmul %478, %487, %cst_356 {dimension_numbers = #tpu.dot_dimension_numbers<[1], [0], [0], [1], [0, 0, 1, 1], [], []>} : vector<16x32xf32>, vector<32x8xf32>, vector<16x8xf32> -> vector<16x8xf32>
    %c1_357 = arith.constant 1 : index
    %c0_358 = arith.constant 0 : index
    %c0_359 = arith.constant 0 : index
    %c0_360 = arith.constant 0 : index
    %489 = vector.load %arg11[%c1_357, %c0_358, %c0_359, %c0_360] : memref<2x4x1x8xf32, #tpu.memory_space<vmem>>, vector<1x1x1x8xf32>
    %490 = vector.shape_cast %489 : vector<1x1x1x8xf32> to vector<1x8xf32>
    %491 = vector.broadcast %490 : vector<1x8xf32> to vector<16x8xf32>
    %492 = arith.addf %488, %491 : vector<16x8xf32>
    %c1_361 = arith.constant 1 : index
    %c0_362 = arith.constant 0 : index
    %c0_363 = arith.constant 0 : index
    %c0_364 = arith.constant 0 : index
    %493 = vector.load %arg12[%c1_361, %c0_362, %c0_363, %c0_364] : memref<2x4x32x8xf32, #tpu.memory_space<vmem>>, vector<1x1x32x8xf32>
    %494 = vector.shape_cast %493 : vector<1x1x32x8xf32> to vector<32x8xf32>
    %cst_365 = arith.constant dense<0.000000e+00> : vector<16x8xf32>
    %495 = tpu.matmul %478, %494, %cst_365 {dimension_numbers = #tpu.dot_dimension_numbers<[1], [0], [0], [1], [0, 0, 1, 1], [], []>} : vector<16x32xf32>, vector<32x8xf32>, vector<16x8xf32> -> vector<16x8xf32>
    %c1_366 = arith.constant 1 : index
    %c0_367 = arith.constant 0 : index
    %c0_368 = arith.constant 0 : index
    %c0_369 = arith.constant 0 : index
    %496 = vector.load %arg13[%c1_366, %c0_367, %c0_368, %c0_369] : memref<2x4x1x8xf32, #tpu.memory_space<vmem>>, vector<1x1x1x8xf32>
    %497 = vector.shape_cast %496 : vector<1x1x1x8xf32> to vector<1x8xf32>
    %498 = vector.broadcast %497 : vector<1x8xf32> to vector<16x8xf32>
    %499 = arith.addf %495, %498 : vector<16x8xf32>
    %500 = tpu.transpose %492, [1, 0] : vector<16x8xf32> -> vector<8x16xf32>
    %cst_370 = arith.constant dense<0.000000e+00> : vector<16x16xf32>
    %501 = tpu.matmul %485, %500, %cst_370 {dimension_numbers = #tpu.dot_dimension_numbers<[1], [0], [0], [1], [0, 0, 1, 1], [], []>} : vector<16x8xf32>, vector<8x16xf32>, vector<16x16xf32> -> vector<16x16xf32>
    %cst_371 = arith.constant dense<0xFF800000> : vector<16xf32>
    %502 = vector.multi_reduction <maximumf>, %501, %cst_371 [1] : vector<16x16xf32> to vector<16xf32>
    %503 = vector.shape_cast %502 : vector<16xf32> to vector<16x1xf32>
    %504 = vector.broadcast %503 : vector<16x1xf32> to vector<16x16xf32>
    %505 = arith.subf %501, %504 : vector<16x16xf32>
    %506 = math.exp %505 : vector<16x16xf32>
    %cst_372 = arith.constant dense<0.000000e+00> : vector<16xf32>
    %507 = vector.multi_reduction <add>, %506, %cst_372 [1] : vector<16x16xf32> to vector<16xf32>
    %508 = vector.shape_cast %507 : vector<16xf32> to vector<16x1xf32>
    %509 = vector.broadcast %508 : vector<16x1xf32> to vector<16x16xf32>
    %510 = arith.divf %506, %509 : vector<16x16xf32>
    %cst_373 = arith.constant dense<0.000000e+00> : vector<16x8xf32>
    %511 = tpu.matmul %510, %499, %cst_373 {dimension_numbers = #tpu.dot_dimension_numbers<[1], [0], [0], [1], [0, 0, 1, 1], [], []>} : vector<16x16xf32>, vector<16x8xf32>, vector<16x8xf32> -> vector<16x8xf32>
    %c1_374 = arith.constant 1 : index
    %c0_375 = arith.constant 0 : index
    %c0_376 = arith.constant 0 : index
    %c0_377 = arith.constant 0 : index
    %512 = vector.load %arg14[%c1_374, %c0_375, %c0_376, %c0_377] : memref<2x4x8x32xf32, #tpu.memory_space<vmem>>, vector<1x1x8x32xf32>
    %513 = vector.shape_cast %512 : vector<1x1x8x32xf32> to vector<8x32xf32>
    %cst_378 = arith.constant dense<0.000000e+00> : vector<16x32xf32>
    %514 = tpu.matmul %511, %513, %cst_378 {dimension_numbers = #tpu.dot_dimension_numbers<[1], [0], [0], [1], [0, 0, 1, 1], [], []>} : vector<16x8xf32>, vector<8x32xf32>, vector<16x32xf32> -> vector<16x32xf32>
    %c1_379 = arith.constant 1 : index
    %c1_380 = arith.constant 1 : index
    %c0_381 = arith.constant 0 : index
    %c0_382 = arith.constant 0 : index
    %515 = vector.load %arg8[%c1_379, %c1_380, %c0_381, %c0_382] : memref<2x4x32x8xf32, #tpu.memory_space<vmem>>, vector<1x1x32x8xf32>
    %516 = vector.shape_cast %515 : vector<1x1x32x8xf32> to vector<32x8xf32>
    %cst_383 = arith.constant dense<0.000000e+00> : vector<16x8xf32>
    %517 = tpu.matmul %478, %516, %cst_383 {dimension_numbers = #tpu.dot_dimension_numbers<[1], [0], [0], [1], [0, 0, 1, 1], [], []>} : vector<16x32xf32>, vector<32x8xf32>, vector<16x8xf32> -> vector<16x8xf32>
    %c1_384 = arith.constant 1 : index
    %c1_385 = arith.constant 1 : index
    %c0_386 = arith.constant 0 : index
    %c0_387 = arith.constant 0 : index
    %518 = vector.load %arg9[%c1_384, %c1_385, %c0_386, %c0_387] : memref<2x4x1x8xf32, #tpu.memory_space<vmem>>, vector<1x1x1x8xf32>
    %519 = vector.shape_cast %518 : vector<1x1x1x8xf32> to vector<1x8xf32>
    %520 = vector.broadcast %519 : vector<1x8xf32> to vector<16x8xf32>
    %521 = arith.addf %517, %520 : vector<16x8xf32>
    %c1_388 = arith.constant 1 : index
    %c1_389 = arith.constant 1 : index
    %c0_390 = arith.constant 0 : index
    %c0_391 = arith.constant 0 : index
    %522 = vector.load %arg10[%c1_388, %c1_389, %c0_390, %c0_391] : memref<2x4x32x8xf32, #tpu.memory_space<vmem>>, vector<1x1x32x8xf32>
    %523 = vector.shape_cast %522 : vector<1x1x32x8xf32> to vector<32x8xf32>
    %cst_392 = arith.constant dense<0.000000e+00> : vector<16x8xf32>
    %524 = tpu.matmul %478, %523, %cst_392 {dimension_numbers = #tpu.dot_dimension_numbers<[1], [0], [0], [1], [0, 0, 1, 1], [], []>} : vector<16x32xf32>, vector<32x8xf32>, vector<16x8xf32> -> vector<16x8xf32>
    %c1_393 = arith.constant 1 : index
    %c1_394 = arith.constant 1 : index
    %c0_395 = arith.constant 0 : index
    %c0_396 = arith.constant 0 : index
    %525 = vector.load %arg11[%c1_393, %c1_394, %c0_395, %c0_396] : memref<2x4x1x8xf32, #tpu.memory_space<vmem>>, vector<1x1x1x8xf32>
    %526 = vector.shape_cast %525 : vector<1x1x1x8xf32> to vector<1x8xf32>
    %527 = vector.broadcast %526 : vector<1x8xf32> to vector<16x8xf32>
    %528 = arith.addf %524, %527 : vector<16x8xf32>
    %c1_397 = arith.constant 1 : index
    %c1_398 = arith.constant 1 : index
    %c0_399 = arith.constant 0 : index
    %c0_400 = arith.constant 0 : index
    %529 = vector.load %arg12[%c1_397, %c1_398, %c0_399, %c0_400] : memref<2x4x32x8xf32, #tpu.memory_space<vmem>>, vector<1x1x32x8xf32>
    %530 = vector.shape_cast %529 : vector<1x1x32x8xf32> to vector<32x8xf32>
    %cst_401 = arith.constant dense<0.000000e+00> : vector<16x8xf32>
    %531 = tpu.matmul %478, %530, %cst_401 {dimension_numbers = #tpu.dot_dimension_numbers<[1], [0], [0], [1], [0, 0, 1, 1], [], []>} : vector<16x32xf32>, vector<32x8xf32>, vector<16x8xf32> -> vector<16x8xf32>
    %c1_402 = arith.constant 1 : index
    %c1_403 = arith.constant 1 : index
    %c0_404 = arith.constant 0 : index
    %c0_405 = arith.constant 0 : index
    %532 = vector.load %arg13[%c1_402, %c1_403, %c0_404, %c0_405] : memref<2x4x1x8xf32, #tpu.memory_space<vmem>>, vector<1x1x1x8xf32>
    %533 = vector.shape_cast %532 : vector<1x1x1x8xf32> to vector<1x8xf32>
    %534 = vector.broadcast %533 : vector<1x8xf32> to vector<16x8xf32>
    %535 = arith.addf %531, %534 : vector<16x8xf32>
    %536 = tpu.transpose %528, [1, 0] : vector<16x8xf32> -> vector<8x16xf32>
    %cst_406 = arith.constant dense<0.000000e+00> : vector<16x16xf32>
    %537 = tpu.matmul %521, %536, %cst_406 {dimension_numbers = #tpu.dot_dimension_numbers<[1], [0], [0], [1], [0, 0, 1, 1], [], []>} : vector<16x8xf32>, vector<8x16xf32>, vector<16x16xf32> -> vector<16x16xf32>
    %cst_407 = arith.constant dense<0xFF800000> : vector<16xf32>
    %538 = vector.multi_reduction <maximumf>, %537, %cst_407 [1] : vector<16x16xf32> to vector<16xf32>
    %539 = vector.shape_cast %538 : vector<16xf32> to vector<16x1xf32>
    %540 = vector.broadcast %539 : vector<16x1xf32> to vector<16x16xf32>
    %541 = arith.subf %537, %540 : vector<16x16xf32>
    %542 = math.exp %541 : vector<16x16xf32>
    %cst_408 = arith.constant dense<0.000000e+00> : vector<16xf32>
    %543 = vector.multi_reduction <add>, %542, %cst_408 [1] : vector<16x16xf32> to vector<16xf32>
    %544 = vector.shape_cast %543 : vector<16xf32> to vector<16x1xf32>
    %545 = vector.broadcast %544 : vector<16x1xf32> to vector<16x16xf32>
    %546 = arith.divf %542, %545 : vector<16x16xf32>
    %cst_409 = arith.constant dense<0.000000e+00> : vector<16x8xf32>
    %547 = tpu.matmul %546, %535, %cst_409 {dimension_numbers = #tpu.dot_dimension_numbers<[1], [0], [0], [1], [0, 0, 1, 1], [], []>} : vector<16x16xf32>, vector<16x8xf32>, vector<16x8xf32> -> vector<16x8xf32>
    %c1_410 = arith.constant 1 : index
    %c1_411 = arith.constant 1 : index
    %c0_412 = arith.constant 0 : index
    %c0_413 = arith.constant 0 : index
    %548 = vector.load %arg14[%c1_410, %c1_411, %c0_412, %c0_413] : memref<2x4x8x32xf32, #tpu.memory_space<vmem>>, vector<1x1x8x32xf32>
    %549 = vector.shape_cast %548 : vector<1x1x8x32xf32> to vector<8x32xf32>
    %cst_414 = arith.constant dense<0.000000e+00> : vector<16x32xf32>
    %550 = tpu.matmul %547, %549, %cst_414 {dimension_numbers = #tpu.dot_dimension_numbers<[1], [0], [0], [1], [0, 0, 1, 1], [], []>} : vector<16x8xf32>, vector<8x32xf32>, vector<16x32xf32> -> vector<16x32xf32>
    %551 = arith.addf %514, %550 : vector<16x32xf32>
    %c1_415 = arith.constant 1 : index
    %c2_416 = arith.constant 2 : index
    %c0_417 = arith.constant 0 : index
    %c0_418 = arith.constant 0 : index
    %552 = vector.load %arg8[%c1_415, %c2_416, %c0_417, %c0_418] : memref<2x4x32x8xf32, #tpu.memory_space<vmem>>, vector<1x1x32x8xf32>
    %553 = vector.shape_cast %552 : vector<1x1x32x8xf32> to vector<32x8xf32>
    %cst_419 = arith.constant dense<0.000000e+00> : vector<16x8xf32>
    %554 = tpu.matmul %478, %553, %cst_419 {dimension_numbers = #tpu.dot_dimension_numbers<[1], [0], [0], [1], [0, 0, 1, 1], [], []>} : vector<16x32xf32>, vector<32x8xf32>, vector<16x8xf32> -> vector<16x8xf32>
    %c1_420 = arith.constant 1 : index
    %c2_421 = arith.constant 2 : index
    %c0_422 = arith.constant 0 : index
    %c0_423 = arith.constant 0 : index
    %555 = vector.load %arg9[%c1_420, %c2_421, %c0_422, %c0_423] : memref<2x4x1x8xf32, #tpu.memory_space<vmem>>, vector<1x1x1x8xf32>
    %556 = vector.shape_cast %555 : vector<1x1x1x8xf32> to vector<1x8xf32>
    %557 = vector.broadcast %556 : vector<1x8xf32> to vector<16x8xf32>
    %558 = arith.addf %554, %557 : vector<16x8xf32>
    %c1_424 = arith.constant 1 : index
    %c2_425 = arith.constant 2 : index
    %c0_426 = arith.constant 0 : index
    %c0_427 = arith.constant 0 : index
    %559 = vector.load %arg10[%c1_424, %c2_425, %c0_426, %c0_427] : memref<2x4x32x8xf32, #tpu.memory_space<vmem>>, vector<1x1x32x8xf32>
    %560 = vector.shape_cast %559 : vector<1x1x32x8xf32> to vector<32x8xf32>
    %cst_428 = arith.constant dense<0.000000e+00> : vector<16x8xf32>
    %561 = tpu.matmul %478, %560, %cst_428 {dimension_numbers = #tpu.dot_dimension_numbers<[1], [0], [0], [1], [0, 0, 1, 1], [], []>} : vector<16x32xf32>, vector<32x8xf32>, vector<16x8xf32> -> vector<16x8xf32>
    %c1_429 = arith.constant 1 : index
    %c2_430 = arith.constant 2 : index
    %c0_431 = arith.constant 0 : index
    %c0_432 = arith.constant 0 : index
    %562 = vector.load %arg11[%c1_429, %c2_430, %c0_431, %c0_432] : memref<2x4x1x8xf32, #tpu.memory_space<vmem>>, vector<1x1x1x8xf32>
    %563 = vector.shape_cast %562 : vector<1x1x1x8xf32> to vector<1x8xf32>
    %564 = vector.broadcast %563 : vector<1x8xf32> to vector<16x8xf32>
    %565 = arith.addf %561, %564 : vector<16x8xf32>
    %c1_433 = arith.constant 1 : index
    %c2_434 = arith.constant 2 : index
    %c0_435 = arith.constant 0 : index
    %c0_436 = arith.constant 0 : index
    %566 = vector.load %arg12[%c1_433, %c2_434, %c0_435, %c0_436] : memref<2x4x32x8xf32, #tpu.memory_space<vmem>>, vector<1x1x32x8xf32>
    %567 = vector.shape_cast %566 : vector<1x1x32x8xf32> to vector<32x8xf32>
    %cst_437 = arith.constant dense<0.000000e+00> : vector<16x8xf32>
    %568 = tpu.matmul %478, %567, %cst_437 {dimension_numbers = #tpu.dot_dimension_numbers<[1], [0], [0], [1], [0, 0, 1, 1], [], []>} : vector<16x32xf32>, vector<32x8xf32>, vector<16x8xf32> -> vector<16x8xf32>
    %c1_438 = arith.constant 1 : index
    %c2_439 = arith.constant 2 : index
    %c0_440 = arith.constant 0 : index
    %c0_441 = arith.constant 0 : index
    %569 = vector.load %arg13[%c1_438, %c2_439, %c0_440, %c0_441] : memref<2x4x1x8xf32, #tpu.memory_space<vmem>>, vector<1x1x1x8xf32>
    %570 = vector.shape_cast %569 : vector<1x1x1x8xf32> to vector<1x8xf32>
    %571 = vector.broadcast %570 : vector<1x8xf32> to vector<16x8xf32>
    %572 = arith.addf %568, %571 : vector<16x8xf32>
    %573 = tpu.transpose %565, [1, 0] : vector<16x8xf32> -> vector<8x16xf32>
    %cst_442 = arith.constant dense<0.000000e+00> : vector<16x16xf32>
    %574 = tpu.matmul %558, %573, %cst_442 {dimension_numbers = #tpu.dot_dimension_numbers<[1], [0], [0], [1], [0, 0, 1, 1], [], []>} : vector<16x8xf32>, vector<8x16xf32>, vector<16x16xf32> -> vector<16x16xf32>
    %cst_443 = arith.constant dense<0xFF800000> : vector<16xf32>
    %575 = vector.multi_reduction <maximumf>, %574, %cst_443 [1] : vector<16x16xf32> to vector<16xf32>
    %576 = vector.shape_cast %575 : vector<16xf32> to vector<16x1xf32>
    %577 = vector.broadcast %576 : vector<16x1xf32> to vector<16x16xf32>
    %578 = arith.subf %574, %577 : vector<16x16xf32>
    %579 = math.exp %578 : vector<16x16xf32>
    %cst_444 = arith.constant dense<0.000000e+00> : vector<16xf32>
    %580 = vector.multi_reduction <add>, %579, %cst_444 [1] : vector<16x16xf32> to vector<16xf32>
    %581 = vector.shape_cast %580 : vector<16xf32> to vector<16x1xf32>
    %582 = vector.broadcast %581 : vector<16x1xf32> to vector<16x16xf32>
    %583 = arith.divf %579, %582 : vector<16x16xf32>
    %cst_445 = arith.constant dense<0.000000e+00> : vector<16x8xf32>
    %584 = tpu.matmul %583, %572, %cst_445 {dimension_numbers = #tpu.dot_dimension_numbers<[1], [0], [0], [1], [0, 0, 1, 1], [], []>} : vector<16x16xf32>, vector<16x8xf32>, vector<16x8xf32> -> vector<16x8xf32>
    %c1_446 = arith.constant 1 : index
    %c2_447 = arith.constant 2 : index
    %c0_448 = arith.constant 0 : index
    %c0_449 = arith.constant 0 : index
    %585 = vector.load %arg14[%c1_446, %c2_447, %c0_448, %c0_449] : memref<2x4x8x32xf32, #tpu.memory_space<vmem>>, vector<1x1x8x32xf32>
    %586 = vector.shape_cast %585 : vector<1x1x8x32xf32> to vector<8x32xf32>
    %cst_450 = arith.constant dense<0.000000e+00> : vector<16x32xf32>
    %587 = tpu.matmul %584, %586, %cst_450 {dimension_numbers = #tpu.dot_dimension_numbers<[1], [0], [0], [1], [0, 0, 1, 1], [], []>} : vector<16x8xf32>, vector<8x32xf32>, vector<16x32xf32> -> vector<16x32xf32>
    %588 = arith.addf %551, %587 : vector<16x32xf32>
    %c1_451 = arith.constant 1 : index
    %c3_452 = arith.constant 3 : index
    %c0_453 = arith.constant 0 : index
    %c0_454 = arith.constant 0 : index
    %589 = vector.load %arg8[%c1_451, %c3_452, %c0_453, %c0_454] : memref<2x4x32x8xf32, #tpu.memory_space<vmem>>, vector<1x1x32x8xf32>
    %590 = vector.shape_cast %589 : vector<1x1x32x8xf32> to vector<32x8xf32>
    %cst_455 = arith.constant dense<0.000000e+00> : vector<16x8xf32>
    %591 = tpu.matmul %478, %590, %cst_455 {dimension_numbers = #tpu.dot_dimension_numbers<[1], [0], [0], [1], [0, 0, 1, 1], [], []>} : vector<16x32xf32>, vector<32x8xf32>, vector<16x8xf32> -> vector<16x8xf32>
    %c1_456 = arith.constant 1 : index
    %c3_457 = arith.constant 3 : index
    %c0_458 = arith.constant 0 : index
    %c0_459 = arith.constant 0 : index
    %592 = vector.load %arg9[%c1_456, %c3_457, %c0_458, %c0_459] : memref<2x4x1x8xf32, #tpu.memory_space<vmem>>, vector<1x1x1x8xf32>
    %593 = vector.shape_cast %592 : vector<1x1x1x8xf32> to vector<1x8xf32>
    %594 = vector.broadcast %593 : vector<1x8xf32> to vector<16x8xf32>
    %595 = arith.addf %591, %594 : vector<16x8xf32>
    %c1_460 = arith.constant 1 : index
    %c3_461 = arith.constant 3 : index
    %c0_462 = arith.constant 0 : index
    %c0_463 = arith.constant 0 : index
    %596 = vector.load %arg10[%c1_460, %c3_461, %c0_462, %c0_463] : memref<2x4x32x8xf32, #tpu.memory_space<vmem>>, vector<1x1x32x8xf32>
    %597 = vector.shape_cast %596 : vector<1x1x32x8xf32> to vector<32x8xf32>
    %cst_464 = arith.constant dense<0.000000e+00> : vector<16x8xf32>
    %598 = tpu.matmul %478, %597, %cst_464 {dimension_numbers = #tpu.dot_dimension_numbers<[1], [0], [0], [1], [0, 0, 1, 1], [], []>} : vector<16x32xf32>, vector<32x8xf32>, vector<16x8xf32> -> vector<16x8xf32>
    %c1_465 = arith.constant 1 : index
    %c3_466 = arith.constant 3 : index
    %c0_467 = arith.constant 0 : index
    %c0_468 = arith.constant 0 : index
    %599 = vector.load %arg11[%c1_465, %c3_466, %c0_467, %c0_468] : memref<2x4x1x8xf32, #tpu.memory_space<vmem>>, vector<1x1x1x8xf32>
    %600 = vector.shape_cast %599 : vector<1x1x1x8xf32> to vector<1x8xf32>
    %601 = vector.broadcast %600 : vector<1x8xf32> to vector<16x8xf32>
    %602 = arith.addf %598, %601 : vector<16x8xf32>
    %c1_469 = arith.constant 1 : index
    %c3_470 = arith.constant 3 : index
    %c0_471 = arith.constant 0 : index
    %c0_472 = arith.constant 0 : index
    %603 = vector.load %arg12[%c1_469, %c3_470, %c0_471, %c0_472] : memref<2x4x32x8xf32, #tpu.memory_space<vmem>>, vector<1x1x32x8xf32>
    %604 = vector.shape_cast %603 : vector<1x1x32x8xf32> to vector<32x8xf32>
    %cst_473 = arith.constant dense<0.000000e+00> : vector<16x8xf32>
    %605 = tpu.matmul %478, %604, %cst_473 {dimension_numbers = #tpu.dot_dimension_numbers<[1], [0], [0], [1], [0, 0, 1, 1], [], []>} : vector<16x32xf32>, vector<32x8xf32>, vector<16x8xf32> -> vector<16x8xf32>
    %c1_474 = arith.constant 1 : index
    %c3_475 = arith.constant 3 : index
    %c0_476 = arith.constant 0 : index
    %c0_477 = arith.constant 0 : index
    %606 = vector.load %arg13[%c1_474, %c3_475, %c0_476, %c0_477] : memref<2x4x1x8xf32, #tpu.memory_space<vmem>>, vector<1x1x1x8xf32>
    %607 = vector.shape_cast %606 : vector<1x1x1x8xf32> to vector<1x8xf32>
    %608 = vector.broadcast %607 : vector<1x8xf32> to vector<16x8xf32>
    %609 = arith.addf %605, %608 : vector<16x8xf32>
    %610 = tpu.transpose %602, [1, 0] : vector<16x8xf32> -> vector<8x16xf32>
    %cst_478 = arith.constant dense<0.000000e+00> : vector<16x16xf32>
    %611 = tpu.matmul %595, %610, %cst_478 {dimension_numbers = #tpu.dot_dimension_numbers<[1], [0], [0], [1], [0, 0, 1, 1], [], []>} : vector<16x8xf32>, vector<8x16xf32>, vector<16x16xf32> -> vector<16x16xf32>
    %cst_479 = arith.constant dense<0xFF800000> : vector<16xf32>
    %612 = vector.multi_reduction <maximumf>, %611, %cst_479 [1] : vector<16x16xf32> to vector<16xf32>
    %613 = vector.shape_cast %612 : vector<16xf32> to vector<16x1xf32>
    %614 = vector.broadcast %613 : vector<16x1xf32> to vector<16x16xf32>
    %615 = arith.subf %611, %614 : vector<16x16xf32>
    %616 = math.exp %615 : vector<16x16xf32>
    %cst_480 = arith.constant dense<0.000000e+00> : vector<16xf32>
    %617 = vector.multi_reduction <add>, %616, %cst_480 [1] : vector<16x16xf32> to vector<16xf32>
    %618 = vector.shape_cast %617 : vector<16xf32> to vector<16x1xf32>
    %619 = vector.broadcast %618 : vector<16x1xf32> to vector<16x16xf32>
    %620 = arith.divf %616, %619 : vector<16x16xf32>
    %cst_481 = arith.constant dense<0.000000e+00> : vector<16x8xf32>
    %621 = tpu.matmul %620, %609, %cst_481 {dimension_numbers = #tpu.dot_dimension_numbers<[1], [0], [0], [1], [0, 0, 1, 1], [], []>} : vector<16x16xf32>, vector<16x8xf32>, vector<16x8xf32> -> vector<16x8xf32>
    %c1_482 = arith.constant 1 : index
    %c3_483 = arith.constant 3 : index
    %c0_484 = arith.constant 0 : index
    %c0_485 = arith.constant 0 : index
    %622 = vector.load %arg14[%c1_482, %c3_483, %c0_484, %c0_485] : memref<2x4x8x32xf32, #tpu.memory_space<vmem>>, vector<1x1x8x32xf32>
    %623 = vector.shape_cast %622 : vector<1x1x8x32xf32> to vector<8x32xf32>
    %cst_486 = arith.constant dense<0.000000e+00> : vector<16x32xf32>
    %624 = tpu.matmul %621, %623, %cst_486 {dimension_numbers = #tpu.dot_dimension_numbers<[1], [0], [0], [1], [0, 0, 1, 1], [], []>} : vector<16x8xf32>, vector<8x32xf32>, vector<16x32xf32> -> vector<16x32xf32>
    %625 = arith.addf %588, %624 : vector<16x32xf32>
    %626 = arith.addf %454, %625 : vector<16x32xf32>
    %c1_487 = arith.constant 1 : index
    %c0_488 = arith.constant 0 : index
    %c0_489 = arith.constant 0 : index
    %627 = vector.load %arg15[%c1_487, %c0_488, %c0_489] : memref<2x1x32xf32, #tpu.memory_space<vmem>>, vector<1x1x32xf32>
    %628 = vector.shape_cast %627 : vector<1x1x32xf32> to vector<1x32xf32>
    %629 = vector.broadcast %628 : vector<1x32xf32> to vector<16x32xf32>
    %630 = arith.addf %626, %629 : vector<16x32xf32>
    %c1_490 = arith.constant 1 : index
    %c0_491 = arith.constant 0 : index
    %c0_492 = arith.constant 0 : index
    %631 = vector.load %arg16[%c1_490, %c0_491, %c0_492] : memref<2x1x32xf32, #tpu.memory_space<vmem>>, vector<1x1x32xf32>
    %632 = vector.shape_cast %631 : vector<1x1x32xf32> to vector<1x32xf32>
    %c1_493 = arith.constant 1 : index
    %c0_494 = arith.constant 0 : index
    %c0_495 = arith.constant 0 : index
    %633 = vector.load %arg17[%c1_493, %c0_494, %c0_495] : memref<2x1x32xf32, #tpu.memory_space<vmem>>, vector<1x1x32xf32>
    %634 = vector.shape_cast %633 : vector<1x1x32xf32> to vector<1x32xf32>
    %cst_496 = arith.constant dense<0.000000e+00> : vector<16xf32>
    %635 = vector.multi_reduction <add>, %630, %cst_496 [1] : vector<16x32xf32> to vector<16xf32>
    %636 = vector.shape_cast %635 : vector<16xf32> to vector<16x1xf32>
    %cst_497 = arith.constant 3.200000e+01 : f32
    %637 = vector.broadcast %cst_497 : f32 to vector<16x1xf32>
    %638 = arith.divf %636, %637 : vector<16x1xf32>
    %639 = vector.broadcast %638 : vector<16x1xf32> to vector<16x32xf32>
    %640 = arith.subf %630, %639 : vector<16x32xf32>
    %641 = arith.mulf %640, %640 : vector<16x32xf32>
    %cst_498 = arith.constant dense<0.000000e+00> : vector<16xf32>
    %642 = vector.multi_reduction <add>, %641, %cst_498 [1] : vector<16x32xf32> to vector<16xf32>
    %643 = vector.shape_cast %642 : vector<16xf32> to vector<16x1xf32>
    %cst_499 = arith.constant 3.200000e+01 : f32
    %644 = vector.broadcast %cst_499 : f32 to vector<16x1xf32>
    %645 = arith.divf %643, %644 : vector<16x1xf32>
    %cst_500 = arith.constant 9.99999974E-6 : f32
    %646 = vector.broadcast %cst_500 : f32 to vector<16x1xf32>
    %647 = arith.addf %645, %646 : vector<16x1xf32>
    %648 = math.rsqrt %647 : vector<16x1xf32>
    %649 = vector.broadcast %648 : vector<16x1xf32> to vector<16x32xf32>
    %650 = arith.mulf %640, %649 : vector<16x32xf32>
    %651 = vector.broadcast %632 : vector<1x32xf32> to vector<16x32xf32>
    %652 = arith.mulf %650, %651 : vector<16x32xf32>
    %653 = vector.broadcast %634 : vector<1x32xf32> to vector<16x32xf32>
    %654 = arith.addf %652, %653 : vector<16x32xf32>
    %c1_501 = arith.constant 1 : index
    %c0_502 = arith.constant 0 : index
    %c0_503 = arith.constant 0 : index
    %655 = vector.load %arg18[%c1_501, %c0_502, %c0_503] : memref<2x32x64xf32, #tpu.memory_space<vmem>>, vector<1x32x64xf32>
    %656 = vector.shape_cast %655 : vector<1x32x64xf32> to vector<32x64xf32>
    %cst_504 = arith.constant dense<0.000000e+00> : vector<16x64xf32>
    %657 = tpu.matmul %654, %656, %cst_504 {dimension_numbers = #tpu.dot_dimension_numbers<[1], [0], [0], [1], [0, 0, 1, 1], [], []>} : vector<16x32xf32>, vector<32x64xf32>, vector<16x64xf32> -> vector<16x64xf32>
    %c1_505 = arith.constant 1 : index
    %c0_506 = arith.constant 0 : index
    %c0_507 = arith.constant 0 : index
    %658 = vector.load %arg19[%c1_505, %c0_506, %c0_507] : memref<2x1x64xf32, #tpu.memory_space<vmem>>, vector<1x1x64xf32>
    %659 = vector.shape_cast %658 : vector<1x1x64xf32> to vector<1x64xf32>
    %660 = vector.broadcast %659 : vector<1x64xf32> to vector<16x64xf32>
    %661 = arith.addf %657, %660 : vector<16x64xf32>
    %cst_508 = arith.constant 5.000000e-01 : f32
    %662 = vector.broadcast %cst_508 : f32 to vector<16x64xf32>
    %663 = arith.mulf %662, %661 : vector<16x64xf32>
    %cst_509 = arith.constant 4.471500e-02 : f32
    %664 = vector.broadcast %cst_509 : f32 to vector<16x64xf32>
    %665 = arith.mulf %664, %661 : vector<16x64xf32>
    %666 = arith.mulf %665, %661 : vector<16x64xf32>
    %667 = arith.mulf %666, %661 : vector<16x64xf32>
    %668 = arith.addf %661, %667 : vector<16x64xf32>
    %cst_510 = arith.constant 0.797884583 : f32
    %669 = vector.broadcast %cst_510 : f32 to vector<16x64xf32>
    %670 = arith.mulf %669, %668 : vector<16x64xf32>
    %671 = math.tanh %670 : vector<16x64xf32>
    %cst_511 = arith.constant 1.000000e+00 : f32
    %672 = vector.broadcast %cst_511 : f32 to vector<16x64xf32>
    %673 = arith.addf %672, %671 : vector<16x64xf32>
    %674 = arith.mulf %663, %673 : vector<16x64xf32>
    %c1_512 = arith.constant 1 : index
    %c0_513 = arith.constant 0 : index
    %c0_514 = arith.constant 0 : index
    %675 = vector.load %arg20[%c1_512, %c0_513, %c0_514] : memref<2x64x32xf32, #tpu.memory_space<vmem>>, vector<1x64x32xf32>
    %676 = vector.shape_cast %675 : vector<1x64x32xf32> to vector<64x32xf32>
    %cst_515 = arith.constant dense<0.000000e+00> : vector<16x32xf32>
    %677 = tpu.matmul %674, %676, %cst_515 {dimension_numbers = #tpu.dot_dimension_numbers<[1], [0], [0], [1], [0, 0, 1, 1], [], []>} : vector<16x64xf32>, vector<64x32xf32>, vector<16x32xf32> -> vector<16x32xf32>
    %678 = arith.addf %630, %677 : vector<16x32xf32>
    %c1_516 = arith.constant 1 : index
    %c0_517 = arith.constant 0 : index
    %c0_518 = arith.constant 0 : index
    %679 = vector.load %arg21[%c1_516, %c0_517, %c0_518] : memref<2x1x32xf32, #tpu.memory_space<vmem>>, vector<1x1x32xf32>
    %680 = vector.shape_cast %679 : vector<1x1x32xf32> to vector<1x32xf32>
    %681 = vector.broadcast %680 : vector<1x32xf32> to vector<16x32xf32>
    %682 = arith.addf %678, %681 : vector<16x32xf32>
    %c0_519 = arith.constant 0 : index
    %c0_520 = arith.constant 0 : index
    %683 = vector.load %arg22[%c0_519, %c0_520] : memref<1x32xf32, #tpu.memory_space<vmem>>, vector<1x32xf32>
    %c0_521 = arith.constant 0 : index
    %c0_522 = arith.constant 0 : index
    %684 = vector.load %arg23[%c0_521, %c0_522] : memref<1x32xf32, #tpu.memory_space<vmem>>, vector<1x32xf32>
    %cst_523 = arith.constant dense<0.000000e+00> : vector<16xf32>
    %685 = vector.multi_reduction <add>, %682, %cst_523 [1] : vector<16x32xf32> to vector<16xf32>
    %686 = vector.shape_cast %685 : vector<16xf32> to vector<16x1xf32>
    %cst_524 = arith.constant 3.200000e+01 : f32
    %687 = vector.broadcast %cst_524 : f32 to vector<16x1xf32>
    %688 = arith.divf %686, %687 : vector<16x1xf32>
    %689 = vector.broadcast %688 : vector<16x1xf32> to vector<16x32xf32>
    %690 = arith.subf %682, %689 : vector<16x32xf32>
    %691 = arith.mulf %690, %690 : vector<16x32xf32>
    %cst_525 = arith.constant dense<0.000000e+00> : vector<16xf32>
    %692 = vector.multi_reduction <add>, %691, %cst_525 [1] : vector<16x32xf32> to vector<16xf32>
    %693 = vector.shape_cast %692 : vector<16xf32> to vector<16x1xf32>
    %cst_526 = arith.constant 3.200000e+01 : f32
    %694 = vector.broadcast %cst_526 : f32 to vector<16x1xf32>
    %695 = arith.divf %693, %694 : vector<16x1xf32>
    %cst_527 = arith.constant 9.99999974E-6 : f32
    %696 = vector.broadcast %cst_527 : f32 to vector<16x1xf32>
    %697 = arith.addf %695, %696 : vector<16x1xf32>
    %698 = math.rsqrt %697 : vector<16x1xf32>
    %699 = vector.broadcast %698 : vector<16x1xf32> to vector<16x32xf32>
    %700 = arith.mulf %690, %699 : vector<16x32xf32>
    %701 = vector.broadcast %683 : vector<1x32xf32> to vector<16x32xf32>
    %702 = arith.mulf %700, %701 : vector<16x32xf32>
    %703 = vector.broadcast %684 : vector<1x32xf32> to vector<16x32xf32>
    %704 = arith.addf %702, %703 : vector<16x32xf32>
    %c0_528 = arith.constant 0 : index
    %c0_529 = arith.constant 0 : index
    %705 = vector.load %arg24[%c0_528, %c0_529] : memref<32x128xf32, #tpu.memory_space<vmem>>, vector<32x128xf32>
    %cst_530 = arith.constant dense<0.000000e+00> : vector<16x128xf32>
    %706 = tpu.matmul %704, %705, %cst_530 {dimension_numbers = #tpu.dot_dimension_numbers<[1], [0], [0], [1], [0, 0, 1, 1], [], []>} : vector<16x32xf32>, vector<32x128xf32>, vector<16x128xf32> -> vector<16x128xf32>
    %c0_531 = arith.constant 0 : index
    %c0_532 = arith.constant 0 : index
    %c0_533 = arith.constant 0 : index
    %707 = vector.load %arg25[%c0_531, %c0_532, %c0_533] : memref<1x16x128xf32, #tpu.memory_space<vmem>>, vector<1x16x128xf32>
    %708 = vector.shape_cast %707 : vector<1x16x128xf32> to vector<16x128xf32>
    %709 = vector.shape_cast %706 : vector<16x128xf32> to vector<1x16x128xf32>
    tpu.vector_store %arg25[%c0_531, %c0_532, %c0_533], %709 {strides = array<i32>} : memref<1x16x128xf32, #tpu.memory_space<vmem>>, vector<1x16x128xf32>,
    return
  }
  func.func @transform_0(%arg0: i32, %arg1: memref<2x16xi32, #tpu.memory_space<smem>>, %arg2: memref<2x16xi32, #tpu.memory_space<smem>>) -> (i32, i32, i32) {
    %c0_i32 = arith.constant 0 : i32
    %c0_i32_0 = arith.constant 0 : i32
    %c0_i32_1 = arith.constant 0 : i32
    %c0_i32_2 = arith.constant 0 : i32
    return %c0_i32, %c0_i32_0, %c0_i32_1 : i32, i32, i32
  }
  func.func @transform_1(%arg0: i32, %arg1: memref<2x16xi32, #tpu.memory_space<smem>>, %arg2: memref<2x16xi32, #tpu.memory_space<smem>>) -> (i32, i32, i32) {
    %c0_i32 = arith.constant 0 : i32
    %c0_i32_0 = arith.constant 0 : i32
    %c0_i32_1 = arith.constant 0 : i32
    %c0_i32_2 = arith.constant 0 : i32
    return %c0_i32, %c0_i32_0, %c0_i32_1 : i32, i32, i32
  }
  func.func @transform_2(%arg0: i32, %arg1: memref<2x16xi32, #tpu.memory_space<smem>>, %arg2: memref<2x16xi32, #tpu.memory_space<smem>>) -> (i32, i32) {
    %c0_i32 = arith.constant 0 : i32
    %c0_i32_0 = arith.constant 0 : i32
    %c0_i32_1 = arith.constant 0 : i32
    return %c0_i32, %c0_i32_0 : i32, i32
  }
  func.func @transform_3(%arg0: i32, %arg1: memref<2x16xi32, #tpu.memory_space<smem>>, %arg2: memref<2x16xi32, #tpu.memory_space<smem>>) -> (i32, i32, i32) {
    %c0_i32 = arith.constant 0 : i32
    %c0_i32_0 = arith.constant 0 : i32
    %c0_i32_1 = arith.constant 0 : i32
    %c0_i32_2 = arith.constant 0 : i32
    return %c0_i32, %c0_i32_0, %c0_i32_1 : i32, i32, i32
  }
  func.func @transform_4(%arg0: i32, %arg1: memref<2x16xi32, #tpu.memory_space<smem>>, %arg2: memref<2x16xi32, #tpu.memory_space<smem>>) -> (i32, i32, i32) {
    %c0_i32 = arith.constant 0 : i32
    %c0_i32_0 = arith.constant 0 : i32
    %c0_i32_1 = arith.constant 0 : i32
    %c0_i32_2 = arith.constant 0 : i32
    return %c0_i32, %c0_i32_0, %c0_i32_1 : i32, i32, i32
  }
  func.func @transform_5(%arg0: i32, %arg1: memref<2x16xi32, #tpu.memory_space<smem>>, %arg2: memref<2x16xi32, #tpu.memory_space<smem>>) -> (i32, i32, i32, i32) {
    %c0_i32 = arith.constant 0 : i32
    %c0_i32_0 = arith.constant 0 : i32
    %c0_i32_1 = arith.constant 0 : i32
    %c0_i32_2 = arith.constant 0 : i32
    %c0_i32_3 = arith.constant 0 : i32
    return %c0_i32, %c0_i32_0, %c0_i32_1, %c0_i32_2 : i32, i32, i32, i32
  }
  func.func @transform_6(%arg0: i32, %arg1: memref<2x16xi32, #tpu.memory_space<smem>>, %arg2: memref<2x16xi32, #tpu.memory_space<smem>>) -> (i32, i32, i32, i32) {
    %c0_i32 = arith.constant 0 : i32
    %c0_i32_0 = arith.constant 0 : i32
    %c0_i32_1 = arith.constant 0 : i32
    %c0_i32_2 = arith.constant 0 : i32
    %c0_i32_3 = arith.constant 0 : i32
    return %c0_i32, %c0_i32_0, %c0_i32_1, %c0_i32_2 : i32, i32, i32, i32
  }
  func.func @transform_7(%arg0: i32, %arg1: memref<2x16xi32, #tpu.memory_space<smem>>, %arg2: memref<2x16xi32, #tpu.memory_space<smem>>) -> (i32, i32, i32, i32) {
    %c0_i32 = arith.constant 0 : i32
    %c0_i32_0 = arith.constant 0 : i32
    %c0_i32_1 = arith.constant 0 : i32
    %c0_i32_2 = arith.constant 0 : i32
    %c0_i32_3 = arith.constant 0 : i32
    return %c0_i32, %c0_i32_0, %c0_i32_1, %c0_i32_2 : i32, i32, i32, i32
  }
  func.func @transform_8(%arg0: i32, %arg1: memref<2x16xi32, #tpu.memory_space<smem>>, %arg2: memref<2x16xi32, #tpu.memory_space<smem>>) -> (i32, i32, i32, i32) {
    %c0_i32 = arith.constant 0 : i32
    %c0_i32_0 = arith.constant 0 : i32
    %c0_i32_1 = arith.constant 0 : i32
    %c0_i32_2 = arith.constant 0 : i32
    %c0_i32_3 = arith.constant 0 : i32
    return %c0_i32, %c0_i32_0, %c0_i32_1, %c0_i32_2 : i32, i32, i32, i32
  }
  func.func @transform_9(%arg0: i32, %arg1: memref<2x16xi32, #tpu.memory_space<smem>>, %arg2: memref<2x16xi32, #tpu.memory_space<smem>>) -> (i32, i32, i32, i32) {
    %c0_i32 = arith.constant 0 : i32
    %c0_i32_0 = arith.constant 0 : i32
    %c0_i32_1 = arith.constant 0 : i32
    %c0_i32_2 = arith.constant 0 : i32
    %c0_i32_3 = arith.constant 0 : i32
    return %c0_i32, %c0_i32_0, %c0_i32_1, %c0_i32_2 : i32, i32, i32, i32
  }
  func.func @transform_10(%arg0: i32, %arg1: memref<2x16xi32, #tpu.memory_space<smem>>, %arg2: memref<2x16xi32, #tpu.memory_space<smem>>) -> (i32, i32, i32, i32) {
    %c0_i32 = arith.constant 0 : i32
    %c0_i32_0 = arith.constant 0 : i32
    %c0_i32_1 = arith.constant 0 : i32
    %c0_i32_2 = arith.constant 0 : i32
    %c0_i32_3 = arith.constant 0 : i32
    return %c0_i32, %c0_i32_0, %c0_i32_1, %c0_i32_2 : i32, i32, i32, i32
  }
  func.func @transform_11(%arg0: i32, %arg1: memref<2x16xi32, #tpu.memory_space<smem>>, %arg2: memref<2x16xi32, #tpu.memory_space<smem>>) -> (i32, i32, i32, i32) {
    %c0_i32 = arith.constant 0 : i32
    %c0_i32_0 = arith.constant 0 : i32
    %c0_i32_1 = arith.constant 0 : i32
    %c0_i32_2 = arith.constant 0 : i32
    %c0_i32_3 = arith.constant 0 : i32
    return %c0_i32, %c0_i32_0, %c0_i32_1, %c0_i32_2 : i32, i32, i32, i32
  }
  func.func @transform_12(%arg0: i32, %arg1: memref<2x16xi32, #tpu.memory_space<smem>>, %arg2: memref<2x16xi32, #tpu.memory_space<smem>>) -> (i32, i32, i32) {
    %c0_i32 = arith.constant 0 : i32
    %c0_i32_0 = arith.constant 0 : i32
    %c0_i32_1 = arith.constant 0 : i32
    %c0_i32_2 = arith.constant 0 : i32
    return %c0_i32, %c0_i32_0, %c0_i32_1 : i32, i32, i32
  }
  func.func @transform_13(%arg0: i32, %arg1: memref<2x16xi32, #tpu.memory_space<smem>>, %arg2: memref<2x16xi32, #tpu.memory_space<smem>>) -> (i32, i32, i32) {
    %c0_i32 = arith.constant 0 : i32
    %c0_i32_0 = arith.constant 0 : i32
    %c0_i32_1 = arith.constant 0 : i32
    %c0_i32_2 = arith.constant 0 : i32
    return %c0_i32, %c0_i32_0, %c0_i32_1 : i32, i32, i32
  }
  func.func @transform_14(%arg0: i32, %arg1: memref<2x16xi32, #tpu.memory_space<smem>>, %arg2: memref<2x16xi32, #tpu.memory_space<smem>>) -> (i32, i32, i32) {
    %c0_i32 = arith.constant 0 : i32
    %c0_i32_0 = arith.constant 0 : i32
    %c0_i32_1 = arith.constant 0 : i32
    %c0_i32_2 = arith.constant 0 : i32
    return %c0_i32, %c0_i32_0, %c0_i32_1 : i32, i32, i32
  }
  func.func @transform_15(%arg0: i32, %arg1: memref<2x16xi32, #tpu.memory_space<smem>>, %arg2: memref<2x16xi32, #tpu.memory_space<smem>>) -> (i32, i32, i32) {
    %c0_i32 = arith.constant 0 : i32
    %c0_i32_0 = arith.constant 0 : i32
    %c0_i32_1 = arith.constant 0 : i32
    %c0_i32_2 = arith.constant 0 : i32
    return %c0_i32, %c0_i32_0, %c0_i32_1 : i32, i32, i32
  }
  func.func @transform_16(%arg0: i32, %arg1: memref<2x16xi32, #tpu.memory_space<smem>>, %arg2: memref<2x16xi32, #tpu.memory_space<smem>>) -> (i32, i32, i32) {
    %c0_i32 = arith.constant 0 : i32
    %c0_i32_0 = arith.constant 0 : i32
    %c0_i32_1 = arith.constant 0 : i32
    %c0_i32_2 = arith.constant 0 : i32
    return %c0_i32, %c0_i32_0, %c0_i32_1 : i32, i32, i32
  }
  func.func @transform_17(%arg0: i32, %arg1: memref<2x16xi32, #tpu.memory_space<smem>>, %arg2: memref<2x16xi32, #tpu.memory_space<smem>>) -> (i32, i32, i32) {
    %c0_i32 = arith.constant 0 : i32
    %c0_i32_0 = arith.constant 0 : i32
    %c0_i32_1 = arith.constant 0 : i32
    %c0_i32_2 = arith.constant 0 : i32
    return %c0_i32, %c0_i32_0, %c0_i32_1 : i32, i32, i32
  }
  func.func @transform_18(%arg0: i32, %arg1: memref<2x16xi32, #tpu.memory_space<smem>>, %arg2: memref<2x16xi32, #tpu.memory_space<smem>>) -> (i32, i32, i32) {
    %c0_i32 = arith.constant 0 : i32
    %c0_i32_0 = arith.constant 0 : i32
    %c0_i32_1 = arith.constant 0 : i32
    %c0_i32_2 = arith.constant 0 : i32
    return %c0_i32, %c0_i32_0, %c0_i32_1 : i32, i32, i32
  }
  func.func @transform_19(%arg0: i32, %arg1: memref<2x16xi32, #tpu.memory_space<smem>>, %arg2: memref<2x16xi32, #tpu.memory_space<smem>>) -> (i32, i32) {
    %c0_i32 = arith.constant 0 : i32
    %c0_i32_0 = arith.constant 0 : i32
    %c0_i32_1 = arith.constant 0 : i32
    return %c0_i32, %c0_i32_0 : i32, i32
  }
  func.func @transform_20(%arg0: i32, %arg1: memref<2x16xi32, #tpu.memory_space<smem>>, %arg2: memref<2x16xi32, #tpu.memory_space<smem>>) -> (i32, i32) {
    %c0_i32 = arith.constant 0 : i32
    %c0_i32_0 = arith.constant 0 : i32
    %c0_i32_1 = arith.constant 0 : i32
    return %c0_i32, %c0_i32_0 : i32, i32
  }
  func.func @transform_21(%arg0: i32, %arg1: memref<2x16xi32, #tpu.memory_space<smem>>, %arg2: memref<2x16xi32, #tpu.memory_space<smem>>) -> (i32, i32) {
    %c0_i32 = arith.constant 0 : i32
    %c0_i32_0 = arith.constant 0 : i32
    %c0_i32_1 = arith.constant 0 : i32
    return %c0_i32, %c0_i32_0 : i32, i32
  }
  func.func @transform_22(%arg0: i32, %arg1: memref<2x16xi32, #tpu.memory_space<smem>>, %arg2: memref<2x16xi32, #tpu.memory_space<smem>>) -> (i32, i32, i32) {
    %c0_i32 = arith.constant 0 : i32
    %c0_i32_0 = arith.constant 0 : i32
    %c0_i32_1 = arith.constant 0 : i32
    return %arg0, %c0_i32, %c0_i32_0 : i32, i32, i32
  }
}

</mosaic_0001>

<llo_original>
// kernel: tpu_custom_call.1
$region0: #{tpu_custom_call.1}
  #allocation0 [shape = 'u32[]', space=smem, size = 0x4, offset = 0x4, fixed_abs, tag = 'smem constant byte address 0x4 - core index']
  #allocation1 [shape = 'u32[144,128]{1,0:T(1,128)}', space=vmem, size = 0x12000, scoped, tag = 'internal scratch']
  #allocation2 [shape = 'f32[16,32]{1,0:T(8,128)}', space=vmem, size = 0x2000, scoped, tag = 'scratch operand']
  #allocation3 [shape = 's32[1]{0}', space=sflag, size = 0x4, scoped, tag = 'scoped memory for tpu_custom_call.1']
  #allocation4 [shape = 'u8[1024]{0}', space=smem, size = 0x400, scoped, tag = 'prefetched SMEM operand 0']
  #allocation5 [shape = 'u8[1024]{0}', space=smem, size = 0x400, scoped, tag = 'prefetched SMEM operand 1']
  %s0 = inlined_call_operand.vmem [shape: s32[2,16], index: 0, kind: input, shape index: {}]
  %s1 = inlined_call_operand.vmem [shape: s32[2,16], index: 1, kind: input, shape index: {}]
  %s2 = inlined_call_operand.vmem [shape: f32[64,1,32], index: 2, kind: input, shape index: {}]
  %s3 = inlined_call_operand.vmem [shape: f32[4,1,32], index: 3, kind: input, shape index: {}]
  %s4 = inlined_call_operand.vmem [shape: f32[128,32], index: 4, kind: input, shape index: {}]
  %s5 = inlined_call_operand.vmem [shape: f32[2,1,32], index: 5, kind: input, shape index: {}]
  %s6 = inlined_call_operand.vmem [shape: f32[2,1,32], index: 6, kind: input, shape index: {}]
  %s7 = inlined_call_operand.vmem [shape: f32[2,4,32,8], index: 7, kind: input, shape index: {}]
  %s8 = inlined_call_operand.vmem [shape: f32[2,4,1,8], index: 8, kind: input, shape index: {}]
  %s9 = inlined_call_operand.vmem [shape: f32[2,4,32,8], index: 9, kind: input, shape index: {}]
  %s10 = inlined_call_operand.vmem [shape: f32[2,4,1,8], index: 10, kind: input, shape index: {}]
  %s11 = inlined_call_operand.vmem [shape: f32[2,4,32,8], index: 11, kind: input, shape index: {}]
  %s12 = inlined_call_operand.vmem [shape: f32[2,4,1,8], index: 12, kind: input, shape index: {}]
  %s13 = inlined_call_operand.vmem [shape: f32[2,4,8,32], index: 13, kind: input, shape index: {}]
  %s14 = inlined_call_operand.vmem [shape: f32[2,1,32], index: 14, kind: input, shape index: {}]
  %s15 = inlined_call_operand.vmem [shape: f32[2,1,32], index: 15, kind: input, shape index: {}]
  %s16 = inlined_call_operand.vmem [shape: f32[2,1,32], index: 16, kind: input, shape index: {}]
  %s17 = inlined_call_operand.vmem [shape: f32[2,32,64], index: 17, kind: input, shape index: {}]
  %s18 = inlined_call_operand.vmem [shape: f32[2,1,64], index: 18, kind: input, shape index: {}]
  %s19 = inlined_call_operand.vmem [shape: f32[2,64,32], index: 19, kind: input, shape index: {}]
  %s20 = inlined_call_operand.vmem [shape: f32[2,1,32], index: 20, kind: input, shape index: {}]
  %s21 = inlined_call_operand.vmem [shape: f32[1,32], index: 21, kind: input, shape index: {}]
  %s22 = inlined_call_operand.vmem [shape: f32[1,32], index: 22, kind: input, shape index: {}]
  %s23 = inlined_call_operand.vmem [shape: f32[32,128], index: 23, kind: input, shape index: {}]
  %s24 = inlined_call_operand.hbm [shape: f32[2,16,128], index: 24, kind: output, shape index: {}]
  %s25 = sld [smem:[#allocation0]]
  $region121: #{tpu_custom_call.1} parent=0
    _
  %s27 = ssub.s32 1, %s25
  %s28 = scalar_select 0, %s27, %s25
  %s29 = sshll.u32 %s0, 4
  %s30 = int_to_ptr.vmem [resolvable:$true] %s29
  %32 = dma.vmem_to_smem %s30, 32, [#allocation4], [#allocation3]
  %s33 = sshll.u32 %s1, 4
  %s34 = int_to_ptr.vmem [resolvable:$true] %s33
  %36 = dma.vmem_to_smem %s34, 32, [#allocation5], [#allocation3]
  %37 = dma.done [#allocation3], 64
  %38 = sfence
  $region1: #{tpu_custom_call.1} parent=0
    #allocation6 [shape = 'u8[16384]{0}', space=vmem, size = 0x4000, scoped, tag = 'output window, operand 0']
    #allocation7 [shape = 's32[2]{0}', space=sflag, size = 0x8, scoped, tag = 'scoped memory for tpu_custom_call.1']
    %39 = vsyncpa [#allocation7], 0
    %s40 = scalar_lea.sflag [#allocation7], 1
    %41 = vsyncpa %s40, 0
    loop: start=0, step=1, limit=4
    $region2: #{tpu_custom_call.1} parent=1 // loop_pre_header
      _
    $region3: #{tpu_custom_call.1} parent=1 // loop_header
      %s43 = sphi 0, %s47
      %p44 = scmp.ge.s32.totalorder %s43, 4
      %s51 = sphi 0, %s51
      %s53 = sphi 0, %s51
      %s54 = sphi 0, %s53
      %s68 = sphi 0, %s54
      %s72 = sphi 0, %s72
      %s74 = sphi 0, %s72
      %s75 = sphi 0, %s74
      %s89 = sphi 0, %s75
      %s93 = sphi 0, %s93
      %s95 = sphi 0, %s93
      %s96 = sphi 0, %s95
      %s110 = sphi 0, %s96
      %s114 = sphi 0, %s114
      %s116 = sphi 0, %s114
      %s117 = sphi 0, %s116
      %s131 = sphi 0, %s117
      %s135 = sphi 0, %s135
      %s137 = sphi 0, %s135
      %s138 = sphi 0, %s137
      %s152 = sphi 0, %s138
      %s156 = sphi 0, %s156
      %s158 = sphi 0, %s156
      %s159 = sphi 0, %s158
      %s173 = sphi 0, %s159
      %s177 = sphi 0, %s177
      %s179 = sphi 0, %s177
      %s180 = sphi 0, %s179
      %s194 = sphi 0, %s180
      %s198 = sphi 0, %s198
      %s200 = sphi 0, %s198
      %s201 = sphi 0, %s200
      %s215 = sphi 0, %s201
      %s219 = sphi 0, %s219
      %s221 = sphi 0, %s219
      %s222 = sphi 0, %s221
      %s236 = sphi 0, %s222
      %s240 = sphi 0, %s240
      %s242 = sphi 0, %s240
      %s243 = sphi 0, %s242
      %s257 = sphi 0, %s243
      %s261 = sphi 0, %s261
      %s263 = sphi 0, %s261
      %s264 = sphi 0, %s263
      %s278 = sphi 0, %s264
      %s282 = sphi 0, %s282
      %s284 = sphi 0, %s282
      %s285 = sphi 0, %s284
      %s299 = sphi 0, %s285
      %s303 = sphi 0, %s303
      %s305 = sphi 0, %s303
      %s306 = sphi 0, %s305
      %s320 = sphi 0, %s306
      %s324 = sphi 0, %s324
      %s326 = sphi 0, %s324
      %s327 = sphi 0, %s326
      %s341 = sphi 0, %s327
      %s345 = sphi 0, %s345
      %s347 = sphi 0, %s345
      %s348 = sphi 0, %s347
      %s362 = sphi 0, %s348
      %s366 = sphi 0, %s366
      %s368 = sphi 0, %s366
      %s369 = sphi 0, %s368
      %s383 = sphi 0, %s369
      %s387 = sphi 0, %s387
      %s389 = sphi 0, %s387
      %s390 = sphi 0, %s389
      %s404 = sphi 0, %s390
      %s408 = sphi 0, %s408
      %s410 = sphi 0, %s408
      %s411 = sphi 0, %s410
      %s425 = sphi 0, %s411
      %s429 = sphi 0, %s429
      %s431 = sphi 0, %s429
      %s432 = sphi 0, %s431
      %s446 = sphi 0, %s432
      %s450 = sphi 0, %s450
      %s452 = sphi 0, %s450
      %s453 = sphi 0, %s452
      %s467 = sphi 0, %s453
      %s471 = sphi 0, %s471
      %s473 = sphi 0, %s471
      %s474 = sphi 0, %s473
      %s488 = sphi 0, %s474
      %s492 = sphi 0, %s492
      %s494 = sphi 0, %s492
      %s495 = sphi 0, %s494
      %s509 = sphi 0, %s495
      %s515 = sphi 0, %s517
      %s518 = sphi 0, %s515
      %s519 = sphi 0, %s518
      %s535 = sphi 0, %s519
    $region4: #{tpu_custom_call.1} parent=1 // loop_header_branch
      %46 = sbr.rel (%p44) target = $region8
    $region5: #{tpu_custom_call.1} parent=1 // loop_body
      %s48 = ssub.s32 %s43, 1
      %s49 = ssub.s32 %s43, 2
      %s50 = sadd.s32 %s43, 1
      %s52 = sadd.s32 %s51, 1
      %p55 = scmp.eq.s32.totalorder %s43, 1
      %p56 = scmp.ne.s32.totalorder %s51, %s53
      %p57 = scmp.eq.s32.totalorder %s43, 0
      %p58 = por %p56, %p57
      %p59 = scmp.ne.s32.totalorder %s51, %s53
      %p60 = scmp.eq.s32.totalorder %s48, 1
      %p61 = por %p59, %p60
      %p62 = scmp.ne.s32.totalorder %s53, %s54
      %p63 = scmp.eq.s32.totalorder %s48, 0
      %p64 = por %p62, %p63
      %p65 = scmp.ne.s32.totalorder %s53, %s54
      %p66 = scmp.eq.s32.totalorder %s49, 1
      %p67 = por %p65, %p66
      %p69 = scmp.ne.s32.totalorder %s54, %s68
      %p70 = scmp.eq.s32.totalorder %s49, 0
      %p71 = por %p69, %p70
      %s73 = sadd.s32 %s72, 1
      %p76 = scmp.eq.s32.totalorder %s43, 1
      %p77 = scmp.ne.s32.totalorder %s72, %s74
      %p78 = scmp.eq.s32.totalorder %s43, 0
      %p79 = por %p77, %p78
      %p80 = scmp.ne.s32.totalorder %s72, %s74
      %p81 = scmp.eq.s32.totalorder %s48, 1
      %p82 = por %p80, %p81
      %p83 = scmp.ne.s32.totalorder %s74, %s75
      %p84 = scmp.eq.s32.totalorder %s48, 0
      %p85 = por %p83, %p84
      %p86 = scmp.ne.s32.totalorder %s74, %s75
      %p87 = scmp.eq.s32.totalorder %s49, 1
      %p88 = por %p86, %p87
      %p90 = scmp.ne.s32.totalorder %s75, %s89
      %p91 = scmp.eq.s32.totalorder %s49, 0
      %p92 = por %p90, %p91
      %s94 = sadd.s32 %s93, 1
      %p97 = scmp.eq.s32.totalorder %s43, 1
      %p98 = scmp.ne.s32.totalorder %s93, %s95
      %p99 = scmp.eq.s32.totalorder %s43, 0
      %p100 = por %p98, %p99
      %p101 = scmp.ne.s32.totalorder %s93, %s95
      %p102 = scmp.eq.s32.totalorder %s48, 1
      %p103 = por %p101, %p102
      %p104 = scmp.ne.s32.totalorder %s95, %s96
      %p105 = scmp.eq.s32.totalorder %s48, 0
      %p106 = por %p104, %p105
      %p107 = scmp.ne.s32.totalorder %s95, %s96
      %p108 = scmp.eq.s32.totalorder %s49, 1
      %p109 = por %p107, %p108
      %p111 = scmp.ne.s32.totalorder %s96, %s110
      %p112 = scmp.eq.s32.totalorder %s49, 0
      %p113 = por %p111, %p112
      %s115 = sadd.s32 %s114, 1
      %p118 = scmp.eq.s32.totalorder %s43, 1
      %p119 = scmp.ne.s32.totalorder %s114, %s116
      %p120 = scmp.eq.s32.totalorder %s43, 0
      %p121 = por %p119, %p120
      %p122 = scmp.ne.s32.totalorder %s114, %s116
      %p123 = scmp.eq.s32.totalorder %s48, 1
      %p124 = por %p122, %p123
      %p125 = scmp.ne.s32.totalorder %s116, %s117
      %p126 = scmp.eq.s32.totalorder %s48, 0
      %p127 = por %p125, %p126
      %p128 = scmp.ne.s32.totalorder %s116, %s117
      %p129 = scmp.eq.s32.totalorder %s49, 1
      %p130 = por %p128, %p129
      %p132 = scmp.ne.s32.totalorder %s117, %s131
      %p133 = scmp.eq.s32.totalorder %s49, 0
      %p134 = por %p132, %p133
      %s136 = sadd.s32 %s135, 1
      %p139 = scmp.eq.s32.totalorder %s43, 1
      %p140 = scmp.ne.s32.totalorder %s135, %s137
      %p141 = scmp.eq.s32.totalorder %s43, 0
      %p142 = por %p140, %p141
      %p143 = scmp.ne.s32.totalorder %s135, %s137
      %p144 = scmp.eq.s32.totalorder %s48, 1
      %p145 = por %p143, %p144
      %p146 = scmp.ne.s32.totalorder %s137, %s138
      %p147 = scmp.eq.s32.totalorder %s48, 0
      %p148 = por %p146, %p147
      %p149 = scmp.ne.s32.totalorder %s137, %s138
      %p150 = scmp.eq.s32.totalorder %s49, 1
      %p151 = por %p149, %p150
      %p153 = scmp.ne.s32.totalorder %s138, %s152
      %p154 = scmp.eq.s32.totalorder %s49, 0
      %p155 = por %p153, %p154
      %s157 = sadd.s32 %s156, 1
      %p160 = scmp.eq.s32.totalorder %s43, 1
      %p161 = scmp.ne.s32.totalorder %s156, %s158
      %p162 = scmp.eq.s32.totalorder %s43, 0
      %p163 = por %p161, %p162
      %p164 = scmp.ne.s32.totalorder %s156, %s158
      %p165 = scmp.eq.s32.totalorder %s48, 1
      %p166 = por %p164, %p165
      %p167 = scmp.ne.s32.totalorder %s158, %s159
      %p168 = scmp.eq.s32.totalorder %s48, 0
      %p169 = por %p167, %p168
      %p170 = scmp.ne.s32.totalorder %s158, %s159
      %p171 = scmp.eq.s32.totalorder %s49, 1
      %p172 = por %p170, %p171
      %p174 = scmp.ne.s32.totalorder %s159, %s173
      %p175 = scmp.eq.s32.totalorder %s49, 0
      %p176 = por %p174, %p175
      %s178 = sadd.s32 %s177, 1
      %p181 = scmp.eq.s32.totalorder %s43, 1
      %p182 = scmp.ne.s32.totalorder %s177, %s179
      %p183 = scmp.eq.s32.totalorder %s43, 0
      %p184 = por %p182, %p183
      %p185 = scmp.ne.s32.totalorder %s177, %s179
      %p186 = scmp.eq.s32.totalorder %s48, 1
      %p187 = por %p185, %p186
      %p188 = scmp.ne.s32.totalorder %s179, %s180
      %p189 = scmp.eq.s32.totalorder %s48, 0
      %p190 = por %p188, %p189
      %p191 = scmp.ne.s32.totalorder %s179, %s180
      %p192 = scmp.eq.s32.totalorder %s49, 1
      %p193 = por %p191, %p192
      %p195 = scmp.ne.s32.totalorder %s180, %s194
      %p196 = scmp.eq.s32.totalorder %s49, 0
      %p197 = por %p195, %p196
      %s199 = sadd.s32 %s198, 1
      %p202 = scmp.eq.s32.totalorder %s43, 1
      %p203 = scmp.ne.s32.totalorder %s198, %s200
      %p204 = scmp.eq.s32.totalorder %s43, 0
      %p205 = por %p203, %p204
      %p206 = scmp.ne.s32.totalorder %s198, %s200
      %p207 = scmp.eq.s32.totalorder %s48, 1
      %p208 = por %p206, %p207
      %p209 = scmp.ne.s32.totalorder %s200, %s201
      %p210 = scmp.eq.s32.totalorder %s48, 0
      %p211 = por %p209, %p210
      %p212 = scmp.ne.s32.totalorder %s200, %s201
      %p213 = scmp.eq.s32.totalorder %s49, 1
      %p214 = por %p212, %p213
      %p216 = scmp.ne.s32.totalorder %s201, %s215
      %p217 = scmp.eq.s32.totalorder %s49, 0
      %p218 = por %p216, %p217
      %s220 = sadd.s32 %s219, 1
      %p223 = scmp.eq.s32.totalorder %s43, 1
      %p224 = scmp.ne.s32.totalorder %s219, %s221
      %p225 = scmp.eq.s32.totalorder %s43, 0
      %p226 = por %p224, %p225
      %p227 = scmp.ne.s32.totalorder %s219, %s221
      %p228 = scmp.eq.s32.totalorder %s48, 1
      %p229 = por %p227, %p228
      %p230 = scmp.ne.s32.totalorder %s221, %s222
      %p231 = scmp.eq.s32.totalorder %s48, 0
      %p232 = por %p230, %p231
      %p233 = scmp.ne.s32.totalorder %s221, %s222
      %p234 = scmp.eq.s32.totalorder %s49, 1
      %p235 = por %p233, %p234
      %p237 = scmp.ne.s32.totalorder %s222, %s236
      %p238 = scmp.eq.s32.totalorder %s49, 0
      %p239 = por %p237, %p238
      %s241 = sadd.s32 %s240, 1
      %p244 = scmp.eq.s32.totalorder %s43, 1
      %p245 = scmp.ne.s32.totalorder %s240, %s242
      %p246 = scmp.eq.s32.totalorder %s43, 0
      %p247 = por %p245, %p246
      %p248 = scmp.ne.s32.totalorder %s240, %s242
      %p249 = scmp.eq.s32.totalorder %s48, 1
      %p250 = por %p248, %p249
      %p251 = scmp.ne.s32.totalorder %s242, %s243
      %p252 = scmp.eq.s32.totalorder %s48, 0
      %p253 = por %p251, %p252
      %p254 = scmp.ne.s32.totalorder %s242, %s243
      %p255 = scmp.eq.s32.totalorder %s49, 1
      %p256 = por %p254, %p255
      %p258 = scmp.ne.s32.totalorder %s243, %s257
      %p259 = scmp.eq.s32.totalorder %s49, 0
      %p260 = por %p258, %p259
      %s262 = sadd.s32 %s261, 1
      %p265 = scmp.eq.s32.totalorder %s43, 1
      %p266 = scmp.ne.s32.totalorder %s261, %s263
      %p267 = scmp.eq.s32.totalorder %s43, 0
      %p268 = por %p266, %p267
      %p269 = scmp.ne.s32.totalorder %s261, %s263
      %p270 = scmp.eq.s32.totalorder %s48, 1
      %p271 = por %p269, %p270
      %p272 = scmp.ne.s32.totalorder %s263, %s264
      %p273 = scmp.eq.s32.totalorder %s48, 0
      %p274 = por %p272, %p273
      %p275 = scmp.ne.s32.totalorder %s263, %s264
      %p276 = scmp.eq.s32.totalorder %s49, 1
      %p277 = por %p275, %p276
      %p279 = scmp.ne.s32.totalorder %s264, %s278
      %p280 = scmp.eq.s32.totalorder %s49, 0
      %p281 = por %p279, %p280
      %s283 = sadd.s32 %s282, 1
      %p286 = scmp.eq.s32.totalorder %s43, 1
      %p287 = scmp.ne.s32.totalorder %s282, %s284
      %p288 = scmp.eq.s32.totalorder %s43, 0
      %p289 = por %p287, %p288
      %p290 = scmp.ne.s32.totalorder %s282, %s284
      %p291 = scmp.eq.s32.totalorder %s48, 1
      %p292 = por %p290, %p291
      %p293 = scmp.ne.s32.totalorder %s284, %s285
      %p294 = scmp.eq.s32.totalorder %s48, 0
      %p295 = por %p293, %p294
      %p296 = scmp.ne.s32.totalorder %s284, %s285
      %p297 = scmp.eq.s32.totalorder %s49, 1
      %p298 = por %p296, %p297
      %p300 = scmp.ne.s32.totalorder %s285, %s299
      %p301 = scmp.eq.s32.totalorder %s49, 0
      %p302 = por %p300, %p301
      %s304 = sadd.s32 %s303, 1
      %p307 = scmp.eq.s32.totalorder %s43, 1
      %p308 = scmp.ne.s32.totalorder %s303, %s305
      %p309 = scmp.eq.s32.totalorder %s43, 0
      %p310 = por %p308, %p309
      %p311 = scmp.ne.s32.totalorder %s303, %s305
      %p312 = scmp.eq.s32.totalorder %s48, 1
      %p313 = por %p311, %p312
      %p314 = scmp.ne.s32.totalorder %s305, %s306
      %p315 = scmp.eq.s32.totalorder %s48, 0
      %p316 = por %p314, %p315
      %p317 = scmp.ne.s32.totalorder %s305, %s306
      %p318 = scmp.eq.s32.totalorder %s49, 1
      %p319 = por %p317, %p318
      %p321 = scmp.ne.s32.totalorder %s306, %s320
      %p322 = scmp.eq.s32.totalorder %s49, 0
      %p323 = por %p321, %p322
      %s325 = sadd.s32 %s324, 1
      %p328 = scmp.eq.s32.totalorder %s43, 1
      %p329 = scmp.ne.s32.totalorder %s324, %s326
      %p330 = scmp.eq.s32.totalorder %s43, 0
      %p331 = por %p329, %p330
      %p332 = scmp.ne.s32.totalorder %s324, %s326
      %p333 = scmp.eq.s32.totalorder %s48, 1
      %p334 = por %p332, %p333
      %p335 = scmp.ne.s32.totalorder %s326, %s327
      %p336 = scmp.eq.s32.totalorder %s48, 0
      %p337 = por %p335, %p336
      %p338 = scmp.ne.s32.totalorder %s326, %s327
      %p339 = scmp.eq.s32.totalorder %s49, 1
      %p340 = por %p338, %p339
      %p342 = scmp.ne.s32.totalorder %s327, %s341
      %p343 = scmp.eq.s32.totalorder %s49, 0
      %p344 = por %p342, %p343
      %s346 = sadd.s32 %s345, 1
      %p349 = scmp.eq.s32.totalorder %s43, 1
      %p350 = scmp.ne.s32.totalorder %s345, %s347
      %p351 = scmp.eq.s32.totalorder %s43, 0
      %p352 = por %p350, %p351
      %p353 = scmp.ne.s32.totalorder %s345, %s347
      %p354 = scmp.eq.s32.totalorder %s48, 1
      %p355 = por %p353, %p354
      %p356 = scmp.ne.s32.totalorder %s347, %s348
      %p357 = scmp.eq.s32.totalorder %s48, 0
      %p358 = por %p356, %p357
      %p359 = scmp.ne.s32.totalorder %s347, %s348
      %p360 = scmp.eq.s32.totalorder %s49, 1
      %p361 = por %p359, %p360
      %p363 = scmp.ne.s32.totalorder %s348, %s362
      %p364 = scmp.eq.s32.totalorder %s49, 0
      %p365 = por %p363, %p364
      %s367 = sadd.s32 %s366, 1
      %p370 = scmp.eq.s32.totalorder %s43, 1
      %p371 = scmp.ne.s32.totalorder %s366, %s368
      %p372 = scmp.eq.s32.totalorder %s43, 0
      %p373 = por %p371, %p372
      %p374 = scmp.ne.s32.totalorder %s366, %s368
      %p375 = scmp.eq.s32.totalorder %s48, 1
      %p376 = por %p374, %p375
      %p377 = scmp.ne.s32.totalorder %s368, %s369
      %p378 = scmp.eq.s32.totalorder %s48, 0
      %p379 = por %p377, %p378
      %p380 = scmp.ne.s32.totalorder %s368, %s369
      %p381 = scmp.eq.s32.totalorder %s49, 1
      %p382 = por %p380, %p381
      %p384 = scmp.ne.s32.totalorder %s369, %s383
      %p385 = scmp.eq.s32.totalorder %s49, 0
      %p386 = por %p384, %p385
      %s388 = sadd.s32 %s387, 1
      %p391 = scmp.eq.s32.totalorder %s43, 1
      %p392 = scmp.ne.s32.totalorder %s387, %s389
      %p393 = scmp.eq.s32.totalorder %s43, 0
      %p394 = por %p392, %p393
      %p395 = scmp.ne.s32.totalorder %s387, %s389
      %p396 = scmp.eq.s32.totalorder %s48, 1
      %p397 = por %p395, %p396
      %p398 = scmp.ne.s32.totalorder %s389, %s390
      %p399 = scmp.eq.s32.totalorder %s48, 0
      %p400 = por %p398, %p399
      %p401 = scmp.ne.s32.totalorder %s389, %s390
      %p402 = scmp.eq.s32.totalorder %s49, 1
      %p403 = por %p401, %p402
      %p405 = scmp.ne.s32.totalorder %s390, %s404
      %p406 = scmp.eq.s32.totalorder %s49, 0
      %p407 = por %p405, %p406
      %s409 = sadd.s32 %s408, 1
      %p412 = scmp.eq.s32.totalorder %s43, 1
      %p413 = scmp.ne.s32.totalorder %s408, %s410
      %p414 = scmp.eq.s32.totalorder %s43, 0
      %p415 = por %p413, %p414
      %p416 = scmp.ne.s32.totalorder %s408, %s410
      %p417 = scmp.eq.s32.totalorder %s48, 1
      %p418 = por %p416, %p417
      %p419 = scmp.ne.s32.totalorder %s410, %s411
      %p420 = scmp.eq.s32.totalorder %s48, 0
      %p421 = por %p419, %p420
      %p422 = scmp.ne.s32.totalorder %s410, %s411
      %p423 = scmp.eq.s32.totalorder %s49, 1
      %p424 = por %p422, %p423
      %p426 = scmp.ne.s32.totalorder %s411, %s425
      %p427 = scmp.eq.s32.totalorder %s49, 0
      %p428 = por %p426, %p427
      %s430 = sadd.s32 %s429, 1
      %p433 = scmp.eq.s32.totalorder %s43, 1
      %p434 = scmp.ne.s32.totalorder %s429, %s431
      %p435 = scmp.eq.s32.totalorder %s43, 0
      %p436 = por %p434, %p435
      %p437 = scmp.ne.s32.totalorder %s429, %s431
      %p438 = scmp.eq.s32.totalorder %s48, 1
      %p439 = por %p437, %p438
      %p440 = scmp.ne.s32.totalorder %s431, %s432
      %p441 = scmp.eq.s32.totalorder %s48, 0
      %p442 = por %p440, %p441
      %p443 = scmp.ne.s32.totalorder %s431, %s432
      %p444 = scmp.eq.s32.totalorder %s49, 1
      %p445 = por %p443, %p444
      %p447 = scmp.ne.s32.totalorder %s432, %s446
      %p448 = scmp.eq.s32.totalorder %s49, 0
      %p449 = por %p447, %p448
      %s451 = sadd.s32 %s450, 1
      %p454 = scmp.eq.s32.totalorder %s43, 1
      %p455 = scmp.ne.s32.totalorder %s450, %s452
      %p456 = scmp.eq.s32.totalorder %s43, 0
      %p457 = por %p455, %p456
      %p458 = scmp.ne.s32.totalorder %s450, %s452
      %p459 = scmp.eq.s32.totalorder %s48, 1
      %p460 = por %p458, %p459
      %p461 = scmp.ne.s32.totalorder %s452, %s453
      %p462 = scmp.eq.s32.totalorder %s48, 0
      %p463 = por %p461, %p462
      %p464 = scmp.ne.s32.totalorder %s452, %s453
      %p465 = scmp.eq.s32.totalorder %s49, 1
      %p466 = por %p464, %p465
      %p468 = scmp.ne.s32.totalorder %s453, %s467
      %p469 = scmp.eq.s32.totalorder %s49, 0
      %p470 = por %p468, %p469
      %s472 = sadd.s32 %s471, 1
      %p475 = scmp.eq.s32.totalorder %s43, 1
      %p476 = scmp.ne.s32.totalorder %s471, %s473
      %p477 = scmp.eq.s32.totalorder %s43, 0
      %p478 = por %p476, %p477
      %p479 = scmp.ne.s32.totalorder %s471, %s473
      %p480 = scmp.eq.s32.totalorder %s48, 1
      %p481 = por %p479, %p480
      %p482 = scmp.ne.s32.totalorder %s473, %s474
      %p483 = scmp.eq.s32.totalorder %s48, 0
      %p484 = por %p482, %p483
      %p485 = scmp.ne.s32.totalorder %s473, %s474
      %p486 = scmp.eq.s32.totalorder %s49, 1
      %p487 = por %p485, %p486
      %p489 = scmp.ne.s32.totalorder %s474, %s488
      %p490 = scmp.eq.s32.totalorder %s49, 0
      %p491 = por %p489, %p490
      %s493 = sadd.s32 %s492, 1
      %p496 = scmp.eq.s32.totalorder %s43, 1
      %p497 = scmp.ne.s32.totalorder %s492, %s494
      %p498 = scmp.eq.s32.totalorder %s43, 0
      %p499 = por %p497, %p498
      %p500 = scmp.ne.s32.totalorder %s492, %s494
      %p501 = scmp.eq.s32.totalorder %s48, 1
      %p502 = por %p500, %p501
      %p503 = scmp.ne.s32.totalorder %s494, %s495
      %p504 = scmp.eq.s32.totalorder %s48, 0
      %p505 = por %p503, %p504
      %p506 = scmp.ne.s32.totalorder %s494, %s495
      %p507 = scmp.eq.s32.totalorder %s49, 1
      %p508 = por %p506, %p507
      %p510 = scmp.ne.s32.totalorder %s495, %s509
      %p511 = scmp.eq.s32.totalorder %s49, 0
      %p512 = por %p510, %p511
      %s513 = ssub.s32 %s43, %s50
      %p514 = scmp.eq.s32.totalorder %s513, 0
      %s516 = sadd.s32 %s515, 1
      %s517 = scalar_select %p514, %s515, %s516
      %p520 = pneg %p514
      %p521 = scmp.eq.s32.totalorder %s43, 1
      %p522 = por %p520, %p521
      %p523 = scmp.ne.s32.totalorder %s515, %s518
      %p524 = scmp.eq.s32.totalorder %s43, 0
      %p525 = por %p523, %p524
      %p526 = scmp.ne.s32.totalorder %s515, %s518
      %p527 = scmp.eq.s32.totalorder %s48, 1
      %p528 = por %p526, %p527
      %p529 = scmp.ne.s32.totalorder %s518, %s519
      %p530 = scmp.eq.s32.totalorder %s48, 0
      %p531 = por %p529, %p530
      %p532 = scmp.ne.s32.totalorder %s518, %s519
      %p533 = scmp.eq.s32.totalorder %s49, 1
      %p534 = por %p532, %p533
      %p536 = scmp.ne.s32.totalorder %s519, %s535
      %p537 = scmp.eq.s32.totalorder %s49, 0
      %p538 = por %p536, %p537
      %p539 = scmp.le.s32.totalorder 1, %s43
      %p540 = scmp.lt.s32.totalorder %s43, 3
      %p541 = pnand %p539, %p540
      %p542 = pneg %p541
      // Predicated region
      $region9: #{tpu_custom_call.1} parent=5 // pred_check
        _
      $region10: #{tpu_custom_call.1} parent=5 // pred_check_branch
        %544 = sbr.rel (%p541) target = $region12
      $region11: #{tpu_custom_call.1} parent=5 // pred_region
        %s545 = ssub.s32 %s43, 1
        // Predicated region
        $region13: #{tpu_custom_call.1} parent=11 // pred_check
          %p546 = pneg %p64
        $region14: #{tpu_custom_call.1} parent=11 // pred_check_branch
          %548 = sbr.rel (%p546) target = $region16
        $region15: #{tpu_custom_call.1} parent=11 // pred_region
          _
        $region16: #{tpu_custom_call.1} parent=11 // pred_fallthru
          _
        // Predicated region
        $region17: #{tpu_custom_call.1} parent=11 // pred_check
          %p549 = pneg %p85
        $region18: #{tpu_custom_call.1} parent=11 // pred_check_branch
          %551 = sbr.rel (%p549) target = $region20
        $region19: #{tpu_custom_call.1} parent=11 // pred_region
          _
        $region20: #{tpu_custom_call.1} parent=11 // pred_fallthru
          _
        // Predicated region
        $region21: #{tpu_custom_call.1} parent=11 // pred_check
          %p552 = pneg %p106
        $region22: #{tpu_custom_call.1} parent=11 // pred_check_branch
          %554 = sbr.rel (%p552) target = $region24
        $region23: #{tpu_custom_call.1} parent=11 // pred_region
          _
        $region24: #{tpu_custom_call.1} parent=11 // pred_fallthru
          _
        // Predicated region
        $region25: #{tpu_custom_call.1} parent=11 // pred_check
          %p555 = pneg %p127
        $region26: #{tpu_custom_call.1} parent=11 // pred_check_branch
          %557 = sbr.rel (%p555) target = $region28
        $region27: #{tpu_custom_call.1} parent=11 // pred_region
          _
        $region28: #{tpu_custom_call.1} parent=11 // pred_fallthru
          _
        // Predicated region
        $region29: #{tpu_custom_call.1} parent=11 // pred_check
          %p558 = pneg %p148
        $region30: #{tpu_custom_call.1} parent=11 // pred_check_branch
          %560 = sbr.rel (%p558) target = $region32
        $region31: #{tpu_custom_call.1} parent=11 // pred_region
          _
        $region32: #{tpu_custom_call.1} parent=11 // pred_fallthru
          _
        // Predicated region
        $region33: #{tpu_custom_call.1} parent=11 // pred_check
          %p561 = pneg %p169
        $region34: #{tpu_custom_call.1} parent=11 // pred_check_branch
          %563 = sbr.rel (%p561) target = $region36
        $region35: #{tpu_custom_call.1} parent=11 // pred_region
          _
        $region36: #{tpu_custom_call.1} parent=11 // pred_fallthru
          _
        // Predicated region
        $region37: #{tpu_custom_call.1} parent=11 // pred_check
          %p564 = pneg %p190
        $region38: #{tpu_custom_call.1} parent=11 // pred_check_branch
          %566 = sbr.rel (%p564) target = $region40
        $region39: #{tpu_custom_call.1} parent=11 // pred_region
          _
        $region40: #{tpu_custom_call.1} parent=11 // pred_fallthru
          _
        // Predicated region
        $region41: #{tpu_custom_call.1} parent=11 // pred_check
          %p567 = pneg %p211
        $region42: #{tpu_custom_call.1} parent=11 // pred_check_branch
          %569 = sbr.rel (%p567) target = $region44
        $region43: #{tpu_custom_call.1} parent=11 // pred_region
          _
        $region44: #{tpu_custom_call.1} parent=11 // pred_fallthru
          _
        // Predicated region
        $region45: #{tpu_custom_call.1} parent=11 // pred_check
          %p570 = pneg %p232
        $region46: #{tpu_custom_call.1} parent=11 // pred_check_branch
          %572 = sbr.rel (%p570) target = $region48
        $region47: #{tpu_custom_call.1} parent=11 // pred_region
          _
        $region48: #{tpu_custom_call.1} parent=11 // pred_fallthru
          _
        // Predicated region
        $region49: #{tpu_custom_call.1} parent=11 // pred_check
          %p573 = pneg %p253
        $region50: #{tpu_custom_call.1} parent=11 // pred_check_branch
          %575 = sbr.rel (%p573) target = $region52
        $region51: #{tpu_custom_call.1} parent=11 // pred_region
          _
        $region52: #{tpu_custom_call.1} parent=11 // pred_fallthru
          _
        // Predicated region
        $region53: #{tpu_custom_call.1} parent=11 // pred_check
          %p576 = pneg %p274
        $region54: #{tpu_custom_call.1} parent=11 // pred_check_branch
          %578 = sbr.rel (%p576) target = $region56
        $region55: #{tpu_custom_call.1} parent=11 // pred_region
          _
        $region56: #{tpu_custom_call.1} parent=11 // pred_fallthru
          _
        // Predicated region
        $region57: #{tpu_custom_call.1} parent=11 // pred_check
          %p579 = pneg %p295
        $region58: #{tpu_custom_call.1} parent=11 // pred_check_branch
          %581 = sbr.rel (%p579) target = $region60
        $region59: #{tpu_custom_call.1} parent=11 // pred_region
          _
        $region60: #{tpu_custom_call.1} parent=11 // pred_fallthru
          _
        // Predicated region
        $region61: #{tpu_custom_call.1} parent=11 // pred_check
          %p582 = pneg %p316
        $region62: #{tpu_custom_call.1} parent=11 // pred_check_branch
          %584 = sbr.rel (%p582) target = $region64
        $region63: #{tpu_custom_call.1} parent=11 // pred_region
          _
        $region64: #{tpu_custom_call.1} parent=11 // pred_fallthru
          _
        // Predicated region
        $region65: #{tpu_custom_call.1} parent=11 // pred_check
          %p585 = pneg %p337
        $region66: #{tpu_custom_call.1} parent=11 // pred_check_branch
          %587 = sbr.rel (%p585) target = $region68
        $region67: #{tpu_custom_call.1} parent=11 // pred_region
          _
        $region68: #{tpu_custom_call.1} parent=11 // pred_fallthru
          _
        // Predicated region
        $region69: #{tpu_custom_call.1} parent=11 // pred_check
          %p588 = pneg %p358
        $region70: #{tpu_custom_call.1} parent=11 // pred_check_branch
          %590 = sbr.rel (%p588) target = $region72
        $region71: #{tpu_custom_call.1} parent=11 // pred_region
          _
        $region72: #{tpu_custom_call.1} parent=11 // pred_fallthru
          _
        // Predicated region
        $region73: #{tpu_custom_call.1} parent=11 // pred_check
          %p591 = pneg %p379
        $region74: #{tpu_custom_call.1} parent=11 // pred_check_branch
          %593 = sbr.rel (%p591) target = $region76
        $region75: #{tpu_custom_call.1} parent=11 // pred_region
          _
        $region76: #{tpu_custom_call.1} parent=11 // pred_fallthru
          _
        // Predicated region
        $region77: #{tpu_custom_call.1} parent=11 // pred_check
          %p594 = pneg %p400
        $region78: #{tpu_custom_call.1} parent=11 // pred_check_branch
          %596 = sbr.rel (%p594) target = $region80
        $region79: #{tpu_custom_call.1} parent=11 // pred_region
          _
        $region80: #{tpu_custom_call.1} parent=11 // pred_fallthru
          _
        // Predicated region
        $region81: #{tpu_custom_call.1} parent=11 // pred_check
          %p597 = pneg %p421
        $region82: #{tpu_custom_call.1} parent=11 // pred_check_branch
          %599 = sbr.rel (%p597) target = $region84
        $region83: #{tpu_custom_call.1} parent=11 // pred_region
          _
        $region84: #{tpu_custom_call.1} parent=11 // pred_fallthru
          _
        // Predicated region
        $region85: #{tpu_custom_call.1} parent=11 // pred_check
          %p600 = pneg %p442
        $region86: #{tpu_custom_call.1} parent=11 // pred_check_branch
          %602 = sbr.rel (%p600) target = $region88
        $region87: #{tpu_custom_call.1} parent=11 // pred_region
          _
        $region88: #{tpu_custom_call.1} parent=11 // pred_fallthru
          _
        // Predicated region
        $region89: #{tpu_custom_call.1} parent=11 // pred_check
          %p603 = pneg %p463
        $region90: #{tpu_custom_call.1} parent=11 // pred_check_branch
          %605 = sbr.rel (%p603) target = $region92
        $region91: #{tpu_custom_call.1} parent=11 // pred_region
          _
        $region92: #{tpu_custom_call.1} parent=11 // pred_fallthru
          _
        // Predicated region
        $region93: #{tpu_custom_call.1} parent=11 // pred_check
          %p606 = pneg %p484
        $region94: #{tpu_custom_call.1} parent=11 // pred_check_branch
          %608 = sbr.rel (%p606) target = $region96
        $region95: #{tpu_custom_call.1} parent=11 // pred_region
          _
        $region96: #{tpu_custom_call.1} parent=11 // pred_fallthru
          _
        // Predicated region
        $region97: #{tpu_custom_call.1} parent=11 // pred_check
          %p609 = pneg %p505
        $region98: #{tpu_custom_call.1} parent=11 // pred_check_branch
          %611 = sbr.rel (%p609) target = $region100
        $region99: #{tpu_custom_call.1} parent=11 // pred_region
          _
        $region100: #{tpu_custom_call.1} parent=11 // pred_fallthru
          _
      $region12: #{tpu_custom_call.1} parent=5 // pred_fallthru
        _
      %p612 = scmp.lt.s32.totalorder %s43, 2
      // Predicated region
      $region101: #{tpu_custom_call.1} parent=5 // pred_check
        %p613 = pneg %p612
      $region102: #{tpu_custom_call.1} parent=5 // pred_check_branch
        %615 = sbr.rel (%p613) target = $region104
      $region103: #{tpu_custom_call.1} parent=5 // pred_region
        _
      $region104: #{tpu_custom_call.1} parent=5 // pred_fallthru
        _
      %p616 = scmp.le.s32.totalorder 1, %s43
      %p617 = scmp.lt.s32.totalorder %s43, 3
      %p618 = pnand %p616, %p617
      %p619 = pneg %p618
      // Predicated region
      $region105: #{tpu_custom_call.1} parent=5 // pred_check
        _
      $region106: #{tpu_custom_call.1} parent=5 // pred_check_branch
        %621 = sbr.rel (%p618) target = $region108
      $region107: #{tpu_custom_call.1} parent=5 // pred_region
        %s622 = ssub.s32 %s43, 1
        %p623 = pneg %p64
        %p624 = pneg %p61
        %p625 = pneg %p85
        %p626 = pneg %p82
        %p627 = pneg %p106
        %p628 = pneg %p103
        %p629 = pneg %p127
        %p630 = pneg %p124
        %p631 = pneg %p148
        %p632 = pneg %p145
        %p633 = pneg %p169
        %p634 = pneg %p166
        %p635 = pneg %p190
        %p636 = pneg %p187
        %p637 = pneg %p211
        %p638 = pneg %p208
        %p639 = pneg %p232
        %p640 = pneg %p229
        %p641 = pneg %p253
        %p642 = pneg %p250
        %p643 = pneg %p274
        %p644 = pneg %p271
        %p645 = pneg %p295
        %p646 = pneg %p292
        %p647 = pneg %p316
        %p648 = pneg %p313
        %p649 = pneg %p337
        %p650 = pneg %p334
        %p651 = pneg %p358
        %p652 = pneg %p355
        %p653 = pneg %p379
        %p654 = pneg %p376
        %p655 = pneg %p400
        %p656 = pneg %p397
        %p657 = pneg %p421
        %p658 = pneg %p418
        %p659 = pneg %p442
        %p660 = pneg %p439
        %p661 = pneg %p463
        %p662 = pneg %p460
        %p663 = pneg %p484
        %p664 = pneg %p481
        %p665 = pneg %p505
        %p666 = pneg %p502
        %p667 = pneg %p531
        %p668 = pneg %p528
        %s669 = sand.u32 %s518, 1
        %s670 = scalar_lea.sflag [#allocation7], %s669
        %s671 = sand.u32 %s518, 1
        %s672 = smul.addr %s671, 16
        %s673 = scalar_lea.vmem [#allocation6], %s672
        %s674 = smul.u32 %s48, 128
        %s675 = sld [smem:[#allocation4 + %s674]]
        %s676 = sld [smem:[#allocation5 + %s674]]
        %p677 = scmp.gt.s32.totalorder %s676, 0
        %s678 = scalar_select %p677, %s676, 0
        %p679 = scmp.lt.s32.totalorder %s678, 3
        %s680 = scalar_select %p679, %s678, 3
        %s681 = scalar_lea.vmem %s2, %s675
        %v682 = vld [vmem:[%s681] sm:$0x1]
        %s683 = scalar_lea.vmem %s3, %s680
        %v684 = vld [vmem:[%s683] sm:$0x1]
        %v685 = vadd.f32 %v682, %v684
        %vm686 = vcmask 253952
        %687 = vst.msk [vmem:[#allocation2] sm:$0x1] %vm686, %v685
        %s688 = sadd.s32 %s674, 1
        %s689 = sld [smem:[#allocation4 + %s688]]
        %s690 = sld [smem:[#allocation5 + %s688]]
        %p691 = scmp.gt.s32.totalorder %s690, 0
        %s692 = scalar_select %p691, %s690, 0
        %p693 = scmp.lt.s32.totalorder %s692, 3
        %s694 = scalar_select %p693, %s692, 3
        %s695 = scalar_lea.vmem %s2, %s689
        %v696 = vld [vmem:[%s695] sm:$0x1]
        %s697 = scalar_lea.vmem %s3, %s694
        %v698 = vld [vmem:[%s697] sm:$0x1]
        %v699 = vadd.f32 %v696, %v698
        %700 = vst.msk [vmem:[#allocation2 + $0x1] sm:$0x1] %vm686, %v699
        %s701 = sadd.s32 %s674, 2
        %s702 = sld [smem:[#allocation4 + %s701]]
        %s703 = sld [smem:[#allocation5 + %s701]]
        %p704 = scmp.gt.s32.totalorder %s703, 0
        %s705 = scalar_select %p704, %s703, 0
        %p706 = scmp.lt.s32.totalorder %s705, 3
        %s707 = scalar_select %p706, %s705, 3
        %s708 = scalar_lea.vmem %s2, %s702
        %v709 = vld [vmem:[%s708] sm:$0x1]
        %s710 = scalar_lea.vmem %s3, %s707
        %v711 = vld [vmem:[%s710] sm:$0x1]
        %v712 = vadd.f32 %v709, %v711
        %713 = vst.msk [vmem:[#allocation2 + $0x2] sm:$0x1] %vm686, %v712
        %s714 = sadd.s32 %s674, 3
        %s715 = sld [smem:[#allocation4 + %s714]]
        %s716 = sld [smem:[#allocation5 + %s714]]
        %p717 = scmp.gt.s32.totalorder %s716, 0
        %s718 = scalar_select %p717, %s716, 0
        %p719 = scmp.lt.s32.totalorder %s718, 3
        %s720 = scalar_select %p719, %s718, 3
        %s721 = scalar_lea.vmem %s2, %s715
        %v722 = vld [vmem:[%s721] sm:$0x1]
        %s723 = scalar_lea.vmem %s3, %s720
        %v724 = vld [vmem:[%s723] sm:$0x1]
        %v725 = vadd.f32 %v722, %v724
        %726 = vst.msk [vmem:[#allocation2 + $0x3] sm:$0x1] %vm686, %v725
        %s727 = sadd.s32 %s674, 4
        %s728 = sld [smem:[#allocation4 + %s727]]
        %s729 = sld [smem:[#allocation5 + %s727]]
        %p730 = scmp.gt.s32.totalorder %s729, 0
        %s731 = scalar_select %p730, %s729, 0
        %p732 = scmp.lt.s32.totalorder %s731, 3
        %s733 = scalar_select %p732, %s731, 3
        %s734 = scalar_lea.vmem %s2, %s728
        %v735 = vld [vmem:[%s734] sm:$0x1]
        %s736 = scalar_lea.vmem %s3, %s733
        %v737 = vld [vmem:[%s736] sm:$0x1]
        %v738 = vadd.f32 %v735, %v737
        %739 = vst.msk [vmem:[#allocation2 + $0x4] sm:$0x1] %vm686, %v738
        %s740 = sadd.s32 %s674, 5
        %s741 = sld [smem:[#allocation4 + %s740]]
        %s742 = sld [smem:[#allocation5 + %s740]]
        %p743 = scmp.gt.s32.totalorder %s742, 0
        %s744 = scalar_select %p743, %s742, 0
        %p745 = scmp.lt.s32.totalorder %s744, 3
        %s746 = scalar_select %p745, %s744, 3
        %s747 = scalar_lea.vmem %s2, %s741
        %v748 = vld [vmem:[%s747] sm:$0x1]
        %s749 = scalar_lea.vmem %s3, %s746
        %v750 = vld [vmem:[%s749] sm:$0x1]
        %v751 = vadd.f32 %v748, %v750
        %752 = vst.msk [vmem:[#allocation2 + $0x5] sm:$0x1] %vm686, %v751
        %s753 = sadd.s32 %s674, 6
        %s754 = sld [smem:[#allocation4 + %s753]]
        %s755 = sld [smem:[#allocation5 + %s753]]
        %p756 = scmp.gt.s32.totalorder %s755, 0
        %s757 = scalar_select %p756, %s755, 0
        %p758 = scmp.lt.s32.totalorder %s757, 3
        %s759 = scalar_select %p758, %s757, 3
        %s760 = scalar_lea.vmem %s2, %s754
        %v761 = vld [vmem:[%s760] sm:$0x1]
        %s762 = scalar_lea.vmem %s3, %s759
        %v763 = vld [vmem:[%s762] sm:$0x1]
        %v764 = vadd.f32 %v761, %v763
        %765 = vst.msk [vmem:[#allocation2 + $0x6] sm:$0x1] %vm686, %v764
        %s766 = sadd.s32 %s674, 7
        %s767 = sld [smem:[#allocation4 + %s766]]
        %s768 = sld [smem:[#allocation5 + %s766]]
        %p769 = scmp.gt.s32.totalorder %s768, 0
        %s770 = scalar_select %p769, %s768, 0
        %p771 = scmp.lt.s32.totalorder %s770, 3
        %s772 = scalar_select %p771, %s770, 3
        %s773 = scalar_lea.vmem %s2, %s767
        %v774 = vld [vmem:[%s773] sm:$0x1]
        %s775 = scalar_lea.vmem %s3, %s772
        %v776 = vld [vmem:[%s775] sm:$0x1]
        %v777 = vadd.f32 %v774, %v776
        %778 = vst.msk [vmem:[#allocation2 + $0x7] sm:$0x1] %vm686, %v777
        %s779 = sadd.s32 %s674, 8
        %s780 = sld [smem:[#allocation4 + %s779]]
        %s781 = sld [smem:[#allocation5 + %s779]]
        %p782 = scmp.gt.s32.totalorder %s781, 0
        %s783 = scalar_select %p782, %s781, 0
        %p784 = scmp.lt.s32.totalorder %s783, 3
        %s785 = scalar_select %p784, %s783, 3
        %s786 = scalar_lea.vmem %s2, %s780
        %v787 = vld [vmem:[%s786] sm:$0x1]
        %s788 = scalar_lea.vmem %s3, %s785
        %v789 = vld [vmem:[%s788] sm:$0x1]
        %v790 = vadd.f32 %v787, %v789
        %791 = vst.msk [vmem:[#allocation2 + $0x8] sm:$0x1] %vm686, %v790
        %s792 = sadd.s32 %s674, 9
        %s793 = sld [smem:[#allocation4 + %s792]]
        %s794 = sld [smem:[#allocation5 + %s792]]
        %p795 = scmp.gt.s32.totalorder %s794, 0
        %s796 = scalar_select %p795, %s794, 0
        %p797 = scmp.lt.s32.totalorder %s796, 3
        %s798 = scalar_select %p797, %s796, 3
        %s799 = scalar_lea.vmem %s2, %s793
        %v800 = vld [vmem:[%s799] sm:$0x1]
        %s801 = scalar_lea.vmem %s3, %s798
        %v802 = vld [vmem:[%s801] sm:$0x1]
        %v803 = vadd.f32 %v800, %v802
        %804 = vst.msk [vmem:[#allocation2 + $0x9] sm:$0x1] %vm686, %v803
        %s805 = sadd.s32 %s674, 10
        %s806 = sld [smem:[#allocation4 + %s805]]
        %s807 = sld [smem:[#allocation5 + %s805]]
        %p808 = scmp.gt.s32.totalorder %s807, 0
        %s809 = scalar_select %p808, %s807, 0
        %p810 = scmp.lt.s32.totalorder %s809, 3
        %s811 = scalar_select %p810, %s809, 3
        %s812 = scalar_lea.vmem %s2, %s806
        %v813 = vld [vmem:[%s812] sm:$0x1]
        %s814 = scalar_lea.vmem %s3, %s811
        %v815 = vld [vmem:[%s814] sm:$0x1]
        %v816 = vadd.f32 %v813, %v815
        %817 = vst.msk [vmem:[#allocation2 + $0xa] sm:$0x1] %vm686, %v816
        %s818 = sadd.s32 %s674, 11
        %s819 = sld [smem:[#allocation4 + %s818]]
        %s820 = sld [smem:[#allocation5 + %s818]]
        %p821 = scmp.gt.s32.totalorder %s820, 0
        %s822 = scalar_select %p821, %s820, 0
        %p823 = scmp.lt.s32.totalorder %s822, 3
        %s824 = scalar_select %p823, %s822, 3
        %s825 = scalar_lea.vmem %s2, %s819
        %v826 = vld [vmem:[%s825] sm:$0x1]
        %s827 = scalar_lea.vmem %s3, %s824
        %v828 = vld [vmem:[%s827] sm:$0x1]
        %v829 = vadd.f32 %v826, %v828
        %830 = vst.msk [vmem:[#allocation2 + $0xb] sm:$0x1] %vm686, %v829
        %s831 = sadd.s32 %s674, 12
        %s832 = sld [smem:[#allocation4 + %s831]]
        %s833 = sld [smem:[#allocation5 + %s831]]
        %p834 = scmp.gt.s32.totalorder %s833, 0
        %s835 = scalar_select %p834, %s833, 0
        %p836 = scmp.lt.s32.totalorder %s835, 3
        %s837 = scalar_select %p836, %s835, 3
        %s838 = scalar_lea.vmem %s2, %s832
        %v839 = vld [vmem:[%s838] sm:$0x1]
        %s840 = scalar_lea.vmem %s3, %s837
        %v841 = vld [vmem:[%s840] sm:$0x1]
        %v842 = vadd.f32 %v839, %v841
        %843 = vst.msk [vmem:[#allocation2 + $0xc] sm:$0x1] %vm686, %v842
        %s844 = sadd.s32 %s674, 13
        %s845 = sld [smem:[#allocation4 + %s844]]
        %s846 = sld [smem:[#allocation5 + %s844]]
        %p847 = scmp.gt.s32.totalorder %s846, 0
        %s848 = scalar_select %p847, %s846, 0
        %p849 = scmp.lt.s32.totalorder %s848, 3
        %s850 = scalar_select %p849, %s848, 3
        %s851 = scalar_lea.vmem %s2, %s845
        %v852 = vld [vmem:[%s851] sm:$0x1]
        %s853 = scalar_lea.vmem %s3, %s850
        %v854 = vld [vmem:[%s853] sm:$0x1]
        %v855 = vadd.f32 %v852, %v854
        %856 = vst.msk [vmem:[#allocation2 + $0xd] sm:$0x1] %vm686, %v855
        %s857 = sadd.s32 %s674, 14
        %s858 = sld [smem:[#allocation4 + %s857]]
        %s859 = sld [smem:[#allocation5 + %s857]]
        %p860 = scmp.gt.s32.totalorder %s859, 0
        %s861 = scalar_select %p860, %s859, 0
        %p862 = scmp.lt.s32.totalorder %s861, 3
        %s863 = scalar_select %p862, %s861, 3
        %s864 = scalar_lea.vmem %s2, %s858
        %v865 = vld [vmem:[%s864] sm:$0x1]
        %s866 = scalar_lea.vmem %s3, %s863
        %v867 = vld [vmem:[%s866] sm:$0x1]
        %v868 = vadd.f32 %v865, %v867
        %869 = vst.msk [vmem:[#allocation2 + $0xe] sm:$0x1] %vm686, %v868
        %s870 = sadd.s32 %s674, 15
        %s871 = sld [smem:[#allocation4 + %s870]]
        %s872 = sld [smem:[#allocation5 + %s870]]
        %p873 = scmp.gt.s32.totalorder %s872, 0
        %s874 = scalar_select %p873, %s872, 0
        %p875 = scmp.lt.s32.totalorder %s874, 3
        %s876 = scalar_select %p875, %s874, 3
        %s877 = scalar_lea.vmem %s2, %s871
        %v878 = vld [vmem:[%s877] sm:$0x1]
        %s879 = scalar_lea.vmem %s3, %s876
        %v880 = vld [vmem:[%s879] sm:$0x1]
        %v881 = vadd.f32 %v878, %v880
        %882 = vst.msk [vmem:[#allocation2 + $0xf] sm:$0x1] %vm686, %v881
        %v883 = vld [vmem:[#allocation2] sm:$0xff]
        %v884 = vld [vmem:[#allocation2 + $0x8] sm:$0xff]
        %v885 = vld [vmem:[%s4] sm:$0xff]
        %v886 = vld [vmem:[%s4 + $0x8] sm:$0xff]
        %v887 = vadd.f32 %v883, %v885
        %v888 = vadd.f32 %v884, %v886
        %v889 = vld [vmem:[%s5] sm:$0x1]
        %v890 = vld [vmem:[%s6] sm:$0x1]
        %vm891 = vcmask 261120
        %v892 = vsel %vm891, %v887, 0.0
        %893 = vadd.xlane.f32.xlu0 %v892
        %v894 = vpop.xlane.xlu0 %893
        %v895 = vsel %vm891, %v888, 0.0
        %896 = vadd.xlane.f32.xlu0 %v895
        %v897 = vpop.xlane.xlu0 %896
        %v898 = vrcp.pop 32.0
        %v899 = vmul.f32 %v894, %v898
        %v900 = vmul.f32 %v897, %v898
        %v901 = vsub.f32 %v887, %v899
        %v902 = vsub.f32 %v888, %v900
        %v903 = vmul.f32 %v901, %v901
        %v904 = vmul.f32 %v902, %v902
        %v905 = vsel %vm891, %v903, 0.0
        %906 = vadd.xlane.f32.xlu0 %v905
        %v907 = vpop.xlane.xlu0 %906
        %v908 = vsel %vm891, %v904, 0.0
        %909 = vadd.xlane.f32.xlu0 %v908
        %v910 = vpop.xlane.xlu0 %909
        %v911 = vmul.f32 %v907, %v898
        %v912 = vmul.f32 %v910, %v898
        %v913 = vadd.f32 %v911, 1e-05
        %v914 = vadd.f32 %v912, 1e-05
        %v915 = vrsqrt.pop %v913
        %v916 = vrsqrt.pop %v914
        %v917 = vmul.f32 %v901, %v915
        %v918 = vmul.f32 %v902, %v916
        %v920 = vlaneseq
        %v921 = vshrl.u32 %v920, 7
        %v922 = vsub.s32 0, %v921
        %v923 = vrot.slane %v889, %v922
        %v925 = vmul.f32 %v917, %v923
        %v926 = vmul.f32 %v918, %v923
        %v928 = vlaneseq
        %v929 = vshrl.u32 %v928, 7
        %v930 = vsub.s32 0, %v929
        %v931 = vrot.slane %v890, %v930
        %v933 = vadd.f32 %v925, %v931
        %v934 = vadd.f32 %v926, %v931
        %v935 = vld [vmem:[%s7] sm:$0xff]
        %v936 = vld [vmem:[%s7 + $0x8] sm:$0xff]
        %v937 = vld [vmem:[%s7 + $0x10] sm:$0xff]
        %v938 = vld [vmem:[%s7 + $0x18] sm:$0xff]
        %v939 = vld [vmem:[%s8] sm:$0x1]
        %v941 = vlaneseq
        %v942 = vshrl.u32 %v941, 7
        %v943 = vsub.s32 0, %v942
        %v944 = vrot.slane %v939, %v943
        %v947 = vsel %vm891, %v933, 0
        %v950 = vsel %vm891, %v934, 0
        %952 = vmatprep.subr.mxu0 0.0
        %953 = vmatpush1.msra.mxu0 %v935
        %954 = vmatprep.subr.mxu0 0.0
        %955 = vmatpush1.msra.mxu0 %v936
        %956 = vmatprep.subr.mxu0 0.0
        %957 = vmatpush1.msra.mxu0 %v937
        %958 = vmatprep.subr.mxu0 0.0
        %959 = vmatpush1.msra.mxu0 %v938
        %960 = vmatprep.subr.mxu0 0.0
        %961 = vmatpush1.msra.mxu0 0.0
        %962 = vmatprep.subr.mxu0 0.0
        %963 = vmatpush1.msra.mxu0 0.0
        %964 = vmatprep.subr.mxu0 0.0
        %965 = vmatpush1.msra.mxu0 0.0
        %966 = vmatprep.subr.mxu0 0.0
        %967 = vmatpush1.msra.mxu0 0.0
        %968 = vmatprep.subr.mxu0 0.0
        %969 = vmatpush1.msra.mxu0 0.0
        %970 = vmatprep.subr.mxu0 0.0
        %971 = vmatpush1.msra.mxu0 0.0
        %972 = vmatprep.subr.mxu0 0.0
        %973 = vmatpush1.msra.mxu0 0.0
        %974 = vmatprep.subr.mxu0 0.0
        %975 = vmatpush1.msra.mxu0 0.0
        %976 = vmatprep.subr.mxu0 0.0
        %977 = vmatpush1.msra.mxu0 0.0
        %978 = vmatprep.subr.mxu0 0.0
        %979 = vmatpush1.msra.mxu0 0.0
        %980 = vmatprep.subr.mxu0 0.0
        %981 = vmatpush1.msra.mxu0 0.0
        %982 = vmatprep.subr.mxu0 0.0
        %983 = vmatpush1.msra.mxu0 0.0
        %984 = vmatprep.subr.mxu0 0.0
        %985 = vmatpush1.msra.mxu0 0.0
        %986 = vmatprep.subr.mxu0 0.0
        %987 = vmatpush1.msra.mxu0 0.0
        %988 = vmatprep.subr.mxu0 0.0
        %989 = vmatpush1.msra.mxu0 0.0
        %990 = vmatprep.subr.mxu0 0.0
        %991 = vmatpush1.msra.mxu0 0.0
        %992 = vmatprep.subr.mxu0 0.0
        %993 = vmatpush1.msra.mxu0 0.0
        %994 = vmatprep.subr.mxu0 0.0
        %995 = vmatpush1.msra.mxu0 0.0
        %996 = vmatprep.subr.mxu0 0.0
        %997 = vmatpush1.msra.mxu0 0.0
        %998 = vmatprep.subr.mxu0 0.0
        %999 = vmatpush1.msra.mxu0 0.0
        %1000 = vmatprep.subr.mxu0 0.0
        %1001 = vmatpush1.msra.mxu0 0.0
        %1002 = vmatprep.subr.mxu0 0.0
        %1003 = vmatpush1.msra.mxu0 0.0
        %1004 = vmatprep.subr.mxu0 0.0
        %1005 = vmatpush1.msra.mxu0 0.0
        %1006 = vmatprep.subr.mxu0 0.0
        %1007 = vmatpush1.msra.mxu0 0.0
        %1008 = vmatprep.subr.mxu0 0.0
        %1009 = vmatpush1.msra.mxu0 0.0
        %1010 = vmatprep.subr.mxu0 0.0
        %1011 = vmatpush1.msra.mxu0 0.0
        %1012 = vmatprep.subr.mxu0 0.0
        %1013 = vmatpush1.msra.mxu0 0.0
        %1014 = vmatprep.subr.mxu0 0.0
        %1015 = vmatpush1.msra.mxu0 0.0
        %1016 = vmatprep.mubr.f32.mxu0 0.0
        %1017 = vmatmul.mubr.f32.gmra.mrb[0].mxu0 %v947
        %v1018 = vpop.f32.mrb[0].mxu0
        %v1019 = vadd.f32 %v944, %v1018
        %v1020 = vpop.f32.mrb[0].mxu0
        %1021 = vmatprep.mubr.f32.mxu0 0.0
        %1022 = vmatmul.mubr.f32.gmra.mrb[0].mxu0 %v950
        %v1023 = vpop.f32.mrb[0].mxu0
        %v1024 = vadd.f32 %v944, %v1023
        %v1025 = vpop.f32.mrb[0].mxu0
        %1026 = vdwg.mxu0
        %v1027 = vld [vmem:[%s9] sm:$0xff]
        %v1028 = vld [vmem:[%s9 + $0x8] sm:$0xff]
        %v1029 = vld [vmem:[%s9 + $0x10] sm:$0xff]
        %v1030 = vld [vmem:[%s9 + $0x18] sm:$0xff]
        %v1031 = vld [vmem:[%s10] sm:$0x1]
        %v1033 = vlaneseq
        %v1034 = vshrl.u32 %v1033, 7
        %v1035 = vsub.s32 0, %v1034
        %v1036 = vrot.slane %v1031, %v1035
        %1038 = vmatprep.subr.mxu0 0.0
        %1039 = vmatpush1.msra.mxu0 %v1027
        %1040 = vmatprep.subr.mxu0 0.0
        %1041 = vmatpush1.msra.mxu0 %v1028
        %1042 = vmatprep.subr.mxu0 0.0
        %1043 = vmatpush1.msra.mxu0 %v1029
        %1044 = vmatprep.subr.mxu0 0.0
        %1045 = vmatpush1.msra.mxu0 %v1030
        %1046 = vmatprep.subr.mxu0 0.0
        %1047 = vmatpush1.msra.mxu0 0.0
        %1048 = vmatprep.subr.mxu0 0.0
        %1049 = vmatpush1.msra.mxu0 0.0
        %1050 = vmatprep.subr.mxu0 0.0
        %1051 = vmatpush1.msra.mxu0 0.0
        %1052 = vmatprep.subr.mxu0 0.0
        %1053 = vmatpush1.msra.mxu0 0.0
        %1054 = vmatprep.subr.mxu0 0.0
        %1055 = vmatpush1.msra.mxu0 0.0
        %1056 = vmatprep.subr.mxu0 0.0
        %1057 = vmatpush1.msra.mxu0 0.0
        %1058 = vmatprep.subr.mxu0 0.0
        %1059 = vmatpush1.msra.mxu0 0.0
        %1060 = vmatprep.subr.mxu0 0.0
        %1061 = vmatpush1.msra.mxu0 0.0
        %1062 = vmatprep.subr.mxu0 0.0
        %1063 = vmatpush1.msra.mxu0 0.0
        %1064 = vmatprep.subr.mxu0 0.0
        %1065 = vmatpush1.msra.mxu0 0.0
        %1066 = vmatprep.subr.mxu0 0.0
        %1067 = vmatpush1.msra.mxu0 0.0
        %1068 = vmatprep.subr.mxu0 0.0
        %1069 = vmatpush1.msra.mxu0 0.0
        %1070 = vmatprep.subr.mxu0 0.0
        %1071 = vmatpush1.msra.mxu0 0.0
        %1072 = vmatprep.subr.mxu0 0.0
        %1073 = vmatpush1.msra.mxu0 0.0
        %1074 = vmatprep.subr.mxu0 0.0
        %1075 = vmatpush1.msra.mxu0 0.0
        %1076 = vmatprep.subr.mxu0 0.0
        %1077 = vmatpush1.msra.mxu0 0.0
        %1078 = vmatprep.subr.mxu0 0.0
        %1079 = vmatpush1.msra.mxu0 0.0
        %1080 = vmatprep.subr.mxu0 0.0
        %1081 = vmatpush1.msra.mxu0 0.0
        %1082 = vmatprep.subr.mxu0 0.0
        %1083 = vmatpush1.msra.mxu0 0.0
        %1084 = vmatprep.subr.mxu0 0.0
        %1085 = vmatpush1.msra.mxu0 0.0
        %1086 = vmatprep.subr.mxu0 0.0
        %1087 = vmatpush1.msra.mxu0 0.0
        %1088 = vmatprep.subr.mxu0 0.0
        %1089 = vmatpush1.msra.mxu0 0.0
        %1090 = vmatprep.subr.mxu0 0.0
        %1091 = vmatpush1.msra.mxu0 0.0
        %1092 = vmatprep.subr.mxu0 0.0
        %1093 = vmatpush1.msra.mxu0 0.0
        %1094 = vmatprep.subr.mxu0 0.0
        %1095 = vmatpush1.msra.mxu0 0.0
        %1096 = vmatprep.subr.mxu0 0.0
        %1097 = vmatpush1.msra.mxu0 0.0
        %1098 = vmatprep.subr.mxu0 0.0
        %1099 = vmatpush1.msra.mxu0 0.0
        %1100 = vmatprep.subr.mxu0 0.0
        %1101 = vmatpush1.msra.mxu0 0.0
        %1102 = vmatprep.mubr.f32.mxu0 0.0
        %1103 = vmatmul.mubr.f32.gmra.mrb[0].mxu0 %v947
        %v1104 = vpop.f32.mrb[0].mxu0
        %v1105 = vadd.f32 %v1036, %v1104
        %v1106 = vpop.f32.mrb[0].mxu0
        %1107 = vmatprep.mubr.f32.mxu0 0.0
        %1108 = vmatmul.mubr.f32.gmra.mrb[0].mxu0 %v950
        %v1109 = vpop.f32.mrb[0].mxu0
        %v1110 = vadd.f32 %v1036, %v1109
        %v1111 = vpop.f32.mrb[0].mxu0
        %1112 = vdwg.mxu0
        %v1113 = vld [vmem:[%s11] sm:$0xff]
        %v1114 = vld [vmem:[%s11 + $0x8] sm:$0xff]
        %v1115 = vld [vmem:[%s11 + $0x10] sm:$0xff]
        %v1116 = vld [vmem:[%s11 + $0x18] sm:$0xff]
        %v1117 = vld [vmem:[%s12] sm:$0x1]
        %v1119 = vlaneseq
        %v1120 = vshrl.u32 %v1119, 7
        %v1121 = vsub.s32 0, %v1120
        %v1122 = vrot.slane %v1117, %v1121
        %1124 = vmatprep.subr.mxu0 0.0
        %1125 = vmatpush1.msra.mxu0 %v1113
        %1126 = vmatprep.subr.mxu0 0.0
        %1127 = vmatpush1.msra.mxu0 %v1114
        %1128 = vmatprep.subr.mxu0 0.0
        %1129 = vmatpush1.msra.mxu0 %v1115
        %1130 = vmatprep.subr.mxu0 0.0
        %1131 = vmatpush1.msra.mxu0 %v1116
        %1132 = vmatprep.subr.mxu0 0.0
        %1133 = vmatpush1.msra.mxu0 0.0
        %1134 = vmatprep.subr.mxu0 0.0
        %1135 = vmatpush1.msra.mxu0 0.0
        %1136 = vmatprep.subr.mxu0 0.0
        %1137 = vmatpush1.msra.mxu0 0.0
        %1138 = vmatprep.subr.mxu0 0.0
        %1139 = vmatpush1.msra.mxu0 0.0
        %1140 = vmatprep.subr.mxu0 0.0
        %1141 = vmatpush1.msra.mxu0 0.0
        %1142 = vmatprep.subr.mxu0 0.0
        %1143 = vmatpush1.msra.mxu0 0.0
        %1144 = vmatprep.subr.mxu0 0.0
        %1145 = vmatpush1.msra.mxu0 0.0
        %1146 = vmatprep.subr.mxu0 0.0
        %1147 = vmatpush1.msra.mxu0 0.0
        %1148 = vmatprep.subr.mxu0 0.0
        %1149 = vmatpush1.msra.mxu0 0.0
        %1150 = vmatprep.subr.mxu0 0.0
        %1151 = vmatpush1.msra.mxu0 0.0
        %1152 = vmatprep.subr.mxu0 0.0
        %1153 = vmatpush1.msra.mxu0 0.0
        %1154 = vmatprep.subr.mxu0 0.0
        %1155 = vmatpush1.msra.mxu0 0.0
        %1156 = vmatprep.subr.mxu0 0.0
        %1157 = vmatpush1.msra.mxu0 0.0
        %1158 = vmatprep.subr.mxu0 0.0
        %1159 = vmatpush1.msra.mxu0 0.0
        %1160 = vmatprep.subr.mxu0 0.0
        %1161 = vmatpush1.msra.mxu0 0.0
        %1162 = vmatprep.subr.mxu0 0.0
        %1163 = vmatpush1.msra.mxu0 0.0
        %1164 = vmatprep.subr.mxu0 0.0
        %1165 = vmatpush1.msra.mxu0 0.0
        %1166 = vmatprep.subr.mxu0 0.0
        %1167 = vmatpush1.msra.mxu0 0.0
        %1168 = vmatprep.subr.mxu0 0.0
        %1169 = vmatpush1.msra.mxu0 0.0
        %1170 = vmatprep.subr.mxu0 0.0
        %1171 = vmatpush1.msra.mxu0 0.0
        %1172 = vmatprep.subr.mxu0 0.0
        %1173 = vmatpush1.msra.mxu0 0.0
        %1174 = vmatprep.subr.mxu0 0.0
        %1175 = vmatpush1.msra.mxu0 0.0
        %1176 = vmatprep.subr.mxu0 0.0
        %1177 = vmatpush1.msra.mxu0 0.0
        %1178 = vmatprep.subr.mxu0 0.0
        %1179 = vmatpush1.msra.mxu0 0.0
        %1180 = vmatprep.subr.mxu0 0.0
        %1181 = vmatpush1.msra.mxu0 0.0
        %1182 = vmatprep.subr.mxu0 0.0
        %1183 = vmatpush1.msra.mxu0 0.0
        %1184 = vmatprep.subr.mxu0 0.0
        %1185 = vmatpush1.msra.mxu0 0.0
        %1186 = vmatprep.subr.mxu0 0.0
        %1187 = vmatpush1.msra.mxu0 0.0
        %1188 = vmatprep.mubr.f32.mxu0 0.0
        %1189 = vmatmul.mubr.f32.gmra.mrb[0].mxu0 %v947
        %v1190 = vpop.f32.mrb[0].mxu0
        %v1191 = vadd.f32 %v1122, %v1190
        %v1192 = vpop.f32.mrb[0].mxu0
        %1193 = vmatprep.mubr.f32.mxu0 0.0
        %1194 = vmatmul.mubr.f32.gmra.mrb[0].mxu0 %v950
        %v1195 = vpop.f32.mrb[0].mxu0
        %v1196 = vadd.f32 %v1122, %v1195
        %v1197 = vpop.f32.mrb[0].mxu0
        %1198 = vdwg.mxu0
        %vm1199 = vcmask 64512
        %v1201 = vsel %vm1199, %v1019, 0
        %v1204 = vsel %vm1199, %v1024, 0
        %v1207 = vsel %vm1199, %v1105, 0
        %v1210 = vsel %vm1199, %v1110, 0
        %1212 = vmatprep.subr.mxu0 0.0
        %1213 = vmatpush1.xpose.msra.mxu0 %v1207
        %1214 = vmatprep.subr.mxu0 0.0
        %1215 = vmatpush1.xpose.msra.mxu0 %v1210
        %1216 = vmatprep.subr.mxu0 0.0
        %1217 = vmatpush1.xpose.msra.mxu0 0.0
        %1218 = vmatprep.subr.mxu0 0.0
        %1219 = vmatpush1.xpose.msra.mxu0 0.0
        %1220 = vmatprep.subr.mxu0 0.0
        %1221 = vmatpush1.xpose.msra.mxu0 0.0
        %1222 = vmatprep.subr.mxu0 0.0
        %1223 = vmatpush1.xpose.msra.mxu0 0.0
        %1224 = vmatprep.subr.mxu0 0.0
        %1225 = vmatpush1.xpose.msra.mxu0 0.0
        %1226 = vmatprep.subr.mxu0 0.0
        %1227 = vmatpush1.xpose.msra.mxu0 0.0
        %1228 = vmatprep.subr.mxu0 0.0
        %1229 = vmatpush1.xpose.msra.mxu0 0.0
        %1230 = vmatprep.subr.mxu0 0.0
        %1231 = vmatpush1.xpose.msra.mxu0 0.0
        %1232 = vmatprep.subr.mxu0 0.0
        %1233 = vmatpush1.xpose.msra.mxu0 0.0
        %1234 = vmatprep.subr.mxu0 0.0
        %1235 = vmatpush1.xpose.msra.mxu0 0.0
        %1236 = vmatprep.subr.mxu0 0.0
        %1237 = vmatpush1.xpose.msra.mxu0 0.0
        %1238 = vmatprep.subr.mxu0 0.0
        %1239 = vmatpush1.xpose.msra.mxu0 0.0
        %1240 = vmatprep.subr.mxu0 0.0
        %1241 = vmatpush1.xpose.msra.mxu0 0.0
        %1242 = vmatprep.subr.mxu0 0.0
        %1243 = vmatpush1.xpose.msra.mxu0 0.0
        %1244 = vmatprep.subr.mxu0 0.0
        %1245 = vmatpush1.xpose.msra.mxu0 0.0
        %1246 = vmatprep.subr.mxu0 0.0
        %1247 = vmatpush1.xpose.msra.mxu0 0.0
        %1248 = vmatprep.subr.mxu0 0.0
        %1249 = vmatpush1.xpose.msra.mxu0 0.0
        %1250 = vmatprep.subr.mxu0 0.0
        %1251 = vmatpush1.xpose.msra.mxu0 0.0
        %1252 = vmatprep.subr.mxu0 0.0
        %1253 = vmatpush1.xpose.msra.mxu0 0.0
        %1254 = vmatprep.subr.mxu0 0.0
        %1255 = vmatpush1.xpose.msra.mxu0 0.0
        %1256 = vmatprep.subr.mxu0 0.0
        %1257 = vmatpush1.xpose.msra.mxu0 0.0
        %1258 = vmatprep.subr.mxu0 0.0
        %1259 = vmatpush1.xpose.msra.mxu0 0.0
        %1260 = vmatprep.subr.mxu0 0.0
        %1261 = vmatpush1.xpose.msra.mxu0 0.0
        %1262 = vmatprep.subr.mxu0 0.0
        %1263 = vmatpush1.xpose.msra.mxu0 0.0
        %1264 = vmatprep.subr.mxu0 0.0
        %1265 = vmatpush1.xpose.msra.mxu0 0.0
        %1266 = vmatprep.subr.mxu0 0.0
        %1267 = vmatpush1.xpose.msra.mxu0 0.0
        %1268 = vmatprep.subr.mxu0 0.0
        %1269 = vmatpush1.xpose.msra.mxu0 0.0
        %1270 = vmatprep.subr.mxu0 0.0
        %1271 = vmatpush1.xpose.msra.mxu0 0.0
        %1272 = vmatprep.subr.mxu0 0.0
        %1273 = vmatpush1.xpose.msra.mxu0 0.0
        %1274 = vmatprep.subr.mxu0 0.0
        %1275 = vmatpush1.xpose.msra.mxu0 0.0
        %1276 = vmatprep.mubr.f32.mxu0 0.0
        %1277 = vmatmul.mubr.f32.gmra.mrb[0].mxu0 %v1201
        %v1278 = vpop.f32.mrb[0].mxu0
        %v1279 = vadd.f32 0.0, %v1278
        %v1280 = vpop.f32.mrb[0].mxu0
        %1281 = vmatprep.mubr.f32.mxu0 0.0
        %1282 = vmatmul.mubr.f32.gmra.mrb[0].mxu0 %v1204
        %v1283 = vpop.f32.mrb[0].mxu0
        %v1284 = vadd.f32 0.0, %v1283
        %v1285 = vpop.f32.mrb[0].mxu0
        %1286 = vdwg.mxu0
        %vm1287 = vcmask 130048
        %v1288 = vsel %vm1287, %v1279, -inf
        %1289 = vmax.xlane.f32.xlu0 %v1288
        %v1290 = vpop.xlane.xlu0 %1289
        %v1291 = vsel %vm1287, %v1284, -inf
        %1292 = vmax.xlane.f32.xlu0 %v1291
        %v1293 = vpop.xlane.xlu0 %1292
        %v1294 = vsub.f32 %v1279, %v1290
        %v1295 = vsub.f32 %v1284, %v1293
        %v1296 = vmul.f32 %v1294, 1.442695
        %v1297 = vpow.pop %v1296
        %v1298 = vmul.f32 %v1295, 1.442695
        %v1299 = vpow.pop %v1298
        %v1300 = vsel %vm1287, %v1297, 0.0
        %1301 = vadd.xlane.f32.xlu0 %v1300
        %v1302 = vpop.xlane.xlu0 %1301
        %v1303 = vsel %vm1287, %v1299, 0.0
        %1304 = vadd.xlane.f32.xlu0 %v1303
        %v1305 = vpop.xlane.xlu0 %1304
        %v1306 = vrcp.pop %v1302
        %v1307 = vmul.f32 %v1297, %v1306
        %v1308 = vrcp.pop %v1305
        %v1309 = vmul.f32 %v1299, %v1308
        %v1311 = vsel %vm1287, %v1307, 0
        %v1314 = vsel %vm1287, %v1309, 0
        %1316 = vmatprep.subr.mxu0 0.0
        %1317 = vmatpush1.msra.mxu0 %v1191
        %1318 = vmatprep.subr.mxu0 0.0
        %1319 = vmatpush1.msra.mxu0 %v1196
        %1320 = vmatprep.subr.mxu0 0.0
        %1321 = vmatpush1.msra.mxu0 0.0
        %1322 = vmatprep.subr.mxu0 0.0
        %1323 = vmatpush1.msra.mxu0 0.0
        %1324 = vmatprep.subr.mxu0 0.0
        %1325 = vmatpush1.msra.mxu0 0.0
        %1326 = vmatprep.subr.mxu0 0.0
        %1327 = vmatpush1.msra.mxu0 0.0
        %1328 = vmatprep.subr.mxu0 0.0
        %1329 = vmatpush1.msra.mxu0 0.0
        %1330 = vmatprep.subr.mxu0 0.0
        %1331 = vmatpush1.msra.mxu0 0.0
        %1332 = vmatprep.subr.mxu0 0.0
        %1333 = vmatpush1.msra.mxu0 0.0
        %1334 = vmatprep.subr.mxu0 0.0
        %1335 = vmatpush1.msra.mxu0 0.0
        %1336 = vmatprep.subr.mxu0 0.0
        %1337 = vmatpush1.msra.mxu0 0.0
        %1338 = vmatprep.subr.mxu0 0.0
        %1339 = vmatpush1.msra.mxu0 0.0
        %1340 = vmatprep.subr.mxu0 0.0
        %1341 = vmatpush1.msra.mxu0 0.0
        %1342 = vmatprep.subr.mxu0 0.0
        %1343 = vmatpush1.msra.mxu0 0.0
        %1344 = vmatprep.subr.mxu0 0.0
        %1345 = vmatpush1.msra.mxu0 0.0
        %1346 = vmatprep.subr.mxu0 0.0
        %1347 = vmatpush1.msra.mxu0 0.0
        %1348 = vmatprep.subr.mxu0 0.0
        %1349 = vmatpush1.msra.mxu0 0.0
        %1350 = vmatprep.subr.mxu0 0.0
        %1351 = vmatpush1.msra.mxu0 0.0
        %1352 = vmatprep.subr.mxu0 0.0
        %1353 = vmatpush1.msra.mxu0 0.0
        %1354 = vmatprep.subr.mxu0 0.0
        %1355 = vmatpush1.msra.mxu0 0.0
        %1356 = vmatprep.subr.mxu0 0.0
        %1357 = vmatpush1.msra.mxu0 0.0
        %1358 = vmatprep.subr.mxu0 0.0
        %1359 = vmatpush1.msra.mxu0 0.0
        %1360 = vmatprep.subr.mxu0 0.0
        %1361 = vmatpush1.msra.mxu0 0.0
        %1362 = vmatprep.subr.mxu0 0.0
        %1363 = vmatpush1.msra.mxu0 0.0
        %1364 = vmatprep.subr.mxu0 0.0
        %1365 = vmatpush1.msra.mxu0 0.0
        %1366 = vmatprep.subr.mxu0 0.0
        %1367 = vmatpush1.msra.mxu0 0.0
        %1368 = vmatprep.subr.mxu0 0.0
        %1369 = vmatpush1.msra.mxu0 0.0
        %1370 = vmatprep.subr.mxu0 0.0
        %1371 = vmatpush1.msra.mxu0 0.0
        %1372 = vmatprep.subr.mxu0 0.0
        %1373 = vmatpush1.msra.mxu0 0.0
        %1374 = vmatprep.subr.mxu0 0.0
        %1375 = vmatpush1.msra.mxu0 0.0
        %1376 = vmatprep.subr.mxu0 0.0
        %1377 = vmatpush1.msra.mxu0 0.0
        %1378 = vmatprep.subr.mxu0 0.0
        %1379 = vmatpush1.msra.mxu0 0.0
        %1380 = vmatprep.mubr.f32.mxu0 0.0
        %1381 = vmatmul.mubr.f32.gmra.mrb[0].mxu0 %v1311
        %v1382 = vpop.f32.mrb[0].mxu0
        %v1383 = vadd.f32 0.0, %v1382
        %v1384 = vpop.f32.mrb[0].mxu0
        %1385 = vmatprep.mubr.f32.mxu0 0.0
        %1386 = vmatmul.mubr.f32.gmra.mrb[0].mxu0 %v1314
        %v1387 = vpop.f32.mrb[0].mxu0
        %v1388 = vadd.f32 0.0, %v1387
        %v1389 = vpop.f32.mrb[0].mxu0
        %1390 = vdwg.mxu0
        %v1391 = vld [vmem:[%s13] sm:$0xff]
        %s1392 = scalar_lea.vmem %s7, 32
        %v1393 = vld [vmem:[%s1392] sm:$0xff]
        %v1394 = vld [vmem:[%s1392 + $0x8] sm:$0xff]
        %v1395 = vld [vmem:[%s1392 + $0x10] sm:$0xff]
        %v1396 = vld [vmem:[%s1392 + $0x18] sm:$0xff]
        %s1397 = scalar_lea.vmem %s8, 1
        %v1398 = vld [vmem:[%s1397] sm:$0x1]
        %v1400 = vlaneseq
        %v1401 = vshrl.u32 %v1400, 7
        %v1402 = vsub.s32 0, %v1401
        %v1403 = vrot.slane %v1398, %v1402
        %1405 = vmatprep.subr.mxu0 0.0
        %1406 = vmatpush1.msra.mxu0 %v1393
        %1407 = vmatprep.subr.mxu0 0.0
        %1408 = vmatpush1.msra.mxu0 %v1394
        %1409 = vmatprep.subr.mxu0 0.0
        %1410 = vmatpush1.msra.mxu0 %v1395
        %1411 = vmatprep.subr.mxu0 0.0
        %1412 = vmatpush1.msra.mxu0 %v1396
        %1413 = vmatprep.subr.mxu0 0.0
        %1414 = vmatpush1.msra.mxu0 0.0
        %1415 = vmatprep.subr.mxu0 0.0
        %1416 = vmatpush1.msra.mxu0 0.0
        %1417 = vmatprep.subr.mxu0 0.0
        %1418 = vmatpush1.msra.mxu0 0.0
        %1419 = vmatprep.subr.mxu0 0.0
        %1420 = vmatpush1.msra.mxu0 0.0
        %1421 = vmatprep.subr.mxu0 0.0
        %1422 = vmatpush1.msra.mxu0 0.0
        %1423 = vmatprep.subr.mxu0 0.0
        %1424 = vmatpush1.msra.mxu0 0.0
        %1425 = vmatprep.subr.mxu0 0.0
        %1426 = vmatpush1.msra.mxu0 0.0
        %1427 = vmatprep.subr.mxu0 0.0
        %1428 = vmatpush1.msra.mxu0 0.0
        %1429 = vmatprep.subr.mxu0 0.0
        %1430 = vmatpush1.msra.mxu0 0.0
        %1431 = vmatprep.subr.mxu0 0.0
        %1432 = vmatpush1.msra.mxu0 0.0
        %1433 = vmatprep.subr.mxu0 0.0
        %1434 = vmatpush1.msra.mxu0 0.0
        %1435 = vmatprep.subr.mxu0 0.0
        %1436 = vmatpush1.msra.mxu0 0.0
        %1437 = vmatprep.subr.mxu0 0.0
        %1438 = vmatpush1.msra.mxu0 0.0
        %1439 = vmatprep.subr.mxu0 0.0
        %1440 = vmatpush1.msra.mxu0 0.0
        %1441 = vmatprep.subr.mxu0 0.0
        %1442 = vmatpush1.msra.mxu0 0.0
        %1443 = vmatprep.subr.mxu0 0.0
        %1444 = vmatpush1.msra.mxu0 0.0
        %1445 = vmatprep.subr.mxu0 0.0
        %1446 = vmatpush1.msra.mxu0 0.0
        %1447 = vmatprep.subr.mxu0 0.0
        %1448 = vmatpush1.msra.mxu0 0.0
        %1449 = vmatprep.subr.mxu0 0.0
        %1450 = vmatpush1.msra.mxu0 0.0
        %1451 = vmatprep.subr.mxu0 0.0
        %1452 = vmatpush1.msra.mxu0 0.0
        %1453 = vmatprep.subr.mxu0 0.0
        %1454 = vmatpush1.msra.mxu0 0.0
        %1455 = vmatprep.subr.mxu0 0.0
        %1456 = vmatpush1.msra.mxu0 0.0
        %1457 = vmatprep.subr.mxu0 0.0
        %1458 = vmatpush1.msra.mxu0 0.0
        %1459 = vmatprep.subr.mxu0 0.0
        %1460 = vmatpush1.msra.mxu0 0.0
        %1461 = vmatprep.subr.mxu0 0.0
        %1462 = vmatpush1.msra.mxu0 0.0
        %1463 = vmatprep.subr.mxu0 0.0
        %1464 = vmatpush1.msra.mxu0 0.0
        %1465 = vmatprep.subr.mxu0 0.0
        %1466 = vmatpush1.msra.mxu0 0.0
        %1467 = vmatprep.subr.mxu0 0.0
        %1468 = vmatpush1.msra.mxu0 0.0
        %1469 = vmatprep.mubr.f32.mxu0 0.0
        %1470 = vmatmul.mubr.f32.gmra.mrb[0].mxu0 %v947
        %v1471 = vpop.f32.mrb[0].mxu0
        %v1472 = vadd.f32 %v1403, %v1471
        %v1473 = vpop.f32.mrb[0].mxu0
        %1474 = vmatprep.mubr.f32.mxu0 0.0
        %1475 = vmatmul.mubr.f32.gmra.mrb[0].mxu0 %v950
        %v1476 = vpop.f32.mrb[0].mxu0
        %v1477 = vadd.f32 %v1403, %v1476
        %v1478 = vpop.f32.mrb[0].mxu0
        %1479 = vdwg.mxu0
        %s1480 = scalar_lea.vmem %s9, 32
        %v1481 = vld [vmem:[%s1480] sm:$0xff]
        %v1482 = vld [vmem:[%s1480 + $0x8] sm:$0xff]
        %v1483 = vld [vmem:[%s1480 + $0x10] sm:$0xff]
        %v1484 = vld [vmem:[%s1480 + $0x18] sm:$0xff]
        %s1485 = scalar_lea.vmem %s10, 1
        %v1486 = vld [vmem:[%s1485] sm:$0x1]
        %v1488 = vlaneseq
        %v1489 = vshrl.u32 %v1488, 7
        %v1490 = vsub.s32 0, %v1489
        %v1491 = vrot.slane %v1486, %v1490
        %1493 = vmatprep.subr.mxu0 0.0
        %1494 = vmatpush1.msra.mxu0 %v1481
        %1495 = vmatprep.subr.mxu0 0.0
        %1496 = vmatpush1.msra.mxu0 %v1482
        %1497 = vmatprep.subr.mxu0 0.0
        %1498 = vmatpush1.msra.mxu0 %v1483
        %1499 = vmatprep.subr.mxu0 0.0
        %1500 = vmatpush1.msra.mxu0 %v1484
        %1501 = vmatprep.subr.mxu0 0.0
        %1502 = vmatpush1.msra.mxu0 0.0
        %1503 = vmatprep.subr.mxu0 0.0
        %1504 = vmatpush1.msra.mxu0 0.0
        %1505 = vmatprep.subr.mxu0 0.0
        %1506 = vmatpush1.msra.mxu0 0.0
        %1507 = vmatprep.subr.mxu0 0.0
        %1508 = vmatpush1.msra.mxu0 0.0
        %1509 = vmatprep.subr.mxu0 0.0
        %1510 = vmatpush1.msra.mxu0 0.0
        %1511 = vmatprep.subr.mxu0 0.0
        %1512 = vmatpush1.msra.mxu0 0.0
        %1513 = vmatprep.subr.mxu0 0.0
        %1514 = vmatpush1.msra.mxu0 0.0
        %1515 = vmatprep.subr.mxu0 0.0
        %1516 = vmatpush1.msra.mxu0 0.0
        %1517 = vmatprep.subr.mxu0 0.0
        %1518 = vmatpush1.msra.mxu0 0.0
        %1519 = vmatprep.subr.mxu0 0.0
        %1520 = vmatpush1.msra.mxu0 0.0
        %1521 = vmatprep.subr.mxu0 0.0
        %1522 = vmatpush1.msra.mxu0 0.0
        %1523 = vmatprep.subr.mxu0 0.0
        %1524 = vmatpush1.msra.mxu0 0.0
        %1525 = vmatprep.subr.mxu0 0.0
        %1526 = vmatpush1.msra.mxu0 0.0
        %1527 = vmatprep.subr.mxu0 0.0
        %1528 = vmatpush1.msra.mxu0 0.0
        %1529 = vmatprep.subr.mxu0 0.0
        %1530 = vmatpush1.msra.mxu0 0.0
        %1531 = vmatprep.subr.mxu0 0.0
        %1532 = vmatpush1.msra.mxu0 0.0
        %1533 = vmatprep.subr.mxu0 0.0
        %1534 = vmatpush1.msra.mxu0 0.0
        %1535 = vmatprep.subr.mxu0 0.0
        %1536 = vmatpush1.msra.mxu0 0.0
        %1537 = vmatprep.subr.mxu0 0.0
        %1538 = vmatpush1.msra.mxu0 0.0
        %1539 = vmatprep.subr.mxu0 0.0
        %1540 = vmatpush1.msra.mxu0 0.0
        %1541 = vmatprep.subr.mxu0 0.0
        %1542 = vmatpush1.msra.mxu0 0.0
        %1543 = vmatprep.subr.mxu0 0.0
        %1544 = vmatpush1.msra.mxu0 0.0
        %1545 = vmatprep.subr.mxu0 0.0
        %1546 = vmatpush1.msra.mxu0 0.0
        %1547 = vmatprep.subr.mxu0 0.0
        %1548 = vmatpush1.msra.mxu0 0.0
        %1549 = vmatprep.subr.mxu0 0.0
        %1550 = vmatpush1.msra.mxu0 0.0
        %1551 = vmatprep.subr.mxu0 0.0
        %1552 = vmatpush1.msra.mxu0 0.0
        %1553 = vmatprep.subr.mxu0 0.0
        %1554 = vmatpush1.msra.mxu0 0.0
        %1555 = vmatprep.subr.mxu0 0.0
        %1556 = vmatpush1.msra.mxu0 0.0
        %1557 = vmatprep.mubr.f32.mxu0 0.0
        %1558 = vmatmul.mubr.f32.gmra.mrb[0].mxu0 %v947
        %v1559 = vpop.f32.mrb[0].mxu0
        %v1560 = vadd.f32 %v1491, %v1559
        %v1561 = vpop.f32.mrb[0].mxu0
        %1562 = vmatprep.mubr.f32.mxu0 0.0
        %1563 = vmatmul.mubr.f32.gmra.mrb[0].mxu0 %v950
        %v1564 = vpop.f32.mrb[0].mxu0
        %v1565 = vadd.f32 %v1491, %v1564
        %v1566 = vpop.f32.mrb[0].mxu0
        %1567 = vdwg.mxu0
        %s1568 = scalar_lea.vmem %s11, 32
        %v1569 = vld [vmem:[%s1568] sm:$0xff]
        %v1570 = vld [vmem:[%s1568 + $0x8] sm:$0xff]
        %v1571 = vld [vmem:[%s1568 + $0x10] sm:$0xff]
        %v1572 = vld [vmem:[%s1568 + $0x18] sm:$0xff]
        %s1573 = scalar_lea.vmem %s12, 1
        %v1574 = vld [vmem:[%s1573] sm:$0x1]
        %v1576 = vlaneseq
        %v1577 = vshrl.u32 %v1576, 7
        %v1578 = vsub.s32 0, %v1577
        %v1579 = vrot.slane %v1574, %v1578
        %1581 = vmatprep.subr.mxu0 0.0
        %1582 = vmatpush1.msra.mxu0 %v1569
        %1583 = vmatprep.subr.mxu0 0.0
        %1584 = vmatpush1.msra.mxu0 %v1570
        %1585 = vmatprep.subr.mxu0 0.0
        %1586 = vmatpush1.msra.mxu0 %v1571
        %1587 = vmatprep.subr.mxu0 0.0
        %1588 = vmatpush1.msra.mxu0 %v1572
        %1589 = vmatprep.subr.mxu0 0.0
        %1590 = vmatpush1.msra.mxu0 0.0
        %1591 = vmatprep.subr.mxu0 0.0
        %1592 = vmatpush1.msra.mxu0 0.0
        %1593 = vmatprep.subr.mxu0 0.0
        %1594 = vmatpush1.msra.mxu0 0.0
        %1595 = vmatprep.subr.mxu0 0.0
        %1596 = vmatpush1.msra.mxu0 0.0
        %1597 = vmatprep.subr.mxu0 0.0
        %1598 = vmatpush1.msra.mxu0 0.0
        %1599 = vmatprep.subr.mxu0 0.0
        %1600 = vmatpush1.msra.mxu0 0.0
        %1601 = vmatprep.subr.mxu0 0.0
        %1602 = vmatpush1.msra.mxu0 0.0
        %1603 = vmatprep.subr.mxu0 0.0
        %1604 = vmatpush1.msra.mxu0 0.0
        %1605 = vmatprep.subr.mxu0 0.0
        %1606 = vmatpush1.msra.mxu0 0.0
        %1607 = vmatprep.subr.mxu0 0.0
        %1608 = vmatpush1.msra.mxu0 0.0
        %1609 = vmatprep.subr.mxu0 0.0
        %1610 = vmatpush1.msra.mxu0 0.0
        %1611 = vmatprep.subr.mxu0 0.0
        %1612 = vmatpush1.msra.mxu0 0.0
        %1613 = vmatprep.subr.mxu0 0.0
        %1614 = vmatpush1.msra.mxu0 0.0
        %1615 = vmatprep.subr.mxu0 0.0
        %1616 = vmatpush1.msra.mxu0 0.0
        %1617 = vmatprep.subr.mxu0 0.0
        %1618 = vmatpush1.msra.mxu0 0.0
        %1619 = vmatprep.subr.mxu0 0.0
        %1620 = vmatpush1.msra.mxu0 0.0
        %1621 = vmatprep.subr.mxu0 0.0
        %1622 = vmatpush1.msra.mxu0 0.0
        %1623 = vmatprep.subr.mxu0 0.0
        %1624 = vmatpush1.msra.mxu0 0.0
        %1625 = vmatprep.subr.mxu0 0.0
        %1626 = vmatpush1.msra.mxu0 0.0
        %1627 = vmatprep.subr.mxu0 0.0
        %1628 = vmatpush1.msra.mxu0 0.0
        %1629 = vmatprep.subr.mxu0 0.0
        %1630 = vmatpush1.msra.mxu0 0.0
        %1631 = vmatprep.subr.mxu0 0.0
        %1632 = vmatpush1.msra.mxu0 0.0
        %1633 = vmatprep.subr.mxu0 0.0
        %1634 = vmatpush1.msra.mxu0 0.0
        %1635 = vmatprep.subr.mxu0 0.0
        %1636 = vmatpush1.msra.mxu0 0.0
        %1637 = vmatprep.subr.mxu0 0.0
        %1638 = vmatpush1.msra.mxu0 0.0
        %1639 = vmatprep.subr.mxu0 0.0
        %1640 = vmatpush1.msra.mxu0 0.0
        %1641 = vmatprep.subr.mxu0 0.0
        %1642 = vmatpush1.msra.mxu0 0.0
        %1643 = vmatprep.subr.mxu0 0.0
        %1644 = vmatpush1.msra.mxu0 0.0
        %1645 = vmatprep.mubr.f32.mxu0 0.0
        %1646 = vmatmul.mubr.f32.gmra.mrb[0].mxu0 %v947
        %v1647 = vpop.f32.mrb[0].mxu0
        %v1648 = vadd.f32 %v1579, %v1647
        %v1649 = vpop.f32.mrb[0].mxu0
        %1650 = vmatprep.mubr.f32.mxu0 0.0
        %1651 = vmatmul.mubr.f32.gmra.mrb[0].mxu0 %v950
        %v1652 = vpop.f32.mrb[0].mxu0
        %v1653 = vadd.f32 %v1579, %v1652
        %v1654 = vpop.f32.mrb[0].mxu0
        %1655 = vdwg.mxu0
        %v1657 = vsel %vm1199, %v1472, 0
        %v1660 = vsel %vm1199, %v1477, 0
        %v1663 = vsel %vm1199, %v1560, 0
        %v1666 = vsel %vm1199, %v1565, 0
        %1668 = vmatprep.subr.mxu0 0.0
        %1669 = vmatpush1.xpose.msra.mxu0 %v1663
        %1670 = vmatprep.subr.mxu0 0.0
        %1671 = vmatpush1.xpose.msra.mxu0 %v1666
        %1672 = vmatprep.subr.mxu0 0.0
        %1673 = vmatpush1.xpose.msra.mxu0 0.0
        %1674 = vmatprep.subr.mxu0 0.0
        %1675 = vmatpush1.xpose.msra.mxu0 0.0
        %1676 = vmatprep.subr.mxu0 0.0
        %1677 = vmatpush1.xpose.msra.mxu0 0.0
        %1678 = vmatprep.subr.mxu0 0.0
        %1679 = vmatpush1.xpose.msra.mxu0 0.0
        %1680 = vmatprep.subr.mxu0 0.0
        %1681 = vmatpush1.xpose.msra.mxu0 0.0
        %1682 = vmatprep.subr.mxu0 0.0
        %1683 = vmatpush1.xpose.msra.mxu0 0.0
        %1684 = vmatprep.subr.mxu0 0.0
        %1685 = vmatpush1.xpose.msra.mxu0 0.0
        %1686 = vmatprep.subr.mxu0 0.0
        %1687 = vmatpush1.xpose.msra.mxu0 0.0
        %1688 = vmatprep.subr.mxu0 0.0
        %1689 = vmatpush1.xpose.msra.mxu0 0.0
        %1690 = vmatprep.subr.mxu0 0.0
        %1691 = vmatpush1.xpose.msra.mxu0 0.0
        %1692 = vmatprep.subr.mxu0 0.0
        %1693 = vmatpush1.xpose.msra.mxu0 0.0
        %1694 = vmatprep.subr.mxu0 0.0
        %1695 = vmatpush1.xpose.msra.mxu0 0.0
        %1696 = vmatprep.subr.mxu0 0.0
        %1697 = vmatpush1.xpose.msra.mxu0 0.0
        %1698 = vmatprep.subr.mxu0 0.0
        %1699 = vmatpush1.xpose.msra.mxu0 0.0
        %1700 = vmatprep.subr.mxu0 0.0
        %1701 = vmatpush1.xpose.msra.mxu0 0.0
        %1702 = vmatprep.subr.mxu0 0.0
        %1703 = vmatpush1.xpose.msra.mxu0 0.0
        %1704 = vmatprep.subr.mxu0 0.0
        %1705 = vmatpush1.xpose.msra.mxu0 0.0
        %1706 = vmatprep.subr.mxu0 0.0
        %1707 = vmatpush1.xpose.msra.mxu0 0.0
        %1708 = vmatprep.subr.mxu0 0.0
        %1709 = vmatpush1.xpose.msra.mxu0 0.0
        %1710 = vmatprep.subr.mxu0 0.0
        %1711 = vmatpush1.xpose.msra.mxu0 0.0
        %1712 = vmatprep.subr.mxu0 0.0
        %1713 = vmatpush1.xpose.msra.mxu0 0.0
        %1714 = vmatprep.subr.mxu0 0.0
        %1715 = vmatpush1.xpose.msra.mxu0 0.0
        %1716 = vmatprep.subr.mxu0 0.0
        %1717 = vmatpush1.xpose.msra.mxu0 0.0
        %1718 = vmatprep.subr.mxu0 0.0
        %1719 = vmatpush1.xpose.msra.mxu0 0.0
        %1720 = vmatprep.subr.mxu0 0.0
        %1721 = vmatpush1.xpose.msra.mxu0 0.0
        %1722 = vmatprep.subr.mxu0 0.0
        %1723 = vmatpush1.xpose.msra.mxu0 0.0
        %1724 = vmatprep.subr.mxu0 0.0
        %1725 = vmatpush1.xpose.msra.mxu0 0.0
        %1726 = vmatprep.subr.mxu0 0.0
        %1727 = vmatpush1.xpose.msra.mxu0 0.0
        %1728 = vmatprep.subr.mxu0 0.0
        %1729 = vmatpush1.xpose.msra.mxu0 0.0
        %1730 = vmatprep.subr.mxu0 0.0
        %1731 = vmatpush1.xpose.msra.mxu0 0.0
        %1732 = vmatprep.mubr.f32.mxu0 0.0
        %1733 = vmatmul.mubr.f32.gmra.mrb[0].mxu0 %v1657
        %v1734 = vpop.f32.mrb[0].mxu0
        %v1735 = vadd.f32 0.0, %v1734
        %v1736 = vpop.f32.mrb[0].mxu0
        %1737 = vmatprep.mubr.f32.mxu0 0.0
        %1738 = vmatmul.mubr.f32.gmra.mrb[0].mxu0 %v1660
        %v1739 = vpop.f32.mrb[0].mxu0
        %v1740 = vadd.f32 0.0, %v1739
        %v1741 = vpop.f32.mrb[0].mxu0
        %1742 = vdwg.mxu0
        %v1743 = vsel %vm1287, %v1735, -inf
        %1744 = vmax.xlane.f32.xlu0 %v1743
        %v1745 = vpop.xlane.xlu0 %1744
        %v1746 = vsel %vm1287, %v1740, -inf
        %1747 = vmax.xlane.f32.xlu0 %v1746
        %v1748 = vpop.xlane.xlu0 %1747
        %v1749 = vsub.f32 %v1735, %v1745
        %v1750 = vsub.f32 %v1740, %v1748
        %v1751 = vmul.f32 %v1749, 1.442695
        %v1752 = vpow.pop %v1751
        %v1753 = vmul.f32 %v1750, 1.442695
        %v1754 = vpow.pop %v1753
        %v1755 = vsel %vm1287, %v1752, 0.0
        %1756 = vadd.xlane.f32.xlu0 %v1755
        %v1757 = vpop.xlane.xlu0 %1756
        %v1758 = vsel %vm1287, %v1754, 0.0
        %1759 = vadd.xlane.f32.xlu0 %v1758
        %v1760 = vpop.xlane.xlu0 %1759
        %v1761 = vrcp.pop %v1757
        %v1762 = vmul.f32 %v1752, %v1761
        %v1763 = vrcp.pop %v1760
        %v1764 = vmul.f32 %v1754, %v1763
        %v1766 = vsel %vm1287, %v1762, 0
        %v1769 = vsel %vm1287, %v1764, 0
        %1771 = vmatprep.subr.mxu0 0.0
        %1772 = vmatpush1.msra.mxu0 %v1648
        %1773 = vmatprep.subr.mxu0 0.0
        %1774 = vmatpush1.msra.mxu0 %v1653
        %1775 = vmatprep.subr.mxu0 0.0
        %1776 = vmatpush1.msra.mxu0 0.0
        %1777 = vmatprep.subr.mxu0 0.0
        %1778 = vmatpush1.msra.mxu0 0.0
        %1779 = vmatprep.subr.mxu0 0.0
        %1780 = vmatpush1.msra.mxu0 0.0
        %1781 = vmatprep.subr.mxu0 0.0
        %1782 = vmatpush1.msra.mxu0 0.0
        %1783 = vmatprep.subr.mxu0 0.0
        %1784 = vmatpush1.msra.mxu0 0.0
        %1785 = vmatprep.subr.mxu0 0.0
        %1786 = vmatpush1.msra.mxu0 0.0
        %1787 = vmatprep.subr.mxu0 0.0
        %1788 = vmatpush1.msra.mxu0 0.0
        %1789 = vmatprep.subr.mxu0 0.0
        %1790 = vmatpush1.msra.mxu0 0.0
        %1791 = vmatprep.subr.mxu0 0.0
        %1792 = vmatpush1.msra.mxu0 0.0
        %1793 = vmatprep.subr.mxu0 0.0
        %1794 = vmatpush1.msra.mxu0 0.0
        %1795 = vmatprep.subr.mxu0 0.0
        %1796 = vmatpush1.msra.mxu0 0.0
        %1797 = vmatprep.subr.mxu0 0.0
        %1798 = vmatpush1.msra.mxu0 0.0
        %1799 = vmatprep.subr.mxu0 0.0
        %1800 = vmatpush1.msra.mxu0 0.0
        %1801 = vmatprep.subr.mxu0 0.0
        %1802 = vmatpush1.msra.mxu0 0.0
        %1803 = vmatprep.subr.mxu0 0.0
        %1804 = vmatpush1.msra.mxu0 0.0
        %1805 = vmatprep.subr.mxu0 0.0
        %1806 = vmatpush1.msra.mxu0 0.0
        %1807 = vmatprep.subr.mxu0 0.0
        %1808 = vmatpush1.msra.mxu0 0.0
        %1809 = vmatprep.subr.mxu0 0.0
        %1810 = vmatpush1.msra.mxu0 0.0
        %1811 = vmatprep.subr.mxu0 0.0
        %1812 = vmatpush1.msra.mxu0 0.0
        %1813 = vmatprep.subr.mxu0 0.0
        %1814 = vmatpush1.msra.mxu0 0.0
        %1815 = vmatprep.subr.mxu0 0.0
        %1816 = vmatpush1.msra.mxu0 0.0
        %1817 = vmatprep.subr.mxu0 0.0
        %1818 = vmatpush1.msra.mxu0 0.0
        %1819 = vmatprep.subr.mxu0 0.0
        %1820 = vmatpush1.msra.mxu0 0.0
        %1821 = vmatprep.subr.mxu0 0.0
        %1822 = vmatpush1.msra.mxu0 0.0
        %1823 = vmatprep.subr.mxu0 0.0
        %1824 = vmatpush1.msra.mxu0 0.0
        %1825 = vmatprep.subr.mxu0 0.0
        %1826 = vmatpush1.msra.mxu0 0.0
        %1827 = vmatprep.subr.mxu0 0.0
        %1828 = vmatpush1.msra.mxu0 0.0
        %1829 = vmatprep.subr.mxu0 0.0
        %1830 = vmatpush1.msra.mxu0 0.0
        %1831 = vmatprep.subr.mxu0 0.0
        %1832 = vmatpush1.msra.mxu0 0.0
        %1833 = vmatprep.subr.mxu0 0.0
        %1834 = vmatpush1.msra.mxu0 0.0
        %1835 = vmatprep.mubr.f32.mxu0 0.0
        %1836 = vmatmul.mubr.f32.gmra.mrb[0].mxu0 %v1766
        %v1837 = vpop.f32.mrb[0].mxu0
        %v1838 = vadd.f32 0.0, %v1837
        %v1839 = vpop.f32.mrb[0].mxu0
        %1840 = vmatprep.mubr.f32.mxu0 0.0
        %1841 = vmatmul.mubr.f32.gmra.mrb[0].mxu0 %v1769
        %v1842 = vpop.f32.mrb[0].mxu0
        %v1843 = vadd.f32 0.0, %v1842
        %v1844 = vpop.f32.mrb[0].mxu0
        %1845 = vdwg.mxu0
        %s1846 = scalar_lea.vmem %s13, 8
        %v1847 = vld [vmem:[%s1846] sm:$0xff]
        %v1849 = vsel %vm1199, %v1838, 0
        %v1852 = vsel %vm1199, %v1843, 0
        %1854 = vmatprep.subr.mxu0 0.0
        %1855 = vmatpush1.msra.mxu0 %v1847
        %1856 = vmatprep.subr.mxu0 0.0
        %1857 = vmatpush1.msra.mxu0 0.0
        %1858 = vmatprep.subr.mxu0 0.0
        %1859 = vmatpush1.msra.mxu0 0.0
        %1860 = vmatprep.subr.mxu0 0.0
        %1861 = vmatpush1.msra.mxu0 0.0
        %1862 = vmatprep.subr.mxu0 0.0
        %1863 = vmatpush1.msra.mxu0 0.0
        %1864 = vmatprep.subr.mxu0 0.0
        %1865 = vmatpush1.msra.mxu0 0.0
        %1866 = vmatprep.subr.mxu0 0.0
        %1867 = vmatpush1.msra.mxu0 0.0
        %1868 = vmatprep.subr.mxu0 0.0
        %1869 = vmatpush1.msra.mxu0 0.0
        %1870 = vmatprep.subr.mxu0 0.0
        %1871 = vmatpush1.msra.mxu0 0.0
        %1872 = vmatprep.subr.mxu0 0.0
        %1873 = vmatpush1.msra.mxu0 0.0
        %1874 = vmatprep.subr.mxu0 0.0
        %1875 = vmatpush1.msra.mxu0 0.0
        %1876 = vmatprep.subr.mxu0 0.0
        %1877 = vmatpush1.msra.mxu0 0.0
        %1878 = vmatprep.subr.mxu0 0.0
        %1879 = vmatpush1.msra.mxu0 0.0
        %1880 = vmatprep.subr.mxu0 0.0
        %1881 = vmatpush1.msra.mxu0 0.0
        %1882 = vmatprep.subr.mxu0 0.0
        %1883 = vmatpush1.msra.mxu0 0.0
        %1884 = vmatprep.subr.mxu0 0.0
        %1885 = vmatpush1.msra.mxu0 0.0
        %1886 = vmatprep.subr.mxu0 0.0
        %1887 = vmatpush1.msra.mxu0 0.0
        %1888 = vmatprep.subr.mxu0 0.0
        %1889 = vmatpush1.msra.mxu0 0.0
        %1890 = vmatprep.subr.mxu0 0.0
        %1891 = vmatpush1.msra.mxu0 0.0
        %1892 = vmatprep.subr.mxu0 0.0
        %1893 = vmatpush1.msra.mxu0 0.0
        %1894 = vmatprep.subr.mxu0 0.0
        %1895 = vmatpush1.msra.mxu0 0.0
        %1896 = vmatprep.subr.mxu0 0.0
        %1897 = vmatpush1.msra.mxu0 0.0
        %1898 = vmatprep.subr.mxu0 0.0
        %1899 = vmatpush1.msra.mxu0 0.0
        %1900 = vmatprep.subr.mxu0 0.0
        %1901 = vmatpush1.msra.mxu0 0.0
        %1902 = vmatprep.subr.mxu0 0.0
        %1903 = vmatpush1.msra.mxu0 0.0
        %1904 = vmatprep.subr.mxu0 0.0
        %1905 = vmatpush1.msra.mxu0 0.0
        %1906 = vmatprep.subr.mxu0 0.0
        %1907 = vmatpush1.msra.mxu0 0.0
        %1908 = vmatprep.subr.mxu0 0.0
        %1909 = vmatpush1.msra.mxu0 0.0
        %1910 = vmatprep.subr.mxu0 0.0
        %1911 = vmatpush1.msra.mxu0 0.0
        %1912 = vmatprep.subr.mxu0 0.0
        %1913 = vmatpush1.msra.mxu0 0.0
        %1914 = vmatprep.subr.mxu0 0.0
        %1915 = vmatpush1.msra.mxu0 0.0
        %1916 = vmatprep.subr.mxu0 0.0
        %1917 = vmatpush1.msra.mxu0 0.0
        %1918 = vmatprep.mubr.f32.mxu0 0.0
        %1919 = vmatmul.mubr.f32.gmra.mrb[0].mxu0 %v1849
        %v1920 = vpop.f32.mrb[0].mxu0
        %v1921 = vadd.f32 0.0, %v1920
        %v1922 = vpop.f32.mrb[0].mxu0
        %1923 = vmatprep.mubr.f32.mxu0 0.0
        %1924 = vmatmul.mubr.f32.gmra.mrb[0].mxu0 %v1852
        %v1925 = vpop.f32.mrb[0].mxu0
        %v1926 = vadd.f32 0.0, %v1925
        %v1927 = vpop.f32.mrb[0].mxu0
        %1928 = vdwg.mxu0
        %v1930 = vsel %vm1199, %v1383, 0
        %v1933 = vsel %vm1199, %v1388, 0
        %1935 = vmatprep.subr.mxu0 0.0
        %1936 = vmatpush1.msra.mxu0 %v1391
        %1937 = vmatprep.subr.mxu0 0.0
        %1938 = vmatpush1.msra.mxu0 0.0
        %1939 = vmatprep.subr.mxu0 0.0
        %1940 = vmatpush1.msra.mxu0 0.0
        %1941 = vmatprep.subr.mxu0 0.0
        %1942 = vmatpush1.msra.mxu0 0.0
        %1943 = vmatprep.subr.mxu0 0.0
        %1944 = vmatpush1.msra.mxu0 0.0
        %1945 = vmatprep.subr.mxu0 0.0
        %1946 = vmatpush1.msra.mxu0 0.0
        %1947 = vmatprep.subr.mxu0 0.0
        %1948 = vmatpush1.msra.mxu0 0.0
        %1949 = vmatprep.subr.mxu0 0.0
        %1950 = vmatpush1.msra.mxu0 0.0
        %1951 = vmatprep.subr.mxu0 0.0
        %1952 = vmatpush1.msra.mxu0 0.0
        %1953 = vmatprep.subr.mxu0 0.0
        %1954 = vmatpush1.msra.mxu0 0.0
        %1955 = vmatprep.subr.mxu0 0.0
        %1956 = vmatpush1.msra.mxu0 0.0
        %1957 = vmatprep.subr.mxu0 0.0
        %1958 = vmatpush1.msra.mxu0 0.0
        %1959 = vmatprep.subr.mxu0 0.0
        %1960 = vmatpush1.msra.mxu0 0.0
        %1961 = vmatprep.subr.mxu0 0.0
        %1962 = vmatpush1.msra.mxu0 0.0
        %1963 = vmatprep.subr.mxu0 0.0
        %1964 = vmatpush1.msra.mxu0 0.0
        %1965 = vmatprep.subr.mxu0 0.0
        %1966 = vmatpush1.msra.mxu0 0.0
        %1967 = vmatprep.subr.mxu0 0.0
        %1968 = vmatpush1.msra.mxu0 0.0
        %1969 = vmatprep.subr.mxu0 0.0
        %1970 = vmatpush1.msra.mxu0 0.0
        %1971 = vmatprep.subr.mxu0 0.0
        %1972 = vmatpush1.msra.mxu0 0.0
        %1973 = vmatprep.subr.mxu0 0.0
        %1974 = vmatpush1.msra.mxu0 0.0
        %1975 = vmatprep.subr.mxu0 0.0
        %1976 = vmatpush1.msra.mxu0 0.0
        %1977 = vmatprep.subr.mxu0 0.0
        %1978 = vmatpush1.msra.mxu0 0.0
        %1979 = vmatprep.subr.mxu0 0.0
        %1980 = vmatpush1.msra.mxu0 0.0
        %1981 = vmatprep.subr.mxu0 0.0
        %1982 = vmatpush1.msra.mxu0 0.0
        %1983 = vmatprep.subr.mxu0 0.0
        %1984 = vmatpush1.msra.mxu0 0.0
        %1985 = vmatprep.subr.mxu0 0.0
        %1986 = vmatpush1.msra.mxu0 0.0
        %1987 = vmatprep.subr.mxu0 0.0
        %1988 = vmatpush1.msra.mxu0 0.0
        %1989 = vmatprep.subr.mxu0 0.0
        %1990 = vmatpush1.msra.mxu0 0.0
        %1991 = vmatprep.subr.mxu0 0.0
        %1992 = vmatpush1.msra.mxu0 0.0
        %1993 = vmatprep.subr.mxu0 0.0
        %1994 = vmatpush1.msra.mxu0 0.0
        %1995 = vmatprep.subr.mxu0 0.0
        %1996 = vmatpush1.msra.mxu0 0.0
        %1997 = vmatprep.subr.mxu0 0.0
        %1998 = vmatpush1.msra.mxu0 0.0
        %1999 = vmatprep.mubr.f32.mxu0 0.0
        %2000 = vmatmul.mubr.f32.gmra.mrb[0].mxu0 %v1930
        %v2001 = vpop.f32.mrb[0].mxu0
        %v2002 = vadd.f32 %v1921, %v2001
        %v2003 = vpop.f32.mrb[0].mxu0
        %2004 = vmatprep.mubr.f32.mxu0 0.0
        %2005 = vmatmul.mubr.f32.gmra.mrb[0].mxu0 %v1933
        %v2006 = vpop.f32.mrb[0].mxu0
        %v2007 = vadd.f32 %v1926, %v2006
        %v2008 = vpop.f32.mrb[0].mxu0
        %2009 = vdwg.mxu0
        %s2010 = scalar_lea.vmem %s7, 64
        %v2011 = vld [vmem:[%s2010] sm:$0xff]
        %v2012 = vld [vmem:[%s2010 + $0x8] sm:$0xff]
        %v2013 = vld [vmem:[%s2010 + $0x10] sm:$0xff]
        %v2014 = vld [vmem:[%s2010 + $0x18] sm:$0xff]
        %s2015 = scalar_lea.vmem %s8, 2
        %v2016 = vld [vmem:[%s2015] sm:$0x1]
        %v2018 = vlaneseq
        %v2019 = vshrl.u32 %v2018, 7
        %v2020 = vsub.s32 0, %v2019
        %v2021 = vrot.slane %v2016, %v2020
        %2023 = vmatprep.subr.mxu0 0.0
        %2024 = vmatpush1.msra.mxu0 %v2011
        %2025 = vmatprep.subr.mxu0 0.0
        %2026 = vmatpush1.msra.mxu0 %v2012
        %2027 = vmatprep.subr.mxu0 0.0
        %2028 = vmatpush1.msra.mxu0 %v2013
        %2029 = vmatprep.subr.mxu0 0.0
        %2030 = vmatpush1.msra.mxu0 %v2014
        %2031 = vmatprep.subr.mxu0 0.0
        %2032 = vmatpush1.msra.mxu0 0.0
        %2033 = vmatprep.subr.mxu0 0.0
        %2034 = vmatpush1.msra.mxu0 0.0
        %2035 = vmatprep.subr.mxu0 0.0
        %2036 = vmatpush1.msra.mxu0 0.0
        %2037 = vmatprep.subr.mxu0 0.0
        %2038 = vmatpush1.msra.mxu0 0.0
        %2039 = vmatprep.subr.mxu0 0.0
        %2040 = vmatpush1.msra.mxu0 0.0
        %2041 = vmatprep.subr.mxu0 0.0
        %2042 = vmatpush1.msra.mxu0 0.0
        %2043 = vmatprep.subr.mxu0 0.0
        %2044 = vmatpush1.msra.mxu0 0.0
        %2045 = vmatprep.subr.mxu0 0.0
        %2046 = vmatpush1.msra.mxu0 0.0
        %2047 = vmatprep.subr.mxu0 0.0
        %2048 = vmatpush1.msra.mxu0 0.0
        %2049 = vmatprep.subr.mxu0 0.0
        %2050 = vmatpush1.msra.mxu0 0.0
        %2051 = vmatprep.subr.mxu0 0.0
        %2052 = vmatpush1.msra.mxu0 0.0
        %2053 = vmatprep.subr.mxu0 0.0
        %2054 = vmatpush1.msra.mxu0 0.0
        %2055 = vmatprep.subr.mxu0 0.0
        %2056 = vmatpush1.msra.mxu0 0.0
        %2057 = vmatprep.subr.mxu0 0.0
        %2058 = vmatpush1.msra.mxu0 0.0
        %2059 = vmatprep.subr.mxu0 0.0
        %2060 = vmatpush1.msra.mxu0 0.0
        %2061 = vmatprep.subr.mxu0 0.0
        %2062 = vmatpush1.msra.mxu0 0.0
        %2063 = vmatprep.subr.mxu0 0.0
        %2064 = vmatpush1.msra.mxu0 0.0
        %2065 = vmatprep.subr.mxu0 0.0
        %2066 = vmatpush1.msra.mxu0 0.0
        %2067 = vmatprep.subr.mxu0 0.0
        %2068 = vmatpush1.msra.mxu0 0.0
        %2069 = vmatprep.subr.mxu0 0.0
        %2070 = vmatpush1.msra.mxu0 0.0
        %2071 = vmatprep.subr.mxu0 0.0
        %2072 = vmatpush1.msra.mxu0 0.0
        %2073 = vmatprep.subr.mxu0 0.0
        %2074 = vmatpush1.msra.mxu0 0.0
        %2075 = vmatprep.subr.mxu0 0.0
        %2076 = vmatpush1.msra.mxu0 0.0
        %2077 = vmatprep.subr.mxu0 0.0
        %2078 = vmatpush1.msra.mxu0 0.0
        %2079 = vmatprep.subr.mxu0 0.0
        %2080 = vmatpush1.msra.mxu0 0.0
        %2081 = vmatprep.subr.mxu0 0.0
        %2082 = vmatpush1.msra.mxu0 0.0
        %2083 = vmatprep.subr.mxu0 0.0
        %2084 = vmatpush1.msra.mxu0 0.0
        %2085 = vmatprep.subr.mxu0 0.0
        %2086 = vmatpush1.msra.mxu0 0.0
        %2087 = vmatprep.mubr.f32.mxu0 0.0
        %2088 = vmatmul.mubr.f32.gmra.mrb[0].mxu0 %v947
        %v2089 = vpop.f32.mrb[0].mxu0
        %v2090 = vadd.f32 %v2021, %v2089
        %v2091 = vpop.f32.mrb[0].mxu0
        %2092 = vmatprep.mubr.f32.mxu0 0.0
        %2093 = vmatmul.mubr.f32.gmra.mrb[0].mxu0 %v950
        %v2094 = vpop.f32.mrb[0].mxu0
        %v2095 = vadd.f32 %v2021, %v2094
        %v2096 = vpop.f32.mrb[0].mxu0
        %2097 = vdwg.mxu0
        %s2098 = scalar_lea.vmem %s9, 64
        %v2099 = vld [vmem:[%s2098] sm:$0xff]
        %v2100 = vld [vmem:[%s2098 + $0x8] sm:$0xff]
        %v2101 = vld [vmem:[%s2098 + $0x10] sm:$0xff]
        %v2102 = vld [vmem:[%s2098 + $0x18] sm:$0xff]
        %s2103 = scalar_lea.vmem %s10, 2
        %v2104 = vld [vmem:[%s2103] sm:$0x1]
        %v2106 = vlaneseq
        %v2107 = vshrl.u32 %v2106, 7
        %v2108 = vsub.s32 0, %v2107
        %v2109 = vrot.slane %v2104, %v2108
        %2111 = vmatprep.subr.mxu0 0.0
        %2112 = vmatpush1.msra.mxu0 %v2099
        %2113 = vmatprep.subr.mxu0 0.0
        %2114 = vmatpush1.msra.mxu0 %v2100
        %2115 = vmatprep.subr.mxu0 0.0
        %2116 = vmatpush1.msra.mxu0 %v2101
        %2117 = vmatprep.subr.mxu0 0.0
        %2118 = vmatpush1.msra.mxu0 %v2102
        %2119 = vmatprep.subr.mxu0 0.0
        %2120 = vmatpush1.msra.mxu0 0.0
        %2121 = vmatprep.subr.mxu0 0.0
        %2122 = vmatpush1.msra.mxu0 0.0
        %2123 = vmatprep.subr.mxu0 0.0
        %2124 = vmatpush1.msra.mxu0 0.0
        %2125 = vmatprep.subr.mxu0 0.0
        %2126 = vmatpush1.msra.mxu0 0.0
        %2127 = vmatprep.subr.mxu0 0.0
        %2128 = vmatpush1.msra.mxu0 0.0
        %2129 = vmatprep.subr.mxu0 0.0
        %2130 = vmatpush1.msra.mxu0 0.0
        %2131 = vmatprep.subr.mxu0 0.0
        %2132 = vmatpush1.msra.mxu0 0.0
        %2133 = vmatprep.subr.mxu0 0.0
        %2134 = vmatpush1.msra.mxu0 0.0
        %2135 = vmatprep.subr.mxu0 0.0
        %2136 = vmatpush1.msra.mxu0 0.0
        %2137 = vmatprep.subr.mxu0 0.0
        %2138 = vmatpush1.msra.mxu0 0.0
        %2139 = vmatprep.subr.mxu0 0.0
        %2140 = vmatpush1.msra.mxu0 0.0
        %2141 = vmatprep.subr.mxu0 0.0
        %2142 = vmatpush1.msra.mxu0 0.0
        %2143 = vmatprep.subr.mxu0 0.0
        %2144 = vmatpush1.msra.mxu0 0.0
        %2145 = vmatprep.subr.mxu0 0.0
        %2146 = vmatpush1.msra.mxu0 0.0
        %2147 = vmatprep.subr.mxu0 0.0
        %2148 = vmatpush1.msra.mxu0 0.0
        %2149 = vmatprep.subr.mxu0 0.0
        %2150 = vmatpush1.msra.mxu0 0.0
        %2151 = vmatprep.subr.mxu0 0.0
        %2152 = vmatpush1.msra.mxu0 0.0
        %2153 = vmatprep.subr.mxu0 0.0
        %2154 = vmatpush1.msra.mxu0 0.0
        %2155 = vmatprep.subr.mxu0 0.0
        %2156 = vmatpush1.msra.mxu0 0.0
        %2157 = vmatprep.subr.mxu0 0.0
        %2158 = vmatpush1.msra.mxu0 0.0
        %2159 = vmatprep.subr.mxu0 0.0
        %2160 = vmatpush1.msra.mxu0 0.0
        %2161 = vmatprep.subr.mxu0 0.0
        %2162 = vmatpush1.msra.mxu0 0.0
        %2163 = vmatprep.subr.mxu0 0.0
        %2164 = vmatpush1.msra.mxu0 0.0
        %2165 = vmatprep.subr.mxu0 0.0
        %2166 = vmatpush1.msra.mxu0 0.0
        %2167 = vmatprep.subr.mxu0 0.0
        %2168 = vmatpush1.msra.mxu0 0.0
        %2169 = vmatprep.subr.mxu0 0.0
        %2170 = vmatpush1.msra.mxu0 0.0
        %2171 = vmatprep.subr.mxu0 0.0
        %2172 = vmatpush1.msra.mxu0 0.0
        %2173 = vmatprep.subr.mxu0 0.0
        %2174 = vmatpush1.msra.mxu0 0.0
        %2175 = vmatprep.mubr.f32.mxu0 0.0
        %2176 = vmatmul.mubr.f32.gmra.mrb[0].mxu0 %v947
        %v2177 = vpop.f32.mrb[0].mxu0
        %v2178 = vadd.f32 %v2109, %v2177
        %v2179 = vpop.f32.mrb[0].mxu0
        %2180 = vmatprep.mubr.f32.mxu0 0.0
        %2181 = vmatmul.mubr.f32.gmra.mrb[0].mxu0 %v950
        %v2182 = vpop.f32.mrb[0].mxu0
        %v2183 = vadd.f32 %v2109, %v2182
        %v2184 = vpop.f32.mrb[0].mxu0
        %2185 = vdwg.mxu0
        %s2186 = scalar_lea.vmem %s11, 64
        %v2187 = vld [vmem:[%s2186] sm:$0xff]
        %v2188 = vld [vmem:[%s2186 + $0x8] sm:$0xff]
        %v2189 = vld [vmem:[%s2186 + $0x10] sm:$0xff]
        %v2190 = vld [vmem:[%s2186 + $0x18] sm:$0xff]
        %s2191 = scalar_lea.vmem %s12, 2
        %v2192 = vld [vmem:[%s2191] sm:$0x1]
        %v2194 = vlaneseq
        %v2195 = vshrl.u32 %v2194, 7
        %v2196 = vsub.s32 0, %v2195
        %v2197 = vrot.slane %v2192, %v2196
        %2199 = vmatprep.subr.mxu0 0.0
        %2200 = vmatpush1.msra.mxu0 %v2187
        %2201 = vmatprep.subr.mxu0 0.0
        %2202 = vmatpush1.msra.mxu0 %v2188
        %2203 = vmatprep.subr.mxu0 0.0
        %2204 = vmatpush1.msra.mxu0 %v2189
        %2205 = vmatprep.subr.mxu0 0.0
        %2206 = vmatpush1.msra.mxu0 %v2190
        %2207 = vmatprep.subr.mxu0 0.0
        %2208 = vmatpush1.msra.mxu0 0.0
        %2209 = vmatprep.subr.mxu0 0.0
        %2210 = vmatpush1.msra.mxu0 0.0
        %2211 = vmatprep.subr.mxu0 0.0
        %2212 = vmatpush1.msra.mxu0 0.0
        %2213 = vmatprep.subr.mxu0 0.0
        %2214 = vmatpush1.msra.mxu0 0.0
        %2215 = vmatprep.subr.mxu0 0.0
        %2216 = vmatpush1.msra.mxu0 0.0
        %2217 = vmatprep.subr.mxu0 0.0
        %2218 = vmatpush1.msra.mxu0 0.0
        %2219 = vmatprep.subr.mxu0 0.0
        %2220 = vmatpush1.msra.mxu0 0.0
        %2221 = vmatprep.subr.mxu0 0.0
        %2222 = vmatpush1.msra.mxu0 0.0
        %2223 = vmatprep.subr.mxu0 0.0
        %2224 = vmatpush1.msra.mxu0 0.0
        %2225 = vmatprep.subr.mxu0 0.0
        %2226 = vmatpush1.msra.mxu0 0.0
        %2227 = vmatprep.subr.mxu0 0.0
        %2228 = vmatpush1.msra.mxu0 0.0
        %2229 = vmatprep.subr.mxu0 0.0
        %2230 = vmatpush1.msra.mxu0 0.0
        %2231 = vmatprep.subr.mxu0 0.0
        %2232 = vmatpush1.msra.mxu0 0.0
        %2233 = vmatprep.subr.mxu0 0.0
        %2234 = vmatpush1.msra.mxu0 0.0
        %2235 = vmatprep.subr.mxu0 0.0
        %2236 = vmatpush1.msra.mxu0 0.0
        %2237 = vmatprep.subr.mxu0 0.0
        %2238 = vmatpush1.msra.mxu0 0.0
        %2239 = vmatprep.subr.mxu0 0.0
        %2240 = vmatpush1.msra.mxu0 0.0
        %2241 = vmatprep.subr.mxu0 0.0
        %2242 = vmatpush1.msra.mxu0 0.0
        %2243 = vmatprep.subr.mxu0 0.0
        %2244 = vmatpush1.msra.mxu0 0.0
        %2245 = vmatprep.subr.mxu0 0.0
        %2246 = vmatpush1.msra.mxu0 0.0
        %2247 = vmatprep.subr.mxu0 0.0
        %2248 = vmatpush1.msra.mxu0 0.0
        %2249 = vmatprep.subr.mxu0 0.0
        %2250 = vmatpush1.msra.mxu0 0.0
        %2251 = vmatprep.subr.mxu0 0.0
        %2252 = vmatpush1.msra.mxu0 0.0
        %2253 = vmatprep.subr.mxu0 0.0
        %2254 = vmatpush1.msra.mxu0 0.0
        %2255 = vmatprep.subr.mxu0 0.0
        %2256 = vmatpush1.msra.mxu0 0.0
        %2257 = vmatprep.subr.mxu0 0.0
        %2258 = vmatpush1.msra.mxu0 0.0
        %2259 = vmatprep.subr.mxu0 0.0
        %2260 = vmatpush1.msra.mxu0 0.0
        %2261 = vmatprep.subr.mxu0 0.0
        %2262 = vmatpush1.msra.mxu0 0.0
        %2263 = vmatprep.mubr.f32.mxu0 0.0
        %2264 = vmatmul.mubr.f32.gmra.mrb[0].mxu0 %v947
        %v2265 = vpop.f32.mrb[0].mxu0
        %v2266 = vadd.f32 %v2197, %v2265
        %v2267 = vpop.f32.mrb[0].mxu0
        %2268 = vmatprep.mubr.f32.mxu0 0.0
        %2269 = vmatmul.mubr.f32.gmra.mrb[0].mxu0 %v950
        %v2270 = vpop.f32.mrb[0].mxu0
        %v2271 = vadd.f32 %v2197, %v2270
        %v2272 = vpop.f32.mrb[0].mxu0
        %2273 = vdwg.mxu0
        %v2275 = vsel %vm1199, %v2090, 0
        %v2278 = vsel %vm1199, %v2095, 0
        %v2281 = vsel %vm1199, %v2178, 0
        %v2284 = vsel %vm1199, %v2183, 0
        %2286 = vmatprep.subr.mxu0 0.0
        %2287 = vmatpush1.xpose.msra.mxu0 %v2281
        %2288 = vmatprep.subr.mxu0 0.0
        %2289 = vmatpush1.xpose.msra.mxu0 %v2284
        %2290 = vmatprep.subr.mxu0 0.0
        %2291 = vmatpush1.xpose.msra.mxu0 0.0
        %2292 = vmatprep.subr.mxu0 0.0
        %2293 = vmatpush1.xpose.msra.mxu0 0.0
        %2294 = vmatprep.subr.mxu0 0.0
        %2295 = vmatpush1.xpose.msra.mxu0 0.0
        %2296 = vmatprep.subr.mxu0 0.0
        %2297 = vmatpush1.xpose.msra.mxu0 0.0
        %2298 = vmatprep.subr.mxu0 0.0
        %2299 = vmatpush1.xpose.msra.mxu0 0.0
        %2300 = vmatprep.subr.mxu0 0.0
        %2301 = vmatpush1.xpose.msra.mxu0 0.0
        %2302 = vmatprep.subr.mxu0 0.0
        %2303 = vmatpush1.xpose.msra.mxu0 0.0
        %2304 = vmatprep.subr.mxu0 0.0
        %2305 = vmatpush1.xpose.msra.mxu0 0.0
        %2306 = vmatprep.subr.mxu0 0.0
        %2307 = vmatpush1.xpose.msra.mxu0 0.0
        %2308 = vmatprep.subr.mxu0 0.0
        %2309 = vmatpush1.xpose.msra.mxu0 0.0
        %2310 = vmatprep.subr.mxu0 0.0
        %2311 = vmatpush1.xpose.msra.mxu0 0.0
        %2312 = vmatprep.subr.mxu0 0.0
        %2313 = vmatpush1.xpose.msra.mxu0 0.0
        %2314 = vmatprep.subr.mxu0 0.0
        %2315 = vmatpush1.xpose.msra.mxu0 0.0
        %2316 = vmatprep.subr.mxu0 0.0
        %2317 = vmatpush1.xpose.msra.mxu0 0.0
        %2318 = vmatprep.subr.mxu0 0.0
        %2319 = vmatpush1.xpose.msra.mxu0 0.0
        %2320 = vmatprep.subr.mxu0 0.0
        %2321 = vmatpush1.xpose.msra.mxu0 0.0
        %2322 = vmatprep.subr.mxu0 0.0
        %2323 = vmatpush1.xpose.msra.mxu0 0.0
        %2324 = vmatprep.subr.mxu0 0.0
        %2325 = vmatpush1.xpose.msra.mxu0 0.0
        %2326 = vmatprep.subr.mxu0 0.0
        %2327 = vmatpush1.xpose.msra.mxu0 0.0
        %2328 = vmatprep.subr.mxu0 0.0
        %2329 = vmatpush1.xpose.msra.mxu0 0.0
        %2330 = vmatprep.subr.mxu0 0.0
        %2331 = vmatpush1.xpose.msra.mxu0 0.0
        %2332 = vmatprep.subr.mxu0 0.0
        %2333 = vmatpush1.xpose.msra.mxu0 0.0
        %2334 = vmatprep.subr.mxu0 0.0
        %2335 = vmatpush1.xpose.msra.mxu0 0.0
        %2336 = vmatprep.subr.mxu0 0.0
        %2337 = vmatpush1.xpose.msra.mxu0 0.0
        %2338 = vmatprep.subr.mxu0 0.0
        %2339 = vmatpush1.xpose.msra.mxu0 0.0
        %2340 = vmatprep.subr.mxu0 0.0
        %2341 = vmatpush1.xpose.msra.mxu0 0.0
        %2342 = vmatprep.subr.mxu0 0.0
        %2343 = vmatpush1.xpose.msra.mxu0 0.0
        %2344 = vmatprep.subr.mxu0 0.0
        %2345 = vmatpush1.xpose.msra.mxu0 0.0
        %2346 = vmatprep.subr.mxu0 0.0
        %2347 = vmatpush1.xpose.msra.mxu0 0.0
        %2348 = vmatprep.subr.mxu0 0.0
        %2349 = vmatpush1.xpose.msra.mxu0 0.0
        %2350 = vmatprep.mubr.f32.mxu0 0.0
        %2351 = vmatmul.mubr.f32.gmra.mrb[0].mxu0 %v2275
        %v2352 = vpop.f32.mrb[0].mxu0
        %v2353 = vadd.f32 0.0, %v2352
        %v2354 = vpop.f32.mrb[0].mxu0
        %2355 = vmatprep.mubr.f32.mxu0 0.0
        %2356 = vmatmul.mubr.f32.gmra.mrb[0].mxu0 %v2278
        %v2357 = vpop.f32.mrb[0].mxu0
        %v2358 = vadd.f32 0.0, %v2357
        %v2359 = vpop.f32.mrb[0].mxu0
        %2360 = vdwg.mxu0
        %v2361 = vsel %vm1287, %v2353, -inf
        %2362 = vmax.xlane.f32.xlu0 %v2361
        %v2363 = vpop.xlane.xlu0 %2362
        %v2364 = vsel %vm1287, %v2358, -inf
        %2365 = vmax.xlane.f32.xlu0 %v2364
        %v2366 = vpop.xlane.xlu0 %2365
        %v2367 = vsub.f32 %v2353, %v2363
        %v2368 = vsub.f32 %v2358, %v2366
        %v2369 = vmul.f32 %v2367, 1.442695
        %v2370 = vpow.pop %v2369
        %v2371 = vmul.f32 %v2368, 1.442695
        %v2372 = vpow.pop %v2371
        %v2373 = vsel %vm1287, %v2370, 0.0
        %2374 = vadd.xlane.f32.xlu0 %v2373
        %v2375 = vpop.xlane.xlu0 %2374
        %v2376 = vsel %vm1287, %v2372, 0.0
        %2377 = vadd.xlane.f32.xlu0 %v2376
        %v2378 = vpop.xlane.xlu0 %2377
        %v2379 = vrcp.pop %v2375
        %v2380 = vmul.f32 %v2370, %v2379
        %v2381 = vrcp.pop %v2378
        %v2382 = vmul.f32 %v2372, %v2381
        %v2384 = vsel %vm1287, %v2380, 0
        %v2387 = vsel %vm1287, %v2382, 0
        %2389 = vmatprep.subr.mxu0 0.0
        %2390 = vmatpush1.msra.mxu0 %v2266
        %2391 = vmatprep.subr.mxu0 0.0
        %2392 = vmatpush1.msra.mxu0 %v2271
        %2393 = vmatprep.subr.mxu0 0.0
        %2394 = vmatpush1.msra.mxu0 0.0
        %2395 = vmatprep.subr.mxu0 0.0
        %2396 = vmatpush1.msra.mxu0 0.0
        %2397 = vmatprep.subr.mxu0 0.0
        %2398 = vmatpush1.msra.mxu0 0.0
        %2399 = vmatprep.subr.mxu0 0.0
        %2400 = vmatpush1.msra.mxu0 0.0
        %2401 = vmatprep.subr.mxu0 0.0
        %2402 = vmatpush1.msra.mxu0 0.0
        %2403 = vmatprep.subr.mxu0 0.0
        %2404 = vmatpush1.msra.mxu0 0.0
        %2405 = vmatprep.subr.mxu0 0.0
        %2406 = vmatpush1.msra.mxu0 0.0
        %2407 = vmatprep.subr.mxu0 0.0
        %2408 = vmatpush1.msra.mxu0 0.0
        %2409 = vmatprep.subr.mxu0 0.0
        %2410 = vmatpush1.msra.mxu0 0.0
        %2411 = vmatprep.subr.mxu0 0.0
        %2412 = vmatpush1.msra.mxu0 0.0
        %2413 = vmatprep.subr.mxu0 0.0
        %2414 = vmatpush1.msra.mxu0 0.0
        %2415 = vmatprep.subr.mxu0 0.0
        %2416 = vmatpush1.msra.mxu0 0.0
        %2417 = vmatprep.subr.mxu0 0.0
        %2418 = vmatpush1.msra.mxu0 0.0
        %2419 = vmatprep.subr.mxu0 0.0
        %2420 = vmatpush1.msra.mxu0 0.0
        %2421 = vmatprep.subr.mxu0 0.0
        %2422 = vmatpush1.msra.mxu0 0.0
        %2423 = vmatprep.subr.mxu0 0.0
        %2424 = vmatpush1.msra.mxu0 0.0
        %2425 = vmatprep.subr.mxu0 0.0
        %2426 = vmatpush1.msra.mxu0 0.0
        %2427 = vmatprep.subr.mxu0 0.0
        %2428 = vmatpush1.msra.mxu0 0.0
        %2429 = vmatprep.subr.mxu0 0.0
        %2430 = vmatpush1.msra.mxu0 0.0
        %2431 = vmatprep.subr.mxu0 0.0
        %2432 = vmatpush1.msra.mxu0 0.0
        %2433 = vmatprep.subr.mxu0 0.0
        %2434 = vmatpush1.msra.mxu0 0.0
        %2435 = vmatprep.subr.mxu0 0.0
        %2436 = vmatpush1.msra.mxu0 0.0
        %2437 = vmatprep.subr.mxu0 0.0
        %2438 = vmatpush1.msra.mxu0 0.0
        %2439 = vmatprep.subr.mxu0 0.0
        %2440 = vmatpush1.msra.mxu0 0.0
        %2441 = vmatprep.subr.mxu0 0.0
        %2442 = vmatpush1.msra.mxu0 0.0
        %2443 = vmatprep.subr.mxu0 0.0
        %2444 = vmatpush1.msra.mxu0 0.0
        %2445 = vmatprep.subr.mxu0 0.0
        %2446 = vmatpush1.msra.mxu0 0.0
        %2447 = vmatprep.subr.mxu0 0.0
        %2448 = vmatpush1.msra.mxu0 0.0
        %2449 = vmatprep.subr.mxu0 0.0
        %2450 = vmatpush1.msra.mxu0 0.0
        %2451 = vmatprep.subr.mxu0 0.0
        %2452 = vmatpush1.msra.mxu0 0.0
        %2453 = vmatprep.mubr.f32.mxu0 0.0
        %2454 = vmatmul.mubr.f32.gmra.mrb[0].mxu0 %v2384
        %v2455 = vpop.f32.mrb[0].mxu0
        %v2456 = vadd.f32 0.0, %v2455
        %v2457 = vpop.f32.mrb[0].mxu0
        %2458 = vmatprep.mubr.f32.mxu0 0.0
        %2459 = vmatmul.mubr.f32.gmra.mrb[0].mxu0 %v2387
        %v2460 = vpop.f32.mrb[0].mxu0
        %v2461 = vadd.f32 0.0, %v2460
        %v2462 = vpop.f32.mrb[0].mxu0
        %2463 = vdwg.mxu0
        %s2464 = scalar_lea.vmem %s13, 16
        %v2465 = vld [vmem:[%s2464] sm:$0xff]
        %v2467 = vsel %vm1199, %v2456, 0
        %v2470 = vsel %vm1199, %v2461, 0
        %2472 = vmatprep.subr.mxu0 0.0
        %2473 = vmatpush1.msra.mxu0 %v2465
        %2474 = vmatprep.subr.mxu0 0.0
        %2475 = vmatpush1.msra.mxu0 0.0
        %2476 = vmatprep.subr.mxu0 0.0
        %2477 = vmatpush1.msra.mxu0 0.0
        %2478 = vmatprep.subr.mxu0 0.0
        %2479 = vmatpush1.msra.mxu0 0.0
        %2480 = vmatprep.subr.mxu0 0.0
        %2481 = vmatpush1.msra.mxu0 0.0
        %2482 = vmatprep.subr.mxu0 0.0
        %2483 = vmatpush1.msra.mxu0 0.0
        %2484 = vmatprep.subr.mxu0 0.0
        %2485 = vmatpush1.msra.mxu0 0.0
        %2486 = vmatprep.subr.mxu0 0.0
        %2487 = vmatpush1.msra.mxu0 0.0
        %2488 = vmatprep.subr.mxu0 0.0
        %2489 = vmatpush1.msra.mxu0 0.0
        %2490 = vmatprep.subr.mxu0 0.0
        %2491 = vmatpush1.msra.mxu0 0.0
        %2492 = vmatprep.subr.mxu0 0.0
        %2493 = vmatpush1.msra.mxu0 0.0
        %2494 = vmatprep.subr.mxu0 0.0
        %2495 = vmatpush1.msra.mxu0 0.0
        %2496 = vmatprep.subr.mxu0 0.0
        %2497 = vmatpush1.msra.mxu0 0.0
        %2498 = vmatprep.subr.mxu0 0.0
        %2499 = vmatpush1.msra.mxu0 0.0
        %2500 = vmatprep.subr.mxu0 0.0
        %2501 = vmatpush1.msra.mxu0 0.0
        %2502 = vmatprep.subr.mxu0 0.0
        %2503 = vmatpush1.msra.mxu0 0.0
        %2504 = vmatprep.subr.mxu0 0.0
        %2505 = vmatpush1.msra.mxu0 0.0
        %2506 = vmatprep.subr.mxu0 0.0
        %2507 = vmatpush1.msra.mxu0 0.0
        %2508 = vmatprep.subr.mxu0 0.0
        %2509 = vmatpush1.msra.mxu0 0.0
        %2510 = vmatprep.subr.mxu0 0.0
        %2511 = vmatpush1.msra.mxu0 0.0
        %2512 = vmatprep.subr.mxu0 0.0
        %2513 = vmatpush1.msra.mxu0 0.0
        %2514 = vmatprep.subr.mxu0 0.0
        %2515 = vmatpush1.msra.mxu0 0.0
        %2516 = vmatprep.subr.mxu0 0.0
        %2517 = vmatpush1.msra.mxu0 0.0
        %2518 = vmatprep.subr.mxu0 0.0
        %2519 = vmatpush1.msra.mxu0 0.0
        %2520 = vmatprep.subr.mxu0 0.0
        %2521 = vmatpush1.msra.mxu0 0.0
        %2522 = vmatprep.subr.mxu0 0.0
        %2523 = vmatpush1.msra.mxu0 0.0
        %2524 = vmatprep.subr.mxu0 0.0
        %2525 = vmatpush1.msra.mxu0 0.0
        %2526 = vmatprep.subr.mxu0 0.0
        %2527 = vmatpush1.msra.mxu0 0.0
        %2528 = vmatprep.subr.mxu0 0.0
        %2529 = vmatpush1.msra.mxu0 0.0
        %2530 = vmatprep.subr.mxu0 0.0
        %2531 = vmatpush1.msra.mxu0 0.0
        %2532 = vmatprep.subr.mxu0 0.0
        %2533 = vmatpush1.msra.mxu0 0.0
        %2534 = vmatprep.subr.mxu0 0.0
        %2535 = vmatpush1.msra.mxu0 0.0
        %2536 = vmatprep.mubr.f32.mxu0 0.0
        %2537 = vmatmul.mubr.f32.gmra.mrb[0].mxu0 %v2467
        %v2538 = vpop.f32.mrb[0].mxu0
        %v2539 = vadd.f32 0.0, %v2538
        %v2540 = vpop.f32.mrb[0].mxu0
        %2541 = vmatprep.mubr.f32.mxu0 0.0
        %2542 = vmatmul.mubr.f32.gmra.mrb[0].mxu0 %v2470
        %v2543 = vpop.f32.mrb[0].mxu0
        %v2544 = vadd.f32 0.0, %v2543
        %v2545 = vpop.f32.mrb[0].mxu0
        %2546 = vdwg.mxu0
        %v2547 = vadd.f32 %v2002, %v2539
        %v2548 = vadd.f32 %v2007, %v2544
        %s2549 = scalar_lea.vmem %s7, 96
        %v2550 = vld [vmem:[%s2549] sm:$0xff]
        %v2551 = vld [vmem:[%s2549 + $0x8] sm:$0xff]
        %v2552 = vld [vmem:[%s2549 + $0x10] sm:$0xff]
        %v2553 = vld [vmem:[%s2549 + $0x18] sm:$0xff]
        %s2554 = scalar_lea.vmem %s8, 3
        %v2555 = vld [vmem:[%s2554] sm:$0x1]
        %v2557 = vlaneseq
        %v2558 = vshrl.u32 %v2557, 7
        %v2559 = vsub.s32 0, %v2558
        %v2560 = vrot.slane %v2555, %v2559
        %2562 = vmatprep.subr.mxu0 0.0
        %2563 = vmatpush1.msra.mxu0 %v2550
        %2564 = vmatprep.subr.mxu0 0.0
        %2565 = vmatpush1.msra.mxu0 %v2551
        %2566 = vmatprep.subr.mxu0 0.0
        %2567 = vmatpush1.msra.mxu0 %v2552
        %2568 = vmatprep.subr.mxu0 0.0
        %2569 = vmatpush1.msra.mxu0 %v2553
        %2570 = vmatprep.subr.mxu0 0.0
        %2571 = vmatpush1.msra.mxu0 0.0
        %2572 = vmatprep.subr.mxu0 0.0
        %2573 = vmatpush1.msra.mxu0 0.0
        %2574 = vmatprep.subr.mxu0 0.0
        %2575 = vmatpush1.msra.mxu0 0.0
        %2576 = vmatprep.subr.mxu0 0.0
        %2577 = vmatpush1.msra.mxu0 0.0
        %2578 = vmatprep.subr.mxu0 0.0
        %2579 = vmatpush1.msra.mxu0 0.0
        %2580 = vmatprep.subr.mxu0 0.0
        %2581 = vmatpush1.msra.mxu0 0.0
        %2582 = vmatprep.subr.mxu0 0.0
        %2583 = vmatpush1.msra.mxu0 0.0
        %2584 = vmatprep.subr.mxu0 0.0
        %2585 = vmatpush1.msra.mxu0 0.0
        %2586 = vmatprep.subr.mxu0 0.0
        %2587 = vmatpush1.msra.mxu0 0.0
        %2588 = vmatprep.subr.mxu0 0.0
        %2589 = vmatpush1.msra.mxu0 0.0
        %2590 = vmatprep.subr.mxu0 0.0
        %2591 = vmatpush1.msra.mxu0 0.0
        %2592 = vmatprep.subr.mxu0 0.0
        %2593 = vmatpush1.msra.mxu0 0.0
        %2594 = vmatprep.subr.mxu0 0.0
        %2595 = vmatpush1.msra.mxu0 0.0
        %2596 = vmatprep.subr.mxu0 0.0
        %2597 = vmatpush1.msra.mxu0 0.0
        %2598 = vmatprep.subr.mxu0 0.0
        %2599 = vmatpush1.msra.mxu0 0.0
        %2600 = vmatprep.subr.mxu0 0.0
        %2601 = vmatpush1.msra.mxu0 0.0
        %2602 = vmatprep.subr.mxu0 0.0
        %2603 = vmatpush1.msra.mxu0 0.0
        %2604 = vmatprep.subr.mxu0 0.0
        %2605 = vmatpush1.msra.mxu0 0.0
        %2606 = vmatprep.subr.mxu0 0.0
        %2607 = vmatpush1.msra.mxu0 0.0
        %2608 = vmatprep.subr.mxu0 0.0
        %2609 = vmatpush1.msra.mxu0 0.0
        %2610 = vmatprep.subr.mxu0 0.0
        %2611 = vmatpush1.msra.mxu0 0.0
        %2612 = vmatprep.subr.mxu0 0.0
        %2613 = vmatpush1.msra.mxu0 0.0
        %2614 = vmatprep.subr.mxu0 0.0
        %2615 = vmatpush1.msra.mxu0 0.0
        %2616 = vmatprep.subr.mxu0 0.0
        %2617 = vmatpush1.msra.mxu0 0.0
        %2618 = vmatprep.subr.mxu0 0.0
        %2619 = vmatpush1.msra.mxu0 0.0
        %2620 = vmatprep.subr.mxu0 0.0
        %2621 = vmatpush1.msra.mxu0 0.0
        %2622 = vmatprep.subr.mxu0 0.0
        %2623 = vmatpush1.msra.mxu0 0.0
        %2624 = vmatprep.subr.mxu0 0.0
        %2625 = vmatpush1.msra.mxu0 0.0
        %2626 = vmatprep.mubr.f32.mxu0 0.0
        %2627 = vmatmul.mubr.f32.gmra.mrb[0].mxu0 %v947
        %v2628 = vpop.f32.mrb[0].mxu0
        %v2629 = vadd.f32 %v2560, %v2628
        %v2630 = vpop.f32.mrb[0].mxu0
        %2631 = vmatprep.mubr.f32.mxu0 0.0
        %2632 = vmatmul.mubr.f32.gmra.mrb[0].mxu0 %v950
        %v2633 = vpop.f32.mrb[0].mxu0
        %v2634 = vadd.f32 %v2560, %v2633
        %v2635 = vpop.f32.mrb[0].mxu0
        %2636 = vdwg.mxu0
        %s2637 = scalar_lea.vmem %s9, 96
        %v2638 = vld [vmem:[%s2637] sm:$0xff]
        %v2639 = vld [vmem:[%s2637 + $0x8] sm:$0xff]
        %v2640 = vld [vmem:[%s2637 + $0x10] sm:$0xff]
        %v2641 = vld [vmem:[%s2637 + $0x18] sm:$0xff]
        %s2642 = scalar_lea.vmem %s10, 3
        %v2643 = vld [vmem:[%s2642] sm:$0x1]
        %v2645 = vlaneseq
        %v2646 = vshrl.u32 %v2645, 7
        %v2647 = vsub.s32 0, %v2646
        %v2648 = vrot.slane %v2643, %v2647
        %2650 = vmatprep.subr.mxu0 0.0
        %2651 = vmatpush1.msra.mxu0 %v2638
        %2652 = vmatprep.subr.mxu0 0.0
        %2653 = vmatpush1.msra.mxu0 %v2639
        %2654 = vmatprep.subr.mxu0 0.0
        %2655 = vmatpush1.msra.mxu0 %v2640
        %2656 = vmatprep.subr.mxu0 0.0
        %2657 = vmatpush1.msra.mxu0 %v2641
        %2658 = vmatprep.subr.mxu0 0.0
        %2659 = vmatpush1.msra.mxu0 0.0
        %2660 = vmatprep.subr.mxu0 0.0
        %2661 = vmatpush1.msra.mxu0 0.0
        %2662 = vmatprep.subr.mxu0 0.0
        %2663 = vmatpush1.msra.mxu0 0.0
        %2664 = vmatprep.subr.mxu0 0.0
        %2665 = vmatpush1.msra.mxu0 0.0
        %2666 = vmatprep.subr.mxu0 0.0
        %2667 = vmatpush1.msra.mxu0 0.0
        %2668 = vmatprep.subr.mxu0 0.0
        %2669 = vmatpush1.msra.mxu0 0.0
        %2670 = vmatprep.subr.mxu0 0.0
        %2671 = vmatpush1.msra.mxu0 0.0
        %2672 = vmatprep.subr.mxu0 0.0
        %2673 = vmatpush1.msra.mxu0 0.0
        %2674 = vmatprep.subr.mxu0 0.0
        %2675 = vmatpush1.msra.mxu0 0.0
        %2676 = vmatprep.subr.mxu0 0.0
        %2677 = vmatpush1.msra.mxu0 0.0
        %2678 = vmatprep.subr.mxu0 0.0
        %2679 = vmatpush1.msra.mxu0 0.0
        %2680 = vmatprep.subr.mxu0 0.0
        %2681 = vmatpush1.msra.mxu0 0.0
        %2682 = vmatprep.subr.mxu0 0.0
        %2683 = vmatpush1.msra.mxu0 0.0
        %2684 = vmatprep.subr.mxu0 0.0
        %2685 = vmatpush1.msra.mxu0 0.0
        %2686 = vmatprep.subr.mxu0 0.0
        %2687 = vmatpush1.msra.mxu0 0.0
        %2688 = vmatprep.subr.mxu0 0.0
        %2689 = vmatpush1.msra.mxu0 0.0
        %2690 = vmatprep.subr.mxu0 0.0
        %2691 = vmatpush1.msra.mxu0 0.0
        %2692 = vmatprep.subr.mxu0 0.0
        %2693 = vmatpush1.msra.mxu0 0.0
        %2694 = vmatprep.subr.mxu0 0.0
        %2695 = vmatpush1.msra.mxu0 0.0
        %2696 = vmatprep.subr.mxu0 0.0
        %2697 = vmatpush1.msra.mxu0 0.0
        %2698 = vmatprep.subr.mxu0 0.0
        %2699 = vmatpush1.msra.mxu0 0.0
        %2700 = vmatprep.subr.mxu0 0.0
        %2701 = vmatpush1.msra.mxu0 0.0
        %2702 = vmatprep.subr.mxu0 0.0
        %2703 = vmatpush1.msra.mxu0 0.0
        %2704 = vmatprep.subr.mxu0 0.0
        %2705 = vmatpush1.msra.mxu0 0.0
        %2706 = vmatprep.subr.mxu0 0.0
        %2707 = vmatpush1.msra.mxu0 0.0
        %2708 = vmatprep.subr.mxu0 0.0
        %2709 = vmatpush1.msra.mxu0 0.0
        %2710 = vmatprep.subr.mxu0 0.0
        %2711 = vmatpush1.msra.mxu0 0.0
        %2712 = vmatprep.subr.mxu0 0.0
        %2713 = vmatpush1.msra.mxu0 0.0
        %2714 = vmatprep.mubr.f32.mxu0 0.0
        %2715 = vmatmul.mubr.f32.gmra.mrb[0].mxu0 %v947
        %v2716 = vpop.f32.mrb[0].mxu0
        %v2717 = vadd.f32 %v2648, %v2716
        %v2718 = vpop.f32.mrb[0].mxu0
        %2719 = vmatprep.mubr.f32.mxu0 0.0
        %2720 = vmatmul.mubr.f32.gmra.mrb[0].mxu0 %v950
        %v2721 = vpop.f32.mrb[0].mxu0
        %v2722 = vadd.f32 %v2648, %v2721
        %v2723 = vpop.f32.mrb[0].mxu0
        %2724 = vdwg.mxu0
        %s2725 = scalar_lea.vmem %s11, 96
        %v2726 = vld [vmem:[%s2725] sm:$0xff]
        %v2727 = vld [vmem:[%s2725 + $0x8] sm:$0xff]
        %v2728 = vld [vmem:[%s2725 + $0x10] sm:$0xff]
        %v2729 = vld [vmem:[%s2725 + $0x18] sm:$0xff]
        %s2730 = scalar_lea.vmem %s12, 3
        %v2731 = vld [vmem:[%s2730] sm:$0x1]
        %v2733 = vlaneseq
        %v2734 = vshrl.u32 %v2733, 7
        %v2735 = vsub.s32 0, %v2734
        %v2736 = vrot.slane %v2731, %v2735
        %2738 = vmatprep.subr.mxu0 0.0
        %2739 = vmatpush1.msra.mxu0 %v2726
        %2740 = vmatprep.subr.mxu0 0.0
        %2741 = vmatpush1.msra.mxu0 %v2727
        %2742 = vmatprep.subr.mxu0 0.0
        %2743 = vmatpush1.msra.mxu0 %v2728
        %2744 = vmatprep.subr.mxu0 0.0
        %2745 = vmatpush1.msra.mxu0 %v2729
        %2746 = vmatprep.subr.mxu0 0.0
        %2747 = vmatpush1.msra.mxu0 0.0
        %2748 = vmatprep.subr.mxu0 0.0
        %2749 = vmatpush1.msra.mxu0 0.0
        %2750 = vmatprep.subr.mxu0 0.0
        %2751 = vmatpush1.msra.mxu0 0.0
        %2752 = vmatprep.subr.mxu0 0.0
        %2753 = vmatpush1.msra.mxu0 0.0
        %2754 = vmatprep.subr.mxu0 0.0
        %2755 = vmatpush1.msra.mxu0 0.0
        %2756 = vmatprep.subr.mxu0 0.0
        %2757 = vmatpush1.msra.mxu0 0.0
        %2758 = vmatprep.subr.mxu0 0.0
        %2759 = vmatpush1.msra.mxu0 0.0
        %2760 = vmatprep.subr.mxu0 0.0
        %2761 = vmatpush1.msra.mxu0 0.0
        %2762 = vmatprep.subr.mxu0 0.0
        %2763 = vmatpush1.msra.mxu0 0.0
        %2764 = vmatprep.subr.mxu0 0.0
        %2765 = vmatpush1.msra.mxu0 0.0
        %2766 = vmatprep.subr.mxu0 0.0
        %2767 = vmatpush1.msra.mxu0 0.0
        %2768 = vmatprep.subr.mxu0 0.0
        %2769 = vmatpush1.msra.mxu0 0.0
        %2770 = vmatprep.subr.mxu0 0.0
        %2771 = vmatpush1.msra.mxu0 0.0
        %2772 = vmatprep.subr.mxu0 0.0
        %2773 = vmatpush1.msra.mxu0 0.0
        %2774 = vmatprep.subr.mxu0 0.0
        %2775 = vmatpush1.msra.mxu0 0.0
        %2776 = vmatprep.subr.mxu0 0.0
        %2777 = vmatpush1.msra.mxu0 0.0
        %2778 = vmatprep.subr.mxu0 0.0
        %2779 = vmatpush1.msra.mxu0 0.0
        %2780 = vmatprep.subr.mxu0 0.0
        %2781 = vmatpush1.msra.mxu0 0.0
        %2782 = vmatprep.subr.mxu0 0.0
        %2783 = vmatpush1.msra.mxu0 0.0
        %2784 = vmatprep.subr.mxu0 0.0
        %2785 = vmatpush1.msra.mxu0 0.0
        %2786 = vmatprep.subr.mxu0 0.0
        %2787 = vmatpush1.msra.mxu0 0.0
        %2788 = vmatprep.subr.mxu0 0.0
        %2789 = vmatpush1.msra.mxu0 0.0
        %2790 = vmatprep.subr.mxu0 0.0
        %2791 = vmatpush1.msra.mxu0 0.0
        %2792 = vmatprep.subr.mxu0 0.0
        %2793 = vmatpush1.msra.mxu0 0.0
        %2794 = vmatprep.subr.mxu0 0.0
        %2795 = vmatpush1.msra.mxu0 0.0
        %2796 = vmatprep.subr.mxu0 0.0
        %2797 = vmatpush1.msra.mxu0 0.0
        %2798 = vmatprep.subr.mxu0 0.0
        %2799 = vmatpush1.msra.mxu0 0.0
        %2800 = vmatprep.subr.mxu0 0.0
        %2801 = vmatpush1.msra.mxu0 0.0
        %2802 = vmatprep.mubr.f32.mxu0 0.0
        %2803 = vmatmul.mubr.f32.gmra.mrb[0].mxu0 %v947
        %v2804 = vpop.f32.mrb[0].mxu0
        %v2805 = vadd.f32 %v2736, %v2804
        %v2806 = vpop.f32.mrb[0].mxu0
        %2807 = vmatprep.mubr.f32.mxu0 0.0
        %2808 = vmatmul.mubr.f32.gmra.mrb[0].mxu0 %v950
        %v2809 = vpop.f32.mrb[0].mxu0
        %v2810 = vadd.f32 %v2736, %v2809
        %v2811 = vpop.f32.mrb[0].mxu0
        %2812 = vdwg.mxu0
        %v2814 = vsel %vm1199, %v2629, 0
        %v2817 = vsel %vm1199, %v2634, 0
        %v2820 = vsel %vm1199, %v2717, 0
        %v2823 = vsel %vm1199, %v2722, 0
        %2825 = vmatprep.subr.mxu0 0.0
        %2826 = vmatpush1.xpose.msra.mxu0 %v2820
        %2827 = vmatprep.subr.mxu0 0.0
        %2828 = vmatpush1.xpose.msra.mxu0 %v2823
        %2829 = vmatprep.subr.mxu0 0.0
        %2830 = vmatpush1.xpose.msra.mxu0 0.0
        %2831 = vmatprep.subr.mxu0 0.0
        %2832 = vmatpush1.xpose.msra.mxu0 0.0
        %2833 = vmatprep.subr.mxu0 0.0
        %2834 = vmatpush1.xpose.msra.mxu0 0.0
        %2835 = vmatprep.subr.mxu0 0.0
        %2836 = vmatpush1.xpose.msra.mxu0 0.0
        %2837 = vmatprep.subr.mxu0 0.0
        %2838 = vmatpush1.xpose.msra.mxu0 0.0
        %2839 = vmatprep.subr.mxu0 0.0
        %2840 = vmatpush1.xpose.msra.mxu0 0.0
        %2841 = vmatprep.subr.mxu0 0.0
        %2842 = vmatpush1.xpose.msra.mxu0 0.0
        %2843 = vmatprep.subr.mxu0 0.0
        %2844 = vmatpush1.xpose.msra.mxu0 0.0
        %2845 = vmatprep.subr.mxu0 0.0
        %2846 = vmatpush1.xpose.msra.mxu0 0.0
        %2847 = vmatprep.subr.mxu0 0.0
        %2848 = vmatpush1.xpose.msra.mxu0 0.0
        %2849 = vmatprep.subr.mxu0 0.0
        %2850 = vmatpush1.xpose.msra.mxu0 0.0
        %2851 = vmatprep.subr.mxu0 0.0
        %2852 = vmatpush1.xpose.msra.mxu0 0.0
        %2853 = vmatprep.subr.mxu0 0.0
        %2854 = vmatpush1.xpose.msra.mxu0 0.0
        %2855 = vmatprep.subr.mxu0 0.0
        %2856 = vmatpush1.xpose.msra.mxu0 0.0
        %2857 = vmatprep.subr.mxu0 0.0
        %2858 = vmatpush1.xpose.msra.mxu0 0.0
        %2859 = vmatprep.subr.mxu0 0.0
        %2860 = vmatpush1.xpose.msra.mxu0 0.0
        %2861 = vmatprep.subr.mxu0 0.0
        %2862 = vmatpush1.xpose.msra.mxu0 0.0
        %2863 = vmatprep.subr.mxu0 0.0
        %2864 = vmatpush1.xpose.msra.mxu0 0.0
        %2865 = vmatprep.subr.mxu0 0.0
        %2866 = vmatpush1.xpose.msra.mxu0 0.0
        %2867 = vmatprep.subr.mxu0 0.0
        %2868 = vmatpush1.xpose.msra.mxu0 0.0
        %2869 = vmatprep.subr.mxu0 0.0
        %2870 = vmatpush1.xpose.msra.mxu0 0.0
        %2871 = vmatprep.subr.mxu0 0.0
        %2872 = vmatpush1.xpose.msra.mxu0 0.0
        %2873 = vmatprep.subr.mxu0 0.0
        %2874 = vmatpush1.xpose.msra.mxu0 0.0
        %2875 = vmatprep.subr.mxu0 0.0
        %2876 = vmatpush1.xpose.msra.mxu0 0.0
        %2877 = vmatprep.subr.mxu0 0.0
        %2878 = vmatpush1.xpose.msra.mxu0 0.0
        %2879 = vmatprep.subr.mxu0 0.0
        %2880 = vmatpush1.xpose.msra.mxu0 0.0
        %2881 = vmatprep.subr.mxu0 0.0
        %2882 = vmatpush1.xpose.msra.mxu0 0.0
        %2883 = vmatprep.subr.mxu0 0.0
        %2884 = vmatpush1.xpose.msra.mxu0 0.0
        %2885 = vmatprep.subr.mxu0 0.0
        %2886 = vmatpush1.xpose.msra.mxu0 0.0
        %2887 = vmatprep.subr.mxu0 0.0
        %2888 = vmatpush1.xpose.msra.mxu0 0.0
        %2889 = vmatprep.mubr.f32.mxu0 0.0
        %2890 = vmatmul.mubr.f32.gmra.mrb[0].mxu0 %v2814
        %v2891 = vpop.f32.mrb[0].mxu0
        %v2892 = vadd.f32 0.0, %v2891
        %v2893 = vpop.f32.mrb[0].mxu0
        %2894 = vmatprep.mubr.f32.mxu0 0.0
        %2895 = vmatmul.mubr.f32.gmra.mrb[0].mxu0 %v2817
        %v2896 = vpop.f32.mrb[0].mxu0
        %v2897 = vadd.f32 0.0, %v2896
        %v2898 = vpop.f32.mrb[0].mxu0
        %2899 = vdwg.mxu0
        %v2900 = vsel %vm1287, %v2892, -inf
        %2901 = vmax.xlane.f32.xlu0 %v2900
        %v2902 = vpop.xlane.xlu0 %2901
        %v2903 = vsel %vm1287, %v2897, -inf
        %2904 = vmax.xlane.f32.xlu0 %v2903
        %v2905 = vpop.xlane.xlu0 %2904
        %v2906 = vsub.f32 %v2892, %v2902
        %v2907 = vsub.f32 %v2897, %v2905
        %v2908 = vmul.f32 %v2906, 1.442695
        %v2909 = vpow.pop %v2908
        %v2910 = vmul.f32 %v2907, 1.442695
        %v2911 = vpow.pop %v2910
        %v2912 = vsel %vm1287, %v2909, 0.0
        %2913 = vadd.xlane.f32.xlu0 %v2912
        %v2914 = vpop.xlane.xlu0 %2913
        %v2915 = vsel %vm1287, %v2911, 0.0
        %2916 = vadd.xlane.f32.xlu0 %v2915
        %v2917 = vpop.xlane.xlu0 %2916
        %v2918 = vrcp.pop %v2914
        %v2919 = vmul.f32 %v2909, %v2918
        %v2920 = vrcp.pop %v2917
        %v2921 = vmul.f32 %v2911, %v2920
        %v2923 = vsel %vm1287, %v2919, 0
        %v2926 = vsel %vm1287, %v2921, 0
        %2928 = vmatprep.subr.mxu0 0.0
        %2929 = vmatpush1.msra.mxu0 %v2805
        %2930 = vmatprep.subr.mxu0 0.0
        %2931 = vmatpush1.msra.mxu0 %v2810
        %2932 = vmatprep.subr.mxu0 0.0
        %2933 = vmatpush1.msra.mxu0 0.0
        %2934 = vmatprep.subr.mxu0 0.0
        %2935 = vmatpush1.msra.mxu0 0.0
        %2936 = vmatprep.subr.mxu0 0.0
        %2937 = vmatpush1.msra.mxu0 0.0
        %2938 = vmatprep.subr.mxu0 0.0
        %2939 = vmatpush1.msra.mxu0 0.0
        %2940 = vmatprep.subr.mxu0 0.0
        %2941 = vmatpush1.msra.mxu0 0.0
        %2942 = vmatprep.subr.mxu0 0.0
        %2943 = vmatpush1.msra.mxu0 0.0
        %2944 = vmatprep.subr.mxu0 0.0
        %2945 = vmatpush1.msra.mxu0 0.0
        %2946 = vmatprep.subr.mxu0 0.0
        %2947 = vmatpush1.msra.mxu0 0.0
        %2948 = vmatprep.subr.mxu0 0.0
        %2949 = vmatpush1.msra.mxu0 0.0
        %2950 = vmatprep.subr.mxu0 0.0
        %2951 = vmatpush1.msra.mxu0 0.0
        %2952 = vmatprep.subr.mxu0 0.0
        %2953 = vmatpush1.msra.mxu0 0.0
        %2954 = vmatprep.subr.mxu0 0.0
        %2955 = vmatpush1.msra.mxu0 0.0
        %2956 = vmatprep.subr.mxu0 0.0
        %2957 = vmatpush1.msra.mxu0 0.0
        %2958 = vmatprep.subr.mxu0 0.0
        %2959 = vmatpush1.msra.mxu0 0.0
        %2960 = vmatprep.subr.mxu0 0.0
        %2961 = vmatpush1.msra.mxu0 0.0
        %2962 = vmatprep.subr.mxu0 0.0
        %2963 = vmatpush1.msra.mxu0 0.0
        %2964 = vmatprep.subr.mxu0 0.0
        %2965 = vmatpush1.msra.mxu0 0.0
        %2966 = vmatprep.subr.mxu0 0.0
        %2967 = vmatpush1.msra.mxu0 0.0
        %2968 = vmatprep.subr.mxu0 0.0
        %2969 = vmatpush1.msra.mxu0 0.0
        %2970 = vmatprep.subr.mxu0 0.0
        %2971 = vmatpush1.msra.mxu0 0.0
        %2972 = vmatprep.subr.mxu0 0.0
        %2973 = vmatpush1.msra.mxu0 0.0
        %2974 = vmatprep.subr.mxu0 0.0
        %2975 = vmatpush1.msra.mxu0 0.0
        %2976 = vmatprep.subr.mxu0 0.0
        %2977 = vmatpush1.msra.mxu0 0.0
        %2978 = vmatprep.subr.mxu0 0.0
        %2979 = vmatpush1.msra.mxu0 0.0
        %2980 = vmatprep.subr.mxu0 0.0
        %2981 = vmatpush1.msra.mxu0 0.0
        %2982 = vmatprep.subr.mxu0 0.0
        %2983 = vmatpush1.msra.mxu0 0.0
        %2984 = vmatprep.subr.mxu0 0.0
        %2985 = vmatpush1.msra.mxu0 0.0
        %2986 = vmatprep.subr.mxu0 0.0
        %2987 = vmatpush1.msra.mxu0 0.0
        %2988 = vmatprep.subr.mxu0 0.0
        %2989 = vmatpush1.msra.mxu0 0.0
        %2990 = vmatprep.subr.mxu0 0.0
        %2991 = vmatpush1.msra.mxu0 0.0
        %2992 = vmatprep.mubr.f32.mxu0 0.0
        %2993 = vmatmul.mubr.f32.gmra.mrb[0].mxu0 %v2923
        %v2994 = vpop.f32.mrb[0].mxu0
        %v2995 = vadd.f32 0.0, %v2994
        %v2996 = vpop.f32.mrb[0].mxu0
        %2997 = vmatprep.mubr.f32.mxu0 0.0
        %2998 = vmatmul.mubr.f32.gmra.mrb[0].mxu0 %v2926
        %v2999 = vpop.f32.mrb[0].mxu0
        %v3000 = vadd.f32 0.0, %v2999
        %v3001 = vpop.f32.mrb[0].mxu0
        %3002 = vdwg.mxu0
        %s3003 = scalar_lea.vmem %s13, 24
        %v3004 = vld [vmem:[%s3003] sm:$0xff]
        %v3006 = vsel %vm1199, %v2995, 0
        %v3009 = vsel %vm1199, %v3000, 0
        %3011 = vmatprep.subr.mxu0 0.0
        %3012 = vmatpush1.msra.mxu0 %v3004
        %3013 = vmatprep.subr.mxu0 0.0
        %3014 = vmatpush1.msra.mxu0 0.0
        %3015 = vmatprep.subr.mxu0 0.0
        %3016 = vmatpush1.msra.mxu0 0.0
        %3017 = vmatprep.subr.mxu0 0.0
        %3018 = vmatpush1.msra.mxu0 0.0
        %3019 = vmatprep.subr.mxu0 0.0
        %3020 = vmatpush1.msra.mxu0 0.0
        %3021 = vmatprep.subr.mxu0 0.0
        %3022 = vmatpush1.msra.mxu0 0.0
        %3023 = vmatprep.subr.mxu0 0.0
        %3024 = vmatpush1.msra.mxu0 0.0
        %3025 = vmatprep.subr.mxu0 0.0
        %3026 = vmatpush1.msra.mxu0 0.0
        %3027 = vmatprep.subr.mxu0 0.0
        %3028 = vmatpush1.msra.mxu0 0.0
        %3029 = vmatprep.subr.mxu0 0.0
        %3030 = vmatpush1.msra.mxu0 0.0
        %3031 = vmatprep.subr.mxu0 0.0
        %3032 = vmatpush1.msra.mxu0 0.0
        %3033 = vmatprep.subr.mxu0 0.0
        %3034 = vmatpush1.msra.mxu0 0.0
        %3035 = vmatprep.subr.mxu0 0.0
        %3036 = vmatpush1.msra.mxu0 0.0
        %3037 = vmatprep.subr.mxu0 0.0
        %3038 = vmatpush1.msra.mxu0 0.0
        %3039 = vmatprep.subr.mxu0 0.0
        %3040 = vmatpush1.msra.mxu0 0.0
        %3041 = vmatprep.subr.mxu0 0.0
        %3042 = vmatpush1.msra.mxu0 0.0
        %3043 = vmatprep.subr.mxu0 0.0
        %3044 = vmatpush1.msra.mxu0 0.0
        %3045 = vmatprep.subr.mxu0 0.0
        %3046 = vmatpush1.msra.mxu0 0.0
        %3047 = vmatprep.subr.mxu0 0.0
        %3048 = vmatpush1.msra.mxu0 0.0
        %3049 = vmatprep.subr.mxu0 0.0
        %3050 = vmatpush1.msra.mxu0 0.0
        %3051 = vmatprep.subr.mxu0 0.0
        %3052 = vmatpush1.msra.mxu0 0.0
        %3053 = vmatprep.subr.mxu0 0.0
        %3054 = vmatpush1.msra.mxu0 0.0
        %3055 = vmatprep.subr.mxu0 0.0
        %3056 = vmatpush1.msra.mxu0 0.0
        %3057 = vmatprep.subr.mxu0 0.0
        %3058 = vmatpush1.msra.mxu0 0.0
        %3059 = vmatprep.subr.mxu0 0.0
        %3060 = vmatpush1.msra.mxu0 0.0
        %3061 = vmatprep.subr.mxu0 0.0
        %3062 = vmatpush1.msra.mxu0 0.0
        %3063 = vmatprep.subr.mxu0 0.0
        %3064 = vmatpush1.msra.mxu0 0.0
        %3065 = vmatprep.subr.mxu0 0.0
        %3066 = vmatpush1.msra.mxu0 0.0
        %3067 = vmatprep.subr.mxu0 0.0
        %3068 = vmatpush1.msra.mxu0 0.0
        %3069 = vmatprep.subr.mxu0 0.0
        %3070 = vmatpush1.msra.mxu0 0.0
        %3071 = vmatprep.subr.mxu0 0.0
        %3072 = vmatpush1.msra.mxu0 0.0
        %3073 = vmatprep.subr.mxu0 0.0
        %3074 = vmatpush1.msra.mxu0 0.0
        %3075 = vmatprep.mubr.f32.mxu0 0.0
        %3076 = vmatmul.mubr.f32.gmra.mrb[0].mxu0 %v3006
        %v3077 = vpop.f32.mrb[0].mxu0
        %v3078 = vadd.f32 0.0, %v3077
        %v3079 = vpop.f32.mrb[0].mxu0
        %3080 = vmatprep.mubr.f32.mxu0 0.0
        %3081 = vmatmul.mubr.f32.gmra.mrb[0].mxu0 %v3009
        %v3082 = vpop.f32.mrb[0].mxu0
        %v3083 = vadd.f32 0.0, %v3082
        %v3084 = vpop.f32.mrb[0].mxu0
        %3085 = vdwg.mxu0
        %v3086 = vadd.f32 %v2547, %v3078
        %v3087 = vadd.f32 %v2548, %v3083
        %v3088 = vadd.f32 %v887, %v3086
        %v3089 = vadd.f32 %v888, %v3087
        %v3090 = vld [vmem:[%s14] sm:$0x1]
        %v3092 = vlaneseq
        %v3093 = vshrl.u32 %v3092, 7
        %v3094 = vsub.s32 0, %v3093
        %v3095 = vrot.slane %v3090, %v3094
        %v3097 = vadd.f32 %v3088, %v3095
        %v3098 = vadd.f32 %v3089, %v3095
        %v3099 = vld [vmem:[%s15] sm:$0x1]
        %v3100 = vld [vmem:[%s16] sm:$0x1]
        %v3101 = vsel %vm891, %v3097, 0.0
        %3102 = vadd.xlane.f32.xlu0 %v3101
        %v3103 = vpop.xlane.xlu0 %3102
        %v3104 = vsel %vm891, %v3098, 0.0
        %3105 = vadd.xlane.f32.xlu0 %v3104
        %v3106 = vpop.xlane.xlu0 %3105
        %v3107 = vmul.f32 %v3103, %v898
        %v3108 = vmul.f32 %v3106, %v898
        %v3109 = vsub.f32 %v3097, %v3107
        %v3110 = vsub.f32 %v3098, %v3108
        %v3111 = vmul.f32 %v3109, %v3109
        %v3112 = vmul.f32 %v3110, %v3110
        %v3113 = vsel %vm891, %v3111, 0.0
        %3114 = vadd.xlane.f32.xlu0 %v3113
        %v3115 = vpop.xlane.xlu0 %3114
        %v3116 = vsel %vm891, %v3112, 0.0
        %3117 = vadd.xlane.f32.xlu0 %v3116
        %v3118 = vpop.xlane.xlu0 %3117
        %v3119 = vmul.f32 %v3115, %v898
        %v3120 = vmul.f32 %v3118, %v898
        %v3121 = vadd.f32 %v3119, 1e-05
        %v3122 = vadd.f32 %v3120, 1e-05
        %v3123 = vrsqrt.pop %v3121
        %v3124 = vrsqrt.pop %v3122
        %v3125 = vmul.f32 %v3109, %v3123
        %v3126 = vmul.f32 %v3110, %v3124
        %v3128 = vlaneseq
        %v3129 = vshrl.u32 %v3128, 7
        %v3130 = vsub.s32 0, %v3129
        %v3131 = vrot.slane %v3099, %v3130
        %v3133 = vmul.f32 %v3125, %v3131
        %v3134 = vmul.f32 %v3126, %v3131
        %v3136 = vlaneseq
        %v3137 = vshrl.u32 %v3136, 7
        %v3138 = vsub.s32 0, %v3137
        %v3139 = vrot.slane %v3100, %v3138
        %v3141 = vadd.f32 %v3133, %v3139
        %v3142 = vadd.f32 %v3134, %v3139
        %v3143 = vld [vmem:[%s17] sm:$0xff]
        %v3144 = vld [vmem:[%s17 + $0x8] sm:$0xff]
        %v3145 = vld [vmem:[%s17 + $0x10] sm:$0xff]
        %v3146 = vld [vmem:[%s17 + $0x18] sm:$0xff]
        %v3147 = vld [vmem:[%s18] sm:$0x1]
        %v3149 = vlaneseq
        %v3150 = vshrl.u32 %v3149, 7
        %v3151 = vsub.s32 0, %v3150
        %v3152 = vrot.slane %v3147, %v3151
        %v3155 = vsel %vm891, %v3141, 0
        %v3158 = vsel %vm891, %v3142, 0
        %3160 = vmatprep.subr.mxu0 0.0
        %3161 = vmatpush1.msra.mxu0 %v3143
        %3162 = vmatprep.subr.mxu0 0.0
        %3163 = vmatpush1.msra.mxu0 %v3144
        %3164 = vmatprep.subr.mxu0 0.0
        %3165 = vmatpush1.msra.mxu0 %v3145
        %3166 = vmatprep.subr.mxu0 0.0
        %3167 = vmatpush1.msra.mxu0 %v3146
        %3168 = vmatprep.subr.mxu0 0.0
        %3169 = vmatpush1.msra.mxu0 0.0
        %3170 = vmatprep.subr.mxu0 0.0
        %3171 = vmatpush1.msra.mxu0 0.0
        %3172 = vmatprep.subr.mxu0 0.0
        %3173 = vmatpush1.msra.mxu0 0.0
        %3174 = vmatprep.subr.mxu0 0.0
        %3175 = vmatpush1.msra.mxu0 0.0
        %3176 = vmatprep.subr.mxu0 0.0
        %3177 = vmatpush1.msra.mxu0 0.0
        %3178 = vmatprep.subr.mxu0 0.0
        %3179 = vmatpush1.msra.mxu0 0.0
        %3180 = vmatprep.subr.mxu0 0.0
        %3181 = vmatpush1.msra.mxu0 0.0
        %3182 = vmatprep.subr.mxu0 0.0
        %3183 = vmatpush1.msra.mxu0 0.0
        %3184 = vmatprep.subr.mxu0 0.0
        %3185 = vmatpush1.msra.mxu0 0.0
        %3186 = vmatprep.subr.mxu0 0.0
        %3187 = vmatpush1.msra.mxu0 0.0
        %3188 = vmatprep.subr.mxu0 0.0
        %3189 = vmatpush1.msra.mxu0 0.0
        %3190 = vmatprep.subr.mxu0 0.0
        %3191 = vmatpush1.msra.mxu0 0.0
        %3192 = vmatprep.subr.mxu0 0.0
        %3193 = vmatpush1.msra.mxu0 0.0
        %3194 = vmatprep.subr.mxu0 0.0
        %3195 = vmatpush1.msra.mxu0 0.0
        %3196 = vmatprep.subr.mxu0 0.0
        %3197 = vmatpush1.msra.mxu0 0.0
        %3198 = vmatprep.subr.mxu0 0.0
        %3199 = vmatpush1.msra.mxu0 0.0
        %3200 = vmatprep.subr.mxu0 0.0
        %3201 = vmatpush1.msra.mxu0 0.0
        %3202 = vmatprep.subr.mxu0 0.0
        %3203 = vmatpush1.msra.mxu0 0.0
        %3204 = vmatprep.subr.mxu0 0.0
        %3205 = vmatpush1.msra.mxu0 0.0
        %3206 = vmatprep.subr.mxu0 0.0
        %3207 = vmatpush1.msra.mxu0 0.0
        %3208 = vmatprep.subr.mxu0 0.0
        %3209 = vmatpush1.msra.mxu0 0.0
        %3210 = vmatprep.subr.mxu0 0.0
        %3211 = vmatpush1.msra.mxu0 0.0
        %3212 = vmatprep.subr.mxu0 0.0
        %3213 = vmatpush1.msra.mxu0 0.0
        %3214 = vmatprep.subr.mxu0 0.0
        %3215 = vmatpush1.msra.mxu0 0.0
        %3216 = vmatprep.subr.mxu0 0.0
        %3217 = vmatpush1.msra.mxu0 0.0
        %3218 = vmatprep.subr.mxu0 0.0
        %3219 = vmatpush1.msra.mxu0 0.0
        %3220 = vmatprep.subr.mxu0 0.0
        %3221 = vmatpush1.msra.mxu0 0.0
        %3222 = vmatprep.subr.mxu0 0.0
        %3223 = vmatpush1.msra.mxu0 0.0
        %3224 = vmatprep.mubr.f32.mxu0 0.0
        %3225 = vmatmul.mubr.f32.gmra.mrb[0].mxu0 %v3155
        %v3226 = vpop.f32.mrb[0].mxu0
        %v3227 = vadd.f32 %v3152, %v3226
        %v3228 = vpop.f32.mrb[0].mxu0
        %3229 = vmatprep.mubr.f32.mxu0 0.0
        %3230 = vmatmul.mubr.f32.gmra.mrb[0].mxu0 %v3158
        %v3231 = vpop.f32.mrb[0].mxu0
        %v3232 = vadd.f32 %v3152, %v3231
        %v3233 = vpop.f32.mrb[0].mxu0
        %3234 = vdwg.mxu0
        %v3235 = vmul.f32 %v3227, 0.5
        %v3236 = vmul.f32 %v3232, 0.5
        %v3237 = vmul.f32 %v3227, 0.044715
        %v3238 = vmul.f32 %v3232, 0.044715
        %v3239 = vmul.f32 %v3237, %v3227
        %v3240 = vmul.f32 %v3238, %v3232
        %v3241 = vmul.f32 %v3239, %v3227
        %v3242 = vmul.f32 %v3240, %v3232
        %v3243 = vadd.f32 %v3227, %v3241
        %v3244 = vadd.f32 %v3232, %v3242
        %v3245 = vmul.f32 %v3243, 0.7978846
        %v3246 = vmul.f32 %v3244, 0.7978846
        %v3247 = vtanh.pop %v3245
        %v3248 = vtanh.pop %v3246
        %v3249 = vadd.f32 %v3247, 1.0
        %v3250 = vadd.f32 %v3248, 1.0
        %v3251 = vmul.f32 %v3235, %v3249
        %v3252 = vmul.f32 %v3236, %v3250
        %v3253 = vld [vmem:[%s19] sm:$0xff]
        %v3254 = vld [vmem:[%s19 + $0x8] sm:$0xff]
        %v3255 = vld [vmem:[%s19 + $0x10] sm:$0xff]
        %v3256 = vld [vmem:[%s19 + $0x18] sm:$0xff]
        %v3257 = vld [vmem:[%s19 + $0x20] sm:$0xff]
        %v3258 = vld [vmem:[%s19 + $0x28] sm:$0xff]
        %v3259 = vld [vmem:[%s19 + $0x30] sm:$0xff]
        %v3260 = vld [vmem:[%s19 + $0x38] sm:$0xff]
        %vm3261 = vcmask 523264
        %v3263 = vsel %vm3261, %v3251, 0
        %v3266 = vsel %vm3261, %v3252, 0
        %3268 = vmatprep.subr.mxu0 0.0
        %3269 = vmatpush1.msra.mxu0 %v3253
        %3270 = vmatprep.subr.mxu0 0.0
        %3271 = vmatpush1.msra.mxu0 %v3254
        %3272 = vmatprep.subr.mxu0 0.0
        %3273 = vmatpush1.msra.mxu0 %v3255
        %3274 = vmatprep.subr.mxu0 0.0
        %3275 = vmatpush1.msra.mxu0 %v3256
        %3276 = vmatprep.subr.mxu0 0.0
        %3277 = vmatpush1.msra.mxu0 %v3257
        %3278 = vmatprep.subr.mxu0 0.0
        %3279 = vmatpush1.msra.mxu0 %v3258
        %3280 = vmatprep.subr.mxu0 0.0
        %3281 = vmatpush1.msra.mxu0 %v3259
        %3282 = vmatprep.subr.mxu0 0.0
        %3283 = vmatpush1.msra.mxu0 %v3260
        %3284 = vmatprep.subr.mxu0 0.0
        %3285 = vmatpush1.msra.mxu0 0.0
        %3286 = vmatprep.subr.mxu0 0.0
        %3287 = vmatpush1.msra.mxu0 0.0
        %3288 = vmatprep.subr.mxu0 0.0
        %3289 = vmatpush1.msra.mxu0 0.0
        %3290 = vmatprep.subr.mxu0 0.0
        %3291 = vmatpush1.msra.mxu0 0.0
        %3292 = vmatprep.subr.mxu0 0.0
        %3293 = vmatpush1.msra.mxu0 0.0
        %3294 = vmatprep.subr.mxu0 0.0
        %3295 = vmatpush1.msra.mxu0 0.0
        %3296 = vmatprep.subr.mxu0 0.0
        %3297 = vmatpush1.msra.mxu0 0.0
        %3298 = vmatprep.subr.mxu0 0.0
        %3299 = vmatpush1.msra.mxu0 0.0
        %3300 = vmatprep.subr.mxu0 0.0
        %3301 = vmatpush1.msra.mxu0 0.0
        %3302 = vmatprep.subr.mxu0 0.0
        %3303 = vmatpush1.msra.mxu0 0.0
        %3304 = vmatprep.subr.mxu0 0.0
        %3305 = vmatpush1.msra.mxu0 0.0
        %3306 = vmatprep.subr.mxu0 0.0
        %3307 = vmatpush1.msra.mxu0 0.0
        %3308 = vmatprep.subr.mxu0 0.0
        %3309 = vmatpush1.msra.mxu0 0.0
        %3310 = vmatprep.subr.mxu0 0.0
        %3311 = vmatpush1.msra.mxu0 0.0
        %3312 = vmatprep.subr.mxu0 0.0
        %3313 = vmatpush1.msra.mxu0 0.0
        %3314 = vmatprep.subr.mxu0 0.0
        %3315 = vmatpush1.msra.mxu0 0.0
        %3316 = vmatprep.subr.mxu0 0.0
        %3317 = vmatpush1.msra.mxu0 0.0
        %3318 = vmatprep.subr.mxu0 0.0
        %3319 = vmatpush1.msra.mxu0 0.0
        %3320 = vmatprep.subr.mxu0 0.0
        %3321 = vmatpush1.msra.mxu0 0.0
        %3322 = vmatprep.subr.mxu0 0.0
        %3323 = vmatpush1.msra.mxu0 0.0
        %3324 = vmatprep.subr.mxu0 0.0
        %3325 = vmatpush1.msra.mxu0 0.0
        %3326 = vmatprep.subr.mxu0 0.0
        %3327 = vmatpush1.msra.mxu0 0.0
        %3328 = vmatprep.subr.mxu0 0.0
        %3329 = vmatpush1.msra.mxu0 0.0
        %3330 = vmatprep.subr.mxu0 0.0
        %3331 = vmatpush1.msra.mxu0 0.0
        %3332 = vmatprep.mubr.f32.mxu0 0.0
        %3333 = vmatmul.mubr.f32.gmra.mrb[0].mxu0 %v3263
        %v3334 = vpop.f32.mrb[0].mxu0
        %v3335 = vadd.f32 0.0, %v3334
        %v3336 = vpop.f32.mrb[0].mxu0
        %3337 = vmatprep.mubr.f32.mxu0 0.0
        %3338 = vmatmul.mubr.f32.gmra.mrb[0].mxu0 %v3266
        %v3339 = vpop.f32.mrb[0].mxu0
        %v3340 = vadd.f32 0.0, %v3339
        %v3341 = vpop.f32.mrb[0].mxu0
        %3342 = vdwg.mxu0
        %v3343 = vadd.f32 %v3097, %v3335
        %v3344 = vadd.f32 %v3098, %v3340
        %v3345 = vld [vmem:[%s20] sm:$0x1]
        %v3347 = vlaneseq
        %v3348 = vshrl.u32 %v3347, 7
        %v3349 = vsub.s32 0, %v3348
        %v3350 = vrot.slane %v3345, %v3349
        %v3352 = vadd.f32 %v3343, %v3350
        %v3353 = vadd.f32 %v3344, %v3350
        %s3354 = scalar_lea.vmem %s5, 1
        %v3355 = vld [vmem:[%s3354] sm:$0x1]
        %s3356 = scalar_lea.vmem %s6, 1
        %v3357 = vld [vmem:[%s3356] sm:$0x1]
        %v3358 = vsel %vm891, %v3352, 0.0
        %3359 = vadd.xlane.f32.xlu0 %v3358
        %v3360 = vpop.xlane.xlu0 %3359
        %v3361 = vsel %vm891, %v3353, 0.0
        %3362 = vadd.xlane.f32.xlu0 %v3361
        %v3363 = vpop.xlane.xlu0 %3362
        %v3364 = vmul.f32 %v3360, %v898
        %v3365 = vmul.f32 %v3363, %v898
        %v3366 = vsub.f32 %v3352, %v3364
        %v3367 = vsub.f32 %v3353, %v3365
        %v3368 = vmul.f32 %v3366, %v3366
        %v3369 = vmul.f32 %v3367, %v3367
        %v3370 = vsel %vm891, %v3368, 0.0
        %3371 = vadd.xlane.f32.xlu0 %v3370
        %v3372 = vpop.xlane.xlu0 %3371
        %v3373 = vsel %vm891, %v3369, 0.0
        %3374 = vadd.xlane.f32.xlu0 %v3373
        %v3375 = vpop.xlane.xlu0 %3374
        %v3376 = vmul.f32 %v3372, %v898
        %v3377 = vmul.f32 %v3375, %v898
        %v3378 = vadd.f32 %v3376, 1e-05
        %v3379 = vadd.f32 %v3377, 1e-05
        %v3380 = vrsqrt.pop %v3378
        %v3381 = vrsqrt.pop %v3379
        %v3382 = vmul.f32 %v3366, %v3380
        %v3383 = vmul.f32 %v3367, %v3381
        %v3385 = vlaneseq
        %v3386 = vshrl.u32 %v3385, 7
        %v3387 = vsub.s32 0, %v3386
        %v3388 = vrot.slane %v3355, %v3387
        %v3390 = vmul.f32 %v3382, %v3388
        %v3391 = vmul.f32 %v3383, %v3388
        %v3393 = vlaneseq
        %v3394 = vshrl.u32 %v3393, 7
        %v3395 = vsub.s32 0, %v3394
        %v3396 = vrot.slane %v3357, %v3395
        %v3398 = vadd.f32 %v3390, %v3396
        %v3399 = vadd.f32 %v3391, %v3396
        %s3400 = scalar_lea.vmem %s7, 128
        %v3401 = vld [vmem:[%s3400] sm:$0xff]
        %v3402 = vld [vmem:[%s3400 + $0x8] sm:$0xff]
        %v3403 = vld [vmem:[%s3400 + $0x10] sm:$0xff]
        %v3404 = vld [vmem:[%s3400 + $0x18] sm:$0xff]
        %s3405 = scalar_lea.vmem %s8, 4
        %v3406 = vld [vmem:[%s3405] sm:$0x1]
        %v3408 = vlaneseq
        %v3409 = vshrl.u32 %v3408, 7
        %v3410 = vsub.s32 0, %v3409
        %v3411 = vrot.slane %v3406, %v3410
        %v3414 = vsel %vm891, %v3398, 0
        %v3417 = vsel %vm891, %v3399, 0
        %3419 = vmatprep.subr.mxu0 0.0
        %3420 = vmatpush1.msra.mxu0 %v3401
        %3421 = vmatprep.subr.mxu0 0.0
        %3422 = vmatpush1.msra.mxu0 %v3402
        %3423 = vmatprep.subr.mxu0 0.0
        %3424 = vmatpush1.msra.mxu0 %v3403
        %3425 = vmatprep.subr.mxu0 0.0
        %3426 = vmatpush1.msra.mxu0 %v3404
        %3427 = vmatprep.subr.mxu0 0.0
        %3428 = vmatpush1.msra.mxu0 0.0
        %3429 = vmatprep.subr.mxu0 0.0
        %3430 = vmatpush1.msra.mxu0 0.0
        %3431 = vmatprep.subr.mxu0 0.0
        %3432 = vmatpush1.msra.mxu0 0.0
        %3433 = vmatprep.subr.mxu0 0.0
        %3434 = vmatpush1.msra.mxu0 0.0
        %3435 = vmatprep.subr.mxu0 0.0
        %3436 = vmatpush1.msra.mxu0 0.0
        %3437 = vmatprep.subr.mxu0 0.0
        %3438 = vmatpush1.msra.mxu0 0.0
        %3439 = vmatprep.subr.mxu0 0.0
        %3440 = vmatpush1.msra.mxu0 0.0
        %3441 = vmatprep.subr.mxu0 0.0
        %3442 = vmatpush1.msra.mxu0 0.0
        %3443 = vmatprep.subr.mxu0 0.0
        %3444 = vmatpush1.msra.mxu0 0.0
        %3445 = vmatprep.subr.mxu0 0.0
        %3446 = vmatpush1.msra.mxu0 0.0
        %3447 = vmatprep.subr.mxu0 0.0
        %3448 = vmatpush1.msra.mxu0 0.0
        %3449 = vmatprep.subr.mxu0 0.0
        %3450 = vmatpush1.msra.mxu0 0.0
        %3451 = vmatprep.subr.mxu0 0.0
        %3452 = vmatpush1.msra.mxu0 0.0
        %3453 = vmatprep.subr.mxu0 0.0
        %3454 = vmatpush1.msra.mxu0 0.0
        %3455 = vmatprep.subr.mxu0 0.0
        %3456 = vmatpush1.msra.mxu0 0.0
        %3457 = vmatprep.subr.mxu0 0.0
        %3458 = vmatpush1.msra.mxu0 0.0
        %3459 = vmatprep.subr.mxu0 0.0
        %3460 = vmatpush1.msra.mxu0 0.0
        %3461 = vmatprep.subr.mxu0 0.0
        %3462 = vmatpush1.msra.mxu0 0.0
        %3463 = vmatprep.subr.mxu0 0.0
        %3464 = vmatpush1.msra.mxu0 0.0
        %3465 = vmatprep.subr.mxu0 0.0
        %3466 = vmatpush1.msra.mxu0 0.0
        %3467 = vmatprep.subr.mxu0 0.0
        %3468 = vmatpush1.msra.mxu0 0.0
        %3469 = vmatprep.subr.mxu0 0.0
        %3470 = vmatpush1.msra.mxu0 0.0
        %3471 = vmatprep.subr.mxu0 0.0
        %3472 = vmatpush1.msra.mxu0 0.0
        %3473 = vmatprep.subr.mxu0 0.0
        %3474 = vmatpush1.msra.mxu0 0.0
        %3475 = vmatprep.subr.mxu0 0.0
        %3476 = vmatpush1.msra.mxu0 0.0
        %3477 = vmatprep.subr.mxu0 0.0
        %3478 = vmatpush1.msra.mxu0 0.0
        %3479 = vmatprep.subr.mxu0 0.0
        %3480 = vmatpush1.msra.mxu0 0.0
        %3481 = vmatprep.subr.mxu0 0.0
        %3482 = vmatpush1.msra.mxu0 0.0
        %3483 = vmatprep.mubr.f32.mxu0 0.0
        %3484 = vmatmul.mubr.f32.gmra.mrb[0].mxu0 %v3414
        %v3485 = vpop.f32.mrb[0].mxu0
        %v3486 = vadd.f32 %v3411, %v3485
        %v3487 = vpop.f32.mrb[0].mxu0
        %3488 = vmatprep.mubr.f32.mxu0 0.0
        %3489 = vmatmul.mubr.f32.gmra.mrb[0].mxu0 %v3417
        %v3490 = vpop.f32.mrb[0].mxu0
        %v3491 = vadd.f32 %v3411, %v3490
        %v3492 = vpop.f32.mrb[0].mxu0
        %3493 = vdwg.mxu0
        %s3494 = scalar_lea.vmem %s9, 128
        %v3495 = vld [vmem:[%s3494] sm:$0xff]
        %v3496 = vld [vmem:[%s3494 + $0x8] sm:$0xff]
        %v3497 = vld [vmem:[%s3494 + $0x10] sm:$0xff]
        %v3498 = vld [vmem:[%s3494 + $0x18] sm:$0xff]
        %s3499 = scalar_lea.vmem %s10, 4
        %v3500 = vld [vmem:[%s3499] sm:$0x1]
        %v3502 = vlaneseq
        %v3503 = vshrl.u32 %v3502, 7
        %v3504 = vsub.s32 0, %v3503
        %v3505 = vrot.slane %v3500, %v3504
        %3507 = vmatprep.subr.mxu0 0.0
        %3508 = vmatpush1.msra.mxu0 %v3495
        %3509 = vmatprep.subr.mxu0 0.0
        %3510 = vmatpush1.msra.mxu0 %v3496
        %3511 = vmatprep.subr.mxu0 0.0
        %3512 = vmatpush1.msra.mxu0 %v3497
        %3513 = vmatprep.subr.mxu0 0.0
        %3514 = vmatpush1.msra.mxu0 %v3498
        %3515 = vmatprep.subr.mxu0 0.0
        %3516 = vmatpush1.msra.mxu0 0.0
        %3517 = vmatprep.subr.mxu0 0.0
        %3518 = vmatpush1.msra.mxu0 0.0
        %3519 = vmatprep.subr.mxu0 0.0
        %3520 = vmatpush1.msra.mxu0 0.0
        %3521 = vmatprep.subr.mxu0 0.0
        %3522 = vmatpush1.msra.mxu0 0.0
        %3523 = vmatprep.subr.mxu0 0.0
        %3524 = vmatpush1.msra.mxu0 0.0
        %3525 = vmatprep.subr.mxu0 0.0
        %3526 = vmatpush1.msra.mxu0 0.0
        %3527 = vmatprep.subr.mxu0 0.0
        %3528 = vmatpush1.msra.mxu0 0.0
        %3529 = vmatprep.subr.mxu0 0.0
        %3530 = vmatpush1.msra.mxu0 0.0
        %3531 = vmatprep.subr.mxu0 0.0
        %3532 = vmatpush1.msra.mxu0 0.0
        %3533 = vmatprep.subr.mxu0 0.0
        %3534 = vmatpush1.msra.mxu0 0.0
        %3535 = vmatprep.subr.mxu0 0.0
        %3536 = vmatpush1.msra.mxu0 0.0
        %3537 = vmatprep.subr.mxu0 0.0
        %3538 = vmatpush1.msra.mxu0 0.0
        %3539 = vmatprep.subr.mxu0 0.0
        %3540 = vmatpush1.msra.mxu0 0.0
        %3541 = vmatprep.subr.mxu0 0.0
        %3542 = vmatpush1.msra.mxu0 0.0
        %3543 = vmatprep.subr.mxu0 0.0
        %3544 = vmatpush1.msra.mxu0 0.0
        %3545 = vmatprep.subr.mxu0 0.0
        %3546 = vmatpush1.msra.mxu0 0.0
        %3547 = vmatprep.subr.mxu0 0.0
        %3548 = vmatpush1.msra.mxu0 0.0
        %3549 = vmatprep.subr.mxu0 0.0
        %3550 = vmatpush1.msra.mxu0 0.0
        %3551 = vmatprep.subr.mxu0 0.0
        %3552 = vmatpush1.msra.mxu0 0.0
        %3553 = vmatprep.subr.mxu0 0.0
        %3554 = vmatpush1.msra.mxu0 0.0
        %3555 = vmatprep.subr.mxu0 0.0
        %3556 = vmatpush1.msra.mxu0 0.0
        %3557 = vmatprep.subr.mxu0 0.0
        %3558 = vmatpush1.msra.mxu0 0.0
        %3559 = vmatprep.subr.mxu0 0.0
        %3560 = vmatpush1.msra.mxu0 0.0
        %3561 = vmatprep.subr.mxu0 0.0
        %3562 = vmatpush1.msra.mxu0 0.0
        %3563 = vmatprep.subr.mxu0 0.0
        %3564 = vmatpush1.msra.mxu0 0.0
        %3565 = vmatprep.subr.mxu0 0.0
        %3566 = vmatpush1.msra.mxu0 0.0
        %3567 = vmatprep.subr.mxu0 0.0
        %3568 = vmatpush1.msra.mxu0 0.0
        %3569 = vmatprep.subr.mxu0 0.0
        %3570 = vmatpush1.msra.mxu0 0.0
        %3571 = vmatprep.mubr.f32.mxu0 0.0
        %3572 = vmatmul.mubr.f32.gmra.mrb[0].mxu0 %v3414
        %v3573 = vpop.f32.mrb[0].mxu0
        %v3574 = vadd.f32 %v3505, %v3573
        %v3575 = vpop.f32.mrb[0].mxu0
        %3576 = vmatprep.mubr.f32.mxu0 0.0
        %3577 = vmatmul.mubr.f32.gmra.mrb[0].mxu0 %v3417
        %v3578 = vpop.f32.mrb[0].mxu0
        %v3579 = vadd.f32 %v3505, %v3578
        %v3580 = vpop.f32.mrb[0].mxu0
        %3581 = vdwg.mxu0
        %s3582 = scalar_lea.vmem %s11, 128
        %v3583 = vld [vmem:[%s3582] sm:$0xff]
        %v3584 = vld [vmem:[%s3582 + $0x8] sm:$0xff]
        %v3585 = vld [vmem:[%s3582 + $0x10] sm:$0xff]
        %v3586 = vld [vmem:[%s3582 + $0x18] sm:$0xff]
        %s3587 = scalar_lea.vmem %s12, 4
        %v3588 = vld [vmem:[%s3587] sm:$0x1]
        %v3590 = vlaneseq
        %v3591 = vshrl.u32 %v3590, 7
        %v3592 = vsub.s32 0, %v3591
        %v3593 = vrot.slane %v3588, %v3592
        %3595 = vmatprep.subr.mxu0 0.0
        %3596 = vmatpush1.msra.mxu0 %v3583
        %3597 = vmatprep.subr.mxu0 0.0
        %3598 = vmatpush1.msra.mxu0 %v3584
        %3599 = vmatprep.subr.mxu0 0.0
        %3600 = vmatpush1.msra.mxu0 %v3585
        %3601 = vmatprep.subr.mxu0 0.0
        %3602 = vmatpush1.msra.mxu0 %v3586
        %3603 = vmatprep.subr.mxu0 0.0
        %3604 = vmatpush1.msra.mxu0 0.0
        %3605 = vmatprep.subr.mxu0 0.0
        %3606 = vmatpush1.msra.mxu0 0.0
        %3607 = vmatprep.subr.mxu0 0.0
        %3608 = vmatpush1.msra.mxu0 0.0
        %3609 = vmatprep.subr.mxu0 0.0
        %3610 = vmatpush1.msra.mxu0 0.0
        %3611 = vmatprep.subr.mxu0 0.0
        %3612 = vmatpush1.msra.mxu0 0.0
        %3613 = vmatprep.subr.mxu0 0.0
        %3614 = vmatpush1.msra.mxu0 0.0
        %3615 = vmatprep.subr.mxu0 0.0
        %3616 = vmatpush1.msra.mxu0 0.0
        %3617 = vmatprep.subr.mxu0 0.0
        %3618 = vmatpush1.msra.mxu0 0.0
        %3619 = vmatprep.subr.mxu0 0.0
        %3620 = vmatpush1.msra.mxu0 0.0
        %3621 = vmatprep.subr.mxu0 0.0
        %3622 = vmatpush1.msra.mxu0 0.0
        %3623 = vmatprep.subr.mxu0 0.0
        %3624 = vmatpush1.msra.mxu0 0.0
        %3625 = vmatprep.subr.mxu0 0.0
        %3626 = vmatpush1.msra.mxu0 0.0
        %3627 = vmatprep.subr.mxu0 0.0
        %3628 = vmatpush1.msra.mxu0 0.0
        %3629 = vmatprep.subr.mxu0 0.0
        %3630 = vmatpush1.msra.mxu0 0.0
        %3631 = vmatprep.subr.mxu0 0.0
        %3632 = vmatpush1.msra.mxu0 0.0
        %3633 = vmatprep.subr.mxu0 0.0
        %3634 = vmatpush1.msra.mxu0 0.0
        %3635 = vmatprep.subr.mxu0 0.0
        %3636 = vmatpush1.msra.mxu0 0.0
        %3637 = vmatprep.subr.mxu0 0.0
        %3638 = vmatpush1.msra.mxu0 0.0
        %3639 = vmatprep.subr.mxu0 0.0
        %3640 = vmatpush1.msra.mxu0 0.0
        %3641 = vmatprep.subr.mxu0 0.0
        %3642 = vmatpush1.msra.mxu0 0.0
        %3643 = vmatprep.subr.mxu0 0.0
        %3644 = vmatpush1.msra.mxu0 0.0
        %3645 = vmatprep.subr.mxu0 0.0
        %3646 = vmatpush1.msra.mxu0 0.0
        %3647 = vmatprep.subr.mxu0 0.0
        %3648 = vmatpush1.msra.mxu0 0.0
        %3649 = vmatprep.subr.mxu0 0.0
        %3650 = vmatpush1.msra.mxu0 0.0
        %3651 = vmatprep.subr.mxu0 0.0
        %3652 = vmatpush1.msra.mxu0 0.0
        %3653 = vmatprep.subr.mxu0 0.0
        %3654 = vmatpush1.msra.mxu0 0.0
        %3655 = vmatprep.subr.mxu0 0.0
        %3656 = vmatpush1.msra.mxu0 0.0
        %3657 = vmatprep.subr.mxu0 0.0
        %3658 = vmatpush1.msra.mxu0 0.0
        %3659 = vmatprep.mubr.f32.mxu0 0.0
        %3660 = vmatmul.mubr.f32.gmra.mrb[0].mxu0 %v3414
        %v3661 = vpop.f32.mrb[0].mxu0
        %v3662 = vadd.f32 %v3593, %v3661
        %v3663 = vpop.f32.mrb[0].mxu0
        %3664 = vmatprep.mubr.f32.mxu0 0.0
        %3665 = vmatmul.mubr.f32.gmra.mrb[0].mxu0 %v3417
        %v3666 = vpop.f32.mrb[0].mxu0
        %v3667 = vadd.f32 %v3593, %v3666
        %v3668 = vpop.f32.mrb[0].mxu0
        %3669 = vdwg.mxu0
        %v3671 = vsel %vm1199, %v3486, 0
        %v3674 = vsel %vm1199, %v3491, 0
        %v3677 = vsel %vm1199, %v3574, 0
        %v3680 = vsel %vm1199, %v3579, 0
        %3682 = vmatprep.subr.mxu0 0.0
        %3683 = vmatpush1.xpose.msra.mxu0 %v3677
        %3684 = vmatprep.subr.mxu0 0.0
        %3685 = vmatpush1.xpose.msra.mxu0 %v3680
        %3686 = vmatprep.subr.mxu0 0.0
        %3687 = vmatpush1.xpose.msra.mxu0 0.0
        %3688 = vmatprep.subr.mxu0 0.0
        %3689 = vmatpush1.xpose.msra.mxu0 0.0
        %3690 = vmatprep.subr.mxu0 0.0
        %3691 = vmatpush1.xpose.msra.mxu0 0.0
        %3692 = vmatprep.subr.mxu0 0.0
        %3693 = vmatpush1.xpose.msra.mxu0 0.0
        %3694 = vmatprep.subr.mxu0 0.0
        %3695 = vmatpush1.xpose.msra.mxu0 0.0
        %3696 = vmatprep.subr.mxu0 0.0
        %3697 = vmatpush1.xpose.msra.mxu0 0.0
        %3698 = vmatprep.subr.mxu0 0.0
        %3699 = vmatpush1.xpose.msra.mxu0 0.0
        %3700 = vmatprep.subr.mxu0 0.0
        %3701 = vmatpush1.xpose.msra.mxu0 0.0
        %3702 = vmatprep.subr.mxu0 0.0
        %3703 = vmatpush1.xpose.msra.mxu0 0.0
        %3704 = vmatprep.subr.mxu0 0.0
        %3705 = vmatpush1.xpose.msra.mxu0 0.0
        %3706 = vmatprep.subr.mxu0 0.0
        %3707 = vmatpush1.xpose.msra.mxu0 0.0
        %3708 = vmatprep.subr.mxu0 0.0
        %3709 = vmatpush1.xpose.msra.mxu0 0.0
        %3710 = vmatprep.subr.mxu0 0.0
        %3711 = vmatpush1.xpose.msra.mxu0 0.0
        %3712 = vmatprep.subr.mxu0 0.0
        %3713 = vmatpush1.xpose.msra.mxu0 0.0
        %3714 = vmatprep.subr.mxu0 0.0
        %3715 = vmatpush1.xpose.msra.mxu0 0.0
        %3716 = vmatprep.subr.mxu0 0.0
        %3717 = vmatpush1.xpose.msra.mxu0 0.0
        %3718 = vmatprep.subr.mxu0 0.0
        %3719 = vmatpush1.xpose.msra.mxu0 0.0
        %3720 = vmatprep.subr.mxu0 0.0
        %3721 = vmatpush1.xpose.msra.mxu0 0.0
        %3722 = vmatprep.subr.mxu0 0.0
        %3723 = vmatpush1.xpose.msra.mxu0 0.0
        %3724 = vmatprep.subr.mxu0 0.0
        %3725 = vmatpush1.xpose.msra.mxu0 0.0
        %3726 = vmatprep.subr.mxu0 0.0
        %3727 = vmatpush1.xpose.msra.mxu0 0.0
        %3728 = vmatprep.subr.mxu0 0.0
        %3729 = vmatpush1.xpose.msra.mxu0 0.0
        %3730 = vmatprep.subr.mxu0 0.0
        %3731 = vmatpush1.xpose.msra.mxu0 0.0
        %3732 = vmatprep.subr.mxu0 0.0
        %3733 = vmatpush1.xpose.msra.mxu0 0.0
        %3734 = vmatprep.subr.mxu0 0.0
        %3735 = vmatpush1.xpose.msra.mxu0 0.0
        %3736 = vmatprep.subr.mxu0 0.0
        %3737 = vmatpush1.xpose.msra.mxu0 0.0
        %3738 = vmatprep.subr.mxu0 0.0
        %3739 = vmatpush1.xpose.msra.mxu0 0.0
        %3740 = vmatprep.subr.mxu0 0.0
        %3741 = vmatpush1.xpose.msra.mxu0 0.0
        %3742 = vmatprep.subr.mxu0 0.0
        %3743 = vmatpush1.xpose.msra.mxu0 0.0
        %3744 = vmatprep.subr.mxu0 0.0
        %3745 = vmatpush1.xpose.msra.mxu0 0.0
        %3746 = vmatprep.mubr.f32.mxu0 0.0
        %3747 = vmatmul.mubr.f32.gmra.mrb[0].mxu0 %v3671
        %v3748 = vpop.f32.mrb[0].mxu0
        %v3749 = vadd.f32 0.0, %v3748
        %v3750 = vpop.f32.mrb[0].mxu0
        %3751 = vmatprep.mubr.f32.mxu0 0.0
        %3752 = vmatmul.mubr.f32.gmra.mrb[0].mxu0 %v3674
        %v3753 = vpop.f32.mrb[0].mxu0
        %v3754 = vadd.f32 0.0, %v3753
        %v3755 = vpop.f32.mrb[0].mxu0
        %3756 = vdwg.mxu0
        %v3757 = vsel %vm1287, %v3749, -inf
        %3758 = vmax.xlane.f32.xlu0 %v3757
        %v3759 = vpop.xlane.xlu0 %3758
        %v3760 = vsel %vm1287, %v3754, -inf
        %3761 = vmax.xlane.f32.xlu0 %v3760
        %v3762 = vpop.xlane.xlu0 %3761
        %v3763 = vsub.f32 %v3749, %v3759
        %v3764 = vsub.f32 %v3754, %v3762
        %v3765 = vmul.f32 %v3763, 1.442695
        %v3766 = vpow.pop %v3765
        %v3767 = vmul.f32 %v3764, 1.442695
        %v3768 = vpow.pop %v3767
        %v3769 = vsel %vm1287, %v3766, 0.0
        %3770 = vadd.xlane.f32.xlu0 %v3769
        %v3771 = vpop.xlane.xlu0 %3770
        %v3772 = vsel %vm1287, %v3768, 0.0
        %3773 = vadd.xlane.f32.xlu0 %v3772
        %v3774 = vpop.xlane.xlu0 %3773
        %v3775 = vrcp.pop %v3771
        %v3776 = vmul.f32 %v3766, %v3775
        %v3777 = vrcp.pop %v3774
        %v3778 = vmul.f32 %v3768, %v3777
        %v3780 = vsel %vm1287, %v3776, 0
        %v3783 = vsel %vm1287, %v3778, 0
        %3785 = vmatprep.subr.mxu0 0.0
        %3786 = vmatpush1.msra.mxu0 %v3662
        %3787 = vmatprep.subr.mxu0 0.0
        %3788 = vmatpush1.msra.mxu0 %v3667
        %3789 = vmatprep.subr.mxu0 0.0
        %3790 = vmatpush1.msra.mxu0 0.0
        %3791 = vmatprep.subr.mxu0 0.0
        %3792 = vmatpush1.msra.mxu0 0.0
        %3793 = vmatprep.subr.mxu0 0.0
        %3794 = vmatpush1.msra.mxu0 0.0
        %3795 = vmatprep.subr.mxu0 0.0
        %3796 = vmatpush1.msra.mxu0 0.0
        %3797 = vmatprep.subr.mxu0 0.0
        %3798 = vmatpush1.msra.mxu0 0.0
        %3799 = vmatprep.subr.mxu0 0.0
        %3800 = vmatpush1.msra.mxu0 0.0
        %3801 = vmatprep.subr.mxu0 0.0
        %3802 = vmatpush1.msra.mxu0 0.0
        %3803 = vmatprep.subr.mxu0 0.0
        %3804 = vmatpush1.msra.mxu0 0.0
        %3805 = vmatprep.subr.mxu0 0.0
        %3806 = vmatpush1.msra.mxu0 0.0
        %3807 = vmatprep.subr.mxu0 0.0
        %3808 = vmatpush1.msra.mxu0 0.0
        %3809 = vmatprep.subr.mxu0 0.0
        %3810 = vmatpush1.msra.mxu0 0.0
        %3811 = vmatprep.subr.mxu0 0.0
        %3812 = vmatpush1.msra.mxu0 0.0
        %3813 = vmatprep.subr.mxu0 0.0
        %3814 = vmatpush1.msra.mxu0 0.0
        %3815 = vmatprep.subr.mxu0 0.0
        %3816 = vmatpush1.msra.mxu0 0.0
        %3817 = vmatprep.subr.mxu0 0.0
        %3818 = vmatpush1.msra.mxu0 0.0
        %3819 = vmatprep.subr.mxu0 0.0
        %3820 = vmatpush1.msra.mxu0 0.0
        %3821 = vmatprep.subr.mxu0 0.0
        %3822 = vmatpush1.msra.mxu0 0.0
        %3823 = vmatprep.subr.mxu0 0.0
        %3824 = vmatpush1.msra.mxu0 0.0
        %3825 = vmatprep.subr.mxu0 0.0
        %3826 = vmatpush1.msra.mxu0 0.0
        %3827 = vmatprep.subr.mxu0 0.0
        %3828 = vmatpush1.msra.mxu0 0.0
        %3829 = vmatprep.subr.mxu0 0.0
        %3830 = vmatpush1.msra.mxu0 0.0
        %3831 = vmatprep.subr.mxu0 0.0
        %3832 = vmatpush1.msra.mxu0 0.0
        %3833 = vmatprep.subr.mxu0 0.0
        %3834 = vmatpush1.msra.mxu0 0.0
        %3835 = vmatprep.subr.mxu0 0.0
        %3836 = vmatpush1.msra.mxu0 0.0
        %3837 = vmatprep.subr.mxu0 0.0
        %3838 = vmatpush1.msra.mxu0 0.0
        %3839 = vmatprep.subr.mxu0 0.0
        %3840 = vmatpush1.msra.mxu0 0.0
        %3841 = vmatprep.subr.mxu0 0.0
        %3842 = vmatpush1.msra.mxu0 0.0
        %3843 = vmatprep.subr.mxu0 0.0
        %3844 = vmatpush1.msra.mxu0 0.0
        %3845 = vmatprep.subr.mxu0 0.0
        %3846 = vmatpush1.msra.mxu0 0.0
        %3847 = vmatprep.subr.mxu0 0.0
        %3848 = vmatpush1.msra.mxu0 0.0
        %3849 = vmatprep.mubr.f32.mxu0 0.0
        %3850 = vmatmul.mubr.f32.gmra.mrb[0].mxu0 %v3780
        %v3851 = vpop.f32.mrb[0].mxu0
        %v3852 = vadd.f32 0.0, %v3851
        %v3853 = vpop.f32.mrb[0].mxu0
        %3854 = vmatprep.mubr.f32.mxu0 0.0
        %3855 = vmatmul.mubr.f32.gmra.mrb[0].mxu0 %v3783
        %v3856 = vpop.f32.mrb[0].mxu0
        %v3857 = vadd.f32 0.0, %v3856
        %v3858 = vpop.f32.mrb[0].mxu0
        %3859 = vdwg.mxu0
        %s3860 = scalar_lea.vmem %s13, 32
        %v3861 = vld [vmem:[%s3860] sm:$0xff]
        %s3862 = scalar_lea.vmem %s7, 160
        %v3863 = vld [vmem:[%s3862] sm:$0xff]
        %v3864 = vld [vmem:[%s3862 + $0x8] sm:$0xff]
        %v3865 = vld [vmem:[%s3862 + $0x10] sm:$0xff]
        %v3866 = vld [vmem:[%s3862 + $0x18] sm:$0xff]
        %s3867 = scalar_lea.vmem %s8, 5
        %v3868 = vld [vmem:[%s3867] sm:$0x1]
        %v3870 = vlaneseq
        %v3871 = vshrl.u32 %v3870, 7
        %v3872 = vsub.s32 0, %v3871
        %v3873 = vrot.slane %v3868, %v3872
        %3875 = vmatprep.subr.mxu0 0.0
        %3876 = vmatpush1.msra.mxu0 %v3863
        %3877 = vmatprep.subr.mxu0 0.0
        %3878 = vmatpush1.msra.mxu0 %v3864
        %3879 = vmatprep.subr.mxu0 0.0
        %3880 = vmatpush1.msra.mxu0 %v3865
        %3881 = vmatprep.subr.mxu0 0.0
        %3882 = vmatpush1.msra.mxu0 %v3866
        %3883 = vmatprep.subr.mxu0 0.0
        %3884 = vmatpush1.msra.mxu0 0.0
        %3885 = vmatprep.subr.mxu0 0.0
        %3886 = vmatpush1.msra.mxu0 0.0
        %3887 = vmatprep.subr.mxu0 0.0
        %3888 = vmatpush1.msra.mxu0 0.0
        %3889 = vmatprep.subr.mxu0 0.0
        %3890 = vmatpush1.msra.mxu0 0.0
        %3891 = vmatprep.subr.mxu0 0.0
        %3892 = vmatpush1.msra.mxu0 0.0
        %3893 = vmatprep.subr.mxu0 0.0
        %3894 = vmatpush1.msra.mxu0 0.0
        %3895 = vmatprep.subr.mxu0 0.0
        %3896 = vmatpush1.msra.mxu0 0.0
        %3897 = vmatprep.subr.mxu0 0.0
        %3898 = vmatpush1.msra.mxu0 0.0
        %3899 = vmatprep.subr.mxu0 0.0
        %3900 = vmatpush1.msra.mxu0 0.0
        %3901 = vmatprep.subr.mxu0 0.0
        %3902 = vmatpush1.msra.mxu0 0.0
        %3903 = vmatprep.subr.mxu0 0.0
        %3904 = vmatpush1.msra.mxu0 0.0
        %3905 = vmatprep.subr.mxu0 0.0
        %3906 = vmatpush1.msra.mxu0 0.0
        %3907 = vmatprep.subr.mxu0 0.0
        %3908 = vmatpush1.msra.mxu0 0.0
        %3909 = vmatprep.subr.mxu0 0.0
        %3910 = vmatpush1.msra.mxu0 0.0
        %3911 = vmatprep.subr.mxu0 0.0
        %3912 = vmatpush1.msra.mxu0 0.0
        %3913 = vmatprep.subr.mxu0 0.0
        %3914 = vmatpush1.msra.mxu0 0.0
        %3915 = vmatprep.subr.mxu0 0.0
        %3916 = vmatpush1.msra.mxu0 0.0
        %3917 = vmatprep.subr.mxu0 0.0
        %3918 = vmatpush1.msra.mxu0 0.0
        %3919 = vmatprep.subr.mxu0 0.0
        %3920 = vmatpush1.msra.mxu0 0.0
        %3921 = vmatprep.subr.mxu0 0.0
        %3922 = vmatpush1.msra.mxu0 0.0
        %3923 = vmatprep.subr.mxu0 0.0
        %3924 = vmatpush1.msra.mxu0 0.0
        %3925 = vmatprep.subr.mxu0 0.0
        %3926 = vmatpush1.msra.mxu0 0.0
        %3927 = vmatprep.subr.mxu0 0.0
        %3928 = vmatpush1.msra.mxu0 0.0
        %3929 = vmatprep.subr.mxu0 0.0
        %3930 = vmatpush1.msra.mxu0 0.0
        %3931 = vmatprep.subr.mxu0 0.0
        %3932 = vmatpush1.msra.mxu0 0.0
        %3933 = vmatprep.subr.mxu0 0.0
        %3934 = vmatpush1.msra.mxu0 0.0
        %3935 = vmatprep.subr.mxu0 0.0
        %3936 = vmatpush1.msra.mxu0 0.0
        %3937 = vmatprep.subr.mxu0 0.0
        %3938 = vmatpush1.msra.mxu0 0.0
        %3939 = vmatprep.mubr.f32.mxu0 0.0
        %3940 = vmatmul.mubr.f32.gmra.mrb[0].mxu0 %v3414
        %v3941 = vpop.f32.mrb[0].mxu0
        %v3942 = vadd.f32 %v3873, %v3941
        %v3943 = vpop.f32.mrb[0].mxu0
        %3944 = vmatprep.mubr.f32.mxu0 0.0
        %3945 = vmatmul.mubr.f32.gmra.mrb[0].mxu0 %v3417
        %v3946 = vpop.f32.mrb[0].mxu0
        %v3947 = vadd.f32 %v3873, %v3946
        %v3948 = vpop.f32.mrb[0].mxu0
        %3949 = vdwg.mxu0
        %s3950 = scalar_lea.vmem %s9, 160
        %v3951 = vld [vmem:[%s3950] sm:$0xff]
        %v3952 = vld [vmem:[%s3950 + $0x8] sm:$0xff]
        %v3953 = vld [vmem:[%s3950 + $0x10] sm:$0xff]
        %v3954 = vld [vmem:[%s3950 + $0x18] sm:$0xff]
        %s3955 = scalar_lea.vmem %s10, 5
        %v3956 = vld [vmem:[%s3955] sm:$0x1]
        %v3958 = vlaneseq
        %v3959 = vshrl.u32 %v3958, 7
        %v3960 = vsub.s32 0, %v3959
        %v3961 = vrot.slane %v3956, %v3960
        %3963 = vmatprep.subr.mxu0 0.0
        %3964 = vmatpush1.msra.mxu0 %v3951
        %3965 = vmatprep.subr.mxu0 0.0
        %3966 = vmatpush1.msra.mxu0 %v3952
        %3967 = vmatprep.subr.mxu0 0.0
        %3968 = vmatpush1.msra.mxu0 %v3953
        %3969 = vmatprep.subr.mxu0 0.0
        %3970 = vmatpush1.msra.mxu0 %v3954
        %3971 = vmatprep.subr.mxu0 0.0
        %3972 = vmatpush1.msra.mxu0 0.0
        %3973 = vmatprep.subr.mxu0 0.0
        %3974 = vmatpush1.msra.mxu0 0.0
        %3975 = vmatprep.subr.mxu0 0.0
        %3976 = vmatpush1.msra.mxu0 0.0
        %3977 = vmatprep.subr.mxu0 0.0
        %3978 = vmatpush1.msra.mxu0 0.0
        %3979 = vmatprep.subr.mxu0 0.0
        %3980 = vmatpush1.msra.mxu0 0.0
        %3981 = vmatprep.subr.mxu0 0.0
        %3982 = vmatpush1.msra.mxu0 0.0
        %3983 = vmatprep.subr.mxu0 0.0
        %3984 = vmatpush1.msra.mxu0 0.0
        %3985 = vmatprep.subr.mxu0 0.0
        %3986 = vmatpush1.msra.mxu0 0.0
        %3987 = vmatprep.subr.mxu0 0.0
        %3988 = vmatpush1.msra.mxu0 0.0
        %3989 = vmatprep.subr.mxu0 0.0
        %3990 = vmatpush1.msra.mxu0 0.0
        %3991 = vmatprep.subr.mxu0 0.0
        %3992 = vmatpush1.msra.mxu0 0.0
        %3993 = vmatprep.subr.mxu0 0.0
        %3994 = vmatpush1.msra.mxu0 0.0
        %3995 = vmatprep.subr.mxu0 0.0
        %3996 = vmatpush1.msra.mxu0 0.0
        %3997 = vmatprep.subr.mxu0 0.0
        %3998 = vmatpush1.msra.mxu0 0.0
        %3999 = vmatprep.subr.mxu0 0.0
        %4000 = vmatpush1.msra.mxu0 0.0
        %4001 = vmatprep.subr.mxu0 0.0
        %4002 = vmatpush1.msra.mxu0 0.0
        %4003 = vmatprep.subr.mxu0 0.0
        %4004 = vmatpush1.msra.mxu0 0.0
        %4005 = vmatprep.subr.mxu0 0.0
        %4006 = vmatpush1.msra.mxu0 0.0
        %4007 = vmatprep.subr.mxu0 0.0
        %4008 = vmatpush1.msra.mxu0 0.0
        %4009 = vmatprep.subr.mxu0 0.0
        %4010 = vmatpush1.msra.mxu0 0.0
        %4011 = vmatprep.subr.mxu0 0.0
        %4012 = vmatpush1.msra.mxu0 0.0
        %4013 = vmatprep.subr.mxu0 0.0
        %4014 = vmatpush1.msra.mxu0 0.0
        %4015 = vmatprep.subr.mxu0 0.0
        %4016 = vmatpush1.msra.mxu0 0.0
        %4017 = vmatprep.subr.mxu0 0.0
        %4018 = vmatpush1.msra.mxu0 0.0
        %4019 = vmatprep.subr.mxu0 0.0
        %4020 = vmatpush1.msra.mxu0 0.0
        %4021 = vmatprep.subr.mxu0 0.0
        %4022 = vmatpush1.msra.mxu0 0.0
        %4023 = vmatprep.subr.mxu0 0.0
        %4024 = vmatpush1.msra.mxu0 0.0
        %4025 = vmatprep.subr.mxu0 0.0
        %4026 = vmatpush1.msra.mxu0 0.0
        %4027 = vmatprep.mubr.f32.mxu0 0.0
        %4028 = vmatmul.mubr.f32.gmra.mrb[0].mxu0 %v3414
        %v4029 = vpop.f32.mrb[0].mxu0
        %v4030 = vadd.f32 %v3961, %v4029
        %v4031 = vpop.f32.mrb[0].mxu0
        %4032 = vmatprep.mubr.f32.mxu0 0.0
        %4033 = vmatmul.mubr.f32.gmra.mrb[0].mxu0 %v3417
        %v4034 = vpop.f32.mrb[0].mxu0
        %v4035 = vadd.f32 %v3961, %v4034
        %v4036 = vpop.f32.mrb[0].mxu0
        %4037 = vdwg.mxu0
        %s4038 = scalar_lea.vmem %s11, 160
        %v4039 = vld [vmem:[%s4038] sm:$0xff]
        %v4040 = vld [vmem:[%s4038 + $0x8] sm:$0xff]
        %v4041 = vld [vmem:[%s4038 + $0x10] sm:$0xff]
        %v4042 = vld [vmem:[%s4038 + $0x18] sm:$0xff]
        %s4043 = scalar_lea.vmem %s12, 5
        %v4044 = vld [vmem:[%s4043] sm:$0x1]
        %v4046 = vlaneseq
        %v4047 = vshrl.u32 %v4046, 7
        %v4048 = vsub.s32 0, %v4047
        %v4049 = vrot.slane %v4044, %v4048
        %4051 = vmatprep.subr.mxu0 0.0
        %4052 = vmatpush1.msra.mxu0 %v4039
        %4053 = vmatprep.subr.mxu0 0.0
        %4054 = vmatpush1.msra.mxu0 %v4040
        %4055 = vmatprep.subr.mxu0 0.0
        %4056 = vmatpush1.msra.mxu0 %v4041
        %4057 = vmatprep.subr.mxu0 0.0
        %4058 = vmatpush1.msra.mxu0 %v4042
        %4059 = vmatprep.subr.mxu0 0.0
        %4060 = vmatpush1.msra.mxu0 0.0
        %4061 = vmatprep.subr.mxu0 0.0
        %4062 = vmatpush1.msra.mxu0 0.0
        %4063 = vmatprep.subr.mxu0 0.0
        %4064 = vmatpush1.msra.mxu0 0.0
        %4065 = vmatprep.subr.mxu0 0.0
        %4066 = vmatpush1.msra.mxu0 0.0
        %4067 = vmatprep.subr.mxu0 0.0
        %4068 = vmatpush1.msra.mxu0 0.0
        %4069 = vmatprep.subr.mxu0 0.0
        %4070 = vmatpush1.msra.mxu0 0.0
        %4071 = vmatprep.subr.mxu0 0.0
        %4072 = vmatpush1.msra.mxu0 0.0
        %4073 = vmatprep.subr.mxu0 0.0
        %4074 = vmatpush1.msra.mxu0 0.0
        %4075 = vmatprep.subr.mxu0 0.0
        %4076 = vmatpush1.msra.mxu0 0.0
        %4077 = vmatprep.subr.mxu0 0.0
        %4078 = vmatpush1.msra.mxu0 0.0
        %4079 = vmatprep.subr.mxu0 0.0
        %4080 = vmatpush1.msra.mxu0 0.0
        %4081 = vmatprep.subr.mxu0 0.0
        %4082 = vmatpush1.msra.mxu0 0.0
        %4083 = vmatprep.subr.mxu0 0.0
        %4084 = vmatpush1.msra.mxu0 0.0
        %4085 = vmatprep.subr.mxu0 0.0
        %4086 = vmatpush1.msra.mxu0 0.0
        %4087 = vmatprep.subr.mxu0 0.0
        %4088 = vmatpush1.msra.mxu0 0.0
        %4089 = vmatprep.subr.mxu0 0.0
        %4090 = vmatpush1.msra.mxu0 0.0
        %4091 = vmatprep.subr.mxu0 0.0
        %4092 = vmatpush1.msra.mxu0 0.0
        %4093 = vmatprep.subr.mxu0 0.0
        %4094 = vmatpush1.msra.mxu0 0.0
        %4095 = vmatprep.subr.mxu0 0.0
        %4096 = vmatpush1.msra.mxu0 0.0
        %4097 = vmatprep.subr.mxu0 0.0
        %4098 = vmatpush1.msra.mxu0 0.0
        %4099 = vmatprep.subr.mxu0 0.0
        %4100 = vmatpush1.msra.mxu0 0.0
        %4101 = vmatprep.subr.mxu0 0.0
        %4102 = vmatpush1.msra.mxu0 0.0
        %4103 = vmatprep.subr.mxu0 0.0
        %4104 = vmatpush1.msra.mxu0 0.0
        %4105 = vmatprep.subr.mxu0 0.0
        %4106 = vmatpush1.msra.mxu0 0.0
        %4107 = vmatprep.subr.mxu0 0.0
        %4108 = vmatpush1.msra.mxu0 0.0
        %4109 = vmatprep.subr.mxu0 0.0
        %4110 = vmatpush1.msra.mxu0 0.0
        %4111 = vmatprep.subr.mxu0 0.0
        %4112 = vmatpush1.msra.mxu0 0.0
        %4113 = vmatprep.subr.mxu0 0.0
        %4114 = vmatpush1.msra.mxu0 0.0
        %4115 = vmatprep.mubr.f32.mxu0 0.0
        %4116 = vmatmul.mubr.f32.gmra.mrb[0].mxu0 %v3414
        %v4117 = vpop.f32.mrb[0].mxu0
        %v4118 = vadd.f32 %v4049, %v4117
        %v4119 = vpop.f32.mrb[0].mxu0
        %4120 = vmatprep.mubr.f32.mxu0 0.0
        %4121 = vmatmul.mubr.f32.gmra.mrb[0].mxu0 %v3417
        %v4122 = vpop.f32.mrb[0].mxu0
        %v4123 = vadd.f32 %v4049, %v4122
        %v4124 = vpop.f32.mrb[0].mxu0
        %4125 = vdwg.mxu0
        %v4127 = vsel %vm1199, %v3942, 0
        %v4130 = vsel %vm1199, %v3947, 0
        %v4133 = vsel %vm1199, %v4030, 0
        %v4136 = vsel %vm1199, %v4035, 0
        %4138 = vmatprep.subr.mxu0 0.0
        %4139 = vmatpush1.xpose.msra.mxu0 %v4133
        %4140 = vmatprep.subr.mxu0 0.0
        %4141 = vmatpush1.xpose.msra.mxu0 %v4136
        %4142 = vmatprep.subr.mxu0 0.0
        %4143 = vmatpush1.xpose.msra.mxu0 0.0
        %4144 = vmatprep.subr.mxu0 0.0
        %4145 = vmatpush1.xpose.msra.mxu0 0.0
        %4146 = vmatprep.subr.mxu0 0.0
        %4147 = vmatpush1.xpose.msra.mxu0 0.0
        %4148 = vmatprep.subr.mxu0 0.0
        %4149 = vmatpush1.xpose.msra.mxu0 0.0
        %4150 = vmatprep.subr.mxu0 0.0
        %4151 = vmatpush1.xpose.msra.mxu0 0.0
        %4152 = vmatprep.subr.mxu0 0.0
        %4153 = vmatpush1.xpose.msra.mxu0 0.0
        %4154 = vmatprep.subr.mxu0 0.0
        %4155 = vmatpush1.xpose.msra.mxu0 0.0
        %4156 = vmatprep.subr.mxu0 0.0
        %4157 = vmatpush1.xpose.msra.mxu0 0.0
        %4158 = vmatprep.subr.mxu0 0.0
        %4159 = vmatpush1.xpose.msra.mxu0 0.0
        %4160 = vmatprep.subr.mxu0 0.0
        %4161 = vmatpush1.xpose.msra.mxu0 0.0
        %4162 = vmatprep.subr.mxu0 0.0
        %4163 = vmatpush1.xpose.msra.mxu0 0.0
        %4164 = vmatprep.subr.mxu0 0.0
        %4165 = vmatpush1.xpose.msra.mxu0 0.0
        %4166 = vmatprep.subr.mxu0 0.0
        %4167 = vmatpush1.xpose.msra.mxu0 0.0
        %4168 = vmatprep.subr.mxu0 0.0
        %4169 = vmatpush1.xpose.msra.mxu0 0.0
        %4170 = vmatprep.subr.mxu0 0.0
        %4171 = vmatpush1.xpose.msra.mxu0 0.0
        %4172 = vmatprep.subr.mxu0 0.0
        %4173 = vmatpush1.xpose.msra.mxu0 0.0
        %4174 = vmatprep.subr.mxu0 0.0
        %4175 = vmatpush1.xpose.msra.mxu0 0.0
        %4176 = vmatprep.subr.mxu0 0.0
        %4177 = vmatpush1.xpose.msra.mxu0 0.0
        %4178 = vmatprep.subr.mxu0 0.0
        %4179 = vmatpush1.xpose.msra.mxu0 0.0
        %4180 = vmatprep.subr.mxu0 0.0
        %4181 = vmatpush1.xpose.msra.mxu0 0.0
        %4182 = vmatprep.subr.mxu0 0.0
        %4183 = vmatpush1.xpose.msra.mxu0 0.0
        %4184 = vmatprep.subr.mxu0 0.0
        %4185 = vmatpush1.xpose.msra.mxu0 0.0
        %4186 = vmatprep.subr.mxu0 0.0
        %4187 = vmatpush1.xpose.msra.mxu0 0.0
        %4188 = vmatprep.subr.mxu0 0.0
        %4189 = vmatpush1.xpose.msra.mxu0 0.0
        %4190 = vmatprep.subr.mxu0 0.0
        %4191 = vmatpush1.xpose.msra.mxu0 0.0
        %4192 = vmatprep.subr.mxu0 0.0
        %4193 = vmatpush1.xpose.msra.mxu0 0.0
        %4194 = vmatprep.subr.mxu0 0.0
        %4195 = vmatpush1.xpose.msra.mxu0 0.0
        %4196 = vmatprep.subr.mxu0 0.0
        %4197 = vmatpush1.xpose.msra.mxu0 0.0
        %4198 = vmatprep.subr.mxu0 0.0
        %4199 = vmatpush1.xpose.msra.mxu0 0.0
        %4200 = vmatprep.subr.mxu0 0.0
        %4201 = vmatpush1.xpose.msra.mxu0 0.0
        %4202 = vmatprep.mubr.f32.mxu0 0.0
        %4203 = vmatmul.mubr.f32.gmra.mrb[0].mxu0 %v4127
        %v4204 = vpop.f32.mrb[0].mxu0
        %v4205 = vadd.f32 0.0, %v4204
        %v4206 = vpop.f32.mrb[0].mxu0
        %4207 = vmatprep.mubr.f32.mxu0 0.0
        %4208 = vmatmul.mubr.f32.gmra.mrb[0].mxu0 %v4130
        %v4209 = vpop.f32.mrb[0].mxu0
        %v4210 = vadd.f32 0.0, %v4209
        %v4211 = vpop.f32.mrb[0].mxu0
        %4212 = vdwg.mxu0
        %v4213 = vsel %vm1287, %v4205, -inf
        %4214 = vmax.xlane.f32.xlu0 %v4213
        %v4215 = vpop.xlane.xlu0 %4214
        %v4216 = vsel %vm1287, %v4210, -inf
        %4217 = vmax.xlane.f32.xlu0 %v4216
        %v4218 = vpop.xlane.xlu0 %4217
        %v4219 = vsub.f32 %v4205, %v4215
        %v4220 = vsub.f32 %v4210, %v4218
        %v4221 = vmul.f32 %v4219, 1.442695
        %v4222 = vpow.pop %v4221
        %v4223 = vmul.f32 %v4220, 1.442695
        %v4224 = vpow.pop %v4223
        %v4225 = vsel %vm1287, %v4222, 0.0
        %4226 = vadd.xlane.f32.xlu0 %v4225
        %v4227 = vpop.xlane.xlu0 %4226
        %v4228 = vsel %vm1287, %v4224, 0.0
        %4229 = vadd.xlane.f32.xlu0 %v4228
        %v4230 = vpop.xlane.xlu0 %4229
        %v4231 = vrcp.pop %v4227
        %v4232 = vmul.f32 %v4222, %v4231
        %v4233 = vrcp.pop %v4230
        %v4234 = vmul.f32 %v4224, %v4233
        %v4236 = vsel %vm1287, %v4232, 0
        %v4239 = vsel %vm1287, %v4234, 0
        %4241 = vmatprep.subr.mxu0 0.0
        %4242 = vmatpush1.msra.mxu0 %v4118
        %4243 = vmatprep.subr.mxu0 0.0
        %4244 = vmatpush1.msra.mxu0 %v4123
        %4245 = vmatprep.subr.mxu0 0.0
        %4246 = vmatpush1.msra.mxu0 0.0
        %4247 = vmatprep.subr.mxu0 0.0
        %4248 = vmatpush1.msra.mxu0 0.0
        %4249 = vmatprep.subr.mxu0 0.0
        %4250 = vmatpush1.msra.mxu0 0.0
        %4251 = vmatprep.subr.mxu0 0.0
        %4252 = vmatpush1.msra.mxu0 0.0
        %4253 = vmatprep.subr.mxu0 0.0
        %4254 = vmatpush1.msra.mxu0 0.0
        %4255 = vmatprep.subr.mxu0 0.0
        %4256 = vmatpush1.msra.mxu0 0.0
        %4257 = vmatprep.subr.mxu0 0.0
        %4258 = vmatpush1.msra.mxu0 0.0
        %4259 = vmatprep.subr.mxu0 0.0
        %4260 = vmatpush1.msra.mxu0 0.0
        %4261 = vmatprep.subr.mxu0 0.0
        %4262 = vmatpush1.msra.mxu0 0.0
        %4263 = vmatprep.subr.mxu0 0.0
        %4264 = vmatpush1.msra.mxu0 0.0
        %4265 = vmatprep.subr.mxu0 0.0
        %4266 = vmatpush1.msra.mxu0 0.0
        %4267 = vmatprep.subr.mxu0 0.0
        %4268 = vmatpush1.msra.mxu0 0.0
        %4269 = vmatprep.subr.mxu0 0.0
        %4270 = vmatpush1.msra.mxu0 0.0
        %4271 = vmatprep.subr.mxu0 0.0
        %4272 = vmatpush1.msra.mxu0 0.0
        %4273 = vmatprep.subr.mxu0 0.0
        %4274 = vmatpush1.msra.mxu0 0.0
        %4275 = vmatprep.subr.mxu0 0.0
        %4276 = vmatpush1.msra.mxu0 0.0
        %4277 = vmatprep.subr.mxu0 0.0
        %4278 = vmatpush1.msra.mxu0 0.0
        %4279 = vmatprep.subr.mxu0 0.0
        %4280 = vmatpush1.msra.mxu0 0.0
        %4281 = vmatprep.subr.mxu0 0.0
        %4282 = vmatpush1.msra.mxu0 0.0
        %4283 = vmatprep.subr.mxu0 0.0
        %4284 = vmatpush1.msra.mxu0 0.0
        %4285 = vmatprep.subr.mxu0 0.0
        %4286 = vmatpush1.msra.mxu0 0.0
        %4287 = vmatprep.subr.mxu0 0.0
        %4288 = vmatpush1.msra.mxu0 0.0
        %4289 = vmatprep.subr.mxu0 0.0
        %4290 = vmatpush1.msra.mxu0 0.0
        %4291 = vmatprep.subr.mxu0 0.0
        %4292 = vmatpush1.msra.mxu0 0.0
        %4293 = vmatprep.subr.mxu0 0.0
        %4294 = vmatpush1.msra.mxu0 0.0
        %4295 = vmatprep.subr.mxu0 0.0
        %4296 = vmatpush1.msra.mxu0 0.0
        %4297 = vmatprep.subr.mxu0 0.0
        %4298 = vmatpush1.msra.mxu0 0.0
        %4299 = vmatprep.subr.mxu0 0.0
        %4300 = vmatpush1.msra.mxu0 0.0
        %4301 = vmatprep.subr.mxu0 0.0
        %4302 = vmatpush1.msra.mxu0 0.0
        %4303 = vmatprep.subr.mxu0 0.0
        %4304 = vmatpush1.msra.mxu0 0.0
        %4305 = vmatprep.mubr.f32.mxu0 0.0
        %4306 = vmatmul.mubr.f32.gmra.mrb[0].mxu0 %v4236
        %v4307 = vpop.f32.mrb[0].mxu0
        %v4308 = vadd.f32 0.0, %v4307
        %v4309 = vpop.f32.mrb[0].mxu0
        %4310 = vmatprep.mubr.f32.mxu0 0.0
        %4311 = vmatmul.mubr.f32.gmra.mrb[0].mxu0 %v4239
        %v4312 = vpop.f32.mrb[0].mxu0
        %v4313 = vadd.f32 0.0, %v4312
        %v4314 = vpop.f32.mrb[0].mxu0
        %4315 = vdwg.mxu0
        %s4316 = scalar_lea.vmem %s13, 40
        %v4317 = vld [vmem:[%s4316] sm:$0xff]
        %v4319 = vsel %vm1199, %v4308, 0
        %v4322 = vsel %vm1199, %v4313, 0
        %4324 = vmatprep.subr.mxu0 0.0
        %4325 = vmatpush1.msra.mxu0 %v4317
        %4326 = vmatprep.subr.mxu0 0.0
        %4327 = vmatpush1.msra.mxu0 0.0
        %4328 = vmatprep.subr.mxu0 0.0
        %4329 = vmatpush1.msra.mxu0 0.0
        %4330 = vmatprep.subr.mxu0 0.0
        %4331 = vmatpush1.msra.mxu0 0.0
        %4332 = vmatprep.subr.mxu0 0.0
        %4333 = vmatpush1.msra.mxu0 0.0
        %4334 = vmatprep.subr.mxu0 0.0
        %4335 = vmatpush1.msra.mxu0 0.0
        %4336 = vmatprep.subr.mxu0 0.0
        %4337 = vmatpush1.msra.mxu0 0.0
        %4338 = vmatprep.subr.mxu0 0.0
        %4339 = vmatpush1.msra.mxu0 0.0
        %4340 = vmatprep.subr.mxu0 0.0
        %4341 = vmatpush1.msra.mxu0 0.0
        %4342 = vmatprep.subr.mxu0 0.0
        %4343 = vmatpush1.msra.mxu0 0.0
        %4344 = vmatprep.subr.mxu0 0.0
        %4345 = vmatpush1.msra.mxu0 0.0
        %4346 = vmatprep.subr.mxu0 0.0
        %4347 = vmatpush1.msra.mxu0 0.0
        %4348 = vmatprep.subr.mxu0 0.0
        %4349 = vmatpush1.msra.mxu0 0.0
        %4350 = vmatprep.subr.mxu0 0.0
        %4351 = vmatpush1.msra.mxu0 0.0
        %4352 = vmatprep.subr.mxu0 0.0
        %4353 = vmatpush1.msra.mxu0 0.0
        %4354 = vmatprep.subr.mxu0 0.0
        %4355 = vmatpush1.msra.mxu0 0.0
        %4356 = vmatprep.subr.mxu0 0.0
        %4357 = vmatpush1.msra.mxu0 0.0
        %4358 = vmatprep.subr.mxu0 0.0
        %4359 = vmatpush1.msra.mxu0 0.0
        %4360 = vmatprep.subr.mxu0 0.0
        %4361 = vmatpush1.msra.mxu0 0.0
        %4362 = vmatprep.subr.mxu0 0.0
        %4363 = vmatpush1.msra.mxu0 0.0
        %4364 = vmatprep.subr.mxu0 0.0
        %4365 = vmatpush1.msra.mxu0 0.0
        %4366 = vmatprep.subr.mxu0 0.0
        %4367 = vmatpush1.msra.mxu0 0.0
        %4368 = vmatprep.subr.mxu0 0.0
        %4369 = vmatpush1.msra.mxu0 0.0
        %4370 = vmatprep.subr.mxu0 0.0
        %4371 = vmatpush1.msra.mxu0 0.0
        %4372 = vmatprep.subr.mxu0 0.0
        %4373 = vmatpush1.msra.mxu0 0.0
        %4374 = vmatprep.subr.mxu0 0.0
        %4375 = vmatpush1.msra.mxu0 0.0
        %4376 = vmatprep.subr.mxu0 0.0
        %4377 = vmatpush1.msra.mxu0 0.0
        %4378 = vmatprep.subr.mxu0 0.0
        %4379 = vmatpush1.msra.mxu0 0.0
        %4380 = vmatprep.subr.mxu0 0.0
        %4381 = vmatpush1.msra.mxu0 0.0
        %4382 = vmatprep.subr.mxu0 0.0
        %4383 = vmatpush1.msra.mxu0 0.0
        %4384 = vmatprep.subr.mxu0 0.0
        %4385 = vmatpush1.msra.mxu0 0.0
        %4386 = vmatprep.subr.mxu0 0.0
        %4387 = vmatpush1.msra.mxu0 0.0
        %4388 = vmatprep.mubr.f32.mxu0 0.0
        %4389 = vmatmul.mubr.f32.gmra.mrb[0].mxu0 %v4319
        %v4390 = vpop.f32.mrb[0].mxu0
        %v4391 = vadd.f32 0.0, %v4390
        %v4392 = vpop.f32.mrb[0].mxu0
        %4393 = vmatprep.mubr.f32.mxu0 0.0
        %4394 = vmatmul.mubr.f32.gmra.mrb[0].mxu0 %v4322
        %v4395 = vpop.f32.mrb[0].mxu0
        %v4396 = vadd.f32 0.0, %v4395
        %v4397 = vpop.f32.mrb[0].mxu0
        %4398 = vdwg.mxu0
        %v4400 = vsel %vm1199, %v3852, 0
        %v4403 = vsel %vm1199, %v3857, 0
        %4405 = vmatprep.subr.mxu0 0.0
        %4406 = vmatpush1.msra.mxu0 %v3861
        %4407 = vmatprep.subr.mxu0 0.0
        %4408 = vmatpush1.msra.mxu0 0.0
        %4409 = vmatprep.subr.mxu0 0.0
        %4410 = vmatpush1.msra.mxu0 0.0
        %4411 = vmatprep.subr.mxu0 0.0
        %4412 = vmatpush1.msra.mxu0 0.0
        %4413 = vmatprep.subr.mxu0 0.0
        %4414 = vmatpush1.msra.mxu0 0.0
        %4415 = vmatprep.subr.mxu0 0.0
        %4416 = vmatpush1.msra.mxu0 0.0
        %4417 = vmatprep.subr.mxu0 0.0
        %4418 = vmatpush1.msra.mxu0 0.0
        %4419 = vmatprep.subr.mxu0 0.0
        %4420 = vmatpush1.msra.mxu0 0.0
        %4421 = vmatprep.subr.mxu0 0.0
        %4422 = vmatpush1.msra.mxu0 0.0
        %4423 = vmatprep.subr.mxu0 0.0
        %4424 = vmatpush1.msra.mxu0 0.0
        %4425 = vmatprep.subr.mxu0 0.0
        %4426 = vmatpush1.msra.mxu0 0.0
        %4427 = vmatprep.subr.mxu0 0.0
        %4428 = vmatpush1.msra.mxu0 0.0
        %4429 = vmatprep.subr.mxu0 0.0
        %4430 = vmatpush1.msra.mxu0 0.0
        %4431 = vmatprep.subr.mxu0 0.0
        %4432 = vmatpush1.msra.mxu0 0.0
        %4433 = vmatprep.subr.mxu0 0.0
        %4434 = vmatpush1.msra.mxu0 0.0
        %4435 = vmatprep.subr.mxu0 0.0
        %4436 = vmatpush1.msra.mxu0 0.0
        %4437 = vmatprep.subr.mxu0 0.0
        %4438 = vmatpush1.msra.mxu0 0.0
        %4439 = vmatprep.subr.mxu0 0.0
        %4440 = vmatpush1.msra.mxu0 0.0
        %4441 = vmatprep.subr.mxu0 0.0
        %4442 = vmatpush1.msra.mxu0 0.0
        %4443 = vmatprep.subr.mxu0 0.0
        %4444 = vmatpush1.msra.mxu0 0.0
        %4445 = vmatprep.subr.mxu0 0.0
        %4446 = vmatpush1.msra.mxu0 0.0
        %4447 = vmatprep.subr.mxu0 0.0
        %4448 = vmatpush1.msra.mxu0 0.0
        %4449 = vmatprep.subr.mxu0 0.0
        %4450 = vmatpush1.msra.mxu0 0.0
        %4451 = vmatprep.subr.mxu0 0.0
        %4452 = vmatpush1.msra.mxu0 0.0
        %4453 = vmatprep.subr.mxu0 0.0
        %4454 = vmatpush1.msra.mxu0 0.0
        %4455 = vmatprep.subr.mxu0 0.0
        %4456 = vmatpush1.msra.mxu0 0.0
        %4457 = vmatprep.subr.mxu0 0.0
        %4458 = vmatpush1.msra.mxu0 0.0
        %4459 = vmatprep.subr.mxu0 0.0
        %4460 = vmatpush1.msra.mxu0 0.0
        %4461 = vmatprep.subr.mxu0 0.0
        %4462 = vmatpush1.msra.mxu0 0.0
        %4463 = vmatprep.subr.mxu0 0.0
        %4464 = vmatpush1.msra.mxu0 0.0
        %4465 = vmatprep.subr.mxu0 0.0
        %4466 = vmatpush1.msra.mxu0 0.0
        %4467 = vmatprep.subr.mxu0 0.0
        %4468 = vmatpush1.msra.mxu0 0.0
        %4469 = vmatprep.mubr.f32.mxu0 0.0
        %4470 = vmatmul.mubr.f32.gmra.mrb[0].mxu0 %v4400
        %v4471 = vpop.f32.mrb[0].mxu0
        %v4472 = vadd.f32 %v4391, %v4471
        %v4473 = vpop.f32.mrb[0].mxu0
        %4474 = vmatprep.mubr.f32.mxu0 0.0
        %4475 = vmatmul.mubr.f32.gmra.mrb[0].mxu0 %v4403
        %v4476 = vpop.f32.mrb[0].mxu0
        %v4477 = vadd.f32 %v4396, %v4476
        %v4478 = vpop.f32.mrb[0].mxu0
        %4479 = vdwg.mxu0
        %s4480 = scalar_lea.vmem %s7, 192
        %v4481 = vld [vmem:[%s4480] sm:$0xff]
        %v4482 = vld [vmem:[%s4480 + $0x8] sm:$0xff]
        %v4483 = vld [vmem:[%s4480 + $0x10] sm:$0xff]
        %v4484 = vld [vmem:[%s4480 + $0x18] sm:$0xff]
        %s4485 = scalar_lea.vmem %s8, 6
        %v4486 = vld [vmem:[%s4485] sm:$0x1]
        %v4488 = vlaneseq
        %v4489 = vshrl.u32 %v4488, 7
        %v4490 = vsub.s32 0, %v4489
        %v4491 = vrot.slane %v4486, %v4490
        %4493 = vmatprep.subr.mxu0 0.0
        %4494 = vmatpush1.msra.mxu0 %v4481
        %4495 = vmatprep.subr.mxu0 0.0
        %4496 = vmatpush1.msra.mxu0 %v4482
        %4497 = vmatprep.subr.mxu0 0.0
        %4498 = vmatpush1.msra.mxu0 %v4483
        %4499 = vmatprep.subr.mxu0 0.0
        %4500 = vmatpush1.msra.mxu0 %v4484
        %4501 = vmatprep.subr.mxu0 0.0
        %4502 = vmatpush1.msra.mxu0 0.0
        %4503 = vmatprep.subr.mxu0 0.0
        %4504 = vmatpush1.msra.mxu0 0.0
        %4505 = vmatprep.subr.mxu0 0.0
        %4506 = vmatpush1.msra.mxu0 0.0
        %4507 = vmatprep.subr.mxu0 0.0
        %4508 = vmatpush1.msra.mxu0 0.0
        %4509 = vmatprep.subr.mxu0 0.0
        %4510 = vmatpush1.msra.mxu0 0.0
        %4511 = vmatprep.subr.mxu0 0.0
        %4512 = vmatpush1.msra.mxu0 0.0
        %4513 = vmatprep.subr.mxu0 0.0
        %4514 = vmatpush1.msra.mxu0 0.0
        %4515 = vmatprep.subr.mxu0 0.0
        %4516 = vmatpush1.msra.mxu0 0.0
        %4517 = vmatprep.subr.mxu0 0.0
        %4518 = vmatpush1.msra.mxu0 0.0
        %4519 = vmatprep.subr.mxu0 0.0
        %4520 = vmatpush1.msra.mxu0 0.0
        %4521 = vmatprep.subr.mxu0 0.0
        %4522 = vmatpush1.msra.mxu0 0.0
        %4523 = vmatprep.subr.mxu0 0.0
        %4524 = vmatpush1.msra.mxu0 0.0
        %4525 = vmatprep.subr.mxu0 0.0
        %4526 = vmatpush1.msra.mxu0 0.0
        %4527 = vmatprep.subr.mxu0 0.0
        %4528 = vmatpush1.msra.mxu0 0.0
        %4529 = vmatprep.subr.mxu0 0.0
        %4530 = vmatpush1.msra.mxu0 0.0
        %4531 = vmatprep.subr.mxu0 0.0
        %4532 = vmatpush1.msra.mxu0 0.0
        %4533 = vmatprep.subr.mxu0 0.0
        %4534 = vmatpush1.msra.mxu0 0.0
        %4535 = vmatprep.subr.mxu0 0.0
        %4536 = vmatpush1.msra.mxu0 0.0
        %4537 = vmatprep.subr.mxu0 0.0
        %4538 = vmatpush1.msra.mxu0 0.0
        %4539 = vmatprep.subr.mxu0 0.0
        %4540 = vmatpush1.msra.mxu0 0.0
        %4541 = vmatprep.subr.mxu0 0.0
        %4542 = vmatpush1.msra.mxu0 0.0
        %4543 = vmatprep.subr.mxu0 0.0
        %4544 = vmatpush1.msra.mxu0 0.0
        %4545 = vmatprep.subr.mxu0 0.0
        %4546 = vmatpush1.msra.mxu0 0.0
        %4547 = vmatprep.subr.mxu0 0.0
        %4548 = vmatpush1.msra.mxu0 0.0
        %4549 = vmatprep.subr.mxu0 0.0
        %4550 = vmatpush1.msra.mxu0 0.0
        %4551 = vmatprep.subr.mxu0 0.0
        %4552 = vmatpush1.msra.mxu0 0.0
        %4553 = vmatprep.subr.mxu0 0.0
        %4554 = vmatpush1.msra.mxu0 0.0
        %4555 = vmatprep.subr.mxu0 0.0
        %4556 = vmatpush1.msra.mxu0 0.0
        %4557 = vmatprep.mubr.f32.mxu0 0.0
        %4558 = vmatmul.mubr.f32.gmra.mrb[0].mxu0 %v3414
        %v4559 = vpop.f32.mrb[0].mxu0
        %v4560 = vadd.f32 %v4491, %v4559
        %v4561 = vpop.f32.mrb[0].mxu0
        %4562 = vmatprep.mubr.f32.mxu0 0.0
        %4563 = vmatmul.mubr.f32.gmra.mrb[0].mxu0 %v3417
        %v4564 = vpop.f32.mrb[0].mxu0
        %v4565 = vadd.f32 %v4491, %v4564
        %v4566 = vpop.f32.mrb[0].mxu0
        %4567 = vdwg.mxu0
        %s4568 = scalar_lea.vmem %s9, 192
        %v4569 = vld [vmem:[%s4568] sm:$0xff]
        %v4570 = vld [vmem:[%s4568 + $0x8] sm:$0xff]
        %v4571 = vld [vmem:[%s4568 + $0x10] sm:$0xff]
        %v4572 = vld [vmem:[%s4568 + $0x18] sm:$0xff]
        %s4573 = scalar_lea.vmem %s10, 6
        %v4574 = vld [vmem:[%s4573] sm:$0x1]
        %v4576 = vlaneseq
        %v4577 = vshrl.u32 %v4576, 7
        %v4578 = vsub.s32 0, %v4577
        %v4579 = vrot.slane %v4574, %v4578
        %4581 = vmatprep.subr.mxu0 0.0
        %4582 = vmatpush1.msra.mxu0 %v4569
        %4583 = vmatprep.subr.mxu0 0.0
        %4584 = vmatpush1.msra.mxu0 %v4570
        %4585 = vmatprep.subr.mxu0 0.0
        %4586 = vmatpush1.msra.mxu0 %v4571
        %4587 = vmatprep.subr.mxu0 0.0
        %4588 = vmatpush1.msra.mxu0 %v4572
        %4589 = vmatprep.subr.mxu0 0.0
        %4590 = vmatpush1.msra.mxu0 0.0
        %4591 = vmatprep.subr.mxu0 0.0
        %4592 = vmatpush1.msra.mxu0 0.0
        %4593 = vmatprep.subr.mxu0 0.0
        %4594 = vmatpush1.msra.mxu0 0.0
        %4595 = vmatprep.subr.mxu0 0.0
        %4596 = vmatpush1.msra.mxu0 0.0
        %4597 = vmatprep.subr.mxu0 0.0
        %4598 = vmatpush1.msra.mxu0 0.0
        %4599 = vmatprep.subr.mxu0 0.0
        %4600 = vmatpush1.msra.mxu0 0.0
        %4601 = vmatprep.subr.mxu0 0.0
        %4602 = vmatpush1.msra.mxu0 0.0
        %4603 = vmatprep.subr.mxu0 0.0
        %4604 = vmatpush1.msra.mxu0 0.0
        %4605 = vmatprep.subr.mxu0 0.0
        %4606 = vmatpush1.msra.mxu0 0.0
        %4607 = vmatprep.subr.mxu0 0.0
        %4608 = vmatpush1.msra.mxu0 0.0
        %4609 = vmatprep.subr.mxu0 0.0
        %4610 = vmatpush1.msra.mxu0 0.0
        %4611 = vmatprep.subr.mxu0 0.0
        %4612 = vmatpush1.msra.mxu0 0.0
        %4613 = vmatprep.subr.mxu0 0.0
        %4614 = vmatpush1.msra.mxu0 0.0
        %4615 = vmatprep.subr.mxu0 0.0
        %4616 = vmatpush1.msra.mxu0 0.0
        %4617 = vmatprep.subr.mxu0 0.0
        %4618 = vmatpush1.msra.mxu0 0.0
        %4619 = vmatprep.subr.mxu0 0.0
        %4620 = vmatpush1.msra.mxu0 0.0
        %4621 = vmatprep.subr.mxu0 0.0
        %4622 = vmatpush1.msra.mxu0 0.0
        %4623 = vmatprep.subr.mxu0 0.0
        %4624 = vmatpush1.msra.mxu0 0.0
        %4625 = vmatprep.subr.mxu0 0.0
        %4626 = vmatpush1.msra.mxu0 0.0
        %4627 = vmatprep.subr.mxu0 0.0
        %4628 = vmatpush1.msra.mxu0 0.0
        %4629 = vmatprep.subr.mxu0 0.0
        %4630 = vmatpush1.msra.mxu0 0.0
        %4631 = vmatprep.subr.mxu0 0.0
        %4632 = vmatpush1.msra.mxu0 0.0
        %4633 = vmatprep.subr.mxu0 0.0
        %4634 = vmatpush1.msra.mxu0 0.0
        %4635 = vmatprep.subr.mxu0 0.0
        %4636 = vmatpush1.msra.mxu0 0.0
        %4637 = vmatprep.subr.mxu0 0.0
        %4638 = vmatpush1.msra.mxu0 0.0
        %4639 = vmatprep.subr.mxu0 0.0
        %4640 = vmatpush1.msra.mxu0 0.0
        %4641 = vmatprep.subr.mxu0 0.0
        %4642 = vmatpush1.msra.mxu0 0.0
        %4643 = vmatprep.subr.mxu0 0.0
        %4644 = vmatpush1.msra.mxu0 0.0
        %4645 = vmatprep.mubr.f32.mxu0 0.0
        %4646 = vmatmul.mubr.f32.gmra.mrb[0].mxu0 %v3414
        %v4647 = vpop.f32.mrb[0].mxu0
        %v4648 = vadd.f32 %v4579, %v4647
        %v4649 = vpop.f32.mrb[0].mxu0
        %4650 = vmatprep.mubr.f32.mxu0 0.0
        %4651 = vmatmul.mubr.f32.gmra.mrb[0].mxu0 %v3417
        %v4652 = vpop.f32.mrb[0].mxu0
        %v4653 = vadd.f32 %v4579, %v4652
        %v4654 = vpop.f32.mrb[0].mxu0
        %4655 = vdwg.mxu0
        %s4656 = scalar_lea.vmem %s11, 192
        %v4657 = vld [vmem:[%s4656] sm:$0xff]
        %v4658 = vld [vmem:[%s4656 + $0x8] sm:$0xff]
        %v4659 = vld [vmem:[%s4656 + $0x10] sm:$0xff]
        %v4660 = vld [vmem:[%s4656 + $0x18] sm:$0xff]
        %s4661 = scalar_lea.vmem %s12, 6
        %v4662 = vld [vmem:[%s4661] sm:$0x1]
        %v4664 = vlaneseq
        %v4665 = vshrl.u32 %v4664, 7
        %v4666 = vsub.s32 0, %v4665
        %v4667 = vrot.slane %v4662, %v4666
        %4669 = vmatprep.subr.mxu0 0.0
        %4670 = vmatpush1.msra.mxu0 %v4657
        %4671 = vmatprep.subr.mxu0 0.0
        %4672 = vmatpush1.msra.mxu0 %v4658
        %4673 = vmatprep.subr.mxu0 0.0
        %4674 = vmatpush1.msra.mxu0 %v4659
        %4675 = vmatprep.subr.mxu0 0.0
        %4676 = vmatpush1.msra.mxu0 %v4660
        %4677 = vmatprep.subr.mxu0 0.0
        %4678 = vmatpush1.msra.mxu0 0.0
        %4679 = vmatprep.subr.mxu0 0.0
        %4680 = vmatpush1.msra.mxu0 0.0
        %4681 = vmatprep.subr.mxu0 0.0
        %4682 = vmatpush1.msra.mxu0 0.0
        %4683 = vmatprep.subr.mxu0 0.0
        %4684 = vmatpush1.msra.mxu0 0.0
        %4685 = vmatprep.subr.mxu0 0.0
        %4686 = vmatpush1.msra.mxu0 0.0
        %4687 = vmatprep.subr.mxu0 0.0
        %4688 = vmatpush1.msra.mxu0 0.0
        %4689 = vmatprep.subr.mxu0 0.0
        %4690 = vmatpush1.msra.mxu0 0.0
        %4691 = vmatprep.subr.mxu0 0.0
        %4692 = vmatpush1.msra.mxu0 0.0
        %4693 = vmatprep.subr.mxu0 0.0
        %4694 = vmatpush1.msra.mxu0 0.0
        %4695 = vmatprep.subr.mxu0 0.0
        %4696 = vmatpush1.msra.mxu0 0.0
        %4697 = vmatprep.subr.mxu0 0.0
        %4698 = vmatpush1.msra.mxu0 0.0
        %4699 = vmatprep.subr.mxu0 0.0
        %4700 = vmatpush1.msra.mxu0 0.0
        %4701 = vmatprep.subr.mxu0 0.0
        %4702 = vmatpush1.msra.mxu0 0.0
        %4703 = vmatprep.subr.mxu0 0.0
        %4704 = vmatpush1.msra.mxu0 0.0
        %4705 = vmatprep.subr.mxu0 0.0
        %4706 = vmatpush1.msra.mxu0 0.0
        %4707 = vmatprep.subr.mxu0 0.0
        %4708 = vmatpush1.msra.mxu0 0.0
        %4709 = vmatprep.subr.mxu0 0.0
        %4710 = vmatpush1.msra.mxu0 0.0
        %4711 = vmatprep.subr.mxu0 0.0
        %4712 = vmatpush1.msra.mxu0 0.0
        %4713 = vmatprep.subr.mxu0 0.0
        %4714 = vmatpush1.msra.mxu0 0.0
        %4715 = vmatprep.subr.mxu0 0.0
        %4716 = vmatpush1.msra.mxu0 0.0
        %4717 = vmatprep.subr.mxu0 0.0
        %4718 = vmatpush1.msra.mxu0 0.0
        %4719 = vmatprep.subr.mxu0 0.0
        %4720 = vmatpush1.msra.mxu0 0.0
        %4721 = vmatprep.subr.mxu0 0.0
        %4722 = vmatpush1.msra.mxu0 0.0
        %4723 = vmatprep.subr.mxu0 0.0
        %4724 = vmatpush1.msra.mxu0 0.0
        %4725 = vmatprep.subr.mxu0 0.0
        %4726 = vmatpush1.msra.mxu0 0.0
        %4727 = vmatprep.subr.mxu0 0.0
        %4728 = vmatpush1.msra.mxu0 0.0
        %4729 = vmatprep.subr.mxu0 0.0
        %4730 = vmatpush1.msra.mxu0 0.0
        %4731 = vmatprep.subr.mxu0 0.0
        %4732 = vmatpush1.msra.mxu0 0.0
        %4733 = vmatprep.mubr.f32.mxu0 0.0
        %4734 = vmatmul.mubr.f32.gmra.mrb[0].mxu0 %v3414
        %v4735 = vpop.f32.mrb[0].mxu0
        %v4736 = vadd.f32 %v4667, %v4735
        %v4737 = vpop.f32.mrb[0].mxu0
        %4738 = vmatprep.mubr.f32.mxu0 0.0
        %4739 = vmatmul.mubr.f32.gmra.mrb[0].mxu0 %v3417
        %v4740 = vpop.f32.mrb[0].mxu0
        %v4741 = vadd.f32 %v4667, %v4740
        %v4742 = vpop.f32.mrb[0].mxu0
        %4743 = vdwg.mxu0
        %v4745 = vsel %vm1199, %v4560, 0
        %v4748 = vsel %vm1199, %v4565, 0
        %v4751 = vsel %vm1199, %v4648, 0
        %v4754 = vsel %vm1199, %v4653, 0
        %4756 = vmatprep.subr.mxu0 0.0
        %4757 = vmatpush1.xpose.msra.mxu0 %v4751
        %4758 = vmatprep.subr.mxu0 0.0
        %4759 = vmatpush1.xpose.msra.mxu0 %v4754
        %4760 = vmatprep.subr.mxu0 0.0
        %4761 = vmatpush1.xpose.msra.mxu0 0.0
        %4762 = vmatprep.subr.mxu0 0.0
        %4763 = vmatpush1.xpose.msra.mxu0 0.0
        %4764 = vmatprep.subr.mxu0 0.0
        %4765 = vmatpush1.xpose.msra.mxu0 0.0
        %4766 = vmatprep.subr.mxu0 0.0
        %4767 = vmatpush1.xpose.msra.mxu0 0.0
        %4768 = vmatprep.subr.mxu0 0.0
        %4769 = vmatpush1.xpose.msra.mxu0 0.0
        %4770 = vmatprep.subr.mxu0 0.0
        %4771 = vmatpush1.xpose.msra.mxu0 0.0
        %4772 = vmatprep.subr.mxu0 0.0
        %4773 = vmatpush1.xpose.msra.mxu0 0.0
        %4774 = vmatprep.subr.mxu0 0.0
        %4775 = vmatpush1.xpose.msra.mxu0 0.0
        %4776 = vmatprep.subr.mxu0 0.0
        %4777 = vmatpush1.xpose.msra.mxu0 0.0
        %4778 = vmatprep.subr.mxu0 0.0
        %4779 = vmatpush1.xpose.msra.mxu0 0.0
        %4780 = vmatprep.subr.mxu0 0.0
        %4781 = vmatpush1.xpose.msra.mxu0 0.0
        %4782 = vmatprep.subr.mxu0 0.0
        %4783 = vmatpush1.xpose.msra.mxu0 0.0
        %4784 = vmatprep.subr.mxu0 0.0
        %4785 = vmatpush1.xpose.msra.mxu0 0.0
        %4786 = vmatprep.subr.mxu0 0.0
        %4787 = vmatpush1.xpose.msra.mxu0 0.0
        %4788 = vmatprep.subr.mxu0 0.0
        %4789 = vmatpush1.xpose.msra.mxu0 0.0
        %4790 = vmatprep.subr.mxu0 0.0
        %4791 = vmatpush1.xpose.msra.mxu0 0.0
        %4792 = vmatprep.subr.mxu0 0.0
        %4793 = vmatpush1.xpose.msra.mxu0 0.0
        %4794 = vmatprep.subr.mxu0 0.0
        %4795 = vmatpush1.xpose.msra.mxu0 0.0
        %4796 = vmatprep.subr.mxu0 0.0
        %4797 = vmatpush1.xpose.msra.mxu0 0.0
        %4798 = vmatprep.subr.mxu0 0.0
        %4799 = vmatpush1.xpose.msra.mxu0 0.0
        %4800 = vmatprep.subr.mxu0 0.0
        %4801 = vmatpush1.xpose.msra.mxu0 0.0
        %4802 = vmatprep.subr.mxu0 0.0
        %4803 = vmatpush1.xpose.msra.mxu0 0.0
        %4804 = vmatprep.subr.mxu0 0.0
        %4805 = vmatpush1.xpose.msra.mxu0 0.0
        %4806 = vmatprep.subr.mxu0 0.0
        %4807 = vmatpush1.xpose.msra.mxu0 0.0
        %4808 = vmatprep.subr.mxu0 0.0
        %4809 = vmatpush1.xpose.msra.mxu0 0.0
        %4810 = vmatprep.subr.mxu0 0.0
        %4811 = vmatpush1.xpose.msra.mxu0 0.0
        %4812 = vmatprep.subr.mxu0 0.0
        %4813 = vmatpush1.xpose.msra.mxu0 0.0
        %4814 = vmatprep.subr.mxu0 0.0
        %4815 = vmatpush1.xpose.msra.mxu0 0.0
        %4816 = vmatprep.subr.mxu0 0.0
        %4817 = vmatpush1.xpose.msra.mxu0 0.0
        %4818 = vmatprep.subr.mxu0 0.0
        %4819 = vmatpush1.xpose.msra.mxu0 0.0
        %4820 = vmatprep.mubr.f32.mxu0 0.0
        %4821 = vmatmul.mubr.f32.gmra.mrb[0].mxu0 %v4745
        %v4822 = vpop.f32.mrb[0].mxu0
        %v4823 = vadd.f32 0.0, %v4822
        %v4824 = vpop.f32.mrb[0].mxu0
        %4825 = vmatprep.mubr.f32.mxu0 0.0
        %4826 = vmatmul.mubr.f32.gmra.mrb[0].mxu0 %v4748
        %v4827 = vpop.f32.mrb[0].mxu0
        %v4828 = vadd.f32 0.0, %v4827
        %v4829 = vpop.f32.mrb[0].mxu0
        %4830 = vdwg.mxu0
        %v4831 = vsel %vm1287, %v4823, -inf
        %4832 = vmax.xlane.f32.xlu0 %v4831
        %v4833 = vpop.xlane.xlu0 %4832
        %v4834 = vsel %vm1287, %v4828, -inf
        %4835 = vmax.xlane.f32.xlu0 %v4834
        %v4836 = vpop.xlane.xlu0 %4835
        %v4837 = vsub.f32 %v4823, %v4833
        %v4838 = vsub.f32 %v4828, %v4836
        %v4839 = vmul.f32 %v4837, 1.442695
        %v4840 = vpow.pop %v4839
        %v4841 = vmul.f32 %v4838, 1.442695
        %v4842 = vpow.pop %v4841
        %v4843 = vsel %vm1287, %v4840, 0.0
        %4844 = vadd.xlane.f32.xlu0 %v4843
        %v4845 = vpop.xlane.xlu0 %4844
        %v4846 = vsel %vm1287, %v4842, 0.0
        %4847 = vadd.xlane.f32.xlu0 %v4846
        %v4848 = vpop.xlane.xlu0 %4847
        %v4849 = vrcp.pop %v4845
        %v4850 = vmul.f32 %v4840, %v4849
        %v4851 = vrcp.pop %v4848
        %v4852 = vmul.f32 %v4842, %v4851
        %v4854 = vsel %vm1287, %v4850, 0
        %v4857 = vsel %vm1287, %v4852, 0
        %4859 = vmatprep.subr.mxu0 0.0
        %4860 = vmatpush1.msra.mxu0 %v4736
        %4861 = vmatprep.subr.mxu0 0.0
        %4862 = vmatpush1.msra.mxu0 %v4741
        %4863 = vmatprep.subr.mxu0 0.0
        %4864 = vmatpush1.msra.mxu0 0.0
        %4865 = vmatprep.subr.mxu0 0.0
        %4866 = vmatpush1.msra.mxu0 0.0
        %4867 = vmatprep.subr.mxu0 0.0
        %4868 = vmatpush1.msra.mxu0 0.0
        %4869 = vmatprep.subr.mxu0 0.0
        %4870 = vmatpush1.msra.mxu0 0.0
        %4871 = vmatprep.subr.mxu0 0.0
        %4872 = vmatpush1.msra.mxu0 0.0
        %4873 = vmatprep.subr.mxu0 0.0
        %4874 = vmatpush1.msra.mxu0 0.0
        %4875 = vmatprep.subr.mxu0 0.0
        %4876 = vmatpush1.msra.mxu0 0.0
        %4877 = vmatprep.subr.mxu0 0.0
        %4878 = vmatpush1.msra.mxu0 0.0
        %4879 = vmatprep.subr.mxu0 0.0
        %4880 = vmatpush1.msra.mxu0 0.0
        %4881 = vmatprep.subr.mxu0 0.0
        %4882 = vmatpush1.msra.mxu0 0.0
        %4883 = vmatprep.subr.mxu0 0.0
        %4884 = vmatpush1.msra.mxu0 0.0
        %4885 = vmatprep.subr.mxu0 0.0
        %4886 = vmatpush1.msra.mxu0 0.0
        %4887 = vmatprep.subr.mxu0 0.0
        %4888 = vmatpush1.msra.mxu0 0.0
        %4889 = vmatprep.subr.mxu0 0.0
        %4890 = vmatpush1.msra.mxu0 0.0
        %4891 = vmatprep.subr.mxu0 0.0
        %4892 = vmatpush1.msra.mxu0 0.0
        %4893 = vmatprep.subr.mxu0 0.0
        %4894 = vmatpush1.msra.mxu0 0.0
        %4895 = vmatprep.subr.mxu0 0.0
        %4896 = vmatpush1.msra.mxu0 0.0
        %4897 = vmatprep.subr.mxu0 0.0
        %4898 = vmatpush1.msra.mxu0 0.0
        %4899 = vmatprep.subr.mxu0 0.0
        %4900 = vmatpush1.msra.mxu0 0.0
        %4901 = vmatprep.subr.mxu0 0.0
        %4902 = vmatpush1.msra.mxu0 0.0
        %4903 = vmatprep.subr.mxu0 0.0
        %4904 = vmatpush1.msra.mxu0 0.0
        %4905 = vmatprep.subr.mxu0 0.0
        %4906 = vmatpush1.msra.mxu0 0.0
        %4907 = vmatprep.subr.mxu0 0.0
        %4908 = vmatpush1.msra.mxu0 0.0
        %4909 = vmatprep.subr.mxu0 0.0
        %4910 = vmatpush1.msra.mxu0 0.0
        %4911 = vmatprep.subr.mxu0 0.0
        %4912 = vmatpush1.msra.mxu0 0.0
        %4913 = vmatprep.subr.mxu0 0.0
        %4914 = vmatpush1.msra.mxu0 0.0
        %4915 = vmatprep.subr.mxu0 0.0
        %4916 = vmatpush1.msra.mxu0 0.0
        %4917 = vmatprep.subr.mxu0 0.0
        %4918 = vmatpush1.msra.mxu0 0.0
        %4919 = vmatprep.subr.mxu0 0.0
        %4920 = vmatpush1.msra.mxu0 0.0
        %4921 = vmatprep.subr.mxu0 0.0
        %4922 = vmatpush1.msra.mxu0 0.0
        %4923 = vmatprep.mubr.f32.mxu0 0.0
        %4924 = vmatmul.mubr.f32.gmra.mrb[0].mxu0 %v4854
        %v4925 = vpop.f32.mrb[0].mxu0
        %v4926 = vadd.f32 0.0, %v4925
        %v4927 = vpop.f32.mrb[0].mxu0
        %4928 = vmatprep.mubr.f32.mxu0 0.0
        %4929 = vmatmul.mubr.f32.gmra.mrb[0].mxu0 %v4857
        %v4930 = vpop.f32.mrb[0].mxu0
        %v4931 = vadd.f32 0.0, %v4930
        %v4932 = vpop.f32.mrb[0].mxu0
        %4933 = vdwg.mxu0
        %s4934 = scalar_lea.vmem %s13, 48
        %v4935 = vld [vmem:[%s4934] sm:$0xff]
        %v4937 = vsel %vm1199, %v4926, 0
        %v4940 = vsel %vm1199, %v4931, 0
        %4942 = vmatprep.subr.mxu0 0.0
        %4943 = vmatpush1.msra.mxu0 %v4935
        %4944 = vmatprep.subr.mxu0 0.0
        %4945 = vmatpush1.msra.mxu0 0.0
        %4946 = vmatprep.subr.mxu0 0.0
        %4947 = vmatpush1.msra.mxu0 0.0
        %4948 = vmatprep.subr.mxu0 0.0
        %4949 = vmatpush1.msra.mxu0 0.0
        %4950 = vmatprep.subr.mxu0 0.0
        %4951 = vmatpush1.msra.mxu0 0.0
        %4952 = vmatprep.subr.mxu0 0.0
        %4953 = vmatpush1.msra.mxu0 0.0
        %4954 = vmatprep.subr.mxu0 0.0
        %4955 = vmatpush1.msra.mxu0 0.0
        %4956 = vmatprep.subr.mxu0 0.0
        %4957 = vmatpush1.msra.mxu0 0.0
        %4958 = vmatprep.subr.mxu0 0.0
        %4959 = vmatpush1.msra.mxu0 0.0
        %4960 = vmatprep.subr.mxu0 0.0
        %4961 = vmatpush1.msra.mxu0 0.0
        %4962 = vmatprep.subr.mxu0 0.0
        %4963 = vmatpush1.msra.mxu0 0.0
        %4964 = vmatprep.subr.mxu0 0.0
        %4965 = vmatpush1.msra.mxu0 0.0
        %4966 = vmatprep.subr.mxu0 0.0
        %4967 = vmatpush1.msra.mxu0 0.0
        %4968 = vmatprep.subr.mxu0 0.0
        %4969 = vmatpush1.msra.mxu0 0.0
        %4970 = vmatprep.subr.mxu0 0.0
        %4971 = vmatpush1.msra.mxu0 0.0
        %4972 = vmatprep.subr.mxu0 0.0
        %4973 = vmatpush1.msra.mxu0 0.0
        %4974 = vmatprep.subr.mxu0 0.0
        %4975 = vmatpush1.msra.mxu0 0.0
        %4976 = vmatprep.subr.mxu0 0.0
        %4977 = vmatpush1.msra.mxu0 0.0
        %4978 = vmatprep.subr.mxu0 0.0
        %4979 = vmatpush1.msra.mxu0 0.0
        %4980 = vmatprep.subr.mxu0 0.0
        %4981 = vmatpush1.msra.mxu0 0.0
        %4982 = vmatprep.subr.mxu0 0.0
        %4983 = vmatpush1.msra.mxu0 0.0
        %4984 = vmatprep.subr.mxu0 0.0
        %4985 = vmatpush1.msra.mxu0 0.0
        %4986 = vmatprep.subr.mxu0 0.0
        %4987 = vmatpush1.msra.mxu0 0.0
        %4988 = vmatprep.subr.mxu0 0.0
        %4989 = vmatpush1.msra.mxu0 0.0
        %4990 = vmatprep.subr.mxu0 0.0
        %4991 = vmatpush1.msra.mxu0 0.0
        %4992 = vmatprep.subr.mxu0 0.0
        %4993 = vmatpush1.msra.mxu0 0.0
        %4994 = vmatprep.subr.mxu0 0.0
        %4995 = vmatpush1.msra.mxu0 0.0
        %4996 = vmatprep.subr.mxu0 0.0
        %4997 = vmatpush1.msra.mxu0 0.0
        %4998 = vmatprep.subr.mxu0 0.0
        %4999 = vmatpush1.msra.mxu0 0.0
        %5000 = vmatprep.subr.mxu0 0.0
        %5001 = vmatpush1.msra.mxu0 0.0
        %5002 = vmatprep.subr.mxu0 0.0
        %5003 = vmatpush1.msra.mxu0 0.0
        %5004 = vmatprep.subr.mxu0 0.0
        %5005 = vmatpush1.msra.mxu0 0.0
        %5006 = vmatprep.mubr.f32.mxu0 0.0
        %5007 = vmatmul.mubr.f32.gmra.mrb[0].mxu0 %v4937
        %v5008 = vpop.f32.mrb[0].mxu0
        %v5009 = vadd.f32 0.0, %v5008
        %v5010 = vpop.f32.mrb[0].mxu0
        %5011 = vmatprep.mubr.f32.mxu0 0.0
        %5012 = vmatmul.mubr.f32.gmra.mrb[0].mxu0 %v4940
        %v5013 = vpop.f32.mrb[0].mxu0
        %v5014 = vadd.f32 0.0, %v5013
        %v5015 = vpop.f32.mrb[0].mxu0
        %5016 = vdwg.mxu0
        %v5017 = vadd.f32 %v4472, %v5009
        %v5018 = vadd.f32 %v4477, %v5014
        %s5019 = scalar_lea.vmem %s7, 224
        %v5020 = vld [vmem:[%s5019] sm:$0xff]
        %v5021 = vld [vmem:[%s5019 + $0x8] sm:$0xff]
        %v5022 = vld [vmem:[%s5019 + $0x10] sm:$0xff]
        %v5023 = vld [vmem:[%s5019 + $0x18] sm:$0xff]
        %s5024 = scalar_lea.vmem %s8, 7
        %v5025 = vld [vmem:[%s5024] sm:$0x1]
        %v5027 = vlaneseq
        %v5028 = vshrl.u32 %v5027, 7
        %v5029 = vsub.s32 0, %v5028
        %v5030 = vrot.slane %v5025, %v5029
        %5032 = vmatprep.subr.mxu0 0.0
        %5033 = vmatpush1.msra.mxu0 %v5020
        %5034 = vmatprep.subr.mxu0 0.0
        %5035 = vmatpush1.msra.mxu0 %v5021
        %5036 = vmatprep.subr.mxu0 0.0
        %5037 = vmatpush1.msra.mxu0 %v5022
        %5038 = vmatprep.subr.mxu0 0.0
        %5039 = vmatpush1.msra.mxu0 %v5023
        %5040 = vmatprep.subr.mxu0 0.0
        %5041 = vmatpush1.msra.mxu0 0.0
        %5042 = vmatprep.subr.mxu0 0.0
        %5043 = vmatpush1.msra.mxu0 0.0
        %5044 = vmatprep.subr.mxu0 0.0
        %5045 = vmatpush1.msra.mxu0 0.0
        %5046 = vmatprep.subr.mxu0 0.0
        %5047 = vmatpush1.msra.mxu0 0.0
        %5048 = vmatprep.subr.mxu0 0.0
        %5049 = vmatpush1.msra.mxu0 0.0
        %5050 = vmatprep.subr.mxu0 0.0
        %5051 = vmatpush1.msra.mxu0 0.0
        %5052 = vmatprep.subr.mxu0 0.0
        %5053 = vmatpush1.msra.mxu0 0.0
        %5054 = vmatprep.subr.mxu0 0.0
        %5055 = vmatpush1.msra.mxu0 0.0
        %5056 = vmatprep.subr.mxu0 0.0
        %5057 = vmatpush1.msra.mxu0 0.0
        %5058 = vmatprep.subr.mxu0 0.0
        %5059 = vmatpush1.msra.mxu0 0.0
        %5060 = vmatprep.subr.mxu0 0.0
        %5061 = vmatpush1.msra.mxu0 0.0
        %5062 = vmatprep.subr.mxu0 0.0
        %5063 = vmatpush1.msra.mxu0 0.0
        %5064 = vmatprep.subr.mxu0 0.0
        %5065 = vmatpush1.msra.mxu0 0.0
        %5066 = vmatprep.subr.mxu0 0.0
        %5067 = vmatpush1.msra.mxu0 0.0
        %5068 = vmatprep.subr.mxu0 0.0
        %5069 = vmatpush1.msra.mxu0 0.0
        %5070 = vmatprep.subr.mxu0 0.0
        %5071 = vmatpush1.msra.mxu0 0.0
        %5072 = vmatprep.subr.mxu0 0.0
        %5073 = vmatpush1.msra.mxu0 0.0
        %5074 = vmatprep.subr.mxu0 0.0
        %5075 = vmatpush1.msra.mxu0 0.0
        %5076 = vmatprep.subr.mxu0 0.0
        %5077 = vmatpush1.msra.mxu0 0.0
        %5078 = vmatprep.subr.mxu0 0.0
        %5079 = vmatpush1.msra.mxu0 0.0
        %5080 = vmatprep.subr.mxu0 0.0
        %5081 = vmatpush1.msra.mxu0 0.0
        %5082 = vmatprep.subr.mxu0 0.0
        %5083 = vmatpush1.msra.mxu0 0.0
        %5084 = vmatprep.subr.mxu0 0.0
        %5085 = vmatpush1.msra.mxu0 0.0
        %5086 = vmatprep.subr.mxu0 0.0
        %5087 = vmatpush1.msra.mxu0 0.0
        %5088 = vmatprep.subr.mxu0 0.0
        %5089 = vmatpush1.msra.mxu0 0.0
        %5090 = vmatprep.subr.mxu0 0.0
        %5091 = vmatpush1.msra.mxu0 0.0
        %5092 = vmatprep.subr.mxu0 0.0
        %5093 = vmatpush1.msra.mxu0 0.0
        %5094 = vmatprep.subr.mxu0 0.0
        %5095 = vmatpush1.msra.mxu0 0.0
        %5096 = vmatprep.mubr.f32.mxu0 0.0
        %5097 = vmatmul.mubr.f32.gmra.mrb[0].mxu0 %v3414
        %v5098 = vpop.f32.mrb[0].mxu0
        %v5099 = vadd.f32 %v5030, %v5098
        %v5100 = vpop.f32.mrb[0].mxu0
        %5101 = vmatprep.mubr.f32.mxu0 0.0
        %5102 = vmatmul.mubr.f32.gmra.mrb[0].mxu0 %v3417
        %v5103 = vpop.f32.mrb[0].mxu0
        %v5104 = vadd.f32 %v5030, %v5103
        %v5105 = vpop.f32.mrb[0].mxu0
        %5106 = vdwg.mxu0
        %s5107 = scalar_lea.vmem %s9, 224
        %v5108 = vld [vmem:[%s5107] sm:$0xff]
        %v5109 = vld [vmem:[%s5107 + $0x8] sm:$0xff]
        %v5110 = vld [vmem:[%s5107 + $0x10] sm:$0xff]
        %v5111 = vld [vmem:[%s5107 + $0x18] sm:$0xff]
        %s5112 = scalar_lea.vmem %s10, 7
        %v5113 = vld [vmem:[%s5112] sm:$0x1]
        %v5115 = vlaneseq
        %v5116 = vshrl.u32 %v5115, 7
        %v5117 = vsub.s32 0, %v5116
        %v5118 = vrot.slane %v5113, %v5117
        %5120 = vmatprep.subr.mxu0 0.0
        %5121 = vmatpush1.msra.mxu0 %v5108
        %5122 = vmatprep.subr.mxu0 0.0
        %5123 = vmatpush1.msra.mxu0 %v5109
        %5124 = vmatprep.subr.mxu0 0.0
        %5125 = vmatpush1.msra.mxu0 %v5110
        %5126 = vmatprep.subr.mxu0 0.0
        %5127 = vmatpush1.msra.mxu0 %v5111
        %5128 = vmatprep.subr.mxu0 0.0
        %5129 = vmatpush1.msra.mxu0 0.0
        %5130 = vmatprep.subr.mxu0 0.0
        %5131 = vmatpush1.msra.mxu0 0.0
        %5132 = vmatprep.subr.mxu0 0.0
        %5133 = vmatpush1.msra.mxu0 0.0
        %5134 = vmatprep.subr.mxu0 0.0
        %5135 = vmatpush1.msra.mxu0 0.0
        %5136 = vmatprep.subr.mxu0 0.0
        %5137 = vmatpush1.msra.mxu0 0.0
        %5138 = vmatprep.subr.mxu0 0.0
        %5139 = vmatpush1.msra.mxu0 0.0
        %5140 = vmatprep.subr.mxu0 0.0
        %5141 = vmatpush1.msra.mxu0 0.0
        %5142 = vmatprep.subr.mxu0 0.0
        %5143 = vmatpush1.msra.mxu0 0.0
        %5144 = vmatprep.subr.mxu0 0.0
        %5145 = vmatpush1.msra.mxu0 0.0
        %5146 = vmatprep.subr.mxu0 0.0
        %5147 = vmatpush1.msra.mxu0 0.0
        %5148 = vmatprep.subr.mxu0 0.0
        %5149 = vmatpush1.msra.mxu0 0.0
        %5150 = vmatprep.subr.mxu0 0.0
        %5151 = vmatpush1.msra.mxu0 0.0
        %5152 = vmatprep.subr.mxu0 0.0
        %5153 = vmatpush1.msra.mxu0 0.0
        %5154 = vmatprep.subr.mxu0 0.0
        %5155 = vmatpush1.msra.mxu0 0.0
        %5156 = vmatprep.subr.mxu0 0.0
        %5157 = vmatpush1.msra.mxu0 0.0
        %5158 = vmatprep.subr.mxu0 0.0
        %5159 = vmatpush1.msra.mxu0 0.0
        %5160 = vmatprep.subr.mxu0 0.0
        %5161 = vmatpush1.msra.mxu0 0.0
        %5162 = vmatprep.subr.mxu0 0.0
        %5163 = vmatpush1.msra.mxu0 0.0
        %5164 = vmatprep.subr.mxu0 0.0
        %5165 = vmatpush1.msra.mxu0 0.0
        %5166 = vmatprep.subr.mxu0 0.0
        %5167 = vmatpush1.msra.mxu0 0.0
        %5168 = vmatprep.subr.mxu0 0.0
        %5169 = vmatpush1.msra.mxu0 0.0
        %5170 = vmatprep.subr.mxu0 0.0
        %5171 = vmatpush1.msra.mxu0 0.0
        %5172 = vmatprep.subr.mxu0 0.0
        %5173 = vmatpush1.msra.mxu0 0.0
        %5174 = vmatprep.subr.mxu0 0.0
        %5175 = vmatpush1.msra.mxu0 0.0
        %5176 = vmatprep.subr.mxu0 0.0
        %5177 = vmatpush1.msra.mxu0 0.0
        %5178 = vmatprep.subr.mxu0 0.0
        %5179 = vmatpush1.msra.mxu0 0.0
        %5180 = vmatprep.subr.mxu0 0.0
        %5181 = vmatpush1.msra.mxu0 0.0
        %5182 = vmatprep.subr.mxu0 0.0
        %5183 = vmatpush1.msra.mxu0 0.0
        %5184 = vmatprep.mubr.f32.mxu0 0.0
        %5185 = vmatmul.mubr.f32.gmra.mrb[0].mxu0 %v3414
        %v5186 = vpop.f32.mrb[0].mxu0
        %v5187 = vadd.f32 %v5118, %v5186
        %v5188 = vpop.f32.mrb[0].mxu0
        %5189 = vmatprep.mubr.f32.mxu0 0.0
        %5190 = vmatmul.mubr.f32.gmra.mrb[0].mxu0 %v3417
        %v5191 = vpop.f32.mrb[0].mxu0
        %v5192 = vadd.f32 %v5118, %v5191
        %v5193 = vpop.f32.mrb[0].mxu0
        %5194 = vdwg.mxu0
        %s5195 = scalar_lea.vmem %s11, 224
        %v5196 = vld [vmem:[%s5195] sm:$0xff]
        %v5197 = vld [vmem:[%s5195 + $0x8] sm:$0xff]
        %v5198 = vld [vmem:[%s5195 + $0x10] sm:$0xff]
        %v5199 = vld [vmem:[%s5195 + $0x18] sm:$0xff]
        %s5200 = scalar_lea.vmem %s12, 7
        %v5201 = vld [vmem:[%s5200] sm:$0x1]
        %v5203 = vlaneseq
        %v5204 = vshrl.u32 %v5203, 7
        %v5205 = vsub.s32 0, %v5204
        %v5206 = vrot.slane %v5201, %v5205
        %5208 = vmatprep.subr.mxu0 0.0
        %5209 = vmatpush1.msra.mxu0 %v5196
        %5210 = vmatprep.subr.mxu0 0.0
        %5211 = vmatpush1.msra.mxu0 %v5197
        %5212 = vmatprep.subr.mxu0 0.0
        %5213 = vmatpush1.msra.mxu0 %v5198
        %5214 = vmatprep.subr.mxu0 0.0
        %5215 = vmatpush1.msra.mxu0 %v5199
        %5216 = vmatprep.subr.mxu0 0.0
        %5217 = vmatpush1.msra.mxu0 0.0
        %5218 = vmatprep.subr.mxu0 0.0
        %5219 = vmatpush1.msra.mxu0 0.0
        %5220 = vmatprep.subr.mxu0 0.0
        %5221 = vmatpush1.msra.mxu0 0.0
        %5222 = vmatprep.subr.mxu0 0.0
        %5223 = vmatpush1.msra.mxu0 0.0
        %5224 = vmatprep.subr.mxu0 0.0
        %5225 = vmatpush1.msra.mxu0 0.0
        %5226 = vmatprep.subr.mxu0 0.0
        %5227 = vmatpush1.msra.mxu0 0.0
        %5228 = vmatprep.subr.mxu0 0.0
        %5229 = vmatpush1.msra.mxu0 0.0
        %5230 = vmatprep.subr.mxu0 0.0
        %5231 = vmatpush1.msra.mxu0 0.0
        %5232 = vmatprep.subr.mxu0 0.0
        %5233 = vmatpush1.msra.mxu0 0.0
        %5234 = vmatprep.subr.mxu0 0.0
        %5235 = vmatpush1.msra.mxu0 0.0
        %5236 = vmatprep.subr.mxu0 0.0
        %5237 = vmatpush1.msra.mxu0 0.0
        %5238 = vmatprep.subr.mxu0 0.0
        %5239 = vmatpush1.msra.mxu0 0.0
        %5240 = vmatprep.subr.mxu0 0.0
        %5241 = vmatpush1.msra.mxu0 0.0
        %5242 = vmatprep.subr.mxu0 0.0
        %5243 = vmatpush1.msra.mxu0 0.0
        %5244 = vmatprep.subr.mxu0 0.0
        %5245 = vmatpush1.msra.mxu0 0.0
        %5246 = vmatprep.subr.mxu0 0.0
        %5247 = vmatpush1.msra.mxu0 0.0
        %5248 = vmatprep.subr.mxu0 0.0
        %5249 = vmatpush1.msra.mxu0 0.0
        %5250 = vmatprep.subr.mxu0 0.0
        %5251 = vmatpush1.msra.mxu0 0.0
        %5252 = vmatprep.subr.mxu0 0.0
        %5253 = vmatpush1.msra.mxu0 0.0
        %5254 = vmatprep.subr.mxu0 0.0
        %5255 = vmatpush1.msra.mxu0 0.0
        %5256 = vmatprep.subr.mxu0 0.0
        %5257 = vmatpush1.msra.mxu0 0.0
        %5258 = vmatprep.subr.mxu0 0.0
        %5259 = vmatpush1.msra.mxu0 0.0
        %5260 = vmatprep.subr.mxu0 0.0
        %5261 = vmatpush1.msra.mxu0 0.0
        %5262 = vmatprep.subr.mxu0 0.0
        %5263 = vmatpush1.msra.mxu0 0.0
        %5264 = vmatprep.subr.mxu0 0.0
        %5265 = vmatpush1.msra.mxu0 0.0
        %5266 = vmatprep.subr.mxu0 0.0
        %5267 = vmatpush1.msra.mxu0 0.0
        %5268 = vmatprep.subr.mxu0 0.0
        %5269 = vmatpush1.msra.mxu0 0.0
        %5270 = vmatprep.subr.mxu0 0.0
        %5271 = vmatpush1.msra.mxu0 0.0
        %5272 = vmatprep.mubr.f32.mxu0 0.0
        %5273 = vmatmul.mubr.f32.gmra.mrb[0].mxu0 %v3414
        %v5274 = vpop.f32.mrb[0].mxu0
        %v5275 = vadd.f32 %v5206, %v5274
        %v5276 = vpop.f32.mrb[0].mxu0
        %5277 = vmatprep.mubr.f32.mxu0 0.0
        %5278 = vmatmul.mubr.f32.gmra.mrb[0].mxu0 %v3417
        %v5279 = vpop.f32.mrb[0].mxu0
        %v5280 = vadd.f32 %v5206, %v5279
        %v5281 = vpop.f32.mrb[0].mxu0
        %5282 = vdwg.mxu0
        %v5284 = vsel %vm1199, %v5099, 0
        %v5287 = vsel %vm1199, %v5104, 0
        %v5290 = vsel %vm1199, %v5187, 0
        %v5293 = vsel %vm1199, %v5192, 0
        %5295 = vmatprep.subr.mxu0 0.0
        %5296 = vmatpush1.xpose.msra.mxu0 %v5290
        %5297 = vmatprep.subr.mxu0 0.0
        %5298 = vmatpush1.xpose.msra.mxu0 %v5293
        %5299 = vmatprep.subr.mxu0 0.0
        %5300 = vmatpush1.xpose.msra.mxu0 0.0
        %5301 = vmatprep.subr.mxu0 0.0
        %5302 = vmatpush1.xpose.msra.mxu0 0.0
        %5303 = vmatprep.subr.mxu0 0.0
        %5304 = vmatpush1.xpose.msra.mxu0 0.0
        %5305 = vmatprep.subr.mxu0 0.0
        %5306 = vmatpush1.xpose.msra.mxu0 0.0
        %5307 = vmatprep.subr.mxu0 0.0
        %5308 = vmatpush1.xpose.msra.mxu0 0.0
        %5309 = vmatprep.subr.mxu0 0.0
        %5310 = vmatpush1.xpose.msra.mxu0 0.0
        %5311 = vmatprep.subr.mxu0 0.0
        %5312 = vmatpush1.xpose.msra.mxu0 0.0
        %5313 = vmatprep.subr.mxu0 0.0
        %5314 = vmatpush1.xpose.msra.mxu0 0.0
        %5315 = vmatprep.subr.mxu0 0.0
        %5316 = vmatpush1.xpose.msra.mxu0 0.0
        %5317 = vmatprep.subr.mxu0 0.0
        %5318 = vmatpush1.xpose.msra.mxu0 0.0
        %5319 = vmatprep.subr.mxu0 0.0
        %5320 = vmatpush1.xpose.msra.mxu0 0.0
        %5321 = vmatprep.subr.mxu0 0.0
        %5322 = vmatpush1.xpose.msra.mxu0 0.0
        %5323 = vmatprep.subr.mxu0 0.0
        %5324 = vmatpush1.xpose.msra.mxu0 0.0
        %5325 = vmatprep.subr.mxu0 0.0
        %5326 = vmatpush1.xpose.msra.mxu0 0.0
        %5327 = vmatprep.subr.mxu0 0.0
        %5328 = vmatpush1.xpose.msra.mxu0 0.0
        %5329 = vmatprep.subr.mxu0 0.0
        %5330 = vmatpush1.xpose.msra.mxu0 0.0
        %5331 = vmatprep.subr.mxu0 0.0
        %5332 = vmatpush1.xpose.msra.mxu0 0.0
        %5333 = vmatprep.subr.mxu0 0.0
        %5334 = vmatpush1.xpose.msra.mxu0 0.0
        %5335 = vmatprep.subr.mxu0 0.0
        %5336 = vmatpush1.xpose.msra.mxu0 0.0
        %5337 = vmatprep.subr.mxu0 0.0
        %5338 = vmatpush1.xpose.msra.mxu0 0.0
        %5339 = vmatprep.subr.mxu0 0.0
        %5340 = vmatpush1.xpose.msra.mxu0 0.0
        %5341 = vmatprep.subr.mxu0 0.0
        %5342 = vmatpush1.xpose.msra.mxu0 0.0
        %5343 = vmatprep.subr.mxu0 0.0
        %5344 = vmatpush1.xpose.msra.mxu0 0.0
        %5345 = vmatprep.subr.mxu0 0.0
        %5346 = vmatpush1.xpose.msra.mxu0 0.0
        %5347 = vmatprep.subr.mxu0 0.0
        %5348 = vmatpush1.xpose.msra.mxu0 0.0
        %5349 = vmatprep.subr.mxu0 0.0
        %5350 = vmatpush1.xpose.msra.mxu0 0.0
        %5351 = vmatprep.subr.mxu0 0.0
        %5352 = vmatpush1.xpose.msra.mxu0 0.0
        %5353 = vmatprep.subr.mxu0 0.0
        %5354 = vmatpush1.xpose.msra.mxu0 0.0
        %5355 = vmatprep.subr.mxu0 0.0
        %5356 = vmatpush1.xpose.msra.mxu0 0.0
        %5357 = vmatprep.subr.mxu0 0.0
        %5358 = vmatpush1.xpose.msra.mxu0 0.0
        %5359 = vmatprep.mubr.f32.mxu0 0.0
        %5360 = vmatmul.mubr.f32.gmra.mrb[0].mxu0 %v5284
        %v5361 = vpop.f32.mrb[0].mxu0
        %v5362 = vadd.f32 0.0, %v5361
        %v5363 = vpop.f32.mrb[0].mxu0
        %5364 = vmatprep.mubr.f32.mxu0 0.0
        %5365 = vmatmul.mubr.f32.gmra.mrb[0].mxu0 %v5287
        %v5366 = vpop.f32.mrb[0].mxu0
        %v5367 = vadd.f32 0.0, %v5366
        %v5368 = vpop.f32.mrb[0].mxu0
        %5369 = vdwg.mxu0
        %v5370 = vsel %vm1287, %v5362, -inf
        %5371 = vmax.xlane.f32.xlu0 %v5370
        %v5372 = vpop.xlane.xlu0 %5371
        %v5373 = vsel %vm1287, %v5367, -inf
        %5374 = vmax.xlane.f32.xlu0 %v5373
        %v5375 = vpop.xlane.xlu0 %5374
        %v5376 = vsub.f32 %v5362, %v5372
        %v5377 = vsub.f32 %v5367, %v5375
        %v5378 = vmul.f32 %v5376, 1.442695
        %v5379 = vpow.pop %v5378
        %v5380 = vmul.f32 %v5377, 1.442695
        %v5381 = vpow.pop %v5380
        %v5382 = vsel %vm1287, %v5379, 0.0
        %5383 = vadd.xlane.f32.xlu0 %v5382
        %v5384 = vpop.xlane.xlu0 %5383
        %v5385 = vsel %vm1287, %v5381, 0.0
        %5386 = vadd.xlane.f32.xlu0 %v5385
        %v5387 = vpop.xlane.xlu0 %5386
        %v5388 = vrcp.pop %v5384
        %v5389 = vmul.f32 %v5379, %v5388
        %v5390 = vrcp.pop %v5387
        %v5391 = vmul.f32 %v5381, %v5390
        %v5393 = vsel %vm1287, %v5389, 0
        %v5396 = vsel %vm1287, %v5391, 0
        %5398 = vmatprep.subr.mxu0 0.0
        %5399 = vmatpush1.msra.mxu0 %v5275
        %5400 = vmatprep.subr.mxu0 0.0
        %5401 = vmatpush1.msra.mxu0 %v5280
        %5402 = vmatprep.subr.mxu0 0.0
        %5403 = vmatpush1.msra.mxu0 0.0
        %5404 = vmatprep.subr.mxu0 0.0
        %5405 = vmatpush1.msra.mxu0 0.0
        %5406 = vmatprep.subr.mxu0 0.0
        %5407 = vmatpush1.msra.mxu0 0.0
        %5408 = vmatprep.subr.mxu0 0.0
        %5409 = vmatpush1.msra.mxu0 0.0
        %5410 = vmatprep.subr.mxu0 0.0
        %5411 = vmatpush1.msra.mxu0 0.0
        %5412 = vmatprep.subr.mxu0 0.0
        %5413 = vmatpush1.msra.mxu0 0.0
        %5414 = vmatprep.subr.mxu0 0.0
        %5415 = vmatpush1.msra.mxu0 0.0
        %5416 = vmatprep.subr.mxu0 0.0
        %5417 = vmatpush1.msra.mxu0 0.0
        %5418 = vmatprep.subr.mxu0 0.0
        %5419 = vmatpush1.msra.mxu0 0.0
        %5420 = vmatprep.subr.mxu0 0.0
        %5421 = vmatpush1.msra.mxu0 0.0
        %5422 = vmatprep.subr.mxu0 0.0
        %5423 = vmatpush1.msra.mxu0 0.0
        %5424 = vmatprep.subr.mxu0 0.0
        %5425 = vmatpush1.msra.mxu0 0.0
        %5426 = vmatprep.subr.mxu0 0.0
        %5427 = vmatpush1.msra.mxu0 0.0
        %5428 = vmatprep.subr.mxu0 0.0
        %5429 = vmatpush1.msra.mxu0 0.0
        %5430 = vmatprep.subr.mxu0 0.0
        %5431 = vmatpush1.msra.mxu0 0.0
        %5432 = vmatprep.subr.mxu0 0.0
        %5433 = vmatpush1.msra.mxu0 0.0
        %5434 = vmatprep.subr.mxu0 0.0
        %5435 = vmatpush1.msra.mxu0 0.0
        %5436 = vmatprep.subr.mxu0 0.0
        %5437 = vmatpush1.msra.mxu0 0.0
        %5438 = vmatprep.subr.mxu0 0.0
        %5439 = vmatpush1.msra.mxu0 0.0
        %5440 = vmatprep.subr.mxu0 0.0
        %5441 = vmatpush1.msra.mxu0 0.0
        %5442 = vmatprep.subr.mxu0 0.0
        %5443 = vmatpush1.msra.mxu0 0.0
        %5444 = vmatprep.subr.mxu0 0.0
        %5445 = vmatpush1.msra.mxu0 0.0
        %5446 = vmatprep.subr.mxu0 0.0
        %5447 = vmatpush1.msra.mxu0 0.0
        %5448 = vmatprep.subr.mxu0 0.0
        %5449 = vmatpush1.msra.mxu0 0.0
        %5450 = vmatprep.subr.mxu0 0.0
        %5451 = vmatpush1.msra.mxu0 0.0
        %5452 = vmatprep.subr.mxu0 0.0
        %5453 = vmatpush1.msra.mxu0 0.0
        %5454 = vmatprep.subr.mxu0 0.0
        %5455 = vmatpush1.msra.mxu0 0.0
        %5456 = vmatprep.subr.mxu0 0.0
        %5457 = vmatpush1.msra.mxu0 0.0
        %5458 = vmatprep.subr.mxu0 0.0
        %5459 = vmatpush1.msra.mxu0 0.0
        %5460 = vmatprep.subr.mxu0 0.0
        %5461 = vmatpush1.msra.mxu0 0.0
        %5462 = vmatprep.mubr.f32.mxu0 0.0
        %5463 = vmatmul.mubr.f32.gmra.mrb[0].mxu0 %v5393
        %v5464 = vpop.f32.mrb[0].mxu0
        %v5465 = vadd.f32 0.0, %v5464
        %v5466 = vpop.f32.mrb[0].mxu0
        %5467 = vmatprep.mubr.f32.mxu0 0.0
        %5468 = vmatmul.mubr.f32.gmra.mrb[0].mxu0 %v5396
        %v5469 = vpop.f32.mrb[0].mxu0
        %v5470 = vadd.f32 0.0, %v5469
        %v5471 = vpop.f32.mrb[0].mxu0
        %5472 = vdwg.mxu0
        %s5473 = scalar_lea.vmem %s13, 56
        %v5474 = vld [vmem:[%s5473] sm:$0xff]
        %v5476 = vsel %vm1199, %v5465, 0
        %v5479 = vsel %vm1199, %v5470, 0
        %5481 = vmatprep.subr.mxu0 0.0
        %5482 = vmatpush1.msra.mxu0 %v5474
        %5483 = vmatprep.subr.mxu0 0.0
        %5484 = vmatpush1.msra.mxu0 0.0
        %5485 = vmatprep.subr.mxu0 0.0
        %5486 = vmatpush1.msra.mxu0 0.0
        %5487 = vmatprep.subr.mxu0 0.0
        %5488 = vmatpush1.msra.mxu0 0.0
        %5489 = vmatprep.subr.mxu0 0.0
        %5490 = vmatpush1.msra.mxu0 0.0
        %5491 = vmatprep.subr.mxu0 0.0
        %5492 = vmatpush1.msra.mxu0 0.0
        %5493 = vmatprep.subr.mxu0 0.0
        %5494 = vmatpush1.msra.mxu0 0.0
        %5495 = vmatprep.subr.mxu0 0.0
        %5496 = vmatpush1.msra.mxu0 0.0
        %5497 = vmatprep.subr.mxu0 0.0
        %5498 = vmatpush1.msra.mxu0 0.0
        %5499 = vmatprep.subr.mxu0 0.0
        %5500 = vmatpush1.msra.mxu0 0.0
        %5501 = vmatprep.subr.mxu0 0.0
        %5502 = vmatpush1.msra.mxu0 0.0
        %5503 = vmatprep.subr.mxu0 0.0
        %5504 = vmatpush1.msra.mxu0 0.0
        %5505 = vmatprep.subr.mxu0 0.0
        %5506 = vmatpush1.msra.mxu0 0.0
        %5507 = vmatprep.subr.mxu0 0.0
        %5508 = vmatpush1.msra.mxu0 0.0
        %5509 = vmatprep.subr.mxu0 0.0
        %5510 = vmatpush1.msra.mxu0 0.0
        %5511 = vmatprep.subr.mxu0 0.0
        %5512 = vmatpush1.msra.mxu0 0.0
        %5513 = vmatprep.subr.mxu0 0.0
        %5514 = vmatpush1.msra.mxu0 0.0
        %5515 = vmatprep.subr.mxu0 0.0
        %5516 = vmatpush1.msra.mxu0 0.0
        %5517 = vmatprep.subr.mxu0 0.0
        %5518 = vmatpush1.msra.mxu0 0.0
        %5519 = vmatprep.subr.mxu0 0.0
        %5520 = vmatpush1.msra.mxu0 0.0
        %5521 = vmatprep.subr.mxu0 0.0
        %5522 = vmatpush1.msra.mxu0 0.0
        %5523 = vmatprep.subr.mxu0 0.0
        %5524 = vmatpush1.msra.mxu0 0.0
        %5525 = vmatprep.subr.mxu0 0.0
        %5526 = vmatpush1.msra.mxu0 0.0
        %5527 = vmatprep.subr.mxu0 0.0
        %5528 = vmatpush1.msra.mxu0 0.0
        %5529 = vmatprep.subr.mxu0 0.0
        %5530 = vmatpush1.msra.mxu0 0.0
        %5531 = vmatprep.subr.mxu0 0.0
        %5532 = vmatpush1.msra.mxu0 0.0
        %5533 = vmatprep.subr.mxu0 0.0
        %5534 = vmatpush1.msra.mxu0 0.0
        %5535 = vmatprep.subr.mxu0 0.0
        %5536 = vmatpush1.msra.mxu0 0.0
        %5537 = vmatprep.subr.mxu0 0.0
        %5538 = vmatpush1.msra.mxu0 0.0
        %5539 = vmatprep.subr.mxu0 0.0
        %5540 = vmatpush1.msra.mxu0 0.0
        %5541 = vmatprep.subr.mxu0 0.0
        %5542 = vmatpush1.msra.mxu0 0.0
        %5543 = vmatprep.subr.mxu0 0.0
        %5544 = vmatpush1.msra.mxu0 0.0
        %5545 = vmatprep.mubr.f32.mxu0 0.0
        %5546 = vmatmul.mubr.f32.gmra.mrb[0].mxu0 %v5476
        %v5547 = vpop.f32.mrb[0].mxu0
        %v5548 = vadd.f32 0.0, %v5547
        %v5549 = vpop.f32.mrb[0].mxu0
        %5550 = vmatprep.mubr.f32.mxu0 0.0
        %5551 = vmatmul.mubr.f32.gmra.mrb[0].mxu0 %v5479
        %v5552 = vpop.f32.mrb[0].mxu0
        %v5553 = vadd.f32 0.0, %v5552
        %v5554 = vpop.f32.mrb[0].mxu0
        %5555 = vdwg.mxu0
        %v5556 = vadd.f32 %v5017, %v5548
        %v5557 = vadd.f32 %v5018, %v5553
        %v5558 = vadd.f32 %v3352, %v5556
        %v5559 = vadd.f32 %v3353, %v5557
        %s5560 = scalar_lea.vmem %s14, 1
        %v5561 = vld [vmem:[%s5560] sm:$0x1]
        %v5563 = vlaneseq
        %v5564 = vshrl.u32 %v5563, 7
        %v5565 = vsub.s32 0, %v5564
        %v5566 = vrot.slane %v5561, %v5565
        %v5568 = vadd.f32 %v5558, %v5566
        %v5569 = vadd.f32 %v5559, %v5566
        %s5570 = scalar_lea.vmem %s15, 1
        %v5571 = vld [vmem:[%s5570] sm:$0x1]
        %s5572 = scalar_lea.vmem %s16, 1
        %v5573 = vld [vmem:[%s5572] sm:$0x1]
        %v5574 = vsel %vm891, %v5568, 0.0
        %5575 = vadd.xlane.f32.xlu0 %v5574
        %v5576 = vpop.xlane.xlu0 %5575
        %v5577 = vsel %vm891, %v5569, 0.0
        %5578 = vadd.xlane.f32.xlu0 %v5577
        %v5579 = vpop.xlane.xlu0 %5578
        %v5580 = vmul.f32 %v5576, %v898
        %v5581 = vmul.f32 %v5579, %v898
        %v5582 = vsub.f32 %v5568, %v5580
        %v5583 = vsub.f32 %v5569, %v5581
        %v5584 = vmul.f32 %v5582, %v5582
        %v5585 = vmul.f32 %v5583, %v5583
        %v5586 = vsel %vm891, %v5584, 0.0
        %5587 = vadd.xlane.f32.xlu0 %v5586
        %v5588 = vpop.xlane.xlu0 %5587
        %v5589 = vsel %vm891, %v5585, 0.0
        %5590 = vadd.xlane.f32.xlu0 %v5589
        %v5591 = vpop.xlane.xlu0 %5590
        %v5592 = vmul.f32 %v5588, %v898
        %v5593 = vmul.f32 %v5591, %v898
        %v5594 = vadd.f32 %v5592, 1e-05
        %v5595 = vadd.f32 %v5593, 1e-05
        %v5596 = vrsqrt.pop %v5594
        %v5597 = vrsqrt.pop %v5595
        %v5598 = vmul.f32 %v5582, %v5596
        %v5599 = vmul.f32 %v5583, %v5597
        %v5601 = vlaneseq
        %v5602 = vshrl.u32 %v5601, 7
        %v5603 = vsub.s32 0, %v5602
        %v5604 = vrot.slane %v5571, %v5603
        %v5606 = vmul.f32 %v5598, %v5604
        %v5607 = vmul.f32 %v5599, %v5604
        %v5609 = vlaneseq
        %v5610 = vshrl.u32 %v5609, 7
        %v5611 = vsub.s32 0, %v5610
        %v5612 = vrot.slane %v5573, %v5611
        %v5614 = vadd.f32 %v5606, %v5612
        %v5615 = vadd.f32 %v5607, %v5612
        %s5616 = scalar_lea.vmem %s17, 32
        %v5617 = vld [vmem:[%s5616] sm:$0xff]
        %v5618 = vld [vmem:[%s5616 + $0x8] sm:$0xff]
        %v5619 = vld [vmem:[%s5616 + $0x10] sm:$0xff]
        %v5620 = vld [vmem:[%s5616 + $0x18] sm:$0xff]
        %s5621 = scalar_lea.vmem %s18, 1
        %v5622 = vld [vmem:[%s5621] sm:$0x1]
        %v5624 = vlaneseq
        %v5625 = vshrl.u32 %v5624, 7
        %v5626 = vsub.s32 0, %v5625
        %v5627 = vrot.slane %v5622, %v5626
        %v5630 = vsel %vm891, %v5614, 0
        %v5633 = vsel %vm891, %v5615, 0
        %5635 = vmatprep.subr.mxu0 0.0
        %5636 = vmatpush1.msra.mxu0 %v5617
        %5637 = vmatprep.subr.mxu0 0.0
        %5638 = vmatpush1.msra.mxu0 %v5618
        %5639 = vmatprep.subr.mxu0 0.0
        %5640 = vmatpush1.msra.mxu0 %v5619
        %5641 = vmatprep.subr.mxu0 0.0
        %5642 = vmatpush1.msra.mxu0 %v5620
        %5643 = vmatprep.subr.mxu0 0.0
        %5644 = vmatpush1.msra.mxu0 0.0
        %5645 = vmatprep.subr.mxu0 0.0
        %5646 = vmatpush1.msra.mxu0 0.0
        %5647 = vmatprep.subr.mxu0 0.0
        %5648 = vmatpush1.msra.mxu0 0.0
        %5649 = vmatprep.subr.mxu0 0.0
        %5650 = vmatpush1.msra.mxu0 0.0
        %5651 = vmatprep.subr.mxu0 0.0
        %5652 = vmatpush1.msra.mxu0 0.0
        %5653 = vmatprep.subr.mxu0 0.0
        %5654 = vmatpush1.msra.mxu0 0.0
        %5655 = vmatprep.subr.mxu0 0.0
        %5656 = vmatpush1.msra.mxu0 0.0
        %5657 = vmatprep.subr.mxu0 0.0
        %5658 = vmatpush1.msra.mxu0 0.0
        %5659 = vmatprep.subr.mxu0 0.0
        %5660 = vmatpush1.msra.mxu0 0.0
        %5661 = vmatprep.subr.mxu0 0.0
        %5662 = vmatpush1.msra.mxu0 0.0
        %5663 = vmatprep.subr.mxu0 0.0
        %5664 = vmatpush1.msra.mxu0 0.0
        %5665 = vmatprep.subr.mxu0 0.0
        %5666 = vmatpush1.msra.mxu0 0.0
        %5667 = vmatprep.subr.mxu0 0.0
        %5668 = vmatpush1.msra.mxu0 0.0
        %5669 = vmatprep.subr.mxu0 0.0
        %5670 = vmatpush1.msra.mxu0 0.0
        %5671 = vmatprep.subr.mxu0 0.0
        %5672 = vmatpush1.msra.mxu0 0.0
        %5673 = vmatprep.subr.mxu0 0.0
        %5674 = vmatpush1.msra.mxu0 0.0
        %5675 = vmatprep.subr.mxu0 0.0
        %5676 = vmatpush1.msra.mxu0 0.0
        %5677 = vmatprep.subr.mxu0 0.0
        %5678 = vmatpush1.msra.mxu0 0.0
        %5679 = vmatprep.subr.mxu0 0.0
        %5680 = vmatpush1.msra.mxu0 0.0
        %5681 = vmatprep.subr.mxu0 0.0
        %5682 = vmatpush1.msra.mxu0 0.0
        %5683 = vmatprep.subr.mxu0 0.0
        %5684 = vmatpush1.msra.mxu0 0.0
        %5685 = vmatprep.subr.mxu0 0.0
        %5686 = vmatpush1.msra.mxu0 0.0
        %5687 = vmatprep.subr.mxu0 0.0
        %5688 = vmatpush1.msra.mxu0 0.0
        %5689 = vmatprep.subr.mxu0 0.0
        %5690 = vmatpush1.msra.mxu0 0.0
        %5691 = vmatprep.subr.mxu0 0.0
        %5692 = vmatpush1.msra.mxu0 0.0
        %5693 = vmatprep.subr.mxu0 0.0
        %5694 = vmatpush1.msra.mxu0 0.0
        %5695 = vmatprep.subr.mxu0 0.0
        %5696 = vmatpush1.msra.mxu0 0.0
        %5697 = vmatprep.subr.mxu0 0.0
        %5698 = vmatpush1.msra.mxu0 0.0
        %5699 = vmatprep.mubr.f32.mxu0 0.0
        %5700 = vmatmul.mubr.f32.gmra.mrb[0].mxu0 %v5630
        %v5701 = vpop.f32.mrb[0].mxu0
        %v5702 = vadd.f32 %v5627, %v5701
        %v5703 = vpop.f32.mrb[0].mxu0
        %5704 = vmatprep.mubr.f32.mxu0 0.0
        %5705 = vmatmul.mubr.f32.gmra.mrb[0].mxu0 %v5633
        %v5706 = vpop.f32.mrb[0].mxu0
        %v5707 = vadd.f32 %v5627, %v5706
        %v5708 = vpop.f32.mrb[0].mxu0
        %5709 = vdwg.mxu0
        %v5710 = vmul.f32 %v5702, 0.5
        %v5711 = vmul.f32 %v5707, 0.5
        %v5712 = vmul.f32 %v5702, 0.044715
        %v5713 = vmul.f32 %v5707, 0.044715
        %v5714 = vmul.f32 %v5712, %v5702
        %v5715 = vmul.f32 %v5713, %v5707
        %v5716 = vmul.f32 %v5714, %v5702
        %v5717 = vmul.f32 %v5715, %v5707
        %v5718 = vadd.f32 %v5702, %v5716
        %v5719 = vadd.f32 %v5707, %v5717
        %v5720 = vmul.f32 %v5718, 0.7978846
        %v5721 = vmul.f32 %v5719, 0.7978846
        %v5722 = vtanh.pop %v5720
        %v5723 = vtanh.pop %v5721
        %v5724 = vadd.f32 %v5722, 1.0
        %v5725 = vadd.f32 %v5723, 1.0
        %v5726 = vmul.f32 %v5710, %v5724
        %v5727 = vmul.f32 %v5711, %v5725
        %s5728 = scalar_lea.vmem %s19, 64
        %v5729 = vld [vmem:[%s5728] sm:$0xff]
        %v5730 = vld [vmem:[%s5728 + $0x8] sm:$0xff]
        %v5731 = vld [vmem:[%s5728 + $0x10] sm:$0xff]
        %v5732 = vld [vmem:[%s5728 + $0x18] sm:$0xff]
        %v5733 = vld [vmem:[%s5728 + $0x20] sm:$0xff]
        %v5734 = vld [vmem:[%s5728 + $0x28] sm:$0xff]
        %v5735 = vld [vmem:[%s5728 + $0x30] sm:$0xff]
        %v5736 = vld [vmem:[%s5728 + $0x38] sm:$0xff]
        %v5738 = vsel %vm3261, %v5726, 0
        %v5741 = vsel %vm3261, %v5727, 0
        %5743 = vmatprep.subr.mxu0 0.0
        %5744 = vmatpush1.msra.mxu0 %v5729
        %5745 = vmatprep.subr.mxu0 0.0
        %5746 = vmatpush1.msra.mxu0 %v5730
        %5747 = vmatprep.subr.mxu0 0.0
        %5748 = vmatpush1.msra.mxu0 %v5731
        %5749 = vmatprep.subr.mxu0 0.0
        %5750 = vmatpush1.msra.mxu0 %v5732
        %5751 = vmatprep.subr.mxu0 0.0
        %5752 = vmatpush1.msra.mxu0 %v5733
        %5753 = vmatprep.subr.mxu0 0.0
        %5754 = vmatpush1.msra.mxu0 %v5734
        %5755 = vmatprep.subr.mxu0 0.0
        %5756 = vmatpush1.msra.mxu0 %v5735
        %5757 = vmatprep.subr.mxu0 0.0
        %5758 = vmatpush1.msra.mxu0 %v5736
        %5759 = vmatprep.subr.mxu0 0.0
        %5760 = vmatpush1.msra.mxu0 0.0
        %5761 = vmatprep.subr.mxu0 0.0
        %5762 = vmatpush1.msra.mxu0 0.0
        %5763 = vmatprep.subr.mxu0 0.0
        %5764 = vmatpush1.msra.mxu0 0.0
        %5765 = vmatprep.subr.mxu0 0.0
        %5766 = vmatpush1.msra.mxu0 0.0
        %5767 = vmatprep.subr.mxu0 0.0
        %5768 = vmatpush1.msra.mxu0 0.0
        %5769 = vmatprep.subr.mxu0 0.0
        %5770 = vmatpush1.msra.mxu0 0.0
        %5771 = vmatprep.subr.mxu0 0.0
        %5772 = vmatpush1.msra.mxu0 0.0
        %5773 = vmatprep.subr.mxu0 0.0
        %5774 = vmatpush1.msra.mxu0 0.0
        %5775 = vmatprep.subr.mxu0 0.0
        %5776 = vmatpush1.msra.mxu0 0.0
        %5777 = vmatprep.subr.mxu0 0.0
        %5778 = vmatpush1.msra.mxu0 0.0
        %5779 = vmatprep.subr.mxu0 0.0
        %5780 = vmatpush1.msra.mxu0 0.0
        %5781 = vmatprep.subr.mxu0 0.0
        %5782 = vmatpush1.msra.mxu0 0.0
        %5783 = vmatprep.subr.mxu0 0.0
        %5784 = vmatpush1.msra.mxu0 0.0
        %5785 = vmatprep.subr.mxu0 0.0
        %5786 = vmatpush1.msra.mxu0 0.0
        %5787 = vmatprep.subr.mxu0 0.0
        %5788 = vmatpush1.msra.mxu0 0.0
        %5789 = vmatprep.subr.mxu0 0.0
        %5790 = vmatpush1.msra.mxu0 0.0
        %5791 = vmatprep.subr.mxu0 0.0
        %5792 = vmatpush1.msra.mxu0 0.0
        %5793 = vmatprep.subr.mxu0 0.0
        %5794 = vmatpush1.msra.mxu0 0.0
        %5795 = vmatprep.subr.mxu0 0.0
        %5796 = vmatpush1.msra.mxu0 0.0
        %5797 = vmatprep.subr.mxu0 0.0
        %5798 = vmatpush1.msra.mxu0 0.0
        %5799 = vmatprep.subr.mxu0 0.0
        %5800 = vmatpush1.msra.mxu0 0.0
        %5801 = vmatprep.subr.mxu0 0.0
        %5802 = vmatpush1.msra.mxu0 0.0
        %5803 = vmatprep.subr.mxu0 0.0
        %5804 = vmatpush1.msra.mxu0 0.0
        %5805 = vmatprep.subr.mxu0 0.0
        %5806 = vmatpush1.msra.mxu0 0.0
        %5807 = vmatprep.mubr.f32.mxu0 0.0
        %5808 = vmatmul.mubr.f32.gmra.mrb[0].mxu0 %v5738
        %v5809 = vpop.f32.mrb[0].mxu0
        %v5810 = vadd.f32 0.0, %v5809
        %v5811 = vpop.f32.mrb[0].mxu0
        %5812 = vmatprep.mubr.f32.mxu0 0.0
        %5813 = vmatmul.mubr.f32.gmra.mrb[0].mxu0 %v5741
        %v5814 = vpop.f32.mrb[0].mxu0
        %v5815 = vadd.f32 0.0, %v5814
        %v5816 = vpop.f32.mrb[0].mxu0
        %5817 = vdwg.mxu0
        %v5818 = vadd.f32 %v5568, %v5810
        %v5819 = vadd.f32 %v5569, %v5815
        %s5820 = scalar_lea.vmem %s20, 1
        %v5821 = vld [vmem:[%s5820] sm:$0x1]
        %v5823 = vlaneseq
        %v5824 = vshrl.u32 %v5823, 7
        %v5825 = vsub.s32 0, %v5824
        %v5826 = vrot.slane %v5821, %v5825
        %v5828 = vadd.f32 %v5818, %v5826
        %v5829 = vadd.f32 %v5819, %v5826
        %v5830 = vld [vmem:[%s21] sm:$0x1]
        %v5831 = vld [vmem:[%s22] sm:$0x1]
        %v5832 = vsel %vm891, %v5828, 0.0
        %5833 = vadd.xlane.f32.xlu0 %v5832
        %v5834 = vpop.xlane.xlu0 %5833
        %v5835 = vsel %vm891, %v5829, 0.0
        %5836 = vadd.xlane.f32.xlu0 %v5835
        %v5837 = vpop.xlane.xlu0 %5836
        %v5838 = vmul.f32 %v5834, %v898
        %v5839 = vmul.f32 %v5837, %v898
        %v5840 = vsub.f32 %v5828, %v5838
        %v5841 = vsub.f32 %v5829, %v5839
        %v5842 = vmul.f32 %v5840, %v5840
        %v5843 = vmul.f32 %v5841, %v5841
        %v5844 = vsel %vm891, %v5842, 0.0
        %5845 = vadd.xlane.f32.xlu0 %v5844
        %v5846 = vpop.xlane.xlu0 %5845
        %v5847 = vsel %vm891, %v5843, 0.0
        %5848 = vadd.xlane.f32.xlu0 %v5847
        %v5849 = vpop.xlane.xlu0 %5848
        %v5850 = vmul.f32 %v5846, %v898
        %v5851 = vmul.f32 %v5849, %v898
        %v5852 = vadd.f32 %v5850, 1e-05
        %v5853 = vadd.f32 %v5851, 1e-05
        %v5854 = vrsqrt.pop %v5852
        %v5855 = vrsqrt.pop %v5853
        %v5856 = vmul.f32 %v5840, %v5854
        %v5857 = vmul.f32 %v5841, %v5855
        %v5859 = vlaneseq
        %v5860 = vshrl.u32 %v5859, 7
        %v5861 = vsub.s32 0, %v5860
        %v5862 = vrot.slane %v5830, %v5861
        %v5864 = vmul.f32 %v5856, %v5862
        %v5865 = vmul.f32 %v5857, %v5862
        %v5867 = vlaneseq
        %v5868 = vshrl.u32 %v5867, 7
        %v5869 = vsub.s32 0, %v5868
        %v5870 = vrot.slane %v5831, %v5869
        %v5872 = vadd.f32 %v5864, %v5870
        %v5873 = vadd.f32 %v5865, %v5870
        %v5874 = vld [vmem:[%s23] sm:$0xff]
        %v5875 = vld [vmem:[%s23 + $0x8] sm:$0xff]
        %v5876 = vld [vmem:[%s23 + $0x10] sm:$0xff]
        %v5877 = vld [vmem:[%s23 + $0x18] sm:$0xff]
        %v5879 = vsel %vm891, %v5872, 0
        %v5882 = vsel %vm891, %v5873, 0
        %5884 = vmatprep.subr.mxu0 0.0
        %5885 = vmatpush1.msra.mxu0 %v5874
        %5886 = vmatprep.subr.mxu0 0.0
        %5887 = vmatpush1.msra.mxu0 %v5875
        %5888 = vmatprep.subr.mxu0 0.0
        %5889 = vmatpush1.msra.mxu0 %v5876
        %5890 = vmatprep.subr.mxu0 0.0
        %5891 = vmatpush1.msra.mxu0 %v5877
        %5892 = vmatprep.subr.mxu0 0.0
        %5893 = vmatpush1.msra.mxu0 0.0
        %5894 = vmatprep.subr.mxu0 0.0
        %5895 = vmatpush1.msra.mxu0 0.0
        %5896 = vmatprep.subr.mxu0 0.0
        %5897 = vmatpush1.msra.mxu0 0.0
        %5898 = vmatprep.subr.mxu0 0.0
        %5899 = vmatpush1.msra.mxu0 0.0
        %5900 = vmatprep.subr.mxu0 0.0
        %5901 = vmatpush1.msra.mxu0 0.0
        %5902 = vmatprep.subr.mxu0 0.0
        %5903 = vmatpush1.msra.mxu0 0.0
        %5904 = vmatprep.subr.mxu0 0.0
        %5905 = vmatpush1.msra.mxu0 0.0
        %5906 = vmatprep.subr.mxu0 0.0
        %5907 = vmatpush1.msra.mxu0 0.0
        %5908 = vmatprep.subr.mxu0 0.0
        %5909 = vmatpush1.msra.mxu0 0.0
        %5910 = vmatprep.subr.mxu0 0.0
        %5911 = vmatpush1.msra.mxu0 0.0
        %5912 = vmatprep.subr.mxu0 0.0
        %5913 = vmatpush1.msra.mxu0 0.0
        %5914 = vmatprep.subr.mxu0 0.0
        %5915 = vmatpush1.msra.mxu0 0.0
        %5916 = vmatprep.subr.mxu0 0.0
        %5917 = vmatpush1.msra.mxu0 0.0
        %5918 = vmatprep.subr.mxu0 0.0
        %5919 = vmatpush1.msra.mxu0 0.0
        %5920 = vmatprep.subr.mxu0 0.0
        %5921 = vmatpush1.msra.mxu0 0.0
        %5922 = vmatprep.subr.mxu0 0.0
        %5923 = vmatpush1.msra.mxu0 0.0
        %5924 = vmatprep.subr.mxu0 0.0
        %5925 = vmatpush1.msra.mxu0 0.0
        %5926 = vmatprep.subr.mxu0 0.0
        %5927 = vmatpush1.msra.mxu0 0.0
        %5928 = vmatprep.subr.mxu0 0.0
        %5929 = vmatpush1.msra.mxu0 0.0
        %5930 = vmatprep.subr.mxu0 0.0
        %5931 = vmatpush1.msra.mxu0 0.0
        %5932 = vmatprep.subr.mxu0 0.0
        %5933 = vmatpush1.msra.mxu0 0.0
        %5934 = vmatprep.subr.mxu0 0.0
        %5935 = vmatpush1.msra.mxu0 0.0
        %5936 = vmatprep.subr.mxu0 0.0
        %5937 = vmatpush1.msra.mxu0 0.0
        %5938 = vmatprep.subr.mxu0 0.0
        %5939 = vmatpush1.msra.mxu0 0.0
        %5940 = vmatprep.subr.mxu0 0.0
        %5941 = vmatpush1.msra.mxu0 0.0
        %5942 = vmatprep.subr.mxu0 0.0
        %5943 = vmatpush1.msra.mxu0 0.0
        %5944 = vmatprep.subr.mxu0 0.0
        %5945 = vmatpush1.msra.mxu0 0.0
        %5946 = vmatprep.subr.mxu0 0.0
        %5947 = vmatpush1.msra.mxu0 0.0
        %5948 = vmatprep.mubr.f32.mxu0 0.0
        %5949 = vmatmul.mubr.f32.gmra.mrb[0].mxu0 %v5879
        %v5950 = vpop.f32.mrb[0].mxu0
        %v5951 = vadd.f32 0.0, %v5950
        %v5952 = vpop.f32.mrb[0].mxu0
        %5953 = vmatprep.mubr.f32.mxu0 0.0
        %5954 = vmatmul.mubr.f32.gmra.mrb[0].mxu0 %v5882
        %v5955 = vpop.f32.mrb[0].mxu0
        %v5956 = vadd.f32 0.0, %v5955
        %v5957 = vpop.f32.mrb[0].mxu0
        %5958 = vdwg.mxu0
        %5959 = vst [vmem:[%s673] sm:$0xff] %v5951
        %5960 = vst [vmem:[%s673 + $0x8] sm:$0xff] %v5956
        %s5961 = sand.u32 %s518, 1
        %s5962 = scalar_lea.sflag [#allocation7], %s5961
        %s5963 = sand.u32 %s518, 1
        %s5964 = smul.addr %s5963, 16
        %s5965 = scalar_lea.vmem [#allocation6], %s5964
        // Predicated region
        $region109: #{tpu_custom_call.1} parent=107 // pred_check
          %p5966 = pneg %p528
        $region110: #{tpu_custom_call.1} parent=107 // pred_check_branch
          %5968 = sbr.rel (%p5966) target = $region112
        $region111: #{tpu_custom_call.1} parent=107 // pred_region
          %s5970 = ssub.s32 256, 256
          %5971 = vsyncadd %s5962, %s5970
          %s5972 = smul.addr %s48, 2
          %s5973 = smul.addr %s5972, 128
          %s5974 = scalar_lea.hbm %s24, %s5973
          %s5975 = sshll.u32 %s5965, 4
          %s5976 = int_to_ptr.vmem [resolvable:$true] %s5975
          %5981 = dma.vmem_to_hbm [thread:$0]  %s5976, 256, %s5974, %s5962, 128, 128, 8
        $region112: #{tpu_custom_call.1} parent=107 // pred_fallthru
          _
      $region108: #{tpu_custom_call.1} parent=5 // pred_fallthru
        _
      %p5982 = scmp.le.s32.totalorder 2, %s43
      // Predicated region
      $region113: #{tpu_custom_call.1} parent=5 // pred_check
        %p5983 = pneg %p5982
      $region114: #{tpu_custom_call.1} parent=5 // pred_check_branch
        %5985 = sbr.rel (%p5983) target = $region116
      $region115: #{tpu_custom_call.1} parent=5 // pred_region
        %s5986 = ssub.s32 %s43, 2
        // Predicated region
        $region117: #{tpu_custom_call.1} parent=115 // pred_check
          %p5987 = pneg %p534
        $region118: #{tpu_custom_call.1} parent=115 // pred_check_branch
          %5989 = sbr.rel (%p5987) target = $region120
        $region119: #{tpu_custom_call.1} parent=115 // pred_region
          %s5990 = sand.u32 %s519, 1
          %s5991 = scalar_lea.sflag [#allocation7], %s5990
          %s5992 = sand.u32 %s519, 1
          %s5993 = smul.addr %s5992, 16
          %s5994 = scalar_lea.vmem [#allocation6], %s5993
          %5995 = dma.done %s5991, 256
        $region120: #{tpu_custom_call.1} parent=115 // pred_fallthru
          _
      $region116: #{tpu_custom_call.1} parent=5 // pred_fallthru
        _
    $region6: #{tpu_custom_call.1} parent=1 // loop_footer
      %s47 = sadd.s32 1, %s43
    $region7: #{tpu_custom_call.1} parent=1 // loop_footer_branch
      %42 = sbr.rel target = $region3
    $region8: #{tpu_custom_call.1} parent=1 // loop_exit
      _
    %5996 = vsyncpa [#allocation7], 1
    %s5997 = scalar_lea.sflag [#allocation7], 1
    %5998 = vsyncpa %s5997, 1

</llo_original>
